<compile_context>
chip_gen: v7x
topology: tpu7x:2x2x1
jax: 0.10.0
libtpu: 0.0.40
codegen_flags: <defaults>
</compile_context>

<pallas_src>
import functools
import itertools

import numpy as np
import jax
import jax.numpy as jnp
from jax.experimental import pallas as pl
from jax.experimental.pallas import tpu as pltpu

# ------------------------- configuration (small demo shapes) -------------------------
B = 2
C1 = 32                     # channels (c1); must be divisible by NUM_HEADS
H = W = 14                  # spatial resolution (multiple of the 7x7 window here)
CM = 128                    # FFN hidden channels (PyTorch default cm=2048; small lane-full demo)
NUM_HEADS = 4               # default kernels=[5,5,5,5] supports 4 heads
KEY_DIM = 16
HEAD_D = C1 // NUM_HEADS
QKV_DIM = 2 * KEY_DIM + HEAD_D
WIN = 7                     # window_resolution
NW = WIN * WIN
KSIZE = 5                   # dw-conv kernel on q (kernels = [5] * num_heads)
LN_EPS = 1e-6               # LayerNorm eps in the reference module
BN_EPS = 1e-5               # BatchNorm2d eps


def _pick_matmul_dtype():
    # bf16 MXU operands (f32 accumulation) on v6e/v7x; keep f32 on v5e & older/unknown chips.
    try:
        kind = jax.devices()[0].device_kind.lower()
    except Exception:
        return jnp.float32
    return jnp.bfloat16 if ("v6" in kind or "v7" in kind) else jnp.float32


# =======================================================================================
# Fused per-window kernel
# =======================================================================================
def _layer_kernel(x_ref, qkvw_ref, qkvb_ref, dww_ref, dwb_ref, mask_ref, ab_ref,
                  projw_ref, projb_ref, fc1w_ref, fc1b_ref, fc2w_ref, fc2b_ref,
                  norm_ref, o_ref, *, num_heads, key_dim, head_d, win, mm_dtype):
    nw = win * win
    scale = key_dim ** -0.5
    x = x_ref[0]                                  # (Nw, C) f32, channels-last tokens
    masks = mask_ref[...]                         # (K*K, Nw, 1) dw-conv boundary masks
    norm = norm_ref[...]                          # (4, C): n1_w, n1_b, n2_w, n2_b

    def layer_norm(t, wrow, brow):                # channels_first LayerNorm == per-token over C
        mu = jnp.mean(t, axis=-1, keepdims=True)
        tc = t - mu
        var = jnp.mean(tc * tc, axis=-1, keepdims=True)
        return tc * jax.lax.rsqrt(var + LN_EPS) * wrow + brow

    # ---------------- CascadedGroupAttention over one win x win window ----------------
    pad = KSIZE // 2
    head_outs = []
    feat = x[:, :head_d]
    for i in range(num_heads):
        if i > 0:
            feat = feat + x[:, i * head_d:(i + 1) * head_d]    # cascade + next input chunk
        qkv = jnp.dot(feat, qkvw_ref[i], preferred_element_type=jnp.float32) + qkvb_ref[i]
        q = qkv[:, :key_dim]
        k = qkv[:, key_dim:2 * key_dim]
        v = qkv[:, 2 * key_dim:]

        # depthwise KSIZExKSIZE conv on q (zero padding); tokens are row-major t = y*win + x.
        # circular shift via slice+concat along the sublane axis + boundary mask: no padded
        # scratch, no misaligned 2-D window reads, no per-step zero fill.
        dwi = dww_ref[i]                                        # (K*K, key_dim)
        acc = jnp.zeros_like(q)
        for ky in range(KSIZE):
            for kx in range(KSIZE):
                tap = ky * KSIZE + kx
                shift = ((ky - pad) * win + (kx - pad)) % nw
                if shift == 0:
                    rolled = q
                else:
                    rolled = jnp.concatenate([q[shift:, :], q[:shift, :]], axis=0)
                acc = acc + (rolled * masks[tap]) * dwi[tap:tap + 1, :]
        qc = acc + dwb_ref[i]

        # attention: (q^T k) * scale + bias, softmax over keys (tiny matmuls kept in f32)
        s = jax.lax.dot_general(qc, k, (((1,), (1,)), ((), ())),
                                preferred_element_type=jnp.float32)
        s = s * scale + ab_ref[i]
        s = s - jnp.max(s, axis=-1, keepdims=True)
        e = jnp.exp(s)
        p = e * pl.reciprocal(jnp.sum(e, axis=-1, keepdims=True), approx=True)
        feat = jnp.dot(p, v, preferred_element_type=jnp.float32)          # (Nw, head_d)
        head_outs.append(feat)

    cat = jnp.maximum(jnp.concatenate(head_outs, axis=-1), 0.0)           # proj ReLU
    attn_out = jnp.dot(cat.astype(mm_dtype), projw_ref[...],
                       preferred_element_type=jnp.float32) + projb_ref[...]

    # -------- residual + norm1 + 1x1-conv FFN (fc1 -> GELU -> fc2) + residual + norm2 --------
    h = layer_norm(x + attn_out, norm[0:1, :], norm[1:2, :])
    hid = jnp.dot(h.astype(mm_dtype), fc1w_ref[...],
                  preferred_element_type=jnp.float32) + fc1b_ref[...]
    # TODO(synk): PyTorch nn.GELU defaults to exact erf; tanh approximation used here.
    hid = jax.nn.gelu(hid, approximate=True)
    ffn = jnp.dot(hid.astype(mm_dtype), fc2w_ref[...],
                  preferred_element_type=jnp.float32) + fc2b_ref[...]
    out = layer_norm(h + ffn, norm[2:3, :], norm[3:4, :])
    o_ref[0] = out.astype(o_ref.dtype)


def _const_spec(arr):
    n = arr.ndim
    return pl.BlockSpec(arr.shape, lambda wi, _n=n: (0,) * _n)   # grid-invariant: DMA'd once


def fused_layer_windows(xw, prep, *, mm_dtype):
    bw, nw, c = xw.shape
    consts = [prep['qkv_w'], prep['qkv_b'], prep['dw_w'], prep['dw_b'], prep['masks'],
              prep['ab'], prep['proj_w'], prep['proj_b'], prep['fc1_w'], prep['fc1_b'],
              prep['fc2_w'], prep['fc2_b'], prep['norm_wb']]
    kern = functools.partial(_layer_kernel, num_heads=NUM_HEADS, key_dim=KEY_DIM,
                             head_d=HEAD_D, win=WIN, mm_dtype=mm_dtype)
    return pl.pallas_call(
        kern,
        grid=(bw,),
        in_specs=[pl.BlockSpec((1, nw, c), lambda wi: (wi, 0, 0))]
                 + [_const_spec(a) for a in consts],
        out_specs=pl.BlockSpec((1, nw, c), lambda wi: (wi, 0, 0)),
        out_shape=jax.ShapeDtypeStruct((bw, nw, c), jnp.float32),
        compiler_params=pltpu.CompilerParams(dimension_semantics=("parallel",)),
    )(xw, *consts)


# =======================================================================================
# Module glue: window partition / reverse, BN folding, parameter packing
# =======================================================================================
def transformer_encoder_layer(src, prep, *, mm_dtype):
    b, c, h, w = src.shape
    x = jnp.transpose(src, (0, 2, 3, 1))                          # NCHW -> NHWC
    pad_b = (-h) % WIN
    pad_r = (-w) % WIN
    if pad_b or pad_r:                                            # LocalWindowAttention padding
        x = jnp.pad(x, ((0, 0), (0, pad_b), (0, pad_r), (0, 0)))
    ph, pw = h + pad_b, w + pad_r
    nh, nwx = ph // WIN, pw // WIN
    xw = (x.reshape(b, nh, WIN, nwx, WIN, c).transpose(0, 1, 3, 2, 4, 5)
           .reshape(b * nh * nwx, WIN * WIN, c))
    ow = fused_layer_windows(xw, prep, mm_dtype=mm_dtype)          # whole layer, fused
    out = (ow.reshape(b, nh, nwx, WIN, WIN, c).transpose(0, 1, 3, 2, 4, 5)
             .reshape(b, ph, pw, c))[:, :h, :w, :]
    return jnp.transpose(out, (0, 3, 1, 2))


def _attention_bias_index(res):
    # EfficientViT CascadedGroupAttention bias index table (|dy|,|dx| offset classes).
    points = list(itertools.product(range(res), range(res)))
    offsets, idxs = {}, []
    for p1 in points:
        for p2 in points:
            off = (abs(p1[0] - p2[0]), abs(p1[1] - p2[1]))
            if off not in offsets:
                offsets[off] = len(offsets)
            idxs.append(offsets[off])
    return np.asarray(idxs, np.int32).reshape(len(points), len(points))


def _dwconv_boundary_masks(win, ksize):
    # masks[tap, t] == 1 iff tap (dy,dx) applied at token t stays inside the win x win window.
    pad = ksize // 2
    nw = win * win
    m = np.zeros((ksize * ksize, nw, 1), np.float32)
    for ky in range(ksize):
        for kx in range(ksize):
            dy, dx = ky - pad, kx - pad
            for t in range(nw):
                y, x = divmod(t, win)
                if 0 <= y + dy < win and 0 <= x + dx < win:
                    m[ky * ksize + kx, t, 0] = 1.0
    return m


def _fold_conv_bn(conv_w, bnp, eps=BN_EPS):
    # Conv2d_BN.switch_to_deploy: fold eval-mode BatchNorm into the (bias-free) conv.
    s = bnp['w'] / jnp.sqrt(bnp['var'] + eps)
    return conv_w * s[:, None, None, None], bnp['b'] - bnp['mean'] * s


def prepare_params(p, mm_dtype):
    qkv_w, qkv_b, dw_w, dw_b = [], [], [], []
    for i in range(NUM_HEADS):
        w, b = _fold_conv_bn(p['qkv'][i]['conv'], p['qkv'][i]['bn'])
        qkv_w.append(w[:, :, 0, 0].T)                                   # (head_d, qkv_dim)
        qkv_b.append(b[None, :])
        w, b = _fold_conv_bn(p['dw'][i]['conv'], p['dw'][i]['bn'])
        dw_w.append(w[:, 0].reshape(KEY_DIM, KSIZE * KSIZE).T)          # (K*K, key_dim)
        dw_b.append(b[None, :])
    pw, pb = _fold_conv_bn(p['proj']['conv'], p['proj']['bn'])
    idx = _attention_bias_index(WIN)
    ab = p['attention_biases'][:, idx.reshape(-1)].reshape(NUM_HEADS, NW, NW)
    return dict(
        qkv_w=jnp.stack(qkv_w), qkv_b=jnp.stack(qkv_b),
        dw_w=jnp.stack(dw_w), dw_b=jnp.stack(dw_b),
        masks=jnp.asarray(_dwconv_boundary_masks(WIN, KSIZE)),
        ab=ab,
        proj_w=pw[:, :, 0, 0].T.astype(mm_dtype), proj_b=pb[None, :],
        fc1_w=p['fc1_w'][:, :, 0, 0].T.astype(mm_dtype), fc1_b=p['fc1_b'][None, :],
        fc2_w=p['fc2_w'][:, :, 0, 0].T.astype(mm_dtype), fc2_b=p['fc2_b'][None, :],
        norm_wb=jnp.stack([p['norm1_w'], p['norm1_b'], p['norm2_w'], p['norm2_b']]),
    )


def init_params(key):
    ks = iter(jax.random.split(key, 64))

    def rnd(shape, scale=0.1):
        return scale * jax.random.normal(next(ks), shape, jnp.float32)

    def bn(n):   # BatchNorm2d affine + running statistics (eval mode)
        return dict(w=1.0 + rnd((n,)), b=rnd((n,)),
                    mean=rnd((n,)), var=1.0 + jnp.abs(rnd((n,))))

    return dict(
        qkv=[dict(conv=rnd((QKV_DIM, HEAD_D, 1, 1), 0.3), bn=bn(QKV_DIM))
             for _ in range(NUM_HEADS)],
        dw=[dict(conv=rnd((KEY_DIM, 1, KSIZE, KSIZE), 0.3), bn=bn(KEY_DIM))
            for _ in range(NUM_HEADS)],
        # NOTE: PyTorch inits the proj BN weight to 0 (bn_weight_init=0), which zeroes the
        #       attention branch at init; random values are used so the full path is exercised.
        proj=dict(conv=rnd((C1, C1, 1, 1), 0.2), bn=bn(C1)),
        attention_biases=rnd((NUM_HEADS, WIN * WIN), 0.5),
        fc1_w=rnd((CM, C1, 1, 1), 0.2), fc1_b=rnd((CM,), 0.1),
        fc2_w=rnd((C1, CM, 1, 1), 0.2), fc2_b=rnd((C1,), 0.1),
        norm1_w=1.0 + rnd((C1,)), norm1_b=rnd((C1,)),
        norm2_w=1.0 + rnd((C1,)), norm2_b=rnd((C1,)),
    )


if __name__ == "__main__":
    key = jax.random.PRNGKey(0)
    pkey, xkey = jax.random.split(key)
    mm_dtype = _pick_matmul_dtype()
    params = init_params(pkey)
    prep = prepare_params(params, mm_dtype)
    src = jax.random.normal(xkey, (B, C1, H, W), jnp.float32)      # NCHW, like PyTorch
    fn = jax.jit(functools.partial(transformer_encoder_layer, mm_dtype=mm_dtype))
    out = jax.block_until_ready(fn(src, prep))
    assert out.shape == (B, C1, H, W)
    assert bool(jnp.all(jnp.isfinite(out)))
    print("KERNEL_OK")
</pallas_src>

<mosaic_0001>
module attributes {stable_mosaic.version = 11 : i64} {
  func.func @_layer_kernel(%arg0: i32, %arg1: memref<1x49x32xf32, #tpu.memory_space<vmem>>, %arg2: memref<4x8x40xf32, #tpu.memory_space<vmem>>, %arg3: memref<4x1x40xf32, #tpu.memory_space<vmem>>, %arg4: memref<4x25x16xf32, #tpu.memory_space<vmem>>, %arg5: memref<4x1x16xf32, #tpu.memory_space<vmem>>, %arg6: memref<25x49x1xf32, #tpu.memory_space<vmem>>, %arg7: memref<4x49x49xf32, #tpu.memory_space<vmem>>, %arg8: memref<32x32xf32, #tpu.memory_space<vmem>>, %arg9: memref<1x32xf32, #tpu.memory_space<vmem>>, %arg10: memref<32x128xf32, #tpu.memory_space<vmem>>, %arg11: memref<1x128xf32, #tpu.memory_space<vmem>>, %arg12: memref<128x32xf32, #tpu.memory_space<vmem>>, %arg13: memref<1x32xf32, #tpu.memory_space<vmem>>, %arg14: memref<4x32xf32, #tpu.memory_space<vmem>>, %arg15: memref<1x49x32xf32, #tpu.memory_space<vmem>>) attributes {dimension_semantics = [#tpu.dimension_semantics<parallel>], iteration_bounds = array<i64: 8>, scalar_prefetch = 0 : i64, scratch_operands = 0 : i64, tpu.core_type = #tpu.core_type<tc>, window_params = [{transform_indices = @transform_0, window_bounds = array<i64: 1, 49, 32>}, {pipeline_mode = #tpu.pipeline_mode<synchronous>, transform_indices = @transform_1, window_bounds = array<i64: 4, 8, 40>}, {pipeline_mode = #tpu.pipeline_mode<synchronous>, transform_indices = @transform_2, window_bounds = array<i64: 4, 1, 40>}, {pipeline_mode = #tpu.pipeline_mode<synchronous>, transform_indices = @transform_3, window_bounds = array<i64: 4, 25, 16>}, {pipeline_mode = #tpu.pipeline_mode<synchronous>, transform_indices = @transform_4, window_bounds = array<i64: 4, 1, 16>}, {pipeline_mode = #tpu.pipeline_mode<synchronous>, transform_indices = @transform_5, window_bounds = array<i64: 25, 49, 1>}, {pipeline_mode = #tpu.pipeline_mode<synchronous>, transform_indices = @transform_6, window_bounds = array<i64: 4, 49, 49>}, {pipeline_mode = #tpu.pipeline_mode<synchronous>, transform_indices = @transform_7, window_bounds = array<i64: 32, 32>}, {pipeline_mode = #tpu.pipeline_mode<synchronous>, transform_indices = @transform_8, window_bounds = array<i64: 1, 32>}, {pipeline_mode = #tpu.pipeline_mode<synchronous>, transform_indices = @transform_9, window_bounds = array<i64: 32, 128>}, {pipeline_mode = #tpu.pipeline_mode<synchronous>, transform_indices = @transform_10, window_bounds = array<i64: 1, 128>}, {pipeline_mode = #tpu.pipeline_mode<synchronous>, transform_indices = @transform_11, window_bounds = array<i64: 128, 32>}, {pipeline_mode = #tpu.pipeline_mode<synchronous>, transform_indices = @transform_12, window_bounds = array<i64: 1, 32>}, {pipeline_mode = #tpu.pipeline_mode<synchronous>, transform_indices = @transform_13, window_bounds = array<i64: 4, 32>}, {transform_indices = @transform_14, window_bounds = array<i64: 1, 49, 32>}]} {
    %c0 = arith.constant 0 : index
    %c0_0 = arith.constant 0 : index
    %c0_1 = arith.constant 0 : index
    %0 = vector.load %arg1[%c0, %c0_0, %c0_1] : memref<1x49x32xf32, #tpu.memory_space<vmem>>, vector<1x49x32xf32>
    %1 = vector.shape_cast %0 : vector<1x49x32xf32> to vector<49x32xf32>
    %c0_2 = arith.constant 0 : index
    %c0_3 = arith.constant 0 : index
    %c0_4 = arith.constant 0 : index
    %2 = vector.load %arg6[%c0_2, %c0_3, %c0_4] : memref<25x49x1xf32, #tpu.memory_space<vmem>>, vector<25x49x1xf32>
    %c0_5 = arith.constant 0 : index
    %c0_6 = arith.constant 0 : index
    %3 = vector.load %arg14[%c0_5, %c0_6] : memref<4x32xf32, #tpu.memory_space<vmem>>, vector<4x32xf32>
    %4 = vector.extract_strided_slice %1 {offsets = [0, 0], sizes = [49, 8], strides = [1, 1]} : vector<49x32xf32> to vector<49x8xf32>
    %c0_7 = arith.constant 0 : index
    %c0_8 = arith.constant 0 : index
    %c0_9 = arith.constant 0 : index
    %5 = vector.load %arg2[%c0_7, %c0_8, %c0_9] : memref<4x8x40xf32, #tpu.memory_space<vmem>>, vector<1x8x40xf32>
    %6 = vector.shape_cast %5 : vector<1x8x40xf32> to vector<8x40xf32>
    %cst = arith.constant dense<0.000000e+00> : vector<49x40xf32>
    %7 = tpu.matmul %4, %6, %cst {dimension_numbers = #tpu.dot_dimension_numbers<[1], [0], [0], [1], [0, 0, 1, 1], [], []>} : vector<49x8xf32>, vector<8x40xf32>, vector<49x40xf32> -> vector<49x40xf32>
    %c0_10 = arith.constant 0 : index
    %c0_11 = arith.constant 0 : index
    %c0_12 = arith.constant 0 : index
    %8 = vector.load %arg3[%c0_10, %c0_11, %c0_12] : memref<4x1x40xf32, #tpu.memory_space<vmem>>, vector<1x1x40xf32>
    %9 = vector.shape_cast %8 : vector<1x1x40xf32> to vector<1x40xf32>
    %10 = vector.broadcast %9 : vector<1x40xf32> to vector<49x40xf32>
    %11 = arith.addf %7, %10 : vector<49x40xf32>
    %12 = vector.extract_strided_slice %11 {offsets = [0, 0], sizes = [49, 16], strides = [1, 1]} : vector<49x40xf32> to vector<49x16xf32>
    %13 = vector.extract_strided_slice %11 {offsets = [0, 16], sizes = [49, 16], strides = [1, 1]} : vector<49x40xf32> to vector<49x16xf32>
    %14 = vector.extract_strided_slice %11 {offsets = [0, 32], sizes = [49, 8], strides = [1, 1]} : vector<49x40xf32> to vector<49x8xf32>
    %c0_13 = arith.constant 0 : index
    %c0_14 = arith.constant 0 : index
    %c0_15 = arith.constant 0 : index
    %15 = vector.load %arg4[%c0_13, %c0_14, %c0_15] : memref<4x25x16xf32, #tpu.memory_space<vmem>>, vector<1x25x16xf32>
    %16 = vector.shape_cast %15 : vector<1x25x16xf32> to vector<25x16xf32>
    %cst_16 = arith.constant 0.000000e+00 : f32
    %17 = vector.broadcast %cst_16 : f32 to vector<49x16xf32>
    %18 = vector.extract_strided_slice %12 {offsets = [33, 0], sizes = [16, 16], strides = [1, 1]} : vector<49x16xf32> to vector<16x16xf32>
    %19 = vector.extract_strided_slice %12 {offsets = [0, 0], sizes = [33, 16], strides = [1, 1]} : vector<49x16xf32> to vector<33x16xf32>
    %20 = tpu.concatenate %18, %19 in 0 : vector<16x16xf32>, vector<33x16xf32> -> vector<49x16xf32>
    %21 = vector.extract_strided_slice %2 {offsets = [0, 0, 0], sizes = [1, 49, 1], strides = [1, 1, 1]} : vector<25x49x1xf32> to vector<1x49x1xf32>
    %22 = vector.shape_cast %21 : vector<1x49x1xf32> to vector<49x1xf32>
    %23 = vector.broadcast %22 : vector<49x1xf32> to vector<49x16xf32>
    %24 = arith.mulf %20, %23 : vector<49x16xf32>
    %25 = vector.extract_strided_slice %16 {offsets = [0, 0], sizes = [1, 16], strides = [1, 1]} : vector<25x16xf32> to vector<1x16xf32>
    %26 = vector.broadcast %25 : vector<1x16xf32> to vector<49x16xf32>
    %27 = arith.mulf %24, %26 : vector<49x16xf32>
    %28 = arith.addf %17, %27 : vector<49x16xf32>
    %29 = vector.extract_strided_slice %12 {offsets = [34, 0], sizes = [15, 16], strides = [1, 1]} : vector<49x16xf32> to vector<15x16xf32>
    %30 = vector.extract_strided_slice %12 {offsets = [0, 0], sizes = [34, 16], strides = [1, 1]} : vector<49x16xf32> to vector<34x16xf32>
    %31 = tpu.concatenate %29, %30 in 0 : vector<15x16xf32>, vector<34x16xf32> -> vector<49x16xf32>
    %32 = vector.extract_strided_slice %2 {offsets = [1, 0, 0], sizes = [1, 49, 1], strides = [1, 1, 1]} : vector<25x49x1xf32> to vector<1x49x1xf32>
    %33 = vector.shape_cast %32 : vector<1x49x1xf32> to vector<49x1xf32>
    %34 = vector.broadcast %33 : vector<49x1xf32> to vector<49x16xf32>
    %35 = arith.mulf %31, %34 : vector<49x16xf32>
    %36 = vector.extract_strided_slice %16 {offsets = [1, 0], sizes = [1, 16], strides = [1, 1]} : vector<25x16xf32> to vector<1x16xf32>
    %37 = vector.broadcast %36 : vector<1x16xf32> to vector<49x16xf32>
    %38 = arith.mulf %35, %37 : vector<49x16xf32>
    %39 = arith.addf %28, %38 : vector<49x16xf32>
    %40 = vector.extract_strided_slice %12 {offsets = [35, 0], sizes = [14, 16], strides = [1, 1]} : vector<49x16xf32> to vector<14x16xf32>
    %41 = vector.extract_strided_slice %12 {offsets = [0, 0], sizes = [35, 16], strides = [1, 1]} : vector<49x16xf32> to vector<35x16xf32>
    %42 = tpu.concatenate %40, %41 in 0 : vector<14x16xf32>, vector<35x16xf32> -> vector<49x16xf32>
    %43 = vector.extract_strided_slice %2 {offsets = [2, 0, 0], sizes = [1, 49, 1], strides = [1, 1, 1]} : vector<25x49x1xf32> to vector<1x49x1xf32>
    %44 = vector.shape_cast %43 : vector<1x49x1xf32> to vector<49x1xf32>
    %45 = vector.broadcast %44 : vector<49x1xf32> to vector<49x16xf32>
    %46 = arith.mulf %42, %45 : vector<49x16xf32>
    %47 = vector.extract_strided_slice %16 {offsets = [2, 0], sizes = [1, 16], strides = [1, 1]} : vector<25x16xf32> to vector<1x16xf32>
    %48 = vector.broadcast %47 : vector<1x16xf32> to vector<49x16xf32>
    %49 = arith.mulf %46, %48 : vector<49x16xf32>
    %50 = arith.addf %39, %49 : vector<49x16xf32>
    %51 = vector.extract_strided_slice %12 {offsets = [36, 0], sizes = [13, 16], strides = [1, 1]} : vector<49x16xf32> to vector<13x16xf32>
    %52 = vector.extract_strided_slice %12 {offsets = [0, 0], sizes = [36, 16], strides = [1, 1]} : vector<49x16xf32> to vector<36x16xf32>
    %53 = tpu.concatenate %51, %52 in 0 : vector<13x16xf32>, vector<36x16xf32> -> vector<49x16xf32>
    %54 = vector.extract_strided_slice %2 {offsets = [3, 0, 0], sizes = [1, 49, 1], strides = [1, 1, 1]} : vector<25x49x1xf32> to vector<1x49x1xf32>
    %55 = vector.shape_cast %54 : vector<1x49x1xf32> to vector<49x1xf32>
    %56 = vector.broadcast %55 : vector<49x1xf32> to vector<49x16xf32>
    %57 = arith.mulf %53, %56 : vector<49x16xf32>
    %58 = vector.extract_strided_slice %16 {offsets = [3, 0], sizes = [1, 16], strides = [1, 1]} : vector<25x16xf32> to vector<1x16xf32>
    %59 = vector.broadcast %58 : vector<1x16xf32> to vector<49x16xf32>
    %60 = arith.mulf %57, %59 : vector<49x16xf32>
    %61 = arith.addf %50, %60 : vector<49x16xf32>
    %62 = vector.extract_strided_slice %12 {offsets = [37, 0], sizes = [12, 16], strides = [1, 1]} : vector<49x16xf32> to vector<12x16xf32>
    %63 = vector.extract_strided_slice %12 {offsets = [0, 0], sizes = [37, 16], strides = [1, 1]} : vector<49x16xf32> to vector<37x16xf32>
    %64 = tpu.concatenate %62, %63 in 0 : vector<12x16xf32>, vector<37x16xf32> -> vector<49x16xf32>
    %65 = vector.extract_strided_slice %2 {offsets = [4, 0, 0], sizes = [1, 49, 1], strides = [1, 1, 1]} : vector<25x49x1xf32> to vector<1x49x1xf32>
    %66 = vector.shape_cast %65 : vector<1x49x1xf32> to vector<49x1xf32>
    %67 = vector.broadcast %66 : vector<49x1xf32> to vector<49x16xf32>
    %68 = arith.mulf %64, %67 : vector<49x16xf32>
    %69 = vector.extract_strided_slice %16 {offsets = [4, 0], sizes = [1, 16], strides = [1, 1]} : vector<25x16xf32> to vector<1x16xf32>
    %70 = vector.broadcast %69 : vector<1x16xf32> to vector<49x16xf32>
    %71 = arith.mulf %68, %70 : vector<49x16xf32>
    %72 = arith.addf %61, %71 : vector<49x16xf32>
    %73 = vector.extract_strided_slice %12 {offsets = [40, 0], sizes = [9, 16], strides = [1, 1]} : vector<49x16xf32> to vector<9x16xf32>
    %74 = vector.extract_strided_slice %12 {offsets = [0, 0], sizes = [40, 16], strides = [1, 1]} : vector<49x16xf32> to vector<40x16xf32>
    %75 = tpu.concatenate %73, %74 in 0 : vector<9x16xf32>, vector<40x16xf32> -> vector<49x16xf32>
    %76 = vector.extract_strided_slice %2 {offsets = [5, 0, 0], sizes = [1, 49, 1], strides = [1, 1, 1]} : vector<25x49x1xf32> to vector<1x49x1xf32>
    %77 = vector.shape_cast %76 : vector<1x49x1xf32> to vector<49x1xf32>
    %78 = vector.broadcast %77 : vector<49x1xf32> to vector<49x16xf32>
    %79 = arith.mulf %75, %78 : vector<49x16xf32>
    %80 = vector.extract_strided_slice %16 {offsets = [5, 0], sizes = [1, 16], strides = [1, 1]} : vector<25x16xf32> to vector<1x16xf32>
    %81 = vector.broadcast %80 : vector<1x16xf32> to vector<49x16xf32>
    %82 = arith.mulf %79, %81 : vector<49x16xf32>
    %83 = arith.addf %72, %82 : vector<49x16xf32>
    %84 = vector.extract_strided_slice %12 {offsets = [41, 0], sizes = [8, 16], strides = [1, 1]} : vector<49x16xf32> to vector<8x16xf32>
    %85 = vector.extract_strided_slice %12 {offsets = [0, 0], sizes = [41, 16], strides = [1, 1]} : vector<49x16xf32> to vector<41x16xf32>
    %86 = tpu.concatenate %84, %85 in 0 : vector<8x16xf32>, vector<41x16xf32> -> vector<49x16xf32>
    %87 = vector.extract_strided_slice %2 {offsets = [6, 0, 0], sizes = [1, 49, 1], strides = [1, 1, 1]} : vector<25x49x1xf32> to vector<1x49x1xf32>
    %88 = vector.shape_cast %87 : vector<1x49x1xf32> to vector<49x1xf32>
    %89 = vector.broadcast %88 : vector<49x1xf32> to vector<49x16xf32>
    %90 = arith.mulf %86, %89 : vector<49x16xf32>
    %91 = vector.extract_strided_slice %16 {offsets = [6, 0], sizes = [1, 16], strides = [1, 1]} : vector<25x16xf32> to vector<1x16xf32>
    %92 = vector.broadcast %91 : vector<1x16xf32> to vector<49x16xf32>
    %93 = arith.mulf %90, %92 : vector<49x16xf32>
    %94 = arith.addf %83, %93 : vector<49x16xf32>
    %95 = vector.extract_strided_slice %12 {offsets = [42, 0], sizes = [7, 16], strides = [1, 1]} : vector<49x16xf32> to vector<7x16xf32>
    %96 = vector.extract_strided_slice %12 {offsets = [0, 0], sizes = [42, 16], strides = [1, 1]} : vector<49x16xf32> to vector<42x16xf32>
    %97 = tpu.concatenate %95, %96 in 0 : vector<7x16xf32>, vector<42x16xf32> -> vector<49x16xf32>
    %98 = vector.extract_strided_slice %2 {offsets = [7, 0, 0], sizes = [1, 49, 1], strides = [1, 1, 1]} : vector<25x49x1xf32> to vector<1x49x1xf32>
    %99 = vector.shape_cast %98 : vector<1x49x1xf32> to vector<49x1xf32>
    %100 = vector.broadcast %99 : vector<49x1xf32> to vector<49x16xf32>
    %101 = arith.mulf %97, %100 : vector<49x16xf32>
    %102 = vector.extract_strided_slice %16 {offsets = [7, 0], sizes = [1, 16], strides = [1, 1]} : vector<25x16xf32> to vector<1x16xf32>
    %103 = vector.broadcast %102 : vector<1x16xf32> to vector<49x16xf32>
    %104 = arith.mulf %101, %103 : vector<49x16xf32>
    %105 = arith.addf %94, %104 : vector<49x16xf32>
    %106 = vector.extract_strided_slice %12 {offsets = [43, 0], sizes = [6, 16], strides = [1, 1]} : vector<49x16xf32> to vector<6x16xf32>
    %107 = vector.extract_strided_slice %12 {offsets = [0, 0], sizes = [43, 16], strides = [1, 1]} : vector<49x16xf32> to vector<43x16xf32>
    %108 = tpu.concatenate %106, %107 in 0 : vector<6x16xf32>, vector<43x16xf32> -> vector<49x16xf32>
    %109 = vector.extract_strided_slice %2 {offsets = [8, 0, 0], sizes = [1, 49, 1], strides = [1, 1, 1]} : vector<25x49x1xf32> to vector<1x49x1xf32>
    %110 = vector.shape_cast %109 : vector<1x49x1xf32> to vector<49x1xf32>
    %111 = vector.broadcast %110 : vector<49x1xf32> to vector<49x16xf32>
    %112 = arith.mulf %108, %111 : vector<49x16xf32>
    %113 = vector.extract_strided_slice %16 {offsets = [8, 0], sizes = [1, 16], strides = [1, 1]} : vector<25x16xf32> to vector<1x16xf32>
    %114 = vector.broadcast %113 : vector<1x16xf32> to vector<49x16xf32>
    %115 = arith.mulf %112, %114 : vector<49x16xf32>
    %116 = arith.addf %105, %115 : vector<49x16xf32>
    %117 = vector.extract_strided_slice %12 {offsets = [44, 0], sizes = [5, 16], strides = [1, 1]} : vector<49x16xf32> to vector<5x16xf32>
    %118 = vector.extract_strided_slice %12 {offsets = [0, 0], sizes = [44, 16], strides = [1, 1]} : vector<49x16xf32> to vector<44x16xf32>
    %119 = tpu.concatenate %117, %118 in 0 : vector<5x16xf32>, vector<44x16xf32> -> vector<49x16xf32>
    %120 = vector.extract_strided_slice %2 {offsets = [9, 0, 0], sizes = [1, 49, 1], strides = [1, 1, 1]} : vector<25x49x1xf32> to vector<1x49x1xf32>
    %121 = vector.shape_cast %120 : vector<1x49x1xf32> to vector<49x1xf32>
    %122 = vector.broadcast %121 : vector<49x1xf32> to vector<49x16xf32>
    %123 = arith.mulf %119, %122 : vector<49x16xf32>
    %124 = vector.extract_strided_slice %16 {offsets = [9, 0], sizes = [1, 16], strides = [1, 1]} : vector<25x16xf32> to vector<1x16xf32>
    %125 = vector.broadcast %124 : vector<1x16xf32> to vector<49x16xf32>
    %126 = arith.mulf %123, %125 : vector<49x16xf32>
    %127 = arith.addf %116, %126 : vector<49x16xf32>
    %128 = vector.extract_strided_slice %12 {offsets = [47, 0], sizes = [2, 16], strides = [1, 1]} : vector<49x16xf32> to vector<2x16xf32>
    %129 = vector.extract_strided_slice %12 {offsets = [0, 0], sizes = [47, 16], strides = [1, 1]} : vector<49x16xf32> to vector<47x16xf32>
    %130 = tpu.concatenate %128, %129 in 0 : vector<2x16xf32>, vector<47x16xf32> -> vector<49x16xf32>
    %131 = vector.extract_strided_slice %2 {offsets = [10, 0, 0], sizes = [1, 49, 1], strides = [1, 1, 1]} : vector<25x49x1xf32> to vector<1x49x1xf32>
    %132 = vector.shape_cast %131 : vector<1x49x1xf32> to vector<49x1xf32>
    %133 = vector.broadcast %132 : vector<49x1xf32> to vector<49x16xf32>
    %134 = arith.mulf %130, %133 : vector<49x16xf32>
    %135 = vector.extract_strided_slice %16 {offsets = [10, 0], sizes = [1, 16], strides = [1, 1]} : vector<25x16xf32> to vector<1x16xf32>
    %136 = vector.broadcast %135 : vector<1x16xf32> to vector<49x16xf32>
    %137 = arith.mulf %134, %136 : vector<49x16xf32>
    %138 = arith.addf %127, %137 : vector<49x16xf32>
    %139 = vector.extract_strided_slice %12 {offsets = [48, 0], sizes = [1, 16], strides = [1, 1]} : vector<49x16xf32> to vector<1x16xf32>
    %140 = vector.extract_strided_slice %12 {offsets = [0, 0], sizes = [48, 16], strides = [1, 1]} : vector<49x16xf32> to vector<48x16xf32>
    %141 = tpu.concatenate %139, %140 in 0 : vector<1x16xf32>, vector<48x16xf32> -> vector<49x16xf32>
    %142 = vector.extract_strided_slice %2 {offsets = [11, 0, 0], sizes = [1, 49, 1], strides = [1, 1, 1]} : vector<25x49x1xf32> to vector<1x49x1xf32>
    %143 = vector.shape_cast %142 : vector<1x49x1xf32> to vector<49x1xf32>
    %144 = vector.broadcast %143 : vector<49x1xf32> to vector<49x16xf32>
    %145 = arith.mulf %141, %144 : vector<49x16xf32>
    %146 = vector.extract_strided_slice %16 {offsets = [11, 0], sizes = [1, 16], strides = [1, 1]} : vector<25x16xf32> to vector<1x16xf32>
    %147 = vector.broadcast %146 : vector<1x16xf32> to vector<49x16xf32>
    %148 = arith.mulf %145, %147 : vector<49x16xf32>
    %149 = arith.addf %138, %148 : vector<49x16xf32>
    %150 = vector.extract_strided_slice %2 {offsets = [12, 0, 0], sizes = [1, 49, 1], strides = [1, 1, 1]} : vector<25x49x1xf32> to vector<1x49x1xf32>
    %151 = vector.shape_cast %150 : vector<1x49x1xf32> to vector<49x1xf32>
    %152 = vector.broadcast %151 : vector<49x1xf32> to vector<49x16xf32>
    %153 = arith.mulf %12, %152 : vector<49x16xf32>
    %154 = vector.extract_strided_slice %16 {offsets = [12, 0], sizes = [1, 16], strides = [1, 1]} : vector<25x16xf32> to vector<1x16xf32>
    %155 = vector.broadcast %154 : vector<1x16xf32> to vector<49x16xf32>
    %156 = arith.mulf %153, %155 : vector<49x16xf32>
    %157 = arith.addf %149, %156 : vector<49x16xf32>
    %158 = vector.extract_strided_slice %12 {offsets = [1, 0], sizes = [48, 16], strides = [1, 1]} : vector<49x16xf32> to vector<48x16xf32>
    %159 = vector.extract_strided_slice %12 {offsets = [0, 0], sizes = [1, 16], strides = [1, 1]} : vector<49x16xf32> to vector<1x16xf32>
    %160 = tpu.concatenate %158, %159 in 0 : vector<48x16xf32>, vector<1x16xf32> -> vector<49x16xf32>
    %161 = vector.extract_strided_slice %2 {offsets = [13, 0, 0], sizes = [1, 49, 1], strides = [1, 1, 1]} : vector<25x49x1xf32> to vector<1x49x1xf32>
    %162 = vector.shape_cast %161 : vector<1x49x1xf32> to vector<49x1xf32>
    %163 = vector.broadcast %162 : vector<49x1xf32> to vector<49x16xf32>
    %164 = arith.mulf %160, %163 : vector<49x16xf32>
    %165 = vector.extract_strided_slice %16 {offsets = [13, 0], sizes = [1, 16], strides = [1, 1]} : vector<25x16xf32> to vector<1x16xf32>
    %166 = vector.broadcast %165 : vector<1x16xf32> to vector<49x16xf32>
    %167 = arith.mulf %164, %166 : vector<49x16xf32>
    %168 = arith.addf %157, %167 : vector<49x16xf32>
    %169 = vector.extract_strided_slice %12 {offsets = [2, 0], sizes = [47, 16], strides = [1, 1]} : vector<49x16xf32> to vector<47x16xf32>
    %170 = vector.extract_strided_slice %12 {offsets = [0, 0], sizes = [2, 16], strides = [1, 1]} : vector<49x16xf32> to vector<2x16xf32>
    %171 = tpu.concatenate %169, %170 in 0 : vector<47x16xf32>, vector<2x16xf32> -> vector<49x16xf32>
    %172 = vector.extract_strided_slice %2 {offsets = [14, 0, 0], sizes = [1, 49, 1], strides = [1, 1, 1]} : vector<25x49x1xf32> to vector<1x49x1xf32>
    %173 = vector.shape_cast %172 : vector<1x49x1xf32> to vector<49x1xf32>
    %174 = vector.broadcast %173 : vector<49x1xf32> to vector<49x16xf32>
    %175 = arith.mulf %171, %174 : vector<49x16xf32>
    %176 = vector.extract_strided_slice %16 {offsets = [14, 0], sizes = [1, 16], strides = [1, 1]} : vector<25x16xf32> to vector<1x16xf32>
    %177 = vector.broadcast %176 : vector<1x16xf32> to vector<49x16xf32>
    %178 = arith.mulf %175, %177 : vector<49x16xf32>
    %179 = arith.addf %168, %178 : vector<49x16xf32>
    %180 = vector.extract_strided_slice %12 {offsets = [5, 0], sizes = [44, 16], strides = [1, 1]} : vector<49x16xf32> to vector<44x16xf32>
    %181 = vector.extract_strided_slice %12 {offsets = [0, 0], sizes = [5, 16], strides = [1, 1]} : vector<49x16xf32> to vector<5x16xf32>
    %182 = tpu.concatenate %180, %181 in 0 : vector<44x16xf32>, vector<5x16xf32> -> vector<49x16xf32>
    %183 = vector.extract_strided_slice %2 {offsets = [15, 0, 0], sizes = [1, 49, 1], strides = [1, 1, 1]} : vector<25x49x1xf32> to vector<1x49x1xf32>
    %184 = vector.shape_cast %183 : vector<1x49x1xf32> to vector<49x1xf32>
    %185 = vector.broadcast %184 : vector<49x1xf32> to vector<49x16xf32>
    %186 = arith.mulf %182, %185 : vector<49x16xf32>
    %187 = vector.extract_strided_slice %16 {offsets = [15, 0], sizes = [1, 16], strides = [1, 1]} : vector<25x16xf32> to vector<1x16xf32>
    %188 = vector.broadcast %187 : vector<1x16xf32> to vector<49x16xf32>
    %189 = arith.mulf %186, %188 : vector<49x16xf32>
    %190 = arith.addf %179, %189 : vector<49x16xf32>
    %191 = vector.extract_strided_slice %12 {offsets = [6, 0], sizes = [43, 16], strides = [1, 1]} : vector<49x16xf32> to vector<43x16xf32>
    %192 = vector.extract_strided_slice %12 {offsets = [0, 0], sizes = [6, 16], strides = [1, 1]} : vector<49x16xf32> to vector<6x16xf32>
    %193 = tpu.concatenate %191, %192 in 0 : vector<43x16xf32>, vector<6x16xf32> -> vector<49x16xf32>
    %194 = vector.extract_strided_slice %2 {offsets = [16, 0, 0], sizes = [1, 49, 1], strides = [1, 1, 1]} : vector<25x49x1xf32> to vector<1x49x1xf32>
    %195 = vector.shape_cast %194 : vector<1x49x1xf32> to vector<49x1xf32>
    %196 = vector.broadcast %195 : vector<49x1xf32> to vector<49x16xf32>
    %197 = arith.mulf %193, %196 : vector<49x16xf32>
    %198 = vector.extract_strided_slice %16 {offsets = [16, 0], sizes = [1, 16], strides = [1, 1]} : vector<25x16xf32> to vector<1x16xf32>
    %199 = vector.broadcast %198 : vector<1x16xf32> to vector<49x16xf32>
    %200 = arith.mulf %197, %199 : vector<49x16xf32>
    %201 = arith.addf %190, %200 : vector<49x16xf32>
    %202 = vector.extract_strided_slice %12 {offsets = [7, 0], sizes = [42, 16], strides = [1, 1]} : vector<49x16xf32> to vector<42x16xf32>
    %203 = vector.extract_strided_slice %12 {offsets = [0, 0], sizes = [7, 16], strides = [1, 1]} : vector<49x16xf32> to vector<7x16xf32>
    %204 = tpu.concatenate %202, %203 in 0 : vector<42x16xf32>, vector<7x16xf32> -> vector<49x16xf32>
    %205 = vector.extract_strided_slice %2 {offsets = [17, 0, 0], sizes = [1, 49, 1], strides = [1, 1, 1]} : vector<25x49x1xf32> to vector<1x49x1xf32>
    %206 = vector.shape_cast %205 : vector<1x49x1xf32> to vector<49x1xf32>
    %207 = vector.broadcast %206 : vector<49x1xf32> to vector<49x16xf32>
    %208 = arith.mulf %204, %207 : vector<49x16xf32>
    %209 = vector.extract_strided_slice %16 {offsets = [17, 0], sizes = [1, 16], strides = [1, 1]} : vector<25x16xf32> to vector<1x16xf32>
    %210 = vector.broadcast %209 : vector<1x16xf32> to vector<49x16xf32>
    %211 = arith.mulf %208, %210 : vector<49x16xf32>
    %212 = arith.addf %201, %211 : vector<49x16xf32>
    %213 = vector.extract_strided_slice %12 {offsets = [8, 0], sizes = [41, 16], strides = [1, 1]} : vector<49x16xf32> to vector<41x16xf32>
    %214 = vector.extract_strided_slice %12 {offsets = [0, 0], sizes = [8, 16], strides = [1, 1]} : vector<49x16xf32> to vector<8x16xf32>
    %215 = tpu.concatenate %213, %214 in 0 : vector<41x16xf32>, vector<8x16xf32> -> vector<49x16xf32>
    %216 = vector.extract_strided_slice %2 {offsets = [18, 0, 0], sizes = [1, 49, 1], strides = [1, 1, 1]} : vector<25x49x1xf32> to vector<1x49x1xf32>
    %217 = vector.shape_cast %216 : vector<1x49x1xf32> to vector<49x1xf32>
    %218 = vector.broadcast %217 : vector<49x1xf32> to vector<49x16xf32>
    %219 = arith.mulf %215, %218 : vector<49x16xf32>
    %220 = vector.extract_strided_slice %16 {offsets = [18, 0], sizes = [1, 16], strides = [1, 1]} : vector<25x16xf32> to vector<1x16xf32>
    %221 = vector.broadcast %220 : vector<1x16xf32> to vector<49x16xf32>
    %222 = arith.mulf %219, %221 : vector<49x16xf32>
    %223 = arith.addf %212, %222 : vector<49x16xf32>
    %224 = vector.extract_strided_slice %12 {offsets = [9, 0], sizes = [40, 16], strides = [1, 1]} : vector<49x16xf32> to vector<40x16xf32>
    %225 = vector.extract_strided_slice %12 {offsets = [0, 0], sizes = [9, 16], strides = [1, 1]} : vector<49x16xf32> to vector<9x16xf32>
    %226 = tpu.concatenate %224, %225 in 0 : vector<40x16xf32>, vector<9x16xf32> -> vector<49x16xf32>
    %227 = vector.extract_strided_slice %2 {offsets = [19, 0, 0], sizes = [1, 49, 1], strides = [1, 1, 1]} : vector<25x49x1xf32> to vector<1x49x1xf32>
    %228 = vector.shape_cast %227 : vector<1x49x1xf32> to vector<49x1xf32>
    %229 = vector.broadcast %228 : vector<49x1xf32> to vector<49x16xf32>
    %230 = arith.mulf %226, %229 : vector<49x16xf32>
    %231 = vector.extract_strided_slice %16 {offsets = [19, 0], sizes = [1, 16], strides = [1, 1]} : vector<25x16xf32> to vector<1x16xf32>
    %232 = vector.broadcast %231 : vector<1x16xf32> to vector<49x16xf32>
    %233 = arith.mulf %230, %232 : vector<49x16xf32>
    %234 = arith.addf %223, %233 : vector<49x16xf32>
    %235 = vector.extract_strided_slice %12 {offsets = [12, 0], sizes = [37, 16], strides = [1, 1]} : vector<49x16xf32> to vector<37x16xf32>
    %236 = vector.extract_strided_slice %12 {offsets = [0, 0], sizes = [12, 16], strides = [1, 1]} : vector<49x16xf32> to vector<12x16xf32>
    %237 = tpu.concatenate %235, %236 in 0 : vector<37x16xf32>, vector<12x16xf32> -> vector<49x16xf32>
    %238 = vector.extract_strided_slice %2 {offsets = [20, 0, 0], sizes = [1, 49, 1], strides = [1, 1, 1]} : vector<25x49x1xf32> to vector<1x49x1xf32>
    %239 = vector.shape_cast %238 : vector<1x49x1xf32> to vector<49x1xf32>
    %240 = vector.broadcast %239 : vector<49x1xf32> to vector<49x16xf32>
    %241 = arith.mulf %237, %240 : vector<49x16xf32>
    %242 = vector.extract_strided_slice %16 {offsets = [20, 0], sizes = [1, 16], strides = [1, 1]} : vector<25x16xf32> to vector<1x16xf32>
    %243 = vector.broadcast %242 : vector<1x16xf32> to vector<49x16xf32>
    %244 = arith.mulf %241, %243 : vector<49x16xf32>
    %245 = arith.addf %234, %244 : vector<49x16xf32>
    %246 = vector.extract_strided_slice %12 {offsets = [13, 0], sizes = [36, 16], strides = [1, 1]} : vector<49x16xf32> to vector<36x16xf32>
    %247 = vector.extract_strided_slice %12 {offsets = [0, 0], sizes = [13, 16], strides = [1, 1]} : vector<49x16xf32> to vector<13x16xf32>
    %248 = tpu.concatenate %246, %247 in 0 : vector<36x16xf32>, vector<13x16xf32> -> vector<49x16xf32>
    %249 = vector.extract_strided_slice %2 {offsets = [21, 0, 0], sizes = [1, 49, 1], strides = [1, 1, 1]} : vector<25x49x1xf32> to vector<1x49x1xf32>
    %250 = vector.shape_cast %249 : vector<1x49x1xf32> to vector<49x1xf32>
    %251 = vector.broadcast %250 : vector<49x1xf32> to vector<49x16xf32>
    %252 = arith.mulf %248, %251 : vector<49x16xf32>
    %253 = vector.extract_strided_slice %16 {offsets = [21, 0], sizes = [1, 16], strides = [1, 1]} : vector<25x16xf32> to vector<1x16xf32>
    %254 = vector.broadcast %253 : vector<1x16xf32> to vector<49x16xf32>
    %255 = arith.mulf %252, %254 : vector<49x16xf32>
    %256 = arith.addf %245, %255 : vector<49x16xf32>
    %257 = vector.extract_strided_slice %12 {offsets = [14, 0], sizes = [35, 16], strides = [1, 1]} : vector<49x16xf32> to vector<35x16xf32>
    %258 = vector.extract_strided_slice %12 {offsets = [0, 0], sizes = [14, 16], strides = [1, 1]} : vector<49x16xf32> to vector<14x16xf32>
    %259 = tpu.concatenate %257, %258 in 0 : vector<35x16xf32>, vector<14x16xf32> -> vector<49x16xf32>
    %260 = vector.extract_strided_slice %2 {offsets = [22, 0, 0], sizes = [1, 49, 1], strides = [1, 1, 1]} : vector<25x49x1xf32> to vector<1x49x1xf32>
    %261 = vector.shape_cast %260 : vector<1x49x1xf32> to vector<49x1xf32>
    %262 = vector.broadcast %261 : vector<49x1xf32> to vector<49x16xf32>
    %263 = arith.mulf %259, %262 : vector<49x16xf32>
    %264 = vector.extract_strided_slice %16 {offsets = [22, 0], sizes = [1, 16], strides = [1, 1]} : vector<25x16xf32> to vector<1x16xf32>
    %265 = vector.broadcast %264 : vector<1x16xf32> to vector<49x16xf32>
    %266 = arith.mulf %263, %265 : vector<49x16xf32>
    %267 = arith.addf %256, %266 : vector<49x16xf32>
    %268 = vector.extract_strided_slice %12 {offsets = [15, 0], sizes = [34, 16], strides = [1, 1]} : vector<49x16xf32> to vector<34x16xf32>
    %269 = vector.extract_strided_slice %12 {offsets = [0, 0], sizes = [15, 16], strides = [1, 1]} : vector<49x16xf32> to vector<15x16xf32>
    %270 = tpu.concatenate %268, %269 in 0 : vector<34x16xf32>, vector<15x16xf32> -> vector<49x16xf32>
    %271 = vector.extract_strided_slice %2 {offsets = [23, 0, 0], sizes = [1, 49, 1], strides = [1, 1, 1]} : vector<25x49x1xf32> to vector<1x49x1xf32>
    %272 = vector.shape_cast %271 : vector<1x49x1xf32> to vector<49x1xf32>
    %273 = vector.broadcast %272 : vector<49x1xf32> to vector<49x16xf32>
    %274 = arith.mulf %270, %273 : vector<49x16xf32>
    %275 = vector.extract_strided_slice %16 {offsets = [23, 0], sizes = [1, 16], strides = [1, 1]} : vector<25x16xf32> to vector<1x16xf32>
    %276 = vector.broadcast %275 : vector<1x16xf32> to vector<49x16xf32>
    %277 = arith.mulf %274, %276 : vector<49x16xf32>
    %278 = arith.addf %267, %277 : vector<49x16xf32>
    %279 = vector.extract_strided_slice %12 {offsets = [16, 0], sizes = [33, 16], strides = [1, 1]} : vector<49x16xf32> to vector<33x16xf32>
    %280 = vector.extract_strided_slice %12 {offsets = [0, 0], sizes = [16, 16], strides = [1, 1]} : vector<49x16xf32> to vector<16x16xf32>
    %281 = tpu.concatenate %279, %280 in 0 : vector<33x16xf32>, vector<16x16xf32> -> vector<49x16xf32>
    %282 = vector.extract_strided_slice %2 {offsets = [24, 0, 0], sizes = [1, 49, 1], strides = [1, 1, 1]} : vector<25x49x1xf32> to vector<1x49x1xf32>
    %283 = vector.shape_cast %282 : vector<1x49x1xf32> to vector<49x1xf32>
    %284 = vector.broadcast %283 : vector<49x1xf32> to vector<49x16xf32>
    %285 = arith.mulf %281, %284 : vector<49x16xf32>
    %286 = vector.extract_strided_slice %16 {offsets = [24, 0], sizes = [1, 16], strides = [1, 1]} : vector<25x16xf32> to vector<1x16xf32>
    %287 = vector.broadcast %286 : vector<1x16xf32> to vector<49x16xf32>
    %288 = arith.mulf %285, %287 : vector<49x16xf32>
    %289 = arith.addf %278, %288 : vector<49x16xf32>
    %c0_17 = arith.constant 0 : index
    %c0_18 = arith.constant 0 : index
    %c0_19 = arith.constant 0 : index
    %290 = vector.load %arg5[%c0_17, %c0_18, %c0_19] : memref<4x1x16xf32, #tpu.memory_space<vmem>>, vector<1x1x16xf32>
    %291 = vector.shape_cast %290 : vector<1x1x16xf32> to vector<1x16xf32>
    %292 = vector.broadcast %291 : vector<1x16xf32> to vector<49x16xf32>
    %293 = arith.addf %289, %292 : vector<49x16xf32>
    %cst_20 = arith.constant dense<0.000000e+00> : vector<49x49xf32>
    %294 = tpu.matmul %293, %13, %cst_20 {dimension_numbers = #tpu.dot_dimension_numbers<[1], [1], [0], [0], [0, 0, 1, 0], [], []>} : vector<49x16xf32>, vector<49x16xf32>, vector<49x49xf32> -> vector<49x49xf32>
    %cst_21 = arith.constant 2.500000e-01 : f32
    %295 = vector.broadcast %cst_21 : f32 to vector<49x49xf32>
    %296 = arith.mulf %294, %295 : vector<49x49xf32>
    %c0_22 = arith.constant 0 : index
    %c0_23 = arith.constant 0 : index
    %c0_24 = arith.constant 0 : index
    %297 = vector.load %arg7[%c0_22, %c0_23, %c0_24] : memref<4x49x49xf32, #tpu.memory_space<vmem>>, vector<1x49x49xf32>
    %298 = vector.shape_cast %297 : vector<1x49x49xf32> to vector<49x49xf32>
    %299 = arith.addf %296, %298 : vector<49x49xf32>
    %cst_25 = arith.constant dense<0xFF800000> : vector<49xf32>
    %300 = vector.multi_reduction <maximumf>, %299, %cst_25 [1] : vector<49x49xf32> to vector<49xf32>
    %301 = vector.shape_cast %300 : vector<49xf32> to vector<49x1xf32>
    %302 = vector.broadcast %301 : vector<49x1xf32> to vector<49x49xf32>
    %303 = arith.subf %299, %302 : vector<49x49xf32>
    %304 = math.exp %303 : vector<49x49xf32>
    %cst_26 = arith.constant dense<0.000000e+00> : vector<49xf32>
    %305 = vector.multi_reduction <add>, %304, %cst_26 [1] : vector<49x49xf32> to vector<49xf32>
    %306 = vector.shape_cast %305 : vector<49xf32> to vector<49x1xf32>
    %307 = tpu.reciprocal %306 {approx = true} : vector<49x1xf32> -> vector<49x1xf32>
    %308 = vector.broadcast %307 : vector<49x1xf32> to vector<49x49xf32>
    %309 = arith.mulf %304, %308 : vector<49x49xf32>
    %cst_27 = arith.constant dense<0.000000e+00> : vector<49x8xf32>
    %310 = tpu.matmul %309, %14, %cst_27 {dimension_numbers = #tpu.dot_dimension_numbers<[1], [0], [0], [1], [0, 0, 1, 1], [], []>} : vector<49x49xf32>, vector<49x8xf32>, vector<49x8xf32> -> vector<49x8xf32>
    %311 = vector.extract_strided_slice %1 {offsets = [0, 8], sizes = [49, 8], strides = [1, 1]} : vector<49x32xf32> to vector<49x8xf32>
    %312 = arith.addf %310, %311 : vector<49x8xf32>
    %c1 = arith.constant 1 : index
    %c0_28 = arith.constant 0 : index
    %c0_29 = arith.constant 0 : index
    %313 = vector.load %arg2[%c1, %c0_28, %c0_29] : memref<4x8x40xf32, #tpu.memory_space<vmem>>, vector<1x8x40xf32>
    %314 = vector.shape_cast %313 : vector<1x8x40xf32> to vector<8x40xf32>
    %cst_30 = arith.constant dense<0.000000e+00> : vector<49x40xf32>
    %315 = tpu.matmul %312, %314, %cst_30 {dimension_numbers = #tpu.dot_dimension_numbers<[1], [0], [0], [1], [0, 0, 1, 1], [], []>} : vector<49x8xf32>, vector<8x40xf32>, vector<49x40xf32> -> vector<49x40xf32>
    %c1_31 = arith.constant 1 : index
    %c0_32 = arith.constant 0 : index
    %c0_33 = arith.constant 0 : index
    %316 = vector.load %arg3[%c1_31, %c0_32, %c0_33] : memref<4x1x40xf32, #tpu.memory_space<vmem>>, vector<1x1x40xf32>
    %317 = vector.shape_cast %316 : vector<1x1x40xf32> to vector<1x40xf32>
    %318 = vector.broadcast %317 : vector<1x40xf32> to vector<49x40xf32>
    %319 = arith.addf %315, %318 : vector<49x40xf32>
    %320 = vector.extract_strided_slice %319 {offsets = [0, 0], sizes = [49, 16], strides = [1, 1]} : vector<49x40xf32> to vector<49x16xf32>
    %321 = vector.extract_strided_slice %319 {offsets = [0, 16], sizes = [49, 16], strides = [1, 1]} : vector<49x40xf32> to vector<49x16xf32>
    %322 = vector.extract_strided_slice %319 {offsets = [0, 32], sizes = [49, 8], strides = [1, 1]} : vector<49x40xf32> to vector<49x8xf32>
    %c1_34 = arith.constant 1 : index
    %c0_35 = arith.constant 0 : index
    %c0_36 = arith.constant 0 : index
    %323 = vector.load %arg4[%c1_34, %c0_35, %c0_36] : memref<4x25x16xf32, #tpu.memory_space<vmem>>, vector<1x25x16xf32>
    %324 = vector.shape_cast %323 : vector<1x25x16xf32> to vector<25x16xf32>
    %cst_37 = arith.constant 0.000000e+00 : f32
    %325 = vector.broadcast %cst_37 : f32 to vector<49x16xf32>
    %326 = vector.extract_strided_slice %320 {offsets = [33, 0], sizes = [16, 16], strides = [1, 1]} : vector<49x16xf32> to vector<16x16xf32>
    %327 = vector.extract_strided_slice %320 {offsets = [0, 0], sizes = [33, 16], strides = [1, 1]} : vector<49x16xf32> to vector<33x16xf32>
    %328 = tpu.concatenate %326, %327 in 0 : vector<16x16xf32>, vector<33x16xf32> -> vector<49x16xf32>
    %329 = vector.extract_strided_slice %2 {offsets = [0, 0, 0], sizes = [1, 49, 1], strides = [1, 1, 1]} : vector<25x49x1xf32> to vector<1x49x1xf32>
    %330 = vector.shape_cast %329 : vector<1x49x1xf32> to vector<49x1xf32>
    %331 = vector.broadcast %330 : vector<49x1xf32> to vector<49x16xf32>
    %332 = arith.mulf %328, %331 : vector<49x16xf32>
    %333 = vector.extract_strided_slice %324 {offsets = [0, 0], sizes = [1, 16], strides = [1, 1]} : vector<25x16xf32> to vector<1x16xf32>
    %334 = vector.broadcast %333 : vector<1x16xf32> to vector<49x16xf32>
    %335 = arith.mulf %332, %334 : vector<49x16xf32>
    %336 = arith.addf %325, %335 : vector<49x16xf32>
    %337 = vector.extract_strided_slice %320 {offsets = [34, 0], sizes = [15, 16], strides = [1, 1]} : vector<49x16xf32> to vector<15x16xf32>
    %338 = vector.extract_strided_slice %320 {offsets = [0, 0], sizes = [34, 16], strides = [1, 1]} : vector<49x16xf32> to vector<34x16xf32>
    %339 = tpu.concatenate %337, %338 in 0 : vector<15x16xf32>, vector<34x16xf32> -> vector<49x16xf32>
    %340 = vector.extract_strided_slice %2 {offsets = [1, 0, 0], sizes = [1, 49, 1], strides = [1, 1, 1]} : vector<25x49x1xf32> to vector<1x49x1xf32>
    %341 = vector.shape_cast %340 : vector<1x49x1xf32> to vector<49x1xf32>
    %342 = vector.broadcast %341 : vector<49x1xf32> to vector<49x16xf32>
    %343 = arith.mulf %339, %342 : vector<49x16xf32>
    %344 = vector.extract_strided_slice %324 {offsets = [1, 0], sizes = [1, 16], strides = [1, 1]} : vector<25x16xf32> to vector<1x16xf32>
    %345 = vector.broadcast %344 : vector<1x16xf32> to vector<49x16xf32>
    %346 = arith.mulf %343, %345 : vector<49x16xf32>
    %347 = arith.addf %336, %346 : vector<49x16xf32>
    %348 = vector.extract_strided_slice %320 {offsets = [35, 0], sizes = [14, 16], strides = [1, 1]} : vector<49x16xf32> to vector<14x16xf32>
    %349 = vector.extract_strided_slice %320 {offsets = [0, 0], sizes = [35, 16], strides = [1, 1]} : vector<49x16xf32> to vector<35x16xf32>
    %350 = tpu.concatenate %348, %349 in 0 : vector<14x16xf32>, vector<35x16xf32> -> vector<49x16xf32>
    %351 = vector.extract_strided_slice %2 {offsets = [2, 0, 0], sizes = [1, 49, 1], strides = [1, 1, 1]} : vector<25x49x1xf32> to vector<1x49x1xf32>
    %352 = vector.shape_cast %351 : vector<1x49x1xf32> to vector<49x1xf32>
    %353 = vector.broadcast %352 : vector<49x1xf32> to vector<49x16xf32>
    %354 = arith.mulf %350, %353 : vector<49x16xf32>
    %355 = vector.extract_strided_slice %324 {offsets = [2, 0], sizes = [1, 16], strides = [1, 1]} : vector<25x16xf32> to vector<1x16xf32>
    %356 = vector.broadcast %355 : vector<1x16xf32> to vector<49x16xf32>
    %357 = arith.mulf %354, %356 : vector<49x16xf32>
    %358 = arith.addf %347, %357 : vector<49x16xf32>
    %359 = vector.extract_strided_slice %320 {offsets = [36, 0], sizes = [13, 16], strides = [1, 1]} : vector<49x16xf32> to vector<13x16xf32>
    %360 = vector.extract_strided_slice %320 {offsets = [0, 0], sizes = [36, 16], strides = [1, 1]} : vector<49x16xf32> to vector<36x16xf32>
    %361 = tpu.concatenate %359, %360 in 0 : vector<13x16xf32>, vector<36x16xf32> -> vector<49x16xf32>
    %362 = vector.extract_strided_slice %2 {offsets = [3, 0, 0], sizes = [1, 49, 1], strides = [1, 1, 1]} : vector<25x49x1xf32> to vector<1x49x1xf32>
    %363 = vector.shape_cast %362 : vector<1x49x1xf32> to vector<49x1xf32>
    %364 = vector.broadcast %363 : vector<49x1xf32> to vector<49x16xf32>
    %365 = arith.mulf %361, %364 : vector<49x16xf32>
    %366 = vector.extract_strided_slice %324 {offsets = [3, 0], sizes = [1, 16], strides = [1, 1]} : vector<25x16xf32> to vector<1x16xf32>
    %367 = vector.broadcast %366 : vector<1x16xf32> to vector<49x16xf32>
    %368 = arith.mulf %365, %367 : vector<49x16xf32>
    %369 = arith.addf %358, %368 : vector<49x16xf32>
    %370 = vector.extract_strided_slice %320 {offsets = [37, 0], sizes = [12, 16], strides = [1, 1]} : vector<49x16xf32> to vector<12x16xf32>
    %371 = vector.extract_strided_slice %320 {offsets = [0, 0], sizes = [37, 16], strides = [1, 1]} : vector<49x16xf32> to vector<37x16xf32>
    %372 = tpu.concatenate %370, %371 in 0 : vector<12x16xf32>, vector<37x16xf32> -> vector<49x16xf32>
    %373 = vector.extract_strided_slice %2 {offsets = [4, 0, 0], sizes = [1, 49, 1], strides = [1, 1, 1]} : vector<25x49x1xf32> to vector<1x49x1xf32>
    %374 = vector.shape_cast %373 : vector<1x49x1xf32> to vector<49x1xf32>
    %375 = vector.broadcast %374 : vector<49x1xf32> to vector<49x16xf32>
    %376 = arith.mulf %372, %375 : vector<49x16xf32>
    %377 = vector.extract_strided_slice %324 {offsets = [4, 0], sizes = [1, 16], strides = [1, 1]} : vector<25x16xf32> to vector<1x16xf32>
    %378 = vector.broadcast %377 : vector<1x16xf32> to vector<49x16xf32>
    %379 = arith.mulf %376, %378 : vector<49x16xf32>
    %380 = arith.addf %369, %379 : vector<49x16xf32>
    %381 = vector.extract_strided_slice %320 {offsets = [40, 0], sizes = [9, 16], strides = [1, 1]} : vector<49x16xf32> to vector<9x16xf32>
    %382 = vector.extract_strided_slice %320 {offsets = [0, 0], sizes = [40, 16], strides = [1, 1]} : vector<49x16xf32> to vector<40x16xf32>
    %383 = tpu.concatenate %381, %382 in 0 : vector<9x16xf32>, vector<40x16xf32> -> vector<49x16xf32>
    %384 = vector.extract_strided_slice %2 {offsets = [5, 0, 0], sizes = [1, 49, 1], strides = [1, 1, 1]} : vector<25x49x1xf32> to vector<1x49x1xf32>
    %385 = vector.shape_cast %384 : vector<1x49x1xf32> to vector<49x1xf32>
    %386 = vector.broadcast %385 : vector<49x1xf32> to vector<49x16xf32>
    %387 = arith.mulf %383, %386 : vector<49x16xf32>
    %388 = vector.extract_strided_slice %324 {offsets = [5, 0], sizes = [1, 16], strides = [1, 1]} : vector<25x16xf32> to vector<1x16xf32>
    %389 = vector.broadcast %388 : vector<1x16xf32> to vector<49x16xf32>
    %390 = arith.mulf %387, %389 : vector<49x16xf32>
    %391 = arith.addf %380, %390 : vector<49x16xf32>
    %392 = vector.extract_strided_slice %320 {offsets = [41, 0], sizes = [8, 16], strides = [1, 1]} : vector<49x16xf32> to vector<8x16xf32>
    %393 = vector.extract_strided_slice %320 {offsets = [0, 0], sizes = [41, 16], strides = [1, 1]} : vector<49x16xf32> to vector<41x16xf32>
    %394 = tpu.concatenate %392, %393 in 0 : vector<8x16xf32>, vector<41x16xf32> -> vector<49x16xf32>
    %395 = vector.extract_strided_slice %2 {offsets = [6, 0, 0], sizes = [1, 49, 1], strides = [1, 1, 1]} : vector<25x49x1xf32> to vector<1x49x1xf32>
    %396 = vector.shape_cast %395 : vector<1x49x1xf32> to vector<49x1xf32>
    %397 = vector.broadcast %396 : vector<49x1xf32> to vector<49x16xf32>
    %398 = arith.mulf %394, %397 : vector<49x16xf32>
    %399 = vector.extract_strided_slice %324 {offsets = [6, 0], sizes = [1, 16], strides = [1, 1]} : vector<25x16xf32> to vector<1x16xf32>
    %400 = vector.broadcast %399 : vector<1x16xf32> to vector<49x16xf32>
    %401 = arith.mulf %398, %400 : vector<49x16xf32>
    %402 = arith.addf %391, %401 : vector<49x16xf32>
    %403 = vector.extract_strided_slice %320 {offsets = [42, 0], sizes = [7, 16], strides = [1, 1]} : vector<49x16xf32> to vector<7x16xf32>
    %404 = vector.extract_strided_slice %320 {offsets = [0, 0], sizes = [42, 16], strides = [1, 1]} : vector<49x16xf32> to vector<42x16xf32>
    %405 = tpu.concatenate %403, %404 in 0 : vector<7x16xf32>, vector<42x16xf32> -> vector<49x16xf32>
    %406 = vector.extract_strided_slice %2 {offsets = [7, 0, 0], sizes = [1, 49, 1], strides = [1, 1, 1]} : vector<25x49x1xf32> to vector<1x49x1xf32>
    %407 = vector.shape_cast %406 : vector<1x49x1xf32> to vector<49x1xf32>
    %408 = vector.broadcast %407 : vector<49x1xf32> to vector<49x16xf32>
    %409 = arith.mulf %405, %408 : vector<49x16xf32>
    %410 = vector.extract_strided_slice %324 {offsets = [7, 0], sizes = [1, 16], strides = [1, 1]} : vector<25x16xf32> to vector<1x16xf32>
    %411 = vector.broadcast %410 : vector<1x16xf32> to vector<49x16xf32>
    %412 = arith.mulf %409, %411 : vector<49x16xf32>
    %413 = arith.addf %402, %412 : vector<49x16xf32>
    %414 = vector.extract_strided_slice %320 {offsets = [43, 0], sizes = [6, 16], strides = [1, 1]} : vector<49x16xf32> to vector<6x16xf32>
    %415 = vector.extract_strided_slice %320 {offsets = [0, 0], sizes = [43, 16], strides = [1, 1]} : vector<49x16xf32> to vector<43x16xf32>
    %416 = tpu.concatenate %414, %415 in 0 : vector<6x16xf32>, vector<43x16xf32> -> vector<49x16xf32>
    %417 = vector.extract_strided_slice %2 {offsets = [8, 0, 0], sizes = [1, 49, 1], strides = [1, 1, 1]} : vector<25x49x1xf32> to vector<1x49x1xf32>
    %418 = vector.shape_cast %417 : vector<1x49x1xf32> to vector<49x1xf32>
    %419 = vector.broadcast %418 : vector<49x1xf32> to vector<49x16xf32>
    %420 = arith.mulf %416, %419 : vector<49x16xf32>
    %421 = vector.extract_strided_slice %324 {offsets = [8, 0], sizes = [1, 16], strides = [1, 1]} : vector<25x16xf32> to vector<1x16xf32>
    %422 = vector.broadcast %421 : vector<1x16xf32> to vector<49x16xf32>
    %423 = arith.mulf %420, %422 : vector<49x16xf32>
    %424 = arith.addf %413, %423 : vector<49x16xf32>
    %425 = vector.extract_strided_slice %320 {offsets = [44, 0], sizes = [5, 16], strides = [1, 1]} : vector<49x16xf32> to vector<5x16xf32>
    %426 = vector.extract_strided_slice %320 {offsets = [0, 0], sizes = [44, 16], strides = [1, 1]} : vector<49x16xf32> to vector<44x16xf32>
    %427 = tpu.concatenate %425, %426 in 0 : vector<5x16xf32>, vector<44x16xf32> -> vector<49x16xf32>
    %428 = vector.extract_strided_slice %2 {offsets = [9, 0, 0], sizes = [1, 49, 1], strides = [1, 1, 1]} : vector<25x49x1xf32> to vector<1x49x1xf32>
    %429 = vector.shape_cast %428 : vector<1x49x1xf32> to vector<49x1xf32>
    %430 = vector.broadcast %429 : vector<49x1xf32> to vector<49x16xf32>
    %431 = arith.mulf %427, %430 : vector<49x16xf32>
    %432 = vector.extract_strided_slice %324 {offsets = [9, 0], sizes = [1, 16], strides = [1, 1]} : vector<25x16xf32> to vector<1x16xf32>
    %433 = vector.broadcast %432 : vector<1x16xf32> to vector<49x16xf32>
    %434 = arith.mulf %431, %433 : vector<49x16xf32>
    %435 = arith.addf %424, %434 : vector<49x16xf32>
    %436 = vector.extract_strided_slice %320 {offsets = [47, 0], sizes = [2, 16], strides = [1, 1]} : vector<49x16xf32> to vector<2x16xf32>
    %437 = vector.extract_strided_slice %320 {offsets = [0, 0], sizes = [47, 16], strides = [1, 1]} : vector<49x16xf32> to vector<47x16xf32>
    %438 = tpu.concatenate %436, %437 in 0 : vector<2x16xf32>, vector<47x16xf32> -> vector<49x16xf32>
    %439 = vector.extract_strided_slice %2 {offsets = [10, 0, 0], sizes = [1, 49, 1], strides = [1, 1, 1]} : vector<25x49x1xf32> to vector<1x49x1xf32>
    %440 = vector.shape_cast %439 : vector<1x49x1xf32> to vector<49x1xf32>
    %441 = vector.broadcast %440 : vector<49x1xf32> to vector<49x16xf32>
    %442 = arith.mulf %438, %441 : vector<49x16xf32>
    %443 = vector.extract_strided_slice %324 {offsets = [10, 0], sizes = [1, 16], strides = [1, 1]} : vector<25x16xf32> to vector<1x16xf32>
    %444 = vector.broadcast %443 : vector<1x16xf32> to vector<49x16xf32>
    %445 = arith.mulf %442, %444 : vector<49x16xf32>
    %446 = arith.addf %435, %445 : vector<49x16xf32>
    %447 = vector.extract_strided_slice %320 {offsets = [48, 0], sizes = [1, 16], strides = [1, 1]} : vector<49x16xf32> to vector<1x16xf32>
    %448 = vector.extract_strided_slice %320 {offsets = [0, 0], sizes = [48, 16], strides = [1, 1]} : vector<49x16xf32> to vector<48x16xf32>
    %449 = tpu.concatenate %447, %448 in 0 : vector<1x16xf32>, vector<48x16xf32> -> vector<49x16xf32>
    %450 = vector.extract_strided_slice %2 {offsets = [11, 0, 0], sizes = [1, 49, 1], strides = [1, 1, 1]} : vector<25x49x1xf32> to vector<1x49x1xf32>
    %451 = vector.shape_cast %450 : vector<1x49x1xf32> to vector<49x1xf32>
    %452 = vector.broadcast %451 : vector<49x1xf32> to vector<49x16xf32>
    %453 = arith.mulf %449, %452 : vector<49x16xf32>
    %454 = vector.extract_strided_slice %324 {offsets = [11, 0], sizes = [1, 16], strides = [1, 1]} : vector<25x16xf32> to vector<1x16xf32>
    %455 = vector.broadcast %454 : vector<1x16xf32> to vector<49x16xf32>
    %456 = arith.mulf %453, %455 : vector<49x16xf32>
    %457 = arith.addf %446, %456 : vector<49x16xf32>
    %458 = vector.extract_strided_slice %2 {offsets = [12, 0, 0], sizes = [1, 49, 1], strides = [1, 1, 1]} : vector<25x49x1xf32> to vector<1x49x1xf32>
    %459 = vector.shape_cast %458 : vector<1x49x1xf32> to vector<49x1xf32>
    %460 = vector.broadcast %459 : vector<49x1xf32> to vector<49x16xf32>
    %461 = arith.mulf %320, %460 : vector<49x16xf32>
    %462 = vector.extract_strided_slice %324 {offsets = [12, 0], sizes = [1, 16], strides = [1, 1]} : vector<25x16xf32> to vector<1x16xf32>
    %463 = vector.broadcast %462 : vector<1x16xf32> to vector<49x16xf32>
    %464 = arith.mulf %461, %463 : vector<49x16xf32>
    %465 = arith.addf %457, %464 : vector<49x16xf32>
    %466 = vector.extract_strided_slice %320 {offsets = [1, 0], sizes = [48, 16], strides = [1, 1]} : vector<49x16xf32> to vector<48x16xf32>
    %467 = vector.extract_strided_slice %320 {offsets = [0, 0], sizes = [1, 16], strides = [1, 1]} : vector<49x16xf32> to vector<1x16xf32>
    %468 = tpu.concatenate %466, %467 in 0 : vector<48x16xf32>, vector<1x16xf32> -> vector<49x16xf32>
    %469 = vector.extract_strided_slice %2 {offsets = [13, 0, 0], sizes = [1, 49, 1], strides = [1, 1, 1]} : vector<25x49x1xf32> to vector<1x49x1xf32>
    %470 = vector.shape_cast %469 : vector<1x49x1xf32> to vector<49x1xf32>
    %471 = vector.broadcast %470 : vector<49x1xf32> to vector<49x16xf32>
    %472 = arith.mulf %468, %471 : vector<49x16xf32>
    %473 = vector.extract_strided_slice %324 {offsets = [13, 0], sizes = [1, 16], strides = [1, 1]} : vector<25x16xf32> to vector<1x16xf32>
    %474 = vector.broadcast %473 : vector<1x16xf32> to vector<49x16xf32>
    %475 = arith.mulf %472, %474 : vector<49x16xf32>
    %476 = arith.addf %465, %475 : vector<49x16xf32>
    %477 = vector.extract_strided_slice %320 {offsets = [2, 0], sizes = [47, 16], strides = [1, 1]} : vector<49x16xf32> to vector<47x16xf32>
    %478 = vector.extract_strided_slice %320 {offsets = [0, 0], sizes = [2, 16], strides = [1, 1]} : vector<49x16xf32> to vector<2x16xf32>
    %479 = tpu.concatenate %477, %478 in 0 : vector<47x16xf32>, vector<2x16xf32> -> vector<49x16xf32>
    %480 = vector.extract_strided_slice %2 {offsets = [14, 0, 0], sizes = [1, 49, 1], strides = [1, 1, 1]} : vector<25x49x1xf32> to vector<1x49x1xf32>
    %481 = vector.shape_cast %480 : vector<1x49x1xf32> to vector<49x1xf32>
    %482 = vector.broadcast %481 : vector<49x1xf32> to vector<49x16xf32>
    %483 = arith.mulf %479, %482 : vector<49x16xf32>
    %484 = vector.extract_strided_slice %324 {offsets = [14, 0], sizes = [1, 16], strides = [1, 1]} : vector<25x16xf32> to vector<1x16xf32>
    %485 = vector.broadcast %484 : vector<1x16xf32> to vector<49x16xf32>
    %486 = arith.mulf %483, %485 : vector<49x16xf32>
    %487 = arith.addf %476, %486 : vector<49x16xf32>
    %488 = vector.extract_strided_slice %320 {offsets = [5, 0], sizes = [44, 16], strides = [1, 1]} : vector<49x16xf32> to vector<44x16xf32>
    %489 = vector.extract_strided_slice %320 {offsets = [0, 0], sizes = [5, 16], strides = [1, 1]} : vector<49x16xf32> to vector<5x16xf32>
    %490 = tpu.concatenate %488, %489 in 0 : vector<44x16xf32>, vector<5x16xf32> -> vector<49x16xf32>
    %491 = vector.extract_strided_slice %2 {offsets = [15, 0, 0], sizes = [1, 49, 1], strides = [1, 1, 1]} : vector<25x49x1xf32> to vector<1x49x1xf32>
    %492 = vector.shape_cast %491 : vector<1x49x1xf32> to vector<49x1xf32>
    %493 = vector.broadcast %492 : vector<49x1xf32> to vector<49x16xf32>
    %494 = arith.mulf %490, %493 : vector<49x16xf32>
    %495 = vector.extract_strided_slice %324 {offsets = [15, 0], sizes = [1, 16], strides = [1, 1]} : vector<25x16xf32> to vector<1x16xf32>
    %496 = vector.broadcast %495 : vector<1x16xf32> to vector<49x16xf32>
    %497 = arith.mulf %494, %496 : vector<49x16xf32>
    %498 = arith.addf %487, %497 : vector<49x16xf32>
    %499 = vector.extract_strided_slice %320 {offsets = [6, 0], sizes = [43, 16], strides = [1, 1]} : vector<49x16xf32> to vector<43x16xf32>
    %500 = vector.extract_strided_slice %320 {offsets = [0, 0], sizes = [6, 16], strides = [1, 1]} : vector<49x16xf32> to vector<6x16xf32>
    %501 = tpu.concatenate %499, %500 in 0 : vector<43x16xf32>, vector<6x16xf32> -> vector<49x16xf32>
    %502 = vector.extract_strided_slice %2 {offsets = [16, 0, 0], sizes = [1, 49, 1], strides = [1, 1, 1]} : vector<25x49x1xf32> to vector<1x49x1xf32>
    %503 = vector.shape_cast %502 : vector<1x49x1xf32> to vector<49x1xf32>
    %504 = vector.broadcast %503 : vector<49x1xf32> to vector<49x16xf32>
    %505 = arith.mulf %501, %504 : vector<49x16xf32>
    %506 = vector.extract_strided_slice %324 {offsets = [16, 0], sizes = [1, 16], strides = [1, 1]} : vector<25x16xf32> to vector<1x16xf32>
    %507 = vector.broadcast %506 : vector<1x16xf32> to vector<49x16xf32>
    %508 = arith.mulf %505, %507 : vector<49x16xf32>
    %509 = arith.addf %498, %508 : vector<49x16xf32>
    %510 = vector.extract_strided_slice %320 {offsets = [7, 0], sizes = [42, 16], strides = [1, 1]} : vector<49x16xf32> to vector<42x16xf32>
    %511 = vector.extract_strided_slice %320 {offsets = [0, 0], sizes = [7, 16], strides = [1, 1]} : vector<49x16xf32> to vector<7x16xf32>
    %512 = tpu.concatenate %510, %511 in 0 : vector<42x16xf32>, vector<7x16xf32> -> vector<49x16xf32>
    %513 = vector.extract_strided_slice %2 {offsets = [17, 0, 0], sizes = [1, 49, 1], strides = [1, 1, 1]} : vector<25x49x1xf32> to vector<1x49x1xf32>
    %514 = vector.shape_cast %513 : vector<1x49x1xf32> to vector<49x1xf32>
    %515 = vector.broadcast %514 : vector<49x1xf32> to vector<49x16xf32>
    %516 = arith.mulf %512, %515 : vector<49x16xf32>
    %517 = vector.extract_strided_slice %324 {offsets = [17, 0], sizes = [1, 16], strides = [1, 1]} : vector<25x16xf32> to vector<1x16xf32>
    %518 = vector.broadcast %517 : vector<1x16xf32> to vector<49x16xf32>
    %519 = arith.mulf %516, %518 : vector<49x16xf32>
    %520 = arith.addf %509, %519 : vector<49x16xf32>
    %521 = vector.extract_strided_slice %320 {offsets = [8, 0], sizes = [41, 16], strides = [1, 1]} : vector<49x16xf32> to vector<41x16xf32>
    %522 = vector.extract_strided_slice %320 {offsets = [0, 0], sizes = [8, 16], strides = [1, 1]} : vector<49x16xf32> to vector<8x16xf32>
    %523 = tpu.concatenate %521, %522 in 0 : vector<41x16xf32>, vector<8x16xf32> -> vector<49x16xf32>
    %524 = vector.extract_strided_slice %2 {offsets = [18, 0, 0], sizes = [1, 49, 1], strides = [1, 1, 1]} : vector<25x49x1xf32> to vector<1x49x1xf32>
    %525 = vector.shape_cast %524 : vector<1x49x1xf32> to vector<49x1xf32>
    %526 = vector.broadcast %525 : vector<49x1xf32> to vector<49x16xf32>
    %527 = arith.mulf %523, %526 : vector<49x16xf32>
    %528 = vector.extract_strided_slice %324 {offsets = [18, 0], sizes = [1, 16], strides = [1, 1]} : vector<25x16xf32> to vector<1x16xf32>
    %529 = vector.broadcast %528 : vector<1x16xf32> to vector<49x16xf32>
    %530 = arith.mulf %527, %529 : vector<49x16xf32>
    %531 = arith.addf %520, %530 : vector<49x16xf32>
    %532 = vector.extract_strided_slice %320 {offsets = [9, 0], sizes = [40, 16], strides = [1, 1]} : vector<49x16xf32> to vector<40x16xf32>
    %533 = vector.extract_strided_slice %320 {offsets = [0, 0], sizes = [9, 16], strides = [1, 1]} : vector<49x16xf32> to vector<9x16xf32>
    %534 = tpu.concatenate %532, %533 in 0 : vector<40x16xf32>, vector<9x16xf32> -> vector<49x16xf32>
    %535 = vector.extract_strided_slice %2 {offsets = [19, 0, 0], sizes = [1, 49, 1], strides = [1, 1, 1]} : vector<25x49x1xf32> to vector<1x49x1xf32>
    %536 = vector.shape_cast %535 : vector<1x49x1xf32> to vector<49x1xf32>
    %537 = vector.broadcast %536 : vector<49x1xf32> to vector<49x16xf32>
    %538 = arith.mulf %534, %537 : vector<49x16xf32>
    %539 = vector.extract_strided_slice %324 {offsets = [19, 0], sizes = [1, 16], strides = [1, 1]} : vector<25x16xf32> to vector<1x16xf32>
    %540 = vector.broadcast %539 : vector<1x16xf32> to vector<49x16xf32>
    %541 = arith.mulf %538, %540 : vector<49x16xf32>
    %542 = arith.addf %531, %541 : vector<49x16xf32>
    %543 = vector.extract_strided_slice %320 {offsets = [12, 0], sizes = [37, 16], strides = [1, 1]} : vector<49x16xf32> to vector<37x16xf32>
    %544 = vector.extract_strided_slice %320 {offsets = [0, 0], sizes = [12, 16], strides = [1, 1]} : vector<49x16xf32> to vector<12x16xf32>
    %545 = tpu.concatenate %543, %544 in 0 : vector<37x16xf32>, vector<12x16xf32> -> vector<49x16xf32>
    %546 = vector.extract_strided_slice %2 {offsets = [20, 0, 0], sizes = [1, 49, 1], strides = [1, 1, 1]} : vector<25x49x1xf32> to vector<1x49x1xf32>
    %547 = vector.shape_cast %546 : vector<1x49x1xf32> to vector<49x1xf32>
    %548 = vector.broadcast %547 : vector<49x1xf32> to vector<49x16xf32>
    %549 = arith.mulf %545, %548 : vector<49x16xf32>
    %550 = vector.extract_strided_slice %324 {offsets = [20, 0], sizes = [1, 16], strides = [1, 1]} : vector<25x16xf32> to vector<1x16xf32>
    %551 = vector.broadcast %550 : vector<1x16xf32> to vector<49x16xf32>
    %552 = arith.mulf %549, %551 : vector<49x16xf32>
    %553 = arith.addf %542, %552 : vector<49x16xf32>
    %554 = vector.extract_strided_slice %320 {offsets = [13, 0], sizes = [36, 16], strides = [1, 1]} : vector<49x16xf32> to vector<36x16xf32>
    %555 = vector.extract_strided_slice %320 {offsets = [0, 0], sizes = [13, 16], strides = [1, 1]} : vector<49x16xf32> to vector<13x16xf32>
    %556 = tpu.concatenate %554, %555 in 0 : vector<36x16xf32>, vector<13x16xf32> -> vector<49x16xf32>
    %557 = vector.extract_strided_slice %2 {offsets = [21, 0, 0], sizes = [1, 49, 1], strides = [1, 1, 1]} : vector<25x49x1xf32> to vector<1x49x1xf32>
    %558 = vector.shape_cast %557 : vector<1x49x1xf32> to vector<49x1xf32>
    %559 = vector.broadcast %558 : vector<49x1xf32> to vector<49x16xf32>
    %560 = arith.mulf %556, %559 : vector<49x16xf32>
    %561 = vector.extract_strided_slice %324 {offsets = [21, 0], sizes = [1, 16], strides = [1, 1]} : vector<25x16xf32> to vector<1x16xf32>
    %562 = vector.broadcast %561 : vector<1x16xf32> to vector<49x16xf32>
    %563 = arith.mulf %560, %562 : vector<49x16xf32>
    %564 = arith.addf %553, %563 : vector<49x16xf32>
    %565 = vector.extract_strided_slice %320 {offsets = [14, 0], sizes = [35, 16], strides = [1, 1]} : vector<49x16xf32> to vector<35x16xf32>
    %566 = vector.extract_strided_slice %320 {offsets = [0, 0], sizes = [14, 16], strides = [1, 1]} : vector<49x16xf32> to vector<14x16xf32>
    %567 = tpu.concatenate %565, %566 in 0 : vector<35x16xf32>, vector<14x16xf32> -> vector<49x16xf32>
    %568 = vector.extract_strided_slice %2 {offsets = [22, 0, 0], sizes = [1, 49, 1], strides = [1, 1, 1]} : vector<25x49x1xf32> to vector<1x49x1xf32>
    %569 = vector.shape_cast %568 : vector<1x49x1xf32> to vector<49x1xf32>
    %570 = vector.broadcast %569 : vector<49x1xf32> to vector<49x16xf32>
    %571 = arith.mulf %567, %570 : vector<49x16xf32>
    %572 = vector.extract_strided_slice %324 {offsets = [22, 0], sizes = [1, 16], strides = [1, 1]} : vector<25x16xf32> to vector<1x16xf32>
    %573 = vector.broadcast %572 : vector<1x16xf32> to vector<49x16xf32>
    %574 = arith.mulf %571, %573 : vector<49x16xf32>
    %575 = arith.addf %564, %574 : vector<49x16xf32>
    %576 = vector.extract_strided_slice %320 {offsets = [15, 0], sizes = [34, 16], strides = [1, 1]} : vector<49x16xf32> to vector<34x16xf32>
    %577 = vector.extract_strided_slice %320 {offsets = [0, 0], sizes = [15, 16], strides = [1, 1]} : vector<49x16xf32> to vector<15x16xf32>
    %578 = tpu.concatenate %576, %577 in 0 : vector<34x16xf32>, vector<15x16xf32> -> vector<49x16xf32>
    %579 = vector.extract_strided_slice %2 {offsets = [23, 0, 0], sizes = [1, 49, 1], strides = [1, 1, 1]} : vector<25x49x1xf32> to vector<1x49x1xf32>
    %580 = vector.shape_cast %579 : vector<1x49x1xf32> to vector<49x1xf32>
    %581 = vector.broadcast %580 : vector<49x1xf32> to vector<49x16xf32>
    %582 = arith.mulf %578, %581 : vector<49x16xf32>
    %583 = vector.extract_strided_slice %324 {offsets = [23, 0], sizes = [1, 16], strides = [1, 1]} : vector<25x16xf32> to vector<1x16xf32>
    %584 = vector.broadcast %583 : vector<1x16xf32> to vector<49x16xf32>
    %585 = arith.mulf %582, %584 : vector<49x16xf32>
    %586 = arith.addf %575, %585 : vector<49x16xf32>
    %587 = vector.extract_strided_slice %320 {offsets = [16, 0], sizes = [33, 16], strides = [1, 1]} : vector<49x16xf32> to vector<33x16xf32>
    %588 = vector.extract_strided_slice %320 {offsets = [0, 0], sizes = [16, 16], strides = [1, 1]} : vector<49x16xf32> to vector<16x16xf32>
    %589 = tpu.concatenate %587, %588 in 0 : vector<33x16xf32>, vector<16x16xf32> -> vector<49x16xf32>
    %590 = vector.extract_strided_slice %2 {offsets = [24, 0, 0], sizes = [1, 49, 1], strides = [1, 1, 1]} : vector<25x49x1xf32> to vector<1x49x1xf32>
    %591 = vector.shape_cast %590 : vector<1x49x1xf32> to vector<49x1xf32>
    %592 = vector.broadcast %591 : vector<49x1xf32> to vector<49x16xf32>
    %593 = arith.mulf %589, %592 : vector<49x16xf32>
    %594 = vector.extract_strided_slice %324 {offsets = [24, 0], sizes = [1, 16], strides = [1, 1]} : vector<25x16xf32> to vector<1x16xf32>
    %595 = vector.broadcast %594 : vector<1x16xf32> to vector<49x16xf32>
    %596 = arith.mulf %593, %595 : vector<49x16xf32>
    %597 = arith.addf %586, %596 : vector<49x16xf32>
    %c1_38 = arith.constant 1 : index
    %c0_39 = arith.constant 0 : index
    %c0_40 = arith.constant 0 : index
    %598 = vector.load %arg5[%c1_38, %c0_39, %c0_40] : memref<4x1x16xf32, #tpu.memory_space<vmem>>, vector<1x1x16xf32>
    %599 = vector.shape_cast %598 : vector<1x1x16xf32> to vector<1x16xf32>
    %600 = vector.broadcast %599 : vector<1x16xf32> to vector<49x16xf32>
    %601 = arith.addf %597, %600 : vector<49x16xf32>
    %cst_41 = arith.constant dense<0.000000e+00> : vector<49x49xf32>
    %602 = tpu.matmul %601, %321, %cst_41 {dimension_numbers = #tpu.dot_dimension_numbers<[1], [1], [0], [0], [0, 0, 1, 0], [], []>} : vector<49x16xf32>, vector<49x16xf32>, vector<49x49xf32> -> vector<49x49xf32>
    %cst_42 = arith.constant 2.500000e-01 : f32
    %603 = vector.broadcast %cst_42 : f32 to vector<49x49xf32>
    %604 = arith.mulf %602, %603 : vector<49x49xf32>
    %c1_43 = arith.constant 1 : index
    %c0_44 = arith.constant 0 : index
    %c0_45 = arith.constant 0 : index
    %605 = vector.load %arg7[%c1_43, %c0_44, %c0_45] : memref<4x49x49xf32, #tpu.memory_space<vmem>>, vector<1x49x49xf32>
    %606 = vector.shape_cast %605 : vector<1x49x49xf32> to vector<49x49xf32>
    %607 = arith.addf %604, %606 : vector<49x49xf32>
    %cst_46 = arith.constant dense<0xFF800000> : vector<49xf32>
    %608 = vector.multi_reduction <maximumf>, %607, %cst_46 [1] : vector<49x49xf32> to vector<49xf32>
    %609 = vector.shape_cast %608 : vector<49xf32> to vector<49x1xf32>
    %610 = vector.broadcast %609 : vector<49x1xf32> to vector<49x49xf32>
    %611 = arith.subf %607, %610 : vector<49x49xf32>
    %612 = math.exp %611 : vector<49x49xf32>
    %cst_47 = arith.constant dense<0.000000e+00> : vector<49xf32>
    %613 = vector.multi_reduction <add>, %612, %cst_47 [1] : vector<49x49xf32> to vector<49xf32>
    %614 = vector.shape_cast %613 : vector<49xf32> to vector<49x1xf32>
    %615 = tpu.reciprocal %614 {approx = true} : vector<49x1xf32> -> vector<49x1xf32>
    %616 = vector.broadcast %615 : vector<49x1xf32> to vector<49x49xf32>
    %617 = arith.mulf %612, %616 : vector<49x49xf32>
    %cst_48 = arith.constant dense<0.000000e+00> : vector<49x8xf32>
    %618 = tpu.matmul %617, %322, %cst_48 {dimension_numbers = #tpu.dot_dimension_numbers<[1], [0], [0], [1], [0, 0, 1, 1], [], []>} : vector<49x49xf32>, vector<49x8xf32>, vector<49x8xf32> -> vector<49x8xf32>
    %619 = vector.extract_strided_slice %1 {offsets = [0, 16], sizes = [49, 8], strides = [1, 1]} : vector<49x32xf32> to vector<49x8xf32>
    %620 = arith.addf %618, %619 : vector<49x8xf32>
    %c2 = arith.constant 2 : index
    %c0_49 = arith.constant 0 : index
    %c0_50 = arith.constant 0 : index
    %621 = vector.load %arg2[%c2, %c0_49, %c0_50] : memref<4x8x40xf32, #tpu.memory_space<vmem>>, vector<1x8x40xf32>
    %622 = vector.shape_cast %621 : vector<1x8x40xf32> to vector<8x40xf32>
    %cst_51 = arith.constant dense<0.000000e+00> : vector<49x40xf32>
    %623 = tpu.matmul %620, %622, %cst_51 {dimension_numbers = #tpu.dot_dimension_numbers<[1], [0], [0], [1], [0, 0, 1, 1], [], []>} : vector<49x8xf32>, vector<8x40xf32>, vector<49x40xf32> -> vector<49x40xf32>
    %c2_52 = arith.constant 2 : index
    %c0_53 = arith.constant 0 : index
    %c0_54 = arith.constant 0 : index
    %624 = vector.load %arg3[%c2_52, %c0_53, %c0_54] : memref<4x1x40xf32, #tpu.memory_space<vmem>>, vector<1x1x40xf32>
    %625 = vector.shape_cast %624 : vector<1x1x40xf32> to vector<1x40xf32>
    %626 = vector.broadcast %625 : vector<1x40xf32> to vector<49x40xf32>
    %627 = arith.addf %623, %626 : vector<49x40xf32>
    %628 = vector.extract_strided_slice %627 {offsets = [0, 0], sizes = [49, 16], strides = [1, 1]} : vector<49x40xf32> to vector<49x16xf32>
    %629 = vector.extract_strided_slice %627 {offsets = [0, 16], sizes = [49, 16], strides = [1, 1]} : vector<49x40xf32> to vector<49x16xf32>
    %630 = vector.extract_strided_slice %627 {offsets = [0, 32], sizes = [49, 8], strides = [1, 1]} : vector<49x40xf32> to vector<49x8xf32>
    %c2_55 = arith.constant 2 : index
    %c0_56 = arith.constant 0 : index
    %c0_57 = arith.constant 0 : index
    %631 = vector.load %arg4[%c2_55, %c0_56, %c0_57] : memref<4x25x16xf32, #tpu.memory_space<vmem>>, vector<1x25x16xf32>
    %632 = vector.shape_cast %631 : vector<1x25x16xf32> to vector<25x16xf32>
    %cst_58 = arith.constant 0.000000e+00 : f32
    %633 = vector.broadcast %cst_58 : f32 to vector<49x16xf32>
    %634 = vector.extract_strided_slice %628 {offsets = [33, 0], sizes = [16, 16], strides = [1, 1]} : vector<49x16xf32> to vector<16x16xf32>
    %635 = vector.extract_strided_slice %628 {offsets = [0, 0], sizes = [33, 16], strides = [1, 1]} : vector<49x16xf32> to vector<33x16xf32>
    %636 = tpu.concatenate %634, %635 in 0 : vector<16x16xf32>, vector<33x16xf32> -> vector<49x16xf32>
    %637 = vector.extract_strided_slice %2 {offsets = [0, 0, 0], sizes = [1, 49, 1], strides = [1, 1, 1]} : vector<25x49x1xf32> to vector<1x49x1xf32>
    %638 = vector.shape_cast %637 : vector<1x49x1xf32> to vector<49x1xf32>
    %639 = vector.broadcast %638 : vector<49x1xf32> to vector<49x16xf32>
    %640 = arith.mulf %636, %639 : vector<49x16xf32>
    %641 = vector.extract_strided_slice %632 {offsets = [0, 0], sizes = [1, 16], strides = [1, 1]} : vector<25x16xf32> to vector<1x16xf32>
    %642 = vector.broadcast %641 : vector<1x16xf32> to vector<49x16xf32>
    %643 = arith.mulf %640, %642 : vector<49x16xf32>
    %644 = arith.addf %633, %643 : vector<49x16xf32>
    %645 = vector.extract_strided_slice %628 {offsets = [34, 0], sizes = [15, 16], strides = [1, 1]} : vector<49x16xf32> to vector<15x16xf32>
    %646 = vector.extract_strided_slice %628 {offsets = [0, 0], sizes = [34, 16], strides = [1, 1]} : vector<49x16xf32> to vector<34x16xf32>
    %647 = tpu.concatenate %645, %646 in 0 : vector<15x16xf32>, vector<34x16xf32> -> vector<49x16xf32>
    %648 = vector.extract_strided_slice %2 {offsets = [1, 0, 0], sizes = [1, 49, 1], strides = [1, 1, 1]} : vector<25x49x1xf32> to vector<1x49x1xf32>
    %649 = vector.shape_cast %648 : vector<1x49x1xf32> to vector<49x1xf32>
    %650 = vector.broadcast %649 : vector<49x1xf32> to vector<49x16xf32>
    %651 = arith.mulf %647, %650 : vector<49x16xf32>
    %652 = vector.extract_strided_slice %632 {offsets = [1, 0], sizes = [1, 16], strides = [1, 1]} : vector<25x16xf32> to vector<1x16xf32>
    %653 = vector.broadcast %652 : vector<1x16xf32> to vector<49x16xf32>
    %654 = arith.mulf %651, %653 : vector<49x16xf32>
    %655 = arith.addf %644, %654 : vector<49x16xf32>
    %656 = vector.extract_strided_slice %628 {offsets = [35, 0], sizes = [14, 16], strides = [1, 1]} : vector<49x16xf32> to vector<14x16xf32>
    %657 = vector.extract_strided_slice %628 {offsets = [0, 0], sizes = [35, 16], strides = [1, 1]} : vector<49x16xf32> to vector<35x16xf32>
    %658 = tpu.concatenate %656, %657 in 0 : vector<14x16xf32>, vector<35x16xf32> -> vector<49x16xf32>
    %659 = vector.extract_strided_slice %2 {offsets = [2, 0, 0], sizes = [1, 49, 1], strides = [1, 1, 1]} : vector<25x49x1xf32> to vector<1x49x1xf32>
    %660 = vector.shape_cast %659 : vector<1x49x1xf32> to vector<49x1xf32>
    %661 = vector.broadcast %660 : vector<49x1xf32> to vector<49x16xf32>
    %662 = arith.mulf %658, %661 : vector<49x16xf32>
    %663 = vector.extract_strided_slice %632 {offsets = [2, 0], sizes = [1, 16], strides = [1, 1]} : vector<25x16xf32> to vector<1x16xf32>
    %664 = vector.broadcast %663 : vector<1x16xf32> to vector<49x16xf32>
    %665 = arith.mulf %662, %664 : vector<49x16xf32>
    %666 = arith.addf %655, %665 : vector<49x16xf32>
    %667 = vector.extract_strided_slice %628 {offsets = [36, 0], sizes = [13, 16], strides = [1, 1]} : vector<49x16xf32> to vector<13x16xf32>
    %668 = vector.extract_strided_slice %628 {offsets = [0, 0], sizes = [36, 16], strides = [1, 1]} : vector<49x16xf32> to vector<36x16xf32>
    %669 = tpu.concatenate %667, %668 in 0 : vector<13x16xf32>, vector<36x16xf32> -> vector<49x16xf32>
    %670 = vector.extract_strided_slice %2 {offsets = [3, 0, 0], sizes = [1, 49, 1], strides = [1, 1, 1]} : vector<25x49x1xf32> to vector<1x49x1xf32>
    %671 = vector.shape_cast %670 : vector<1x49x1xf32> to vector<49x1xf32>
    %672 = vector.broadcast %671 : vector<49x1xf32> to vector<49x16xf32>
    %673 = arith.mulf %669, %672 : vector<49x16xf32>
    %674 = vector.extract_strided_slice %632 {offsets = [3, 0], sizes = [1, 16], strides = [1, 1]} : vector<25x16xf32> to vector<1x16xf32>
    %675 = vector.broadcast %674 : vector<1x16xf32> to vector<49x16xf32>
    %676 = arith.mulf %673, %675 : vector<49x16xf32>
    %677 = arith.addf %666, %676 : vector<49x16xf32>
    %678 = vector.extract_strided_slice %628 {offsets = [37, 0], sizes = [12, 16], strides = [1, 1]} : vector<49x16xf32> to vector<12x16xf32>
    %679 = vector.extract_strided_slice %628 {offsets = [0, 0], sizes = [37, 16], strides = [1, 1]} : vector<49x16xf32> to vector<37x16xf32>
    %680 = tpu.concatenate %678, %679 in 0 : vector<12x16xf32>, vector<37x16xf32> -> vector<49x16xf32>
    %681 = vector.extract_strided_slice %2 {offsets = [4, 0, 0], sizes = [1, 49, 1], strides = [1, 1, 1]} : vector<25x49x1xf32> to vector<1x49x1xf32>
    %682 = vector.shape_cast %681 : vector<1x49x1xf32> to vector<49x1xf32>
    %683 = vector.broadcast %682 : vector<49x1xf32> to vector<49x16xf32>
    %684 = arith.mulf %680, %683 : vector<49x16xf32>
    %685 = vector.extract_strided_slice %632 {offsets = [4, 0], sizes = [1, 16], strides = [1, 1]} : vector<25x16xf32> to vector<1x16xf32>
    %686 = vector.broadcast %685 : vector<1x16xf32> to vector<49x16xf32>
    %687 = arith.mulf %684, %686 : vector<49x16xf32>
    %688 = arith.addf %677, %687 : vector<49x16xf32>
    %689 = vector.extract_strided_slice %628 {offsets = [40, 0], sizes = [9, 16], strides = [1, 1]} : vector<49x16xf32> to vector<9x16xf32>
    %690 = vector.extract_strided_slice %628 {offsets = [0, 0], sizes = [40, 16], strides = [1, 1]} : vector<49x16xf32> to vector<40x16xf32>
    %691 = tpu.concatenate %689, %690 in 0 : vector<9x16xf32>, vector<40x16xf32> -> vector<49x16xf32>
    %692 = vector.extract_strided_slice %2 {offsets = [5, 0, 0], sizes = [1, 49, 1], strides = [1, 1, 1]} : vector<25x49x1xf32> to vector<1x49x1xf32>
    %693 = vector.shape_cast %692 : vector<1x49x1xf32> to vector<49x1xf32>
    %694 = vector.broadcast %693 : vector<49x1xf32> to vector<49x16xf32>
    %695 = arith.mulf %691, %694 : vector<49x16xf32>
    %696 = vector.extract_strided_slice %632 {offsets = [5, 0], sizes = [1, 16], strides = [1, 1]} : vector<25x16xf32> to vector<1x16xf32>
    %697 = vector.broadcast %696 : vector<1x16xf32> to vector<49x16xf32>
    %698 = arith.mulf %695, %697 : vector<49x16xf32>
    %699 = arith.addf %688, %698 : vector<49x16xf32>
    %700 = vector.extract_strided_slice %628 {offsets = [41, 0], sizes = [8, 16], strides = [1, 1]} : vector<49x16xf32> to vector<8x16xf32>
    %701 = vector.extract_strided_slice %628 {offsets = [0, 0], sizes = [41, 16], strides = [1, 1]} : vector<49x16xf32> to vector<41x16xf32>
    %702 = tpu.concatenate %700, %701 in 0 : vector<8x16xf32>, vector<41x16xf32> -> vector<49x16xf32>
    %703 = vector.extract_strided_slice %2 {offsets = [6, 0, 0], sizes = [1, 49, 1], strides = [1, 1, 1]} : vector<25x49x1xf32> to vector<1x49x1xf32>
    %704 = vector.shape_cast %703 : vector<1x49x1xf32> to vector<49x1xf32>
    %705 = vector.broadcast %704 : vector<49x1xf32> to vector<49x16xf32>
    %706 = arith.mulf %702, %705 : vector<49x16xf32>
    %707 = vector.extract_strided_slice %632 {offsets = [6, 0], sizes = [1, 16], strides = [1, 1]} : vector<25x16xf32> to vector<1x16xf32>
    %708 = vector.broadcast %707 : vector<1x16xf32> to vector<49x16xf32>
    %709 = arith.mulf %706, %708 : vector<49x16xf32>
    %710 = arith.addf %699, %709 : vector<49x16xf32>
    %711 = vector.extract_strided_slice %628 {offsets = [42, 0], sizes = [7, 16], strides = [1, 1]} : vector<49x16xf32> to vector<7x16xf32>
    %712 = vector.extract_strided_slice %628 {offsets = [0, 0], sizes = [42, 16], strides = [1, 1]} : vector<49x16xf32> to vector<42x16xf32>
    %713 = tpu.concatenate %711, %712 in 0 : vector<7x16xf32>, vector<42x16xf32> -> vector<49x16xf32>
    %714 = vector.extract_strided_slice %2 {offsets = [7, 0, 0], sizes = [1, 49, 1], strides = [1, 1, 1]} : vector<25x49x1xf32> to vector<1x49x1xf32>
    %715 = vector.shape_cast %714 : vector<1x49x1xf32> to vector<49x1xf32>
    %716 = vector.broadcast %715 : vector<49x1xf32> to vector<49x16xf32>
    %717 = arith.mulf %713, %716 : vector<49x16xf32>
    %718 = vector.extract_strided_slice %632 {offsets = [7, 0], sizes = [1, 16], strides = [1, 1]} : vector<25x16xf32> to vector<1x16xf32>
    %719 = vector.broadcast %718 : vector<1x16xf32> to vector<49x16xf32>
    %720 = arith.mulf %717, %719 : vector<49x16xf32>
    %721 = arith.addf %710, %720 : vector<49x16xf32>
    %722 = vector.extract_strided_slice %628 {offsets = [43, 0], sizes = [6, 16], strides = [1, 1]} : vector<49x16xf32> to vector<6x16xf32>
    %723 = vector.extract_strided_slice %628 {offsets = [0, 0], sizes = [43, 16], strides = [1, 1]} : vector<49x16xf32> to vector<43x16xf32>
    %724 = tpu.concatenate %722, %723 in 0 : vector<6x16xf32>, vector<43x16xf32> -> vector<49x16xf32>
    %725 = vector.extract_strided_slice %2 {offsets = [8, 0, 0], sizes = [1, 49, 1], strides = [1, 1, 1]} : vector<25x49x1xf32> to vector<1x49x1xf32>
    %726 = vector.shape_cast %725 : vector<1x49x1xf32> to vector<49x1xf32>
    %727 = vector.broadcast %726 : vector<49x1xf32> to vector<49x16xf32>
    %728 = arith.mulf %724, %727 : vector<49x16xf32>
    %729 = vector.extract_strided_slice %632 {offsets = [8, 0], sizes = [1, 16], strides = [1, 1]} : vector<25x16xf32> to vector<1x16xf32>
    %730 = vector.broadcast %729 : vector<1x16xf32> to vector<49x16xf32>
    %731 = arith.mulf %728, %730 : vector<49x16xf32>
    %732 = arith.addf %721, %731 : vector<49x16xf32>
    %733 = vector.extract_strided_slice %628 {offsets = [44, 0], sizes = [5, 16], strides = [1, 1]} : vector<49x16xf32> to vector<5x16xf32>
    %734 = vector.extract_strided_slice %628 {offsets = [0, 0], sizes = [44, 16], strides = [1, 1]} : vector<49x16xf32> to vector<44x16xf32>
    %735 = tpu.concatenate %733, %734 in 0 : vector<5x16xf32>, vector<44x16xf32> -> vector<49x16xf32>
    %736 = vector.extract_strided_slice %2 {offsets = [9, 0, 0], sizes = [1, 49, 1], strides = [1, 1, 1]} : vector<25x49x1xf32> to vector<1x49x1xf32>
    %737 = vector.shape_cast %736 : vector<1x49x1xf32> to vector<49x1xf32>
    %738 = vector.broadcast %737 : vector<49x1xf32> to vector<49x16xf32>
    %739 = arith.mulf %735, %738 : vector<49x16xf32>
    %740 = vector.extract_strided_slice %632 {offsets = [9, 0], sizes = [1, 16], strides = [1, 1]} : vector<25x16xf32> to vector<1x16xf32>
    %741 = vector.broadcast %740 : vector<1x16xf32> to vector<49x16xf32>
    %742 = arith.mulf %739, %741 : vector<49x16xf32>
    %743 = arith.addf %732, %742 : vector<49x16xf32>
    %744 = vector.extract_strided_slice %628 {offsets = [47, 0], sizes = [2, 16], strides = [1, 1]} : vector<49x16xf32> to vector<2x16xf32>
    %745 = vector.extract_strided_slice %628 {offsets = [0, 0], sizes = [47, 16], strides = [1, 1]} : vector<49x16xf32> to vector<47x16xf32>
    %746 = tpu.concatenate %744, %745 in 0 : vector<2x16xf32>, vector<47x16xf32> -> vector<49x16xf32>
    %747 = vector.extract_strided_slice %2 {offsets = [10, 0, 0], sizes = [1, 49, 1], strides = [1, 1, 1]} : vector<25x49x1xf32> to vector<1x49x1xf32>
    %748 = vector.shape_cast %747 : vector<1x49x1xf32> to vector<49x1xf32>
    %749 = vector.broadcast %748 : vector<49x1xf32> to vector<49x16xf32>
    %750 = arith.mulf %746, %749 : vector<49x16xf32>
    %751 = vector.extract_strided_slice %632 {offsets = [10, 0], sizes = [1, 16], strides = [1, 1]} : vector<25x16xf32> to vector<1x16xf32>
    %752 = vector.broadcast %751 : vector<1x16xf32> to vector<49x16xf32>
    %753 = arith.mulf %750, %752 : vector<49x16xf32>
    %754 = arith.addf %743, %753 : vector<49x16xf32>
    %755 = vector.extract_strided_slice %628 {offsets = [48, 0], sizes = [1, 16], strides = [1, 1]} : vector<49x16xf32> to vector<1x16xf32>
    %756 = vector.extract_strided_slice %628 {offsets = [0, 0], sizes = [48, 16], strides = [1, 1]} : vector<49x16xf32> to vector<48x16xf32>
    %757 = tpu.concatenate %755, %756 in 0 : vector<1x16xf32>, vector<48x16xf32> -> vector<49x16xf32>
    %758 = vector.extract_strided_slice %2 {offsets = [11, 0, 0], sizes = [1, 49, 1], strides = [1, 1, 1]} : vector<25x49x1xf32> to vector<1x49x1xf32>
    %759 = vector.shape_cast %758 : vector<1x49x1xf32> to vector<49x1xf32>
    %760 = vector.broadcast %759 : vector<49x1xf32> to vector<49x16xf32>
    %761 = arith.mulf %757, %760 : vector<49x16xf32>
    %762 = vector.extract_strided_slice %632 {offsets = [11, 0], sizes = [1, 16], strides = [1, 1]} : vector<25x16xf32> to vector<1x16xf32>
    %763 = vector.broadcast %762 : vector<1x16xf32> to vector<49x16xf32>
    %764 = arith.mulf %761, %763 : vector<49x16xf32>
    %765 = arith.addf %754, %764 : vector<49x16xf32>
    %766 = vector.extract_strided_slice %2 {offsets = [12, 0, 0], sizes = [1, 49, 1], strides = [1, 1, 1]} : vector<25x49x1xf32> to vector<1x49x1xf32>
    %767 = vector.shape_cast %766 : vector<1x49x1xf32> to vector<49x1xf32>
    %768 = vector.broadcast %767 : vector<49x1xf32> to vector<49x16xf32>
    %769 = arith.mulf %628, %768 : vector<49x16xf32>
    %770 = vector.extract_strided_slice %632 {offsets = [12, 0], sizes = [1, 16], strides = [1, 1]} : vector<25x16xf32> to vector<1x16xf32>
    %771 = vector.broadcast %770 : vector<1x16xf32> to vector<49x16xf32>
    %772 = arith.mulf %769, %771 : vector<49x16xf32>
    %773 = arith.addf %765, %772 : vector<49x16xf32>
    %774 = vector.extract_strided_slice %628 {offsets = [1, 0], sizes = [48, 16], strides = [1, 1]} : vector<49x16xf32> to vector<48x16xf32>
    %775 = vector.extract_strided_slice %628 {offsets = [0, 0], sizes = [1, 16], strides = [1, 1]} : vector<49x16xf32> to vector<1x16xf32>
    %776 = tpu.concatenate %774, %775 in 0 : vector<48x16xf32>, vector<1x16xf32> -> vector<49x16xf32>
    %777 = vector.extract_strided_slice %2 {offsets = [13, 0, 0], sizes = [1, 49, 1], strides = [1, 1, 1]} : vector<25x49x1xf32> to vector<1x49x1xf32>
    %778 = vector.shape_cast %777 : vector<1x49x1xf32> to vector<49x1xf32>
    %779 = vector.broadcast %778 : vector<49x1xf32> to vector<49x16xf32>
    %780 = arith.mulf %776, %779 : vector<49x16xf32>
    %781 = vector.extract_strided_slice %632 {offsets = [13, 0], sizes = [1, 16], strides = [1, 1]} : vector<25x16xf32> to vector<1x16xf32>
    %782 = vector.broadcast %781 : vector<1x16xf32> to vector<49x16xf32>
    %783 = arith.mulf %780, %782 : vector<49x16xf32>
    %784 = arith.addf %773, %783 : vector<49x16xf32>
    %785 = vector.extract_strided_slice %628 {offsets = [2, 0], sizes = [47, 16], strides = [1, 1]} : vector<49x16xf32> to vector<47x16xf32>
    %786 = vector.extract_strided_slice %628 {offsets = [0, 0], sizes = [2, 16], strides = [1, 1]} : vector<49x16xf32> to vector<2x16xf32>
    %787 = tpu.concatenate %785, %786 in 0 : vector<47x16xf32>, vector<2x16xf32> -> vector<49x16xf32>
    %788 = vector.extract_strided_slice %2 {offsets = [14, 0, 0], sizes = [1, 49, 1], strides = [1, 1, 1]} : vector<25x49x1xf32> to vector<1x49x1xf32>
    %789 = vector.shape_cast %788 : vector<1x49x1xf32> to vector<49x1xf32>
    %790 = vector.broadcast %789 : vector<49x1xf32> to vector<49x16xf32>
    %791 = arith.mulf %787, %790 : vector<49x16xf32>
    %792 = vector.extract_strided_slice %632 {offsets = [14, 0], sizes = [1, 16], strides = [1, 1]} : vector<25x16xf32> to vector<1x16xf32>
    %793 = vector.broadcast %792 : vector<1x16xf32> to vector<49x16xf32>
    %794 = arith.mulf %791, %793 : vector<49x16xf32>
    %795 = arith.addf %784, %794 : vector<49x16xf32>
    %796 = vector.extract_strided_slice %628 {offsets = [5, 0], sizes = [44, 16], strides = [1, 1]} : vector<49x16xf32> to vector<44x16xf32>
    %797 = vector.extract_strided_slice %628 {offsets = [0, 0], sizes = [5, 16], strides = [1, 1]} : vector<49x16xf32> to vector<5x16xf32>
    %798 = tpu.concatenate %796, %797 in 0 : vector<44x16xf32>, vector<5x16xf32> -> vector<49x16xf32>
    %799 = vector.extract_strided_slice %2 {offsets = [15, 0, 0], sizes = [1, 49, 1], strides = [1, 1, 1]} : vector<25x49x1xf32> to vector<1x49x1xf32>
    %800 = vector.shape_cast %799 : vector<1x49x1xf32> to vector<49x1xf32>
    %801 = vector.broadcast %800 : vector<49x1xf32> to vector<49x16xf32>
    %802 = arith.mulf %798, %801 : vector<49x16xf32>
    %803 = vector.extract_strided_slice %632 {offsets = [15, 0], sizes = [1, 16], strides = [1, 1]} : vector<25x16xf32> to vector<1x16xf32>
    %804 = vector.broadcast %803 : vector<1x16xf32> to vector<49x16xf32>
    %805 = arith.mulf %802, %804 : vector<49x16xf32>
    %806 = arith.addf %795, %805 : vector<49x16xf32>
    %807 = vector.extract_strided_slice %628 {offsets = [6, 0], sizes = [43, 16], strides = [1, 1]} : vector<49x16xf32> to vector<43x16xf32>
    %808 = vector.extract_strided_slice %628 {offsets = [0, 0], sizes = [6, 16], strides = [1, 1]} : vector<49x16xf32> to vector<6x16xf32>
    %809 = tpu.concatenate %807, %808 in 0 : vector<43x16xf32>, vector<6x16xf32> -> vector<49x16xf32>
    %810 = vector.extract_strided_slice %2 {offsets = [16, 0, 0], sizes = [1, 49, 1], strides = [1, 1, 1]} : vector<25x49x1xf32> to vector<1x49x1xf32>
    %811 = vector.shape_cast %810 : vector<1x49x1xf32> to vector<49x1xf32>
    %812 = vector.broadcast %811 : vector<49x1xf32> to vector<49x16xf32>
    %813 = arith.mulf %809, %812 : vector<49x16xf32>
    %814 = vector.extract_strided_slice %632 {offsets = [16, 0], sizes = [1, 16], strides = [1, 1]} : vector<25x16xf32> to vector<1x16xf32>
    %815 = vector.broadcast %814 : vector<1x16xf32> to vector<49x16xf32>
    %816 = arith.mulf %813, %815 : vector<49x16xf32>
    %817 = arith.addf %806, %816 : vector<49x16xf32>
    %818 = vector.extract_strided_slice %628 {offsets = [7, 0], sizes = [42, 16], strides = [1, 1]} : vector<49x16xf32> to vector<42x16xf32>
    %819 = vector.extract_strided_slice %628 {offsets = [0, 0], sizes = [7, 16], strides = [1, 1]} : vector<49x16xf32> to vector<7x16xf32>
    %820 = tpu.concatenate %818, %819 in 0 : vector<42x16xf32>, vector<7x16xf32> -> vector<49x16xf32>
    %821 = vector.extract_strided_slice %2 {offsets = [17, 0, 0], sizes = [1, 49, 1], strides = [1, 1, 1]} : vector<25x49x1xf32> to vector<1x49x1xf32>
    %822 = vector.shape_cast %821 : vector<1x49x1xf32> to vector<49x1xf32>
    %823 = vector.broadcast %822 : vector<49x1xf32> to vector<49x16xf32>
    %824 = arith.mulf %820, %823 : vector<49x16xf32>
    %825 = vector.extract_strided_slice %632 {offsets = [17, 0], sizes = [1, 16], strides = [1, 1]} : vector<25x16xf32> to vector<1x16xf32>
    %826 = vector.broadcast %825 : vector<1x16xf32> to vector<49x16xf32>
    %827 = arith.mulf %824, %826 : vector<49x16xf32>
    %828 = arith.addf %817, %827 : vector<49x16xf32>
    %829 = vector.extract_strided_slice %628 {offsets = [8, 0], sizes = [41, 16], strides = [1, 1]} : vector<49x16xf32> to vector<41x16xf32>
    %830 = vector.extract_strided_slice %628 {offsets = [0, 0], sizes = [8, 16], strides = [1, 1]} : vector<49x16xf32> to vector<8x16xf32>
    %831 = tpu.concatenate %829, %830 in 0 : vector<41x16xf32>, vector<8x16xf32> -> vector<49x16xf32>
    %832 = vector.extract_strided_slice %2 {offsets = [18, 0, 0], sizes = [1, 49, 1], strides = [1, 1, 1]} : vector<25x49x1xf32> to vector<1x49x1xf32>
    %833 = vector.shape_cast %832 : vector<1x49x1xf32> to vector<49x1xf32>
    %834 = vector.broadcast %833 : vector<49x1xf32> to vector<49x16xf32>
    %835 = arith.mulf %831, %834 : vector<49x16xf32>
    %836 = vector.extract_strided_slice %632 {offsets = [18, 0], sizes = [1, 16], strides = [1, 1]} : vector<25x16xf32> to vector<1x16xf32>
    %837 = vector.broadcast %836 : vector<1x16xf32> to vector<49x16xf32>
    %838 = arith.mulf %835, %837 : vector<49x16xf32>
    %839 = arith.addf %828, %838 : vector<49x16xf32>
    %840 = vector.extract_strided_slice %628 {offsets = [9, 0], sizes = [40, 16], strides = [1, 1]} : vector<49x16xf32> to vector<40x16xf32>
    %841 = vector.extract_strided_slice %628 {offsets = [0, 0], sizes = [9, 16], strides = [1, 1]} : vector<49x16xf32> to vector<9x16xf32>
    %842 = tpu.concatenate %840, %841 in 0 : vector<40x16xf32>, vector<9x16xf32> -> vector<49x16xf32>
    %843 = vector.extract_strided_slice %2 {offsets = [19, 0, 0], sizes = [1, 49, 1], strides = [1, 1, 1]} : vector<25x49x1xf32> to vector<1x49x1xf32>
    %844 = vector.shape_cast %843 : vector<1x49x1xf32> to vector<49x1xf32>
    %845 = vector.broadcast %844 : vector<49x1xf32> to vector<49x16xf32>
    %846 = arith.mulf %842, %845 : vector<49x16xf32>
    %847 = vector.extract_strided_slice %632 {offsets = [19, 0], sizes = [1, 16], strides = [1, 1]} : vector<25x16xf32> to vector<1x16xf32>
    %848 = vector.broadcast %847 : vector<1x16xf32> to vector<49x16xf32>
    %849 = arith.mulf %846, %848 : vector<49x16xf32>
    %850 = arith.addf %839, %849 : vector<49x16xf32>
    %851 = vector.extract_strided_slice %628 {offsets = [12, 0], sizes = [37, 16], strides = [1, 1]} : vector<49x16xf32> to vector<37x16xf32>
    %852 = vector.extract_strided_slice %628 {offsets = [0, 0], sizes = [12, 16], strides = [1, 1]} : vector<49x16xf32> to vector<12x16xf32>
    %853 = tpu.concatenate %851, %852 in 0 : vector<37x16xf32>, vector<12x16xf32> -> vector<49x16xf32>
    %854 = vector.extract_strided_slice %2 {offsets = [20, 0, 0], sizes = [1, 49, 1], strides = [1, 1, 1]} : vector<25x49x1xf32> to vector<1x49x1xf32>
    %855 = vector.shape_cast %854 : vector<1x49x1xf32> to vector<49x1xf32>
    %856 = vector.broadcast %855 : vector<49x1xf32> to vector<49x16xf32>
    %857 = arith.mulf %853, %856 : vector<49x16xf32>
    %858 = vector.extract_strided_slice %632 {offsets = [20, 0], sizes = [1, 16], strides = [1, 1]} : vector<25x16xf32> to vector<1x16xf32>
    %859 = vector.broadcast %858 : vector<1x16xf32> to vector<49x16xf32>
    %860 = arith.mulf %857, %859 : vector<49x16xf32>
    %861 = arith.addf %850, %860 : vector<49x16xf32>
    %862 = vector.extract_strided_slice %628 {offsets = [13, 0], sizes = [36, 16], strides = [1, 1]} : vector<49x16xf32> to vector<36x16xf32>
    %863 = vector.extract_strided_slice %628 {offsets = [0, 0], sizes = [13, 16], strides = [1, 1]} : vector<49x16xf32> to vector<13x16xf32>
    %864 = tpu.concatenate %862, %863 in 0 : vector<36x16xf32>, vector<13x16xf32> -> vector<49x16xf32>
    %865 = vector.extract_strided_slice %2 {offsets = [21, 0, 0], sizes = [1, 49, 1], strides = [1, 1, 1]} : vector<25x49x1xf32> to vector<1x49x1xf32>
    %866 = vector.shape_cast %865 : vector<1x49x1xf32> to vector<49x1xf32>
    %867 = vector.broadcast %866 : vector<49x1xf32> to vector<49x16xf32>
    %868 = arith.mulf %864, %867 : vector<49x16xf32>
    %869 = vector.extract_strided_slice %632 {offsets = [21, 0], sizes = [1, 16], strides = [1, 1]} : vector<25x16xf32> to vector<1x16xf32>
    %870 = vector.broadcast %869 : vector<1x16xf32> to vector<49x16xf32>
    %871 = arith.mulf %868, %870 : vector<49x16xf32>
    %872 = arith.addf %861, %871 : vector<49x16xf32>
    %873 = vector.extract_strided_slice %628 {offsets = [14, 0], sizes = [35, 16], strides = [1, 1]} : vector<49x16xf32> to vector<35x16xf32>
    %874 = vector.extract_strided_slice %628 {offsets = [0, 0], sizes = [14, 16], strides = [1, 1]} : vector<49x16xf32> to vector<14x16xf32>
    %875 = tpu.concatenate %873, %874 in 0 : vector<35x16xf32>, vector<14x16xf32> -> vector<49x16xf32>
    %876 = vector.extract_strided_slice %2 {offsets = [22, 0, 0], sizes = [1, 49, 1], strides = [1, 1, 1]} : vector<25x49x1xf32> to vector<1x49x1xf32>
    %877 = vector.shape_cast %876 : vector<1x49x1xf32> to vector<49x1xf32>
    %878 = vector.broadcast %877 : vector<49x1xf32> to vector<49x16xf32>
    %879 = arith.mulf %875, %878 : vector<49x16xf32>
    %880 = vector.extract_strided_slice %632 {offsets = [22, 0], sizes = [1, 16], strides = [1, 1]} : vector<25x16xf32> to vector<1x16xf32>
    %881 = vector.broadcast %880 : vector<1x16xf32> to vector<49x16xf32>
    %882 = arith.mulf %879, %881 : vector<49x16xf32>
    %883 = arith.addf %872, %882 : vector<49x16xf32>
    %884 = vector.extract_strided_slice %628 {offsets = [15, 0], sizes = [34, 16], strides = [1, 1]} : vector<49x16xf32> to vector<34x16xf32>
    %885 = vector.extract_strided_slice %628 {offsets = [0, 0], sizes = [15, 16], strides = [1, 1]} : vector<49x16xf32> to vector<15x16xf32>
    %886 = tpu.concatenate %884, %885 in 0 : vector<34x16xf32>, vector<15x16xf32> -> vector<49x16xf32>
    %887 = vector.extract_strided_slice %2 {offsets = [23, 0, 0], sizes = [1, 49, 1], strides = [1, 1, 1]} : vector<25x49x1xf32> to vector<1x49x1xf32>
    %888 = vector.shape_cast %887 : vector<1x49x1xf32> to vector<49x1xf32>
    %889 = vector.broadcast %888 : vector<49x1xf32> to vector<49x16xf32>
    %890 = arith.mulf %886, %889 : vector<49x16xf32>
    %891 = vector.extract_strided_slice %632 {offsets = [23, 0], sizes = [1, 16], strides = [1, 1]} : vector<25x16xf32> to vector<1x16xf32>
    %892 = vector.broadcast %891 : vector<1x16xf32> to vector<49x16xf32>
    %893 = arith.mulf %890, %892 : vector<49x16xf32>
    %894 = arith.addf %883, %893 : vector<49x16xf32>
    %895 = vector.extract_strided_slice %628 {offsets = [16, 0], sizes = [33, 16], strides = [1, 1]} : vector<49x16xf32> to vector<33x16xf32>
    %896 = vector.extract_strided_slice %628 {offsets = [0, 0], sizes = [16, 16], strides = [1, 1]} : vector<49x16xf32> to vector<16x16xf32>
    %897 = tpu.concatenate %895, %896 in 0 : vector<33x16xf32>, vector<16x16xf32> -> vector<49x16xf32>
    %898 = vector.extract_strided_slice %2 {offsets = [24, 0, 0], sizes = [1, 49, 1], strides = [1, 1, 1]} : vector<25x49x1xf32> to vector<1x49x1xf32>
    %899 = vector.shape_cast %898 : vector<1x49x1xf32> to vector<49x1xf32>
    %900 = vector.broadcast %899 : vector<49x1xf32> to vector<49x16xf32>
    %901 = arith.mulf %897, %900 : vector<49x16xf32>
    %902 = vector.extract_strided_slice %632 {offsets = [24, 0], sizes = [1, 16], strides = [1, 1]} : vector<25x16xf32> to vector<1x16xf32>
    %903 = vector.broadcast %902 : vector<1x16xf32> to vector<49x16xf32>
    %904 = arith.mulf %901, %903 : vector<49x16xf32>
    %905 = arith.addf %894, %904 : vector<49x16xf32>
    %c2_59 = arith.constant 2 : index
    %c0_60 = arith.constant 0 : index
    %c0_61 = arith.constant 0 : index
    %906 = vector.load %arg5[%c2_59, %c0_60, %c0_61] : memref<4x1x16xf32, #tpu.memory_space<vmem>>, vector<1x1x16xf32>
    %907 = vector.shape_cast %906 : vector<1x1x16xf32> to vector<1x16xf32>
    %908 = vector.broadcast %907 : vector<1x16xf32> to vector<49x16xf32>
    %909 = arith.addf %905, %908 : vector<49x16xf32>
    %cst_62 = arith.constant dense<0.000000e+00> : vector<49x49xf32>
    %910 = tpu.matmul %909, %629, %cst_62 {dimension_numbers = #tpu.dot_dimension_numbers<[1], [1], [0], [0], [0, 0, 1, 0], [], []>} : vector<49x16xf32>, vector<49x16xf32>, vector<49x49xf32> -> vector<49x49xf32>
    %cst_63 = arith.constant 2.500000e-01 : f32
    %911 = vector.broadcast %cst_63 : f32 to vector<49x49xf32>
    %912 = arith.mulf %910, %911 : vector<49x49xf32>
    %c2_64 = arith.constant 2 : index
    %c0_65 = arith.constant 0 : index
    %c0_66 = arith.constant 0 : index
    %913 = vector.load %arg7[%c2_64, %c0_65, %c0_66] : memref<4x49x49xf32, #tpu.memory_space<vmem>>, vector<1x49x49xf32>
    %914 = vector.shape_cast %913 : vector<1x49x49xf32> to vector<49x49xf32>
    %915 = arith.addf %912, %914 : vector<49x49xf32>
    %cst_67 = arith.constant dense<0xFF800000> : vector<49xf32>
    %916 = vector.multi_reduction <maximumf>, %915, %cst_67 [1] : vector<49x49xf32> to vector<49xf32>
    %917 = vector.shape_cast %916 : vector<49xf32> to vector<49x1xf32>
    %918 = vector.broadcast %917 : vector<49x1xf32> to vector<49x49xf32>
    %919 = arith.subf %915, %918 : vector<49x49xf32>
    %920 = math.exp %919 : vector<49x49xf32>
    %cst_68 = arith.constant dense<0.000000e+00> : vector<49xf32>
    %921 = vector.multi_reduction <add>, %920, %cst_68 [1] : vector<49x49xf32> to vector<49xf32>
    %922 = vector.shape_cast %921 : vector<49xf32> to vector<49x1xf32>
    %923 = tpu.reciprocal %922 {approx = true} : vector<49x1xf32> -> vector<49x1xf32>
    %924 = vector.broadcast %923 : vector<49x1xf32> to vector<49x49xf32>
    %925 = arith.mulf %920, %924 : vector<49x49xf32>
    %cst_69 = arith.constant dense<0.000000e+00> : vector<49x8xf32>
    %926 = tpu.matmul %925, %630, %cst_69 {dimension_numbers = #tpu.dot_dimension_numbers<[1], [0], [0], [1], [0, 0, 1, 1], [], []>} : vector<49x49xf32>, vector<49x8xf32>, vector<49x8xf32> -> vector<49x8xf32>
    %927 = vector.extract_strided_slice %1 {offsets = [0, 24], sizes = [49, 8], strides = [1, 1]} : vector<49x32xf32> to vector<49x8xf32>
    %928 = arith.addf %926, %927 : vector<49x8xf32>
    %c3 = arith.constant 3 : index
    %c0_70 = arith.constant 0 : index
    %c0_71 = arith.constant 0 : index
    %929 = vector.load %arg2[%c3, %c0_70, %c0_71] : memref<4x8x40xf32, #tpu.memory_space<vmem>>, vector<1x8x40xf32>
    %930 = vector.shape_cast %929 : vector<1x8x40xf32> to vector<8x40xf32>
    %cst_72 = arith.constant dense<0.000000e+00> : vector<49x40xf32>
    %931 = tpu.matmul %928, %930, %cst_72 {dimension_numbers = #tpu.dot_dimension_numbers<[1], [0], [0], [1], [0, 0, 1, 1], [], []>} : vector<49x8xf32>, vector<8x40xf32>, vector<49x40xf32> -> vector<49x40xf32>
    %c3_73 = arith.constant 3 : index
    %c0_74 = arith.constant 0 : index
    %c0_75 = arith.constant 0 : index
    %932 = vector.load %arg3[%c3_73, %c0_74, %c0_75] : memref<4x1x40xf32, #tpu.memory_space<vmem>>, vector<1x1x40xf32>
    %933 = vector.shape_cast %932 : vector<1x1x40xf32> to vector<1x40xf32>
    %934 = vector.broadcast %933 : vector<1x40xf32> to vector<49x40xf32>
    %935 = arith.addf %931, %934 : vector<49x40xf32>
    %936 = vector.extract_strided_slice %935 {offsets = [0, 0], sizes = [49, 16], strides = [1, 1]} : vector<49x40xf32> to vector<49x16xf32>
    %937 = vector.extract_strided_slice %935 {offsets = [0, 16], sizes = [49, 16], strides = [1, 1]} : vector<49x40xf32> to vector<49x16xf32>
    %938 = vector.extract_strided_slice %935 {offsets = [0, 32], sizes = [49, 8], strides = [1, 1]} : vector<49x40xf32> to vector<49x8xf32>
    %c3_76 = arith.constant 3 : index
    %c0_77 = arith.constant 0 : index
    %c0_78 = arith.constant 0 : index
    %939 = vector.load %arg4[%c3_76, %c0_77, %c0_78] : memref<4x25x16xf32, #tpu.memory_space<vmem>>, vector<1x25x16xf32>
    %940 = vector.shape_cast %939 : vector<1x25x16xf32> to vector<25x16xf32>
    %cst_79 = arith.constant 0.000000e+00 : f32
    %941 = vector.broadcast %cst_79 : f32 to vector<49x16xf32>
    %942 = vector.extract_strided_slice %936 {offsets = [33, 0], sizes = [16, 16], strides = [1, 1]} : vector<49x16xf32> to vector<16x16xf32>
    %943 = vector.extract_strided_slice %936 {offsets = [0, 0], sizes = [33, 16], strides = [1, 1]} : vector<49x16xf32> to vector<33x16xf32>
    %944 = tpu.concatenate %942, %943 in 0 : vector<16x16xf32>, vector<33x16xf32> -> vector<49x16xf32>
    %945 = vector.extract_strided_slice %2 {offsets = [0, 0, 0], sizes = [1, 49, 1], strides = [1, 1, 1]} : vector<25x49x1xf32> to vector<1x49x1xf32>
    %946 = vector.shape_cast %945 : vector<1x49x1xf32> to vector<49x1xf32>
    %947 = vector.broadcast %946 : vector<49x1xf32> to vector<49x16xf32>
    %948 = arith.mulf %944, %947 : vector<49x16xf32>
    %949 = vector.extract_strided_slice %940 {offsets = [0, 0], sizes = [1, 16], strides = [1, 1]} : vector<25x16xf32> to vector<1x16xf32>
    %950 = vector.broadcast %949 : vector<1x16xf32> to vector<49x16xf32>
    %951 = arith.mulf %948, %950 : vector<49x16xf32>
    %952 = arith.addf %941, %951 : vector<49x16xf32>
    %953 = vector.extract_strided_slice %936 {offsets = [34, 0], sizes = [15, 16], strides = [1, 1]} : vector<49x16xf32> to vector<15x16xf32>
    %954 = vector.extract_strided_slice %936 {offsets = [0, 0], sizes = [34, 16], strides = [1, 1]} : vector<49x16xf32> to vector<34x16xf32>
    %955 = tpu.concatenate %953, %954 in 0 : vector<15x16xf32>, vector<34x16xf32> -> vector<49x16xf32>
    %956 = vector.extract_strided_slice %2 {offsets = [1, 0, 0], sizes = [1, 49, 1], strides = [1, 1, 1]} : vector<25x49x1xf32> to vector<1x49x1xf32>
    %957 = vector.shape_cast %956 : vector<1x49x1xf32> to vector<49x1xf32>
    %958 = vector.broadcast %957 : vector<49x1xf32> to vector<49x16xf32>
    %959 = arith.mulf %955, %958 : vector<49x16xf32>
    %960 = vector.extract_strided_slice %940 {offsets = [1, 0], sizes = [1, 16], strides = [1, 1]} : vector<25x16xf32> to vector<1x16xf32>
    %961 = vector.broadcast %960 : vector<1x16xf32> to vector<49x16xf32>
    %962 = arith.mulf %959, %961 : vector<49x16xf32>
    %963 = arith.addf %952, %962 : vector<49x16xf32>
    %964 = vector.extract_strided_slice %936 {offsets = [35, 0], sizes = [14, 16], strides = [1, 1]} : vector<49x16xf32> to vector<14x16xf32>
    %965 = vector.extract_strided_slice %936 {offsets = [0, 0], sizes = [35, 16], strides = [1, 1]} : vector<49x16xf32> to vector<35x16xf32>
    %966 = tpu.concatenate %964, %965 in 0 : vector<14x16xf32>, vector<35x16xf32> -> vector<49x16xf32>
    %967 = vector.extract_strided_slice %2 {offsets = [2, 0, 0], sizes = [1, 49, 1], strides = [1, 1, 1]} : vector<25x49x1xf32> to vector<1x49x1xf32>
    %968 = vector.shape_cast %967 : vector<1x49x1xf32> to vector<49x1xf32>
    %969 = vector.broadcast %968 : vector<49x1xf32> to vector<49x16xf32>
    %970 = arith.mulf %966, %969 : vector<49x16xf32>
    %971 = vector.extract_strided_slice %940 {offsets = [2, 0], sizes = [1, 16], strides = [1, 1]} : vector<25x16xf32> to vector<1x16xf32>
    %972 = vector.broadcast %971 : vector<1x16xf32> to vector<49x16xf32>
    %973 = arith.mulf %970, %972 : vector<49x16xf32>
    %974 = arith.addf %963, %973 : vector<49x16xf32>
    %975 = vector.extract_strided_slice %936 {offsets = [36, 0], sizes = [13, 16], strides = [1, 1]} : vector<49x16xf32> to vector<13x16xf32>
    %976 = vector.extract_strided_slice %936 {offsets = [0, 0], sizes = [36, 16], strides = [1, 1]} : vector<49x16xf32> to vector<36x16xf32>
    %977 = tpu.concatenate %975, %976 in 0 : vector<13x16xf32>, vector<36x16xf32> -> vector<49x16xf32>
    %978 = vector.extract_strided_slice %2 {offsets = [3, 0, 0], sizes = [1, 49, 1], strides = [1, 1, 1]} : vector<25x49x1xf32> to vector<1x49x1xf32>
    %979 = vector.shape_cast %978 : vector<1x49x1xf32> to vector<49x1xf32>
    %980 = vector.broadcast %979 : vector<49x1xf32> to vector<49x16xf32>
    %981 = arith.mulf %977, %980 : vector<49x16xf32>
    %982 = vector.extract_strided_slice %940 {offsets = [3, 0], sizes = [1, 16], strides = [1, 1]} : vector<25x16xf32> to vector<1x16xf32>
    %983 = vector.broadcast %982 : vector<1x16xf32> to vector<49x16xf32>
    %984 = arith.mulf %981, %983 : vector<49x16xf32>
    %985 = arith.addf %974, %984 : vector<49x16xf32>
    %986 = vector.extract_strided_slice %936 {offsets = [37, 0], sizes = [12, 16], strides = [1, 1]} : vector<49x16xf32> to vector<12x16xf32>
    %987 = vector.extract_strided_slice %936 {offsets = [0, 0], sizes = [37, 16], strides = [1, 1]} : vector<49x16xf32> to vector<37x16xf32>
    %988 = tpu.concatenate %986, %987 in 0 : vector<12x16xf32>, vector<37x16xf32> -> vector<49x16xf32>
    %989 = vector.extract_strided_slice %2 {offsets = [4, 0, 0], sizes = [1, 49, 1], strides = [1, 1, 1]} : vector<25x49x1xf32> to vector<1x49x1xf32>
    %990 = vector.shape_cast %989 : vector<1x49x1xf32> to vector<49x1xf32>
    %991 = vector.broadcast %990 : vector<49x1xf32> to vector<49x16xf32>
    %992 = arith.mulf %988, %991 : vector<49x16xf32>
    %993 = vector.extract_strided_slice %940 {offsets = [4, 0], sizes = [1, 16], strides = [1, 1]} : vector<25x16xf32> to vector<1x16xf32>
    %994 = vector.broadcast %993 : vector<1x16xf32> to vector<49x16xf32>
    %995 = arith.mulf %992, %994 : vector<49x16xf32>
    %996 = arith.addf %985, %995 : vector<49x16xf32>
    %997 = vector.extract_strided_slice %936 {offsets = [40, 0], sizes = [9, 16], strides = [1, 1]} : vector<49x16xf32> to vector<9x16xf32>
    %998 = vector.extract_strided_slice %936 {offsets = [0, 0], sizes = [40, 16], strides = [1, 1]} : vector<49x16xf32> to vector<40x16xf32>
    %999 = tpu.concatenate %997, %998 in 0 : vector<9x16xf32>, vector<40x16xf32> -> vector<49x16xf32>
    %1000 = vector.extract_strided_slice %2 {offsets = [5, 0, 0], sizes = [1, 49, 1], strides = [1, 1, 1]} : vector<25x49x1xf32> to vector<1x49x1xf32>
    %1001 = vector.shape_cast %1000 : vector<1x49x1xf32> to vector<49x1xf32>
    %1002 = vector.broadcast %1001 : vector<49x1xf32> to vector<49x16xf32>
    %1003 = arith.mulf %999, %1002 : vector<49x16xf32>
    %1004 = vector.extract_strided_slice %940 {offsets = [5, 0], sizes = [1, 16], strides = [1, 1]} : vector<25x16xf32> to vector<1x16xf32>
    %1005 = vector.broadcast %1004 : vector<1x16xf32> to vector<49x16xf32>
    %1006 = arith.mulf %1003, %1005 : vector<49x16xf32>
    %1007 = arith.addf %996, %1006 : vector<49x16xf32>
    %1008 = vector.extract_strided_slice %936 {offsets = [41, 0], sizes = [8, 16], strides = [1, 1]} : vector<49x16xf32> to vector<8x16xf32>
    %1009 = vector.extract_strided_slice %936 {offsets = [0, 0], sizes = [41, 16], strides = [1, 1]} : vector<49x16xf32> to vector<41x16xf32>
    %1010 = tpu.concatenate %1008, %1009 in 0 : vector<8x16xf32>, vector<41x16xf32> -> vector<49x16xf32>
    %1011 = vector.extract_strided_slice %2 {offsets = [6, 0, 0], sizes = [1, 49, 1], strides = [1, 1, 1]} : vector<25x49x1xf32> to vector<1x49x1xf32>
    %1012 = vector.shape_cast %1011 : vector<1x49x1xf32> to vector<49x1xf32>
    %1013 = vector.broadcast %1012 : vector<49x1xf32> to vector<49x16xf32>
    %1014 = arith.mulf %1010, %1013 : vector<49x16xf32>
    %1015 = vector.extract_strided_slice %940 {offsets = [6, 0], sizes = [1, 16], strides = [1, 1]} : vector<25x16xf32> to vector<1x16xf32>
    %1016 = vector.broadcast %1015 : vector<1x16xf32> to vector<49x16xf32>
    %1017 = arith.mulf %1014, %1016 : vector<49x16xf32>
    %1018 = arith.addf %1007, %1017 : vector<49x16xf32>
    %1019 = vector.extract_strided_slice %936 {offsets = [42, 0], sizes = [7, 16], strides = [1, 1]} : vector<49x16xf32> to vector<7x16xf32>
    %1020 = vector.extract_strided_slice %936 {offsets = [0, 0], sizes = [42, 16], strides = [1, 1]} : vector<49x16xf32> to vector<42x16xf32>
    %1021 = tpu.concatenate %1019, %1020 in 0 : vector<7x16xf32>, vector<42x16xf32> -> vector<49x16xf32>
    %1022 = vector.extract_strided_slice %2 {offsets = [7, 0, 0], sizes = [1, 49, 1], strides = [1, 1, 1]} : vector<25x49x1xf32> to vector<1x49x1xf32>
    %1023 = vector.shape_cast %1022 : vector<1x49x1xf32> to vector<49x1xf32>
    %1024 = vector.broadcast %1023 : vector<49x1xf32> to vector<49x16xf32>
    %1025 = arith.mulf %1021, %1024 : vector<49x16xf32>
    %1026 = vector.extract_strided_slice %940 {offsets = [7, 0], sizes = [1, 16], strides = [1, 1]} : vector<25x16xf32> to vector<1x16xf32>
    %1027 = vector.broadcast %1026 : vector<1x16xf32> to vector<49x16xf32>
    %1028 = arith.mulf %1025, %1027 : vector<49x16xf32>
    %1029 = arith.addf %1018, %1028 : vector<49x16xf32>
    %1030 = vector.extract_strided_slice %936 {offsets = [43, 0], sizes = [6, 16], strides = [1, 1]} : vector<49x16xf32> to vector<6x16xf32>
    %1031 = vector.extract_strided_slice %936 {offsets = [0, 0], sizes = [43, 16], strides = [1, 1]} : vector<49x16xf32> to vector<43x16xf32>
    %1032 = tpu.concatenate %1030, %1031 in 0 : vector<6x16xf32>, vector<43x16xf32> -> vector<49x16xf32>
    %1033 = vector.extract_strided_slice %2 {offsets = [8, 0, 0], sizes = [1, 49, 1], strides = [1, 1, 1]} : vector<25x49x1xf32> to vector<1x49x1xf32>
    %1034 = vector.shape_cast %1033 : vector<1x49x1xf32> to vector<49x1xf32>
    %1035 = vector.broadcast %1034 : vector<49x1xf32> to vector<49x16xf32>
    %1036 = arith.mulf %1032, %1035 : vector<49x16xf32>
    %1037 = vector.extract_strided_slice %940 {offsets = [8, 0], sizes = [1, 16], strides = [1, 1]} : vector<25x16xf32> to vector<1x16xf32>
    %1038 = vector.broadcast %1037 : vector<1x16xf32> to vector<49x16xf32>
    %1039 = arith.mulf %1036, %1038 : vector<49x16xf32>
    %1040 = arith.addf %1029, %1039 : vector<49x16xf32>
    %1041 = vector.extract_strided_slice %936 {offsets = [44, 0], sizes = [5, 16], strides = [1, 1]} : vector<49x16xf32> to vector<5x16xf32>
    %1042 = vector.extract_strided_slice %936 {offsets = [0, 0], sizes = [44, 16], strides = [1, 1]} : vector<49x16xf32> to vector<44x16xf32>
    %1043 = tpu.concatenate %1041, %1042 in 0 : vector<5x16xf32>, vector<44x16xf32> -> vector<49x16xf32>
    %1044 = vector.extract_strided_slice %2 {offsets = [9, 0, 0], sizes = [1, 49, 1], strides = [1, 1, 1]} : vector<25x49x1xf32> to vector<1x49x1xf32>
    %1045 = vector.shape_cast %1044 : vector<1x49x1xf32> to vector<49x1xf32>
    %1046 = vector.broadcast %1045 : vector<49x1xf32> to vector<49x16xf32>
    %1047 = arith.mulf %1043, %1046 : vector<49x16xf32>
    %1048 = vector.extract_strided_slice %940 {offsets = [9, 0], sizes = [1, 16], strides = [1, 1]} : vector<25x16xf32> to vector<1x16xf32>
    %1049 = vector.broadcast %1048 : vector<1x16xf32> to vector<49x16xf32>
    %1050 = arith.mulf %1047, %1049 : vector<49x16xf32>
    %1051 = arith.addf %1040, %1050 : vector<49x16xf32>
    %1052 = vector.extract_strided_slice %936 {offsets = [47, 0], sizes = [2, 16], strides = [1, 1]} : vector<49x16xf32> to vector<2x16xf32>
    %1053 = vector.extract_strided_slice %936 {offsets = [0, 0], sizes = [47, 16], strides = [1, 1]} : vector<49x16xf32> to vector<47x16xf32>
    %1054 = tpu.concatenate %1052, %1053 in 0 : vector<2x16xf32>, vector<47x16xf32> -> vector<49x16xf32>
    %1055 = vector.extract_strided_slice %2 {offsets = [10, 0, 0], sizes = [1, 49, 1], strides = [1, 1, 1]} : vector<25x49x1xf32> to vector<1x49x1xf32>
    %1056 = vector.shape_cast %1055 : vector<1x49x1xf32> to vector<49x1xf32>
    %1057 = vector.broadcast %1056 : vector<49x1xf32> to vector<49x16xf32>
    %1058 = arith.mulf %1054, %1057 : vector<49x16xf32>
    %1059 = vector.extract_strided_slice %940 {offsets = [10, 0], sizes = [1, 16], strides = [1, 1]} : vector<25x16xf32> to vector<1x16xf32>
    %1060 = vector.broadcast %1059 : vector<1x16xf32> to vector<49x16xf32>
    %1061 = arith.mulf %1058, %1060 : vector<49x16xf32>
    %1062 = arith.addf %1051, %1061 : vector<49x16xf32>
    %1063 = vector.extract_strided_slice %936 {offsets = [48, 0], sizes = [1, 16], strides = [1, 1]} : vector<49x16xf32> to vector<1x16xf32>
    %1064 = vector.extract_strided_slice %936 {offsets = [0, 0], sizes = [48, 16], strides = [1, 1]} : vector<49x16xf32> to vector<48x16xf32>
    %1065 = tpu.concatenate %1063, %1064 in 0 : vector<1x16xf32>, vector<48x16xf32> -> vector<49x16xf32>
    %1066 = vector.extract_strided_slice %2 {offsets = [11, 0, 0], sizes = [1, 49, 1], strides = [1, 1, 1]} : vector<25x49x1xf32> to vector<1x49x1xf32>
    %1067 = vector.shape_cast %1066 : vector<1x49x1xf32> to vector<49x1xf32>
    %1068 = vector.broadcast %1067 : vector<49x1xf32> to vector<49x16xf32>
    %1069 = arith.mulf %1065, %1068 : vector<49x16xf32>
    %1070 = vector.extract_strided_slice %940 {offsets = [11, 0], sizes = [1, 16], strides = [1, 1]} : vector<25x16xf32> to vector<1x16xf32>
    %1071 = vector.broadcast %1070 : vector<1x16xf32> to vector<49x16xf32>
    %1072 = arith.mulf %1069, %1071 : vector<49x16xf32>
    %1073 = arith.addf %1062, %1072 : vector<49x16xf32>
    %1074 = vector.extract_strided_slice %2 {offsets = [12, 0, 0], sizes = [1, 49, 1], strides = [1, 1, 1]} : vector<25x49x1xf32> to vector<1x49x1xf32>
    %1075 = vector.shape_cast %1074 : vector<1x49x1xf32> to vector<49x1xf32>
    %1076 = vector.broadcast %1075 : vector<49x1xf32> to vector<49x16xf32>
    %1077 = arith.mulf %936, %1076 : vector<49x16xf32>
    %1078 = vector.extract_strided_slice %940 {offsets = [12, 0], sizes = [1, 16], strides = [1, 1]} : vector<25x16xf32> to vector<1x16xf32>
    %1079 = vector.broadcast %1078 : vector<1x16xf32> to vector<49x16xf32>
    %1080 = arith.mulf %1077, %1079 : vector<49x16xf32>
    %1081 = arith.addf %1073, %1080 : vector<49x16xf32>
    %1082 = vector.extract_strided_slice %936 {offsets = [1, 0], sizes = [48, 16], strides = [1, 1]} : vector<49x16xf32> to vector<48x16xf32>
    %1083 = vector.extract_strided_slice %936 {offsets = [0, 0], sizes = [1, 16], strides = [1, 1]} : vector<49x16xf32> to vector<1x16xf32>
    %1084 = tpu.concatenate %1082, %1083 in 0 : vector<48x16xf32>, vector<1x16xf32> -> vector<49x16xf32>
    %1085 = vector.extract_strided_slice %2 {offsets = [13, 0, 0], sizes = [1, 49, 1], strides = [1, 1, 1]} : vector<25x49x1xf32> to vector<1x49x1xf32>
    %1086 = vector.shape_cast %1085 : vector<1x49x1xf32> to vector<49x1xf32>
    %1087 = vector.broadcast %1086 : vector<49x1xf32> to vector<49x16xf32>
    %1088 = arith.mulf %1084, %1087 : vector<49x16xf32>
    %1089 = vector.extract_strided_slice %940 {offsets = [13, 0], sizes = [1, 16], strides = [1, 1]} : vector<25x16xf32> to vector<1x16xf32>
    %1090 = vector.broadcast %1089 : vector<1x16xf32> to vector<49x16xf32>
    %1091 = arith.mulf %1088, %1090 : vector<49x16xf32>
    %1092 = arith.addf %1081, %1091 : vector<49x16xf32>
    %1093 = vector.extract_strided_slice %936 {offsets = [2, 0], sizes = [47, 16], strides = [1, 1]} : vector<49x16xf32> to vector<47x16xf32>
    %1094 = vector.extract_strided_slice %936 {offsets = [0, 0], sizes = [2, 16], strides = [1, 1]} : vector<49x16xf32> to vector<2x16xf32>
    %1095 = tpu.concatenate %1093, %1094 in 0 : vector<47x16xf32>, vector<2x16xf32> -> vector<49x16xf32>
    %1096 = vector.extract_strided_slice %2 {offsets = [14, 0, 0], sizes = [1, 49, 1], strides = [1, 1, 1]} : vector<25x49x1xf32> to vector<1x49x1xf32>
    %1097 = vector.shape_cast %1096 : vector<1x49x1xf32> to vector<49x1xf32>
    %1098 = vector.broadcast %1097 : vector<49x1xf32> to vector<49x16xf32>
    %1099 = arith.mulf %1095, %1098 : vector<49x16xf32>
    %1100 = vector.extract_strided_slice %940 {offsets = [14, 0], sizes = [1, 16], strides = [1, 1]} : vector<25x16xf32> to vector<1x16xf32>
    %1101 = vector.broadcast %1100 : vector<1x16xf32> to vector<49x16xf32>
    %1102 = arith.mulf %1099, %1101 : vector<49x16xf32>
    %1103 = arith.addf %1092, %1102 : vector<49x16xf32>
    %1104 = vector.extract_strided_slice %936 {offsets = [5, 0], sizes = [44, 16], strides = [1, 1]} : vector<49x16xf32> to vector<44x16xf32>
    %1105 = vector.extract_strided_slice %936 {offsets = [0, 0], sizes = [5, 16], strides = [1, 1]} : vector<49x16xf32> to vector<5x16xf32>
    %1106 = tpu.concatenate %1104, %1105 in 0 : vector<44x16xf32>, vector<5x16xf32> -> vector<49x16xf32>
    %1107 = vector.extract_strided_slice %2 {offsets = [15, 0, 0], sizes = [1, 49, 1], strides = [1, 1, 1]} : vector<25x49x1xf32> to vector<1x49x1xf32>
    %1108 = vector.shape_cast %1107 : vector<1x49x1xf32> to vector<49x1xf32>
    %1109 = vector.broadcast %1108 : vector<49x1xf32> to vector<49x16xf32>
    %1110 = arith.mulf %1106, %1109 : vector<49x16xf32>
    %1111 = vector.extract_strided_slice %940 {offsets = [15, 0], sizes = [1, 16], strides = [1, 1]} : vector<25x16xf32> to vector<1x16xf32>
    %1112 = vector.broadcast %1111 : vector<1x16xf32> to vector<49x16xf32>
    %1113 = arith.mulf %1110, %1112 : vector<49x16xf32>
    %1114 = arith.addf %1103, %1113 : vector<49x16xf32>
    %1115 = vector.extract_strided_slice %936 {offsets = [6, 0], sizes = [43, 16], strides = [1, 1]} : vector<49x16xf32> to vector<43x16xf32>
    %1116 = vector.extract_strided_slice %936 {offsets = [0, 0], sizes = [6, 16], strides = [1, 1]} : vector<49x16xf32> to vector<6x16xf32>
    %1117 = tpu.concatenate %1115, %1116 in 0 : vector<43x16xf32>, vector<6x16xf32> -> vector<49x16xf32>
    %1118 = vector.extract_strided_slice %2 {offsets = [16, 0, 0], sizes = [1, 49, 1], strides = [1, 1, 1]} : vector<25x49x1xf32> to vector<1x49x1xf32>
    %1119 = vector.shape_cast %1118 : vector<1x49x1xf32> to vector<49x1xf32>
    %1120 = vector.broadcast %1119 : vector<49x1xf32> to vector<49x16xf32>
    %1121 = arith.mulf %1117, %1120 : vector<49x16xf32>
    %1122 = vector.extract_strided_slice %940 {offsets = [16, 0], sizes = [1, 16], strides = [1, 1]} : vector<25x16xf32> to vector<1x16xf32>
    %1123 = vector.broadcast %1122 : vector<1x16xf32> to vector<49x16xf32>
    %1124 = arith.mulf %1121, %1123 : vector<49x16xf32>
    %1125 = arith.addf %1114, %1124 : vector<49x16xf32>
    %1126 = vector.extract_strided_slice %936 {offsets = [7, 0], sizes = [42, 16], strides = [1, 1]} : vector<49x16xf32> to vector<42x16xf32>
    %1127 = vector.extract_strided_slice %936 {offsets = [0, 0], sizes = [7, 16], strides = [1, 1]} : vector<49x16xf32> to vector<7x16xf32>
    %1128 = tpu.concatenate %1126, %1127 in 0 : vector<42x16xf32>, vector<7x16xf32> -> vector<49x16xf32>
    %1129 = vector.extract_strided_slice %2 {offsets = [17, 0, 0], sizes = [1, 49, 1], strides = [1, 1, 1]} : vector<25x49x1xf32> to vector<1x49x1xf32>
    %1130 = vector.shape_cast %1129 : vector<1x49x1xf32> to vector<49x1xf32>
    %1131 = vector.broadcast %1130 : vector<49x1xf32> to vector<49x16xf32>
    %1132 = arith.mulf %1128, %1131 : vector<49x16xf32>
    %1133 = vector.extract_strided_slice %940 {offsets = [17, 0], sizes = [1, 16], strides = [1, 1]} : vector<25x16xf32> to vector<1x16xf32>
    %1134 = vector.broadcast %1133 : vector<1x16xf32> to vector<49x16xf32>
    %1135 = arith.mulf %1132, %1134 : vector<49x16xf32>
    %1136 = arith.addf %1125, %1135 : vector<49x16xf32>
    %1137 = vector.extract_strided_slice %936 {offsets = [8, 0], sizes = [41, 16], strides = [1, 1]} : vector<49x16xf32> to vector<41x16xf32>
    %1138 = vector.extract_strided_slice %936 {offsets = [0, 0], sizes = [8, 16], strides = [1, 1]} : vector<49x16xf32> to vector<8x16xf32>
    %1139 = tpu.concatenate %1137, %1138 in 0 : vector<41x16xf32>, vector<8x16xf32> -> vector<49x16xf32>
    %1140 = vector.extract_strided_slice %2 {offsets = [18, 0, 0], sizes = [1, 49, 1], strides = [1, 1, 1]} : vector<25x49x1xf32> to vector<1x49x1xf32>
    %1141 = vector.shape_cast %1140 : vector<1x49x1xf32> to vector<49x1xf32>
    %1142 = vector.broadcast %1141 : vector<49x1xf32> to vector<49x16xf32>
    %1143 = arith.mulf %1139, %1142 : vector<49x16xf32>
    %1144 = vector.extract_strided_slice %940 {offsets = [18, 0], sizes = [1, 16], strides = [1, 1]} : vector<25x16xf32> to vector<1x16xf32>
    %1145 = vector.broadcast %1144 : vector<1x16xf32> to vector<49x16xf32>
    %1146 = arith.mulf %1143, %1145 : vector<49x16xf32>
    %1147 = arith.addf %1136, %1146 : vector<49x16xf32>
    %1148 = vector.extract_strided_slice %936 {offsets = [9, 0], sizes = [40, 16], strides = [1, 1]} : vector<49x16xf32> to vector<40x16xf32>
    %1149 = vector.extract_strided_slice %936 {offsets = [0, 0], sizes = [9, 16], strides = [1, 1]} : vector<49x16xf32> to vector<9x16xf32>
    %1150 = tpu.concatenate %1148, %1149 in 0 : vector<40x16xf32>, vector<9x16xf32> -> vector<49x16xf32>
    %1151 = vector.extract_strided_slice %2 {offsets = [19, 0, 0], sizes = [1, 49, 1], strides = [1, 1, 1]} : vector<25x49x1xf32> to vector<1x49x1xf32>
    %1152 = vector.shape_cast %1151 : vector<1x49x1xf32> to vector<49x1xf32>
    %1153 = vector.broadcast %1152 : vector<49x1xf32> to vector<49x16xf32>
    %1154 = arith.mulf %1150, %1153 : vector<49x16xf32>
    %1155 = vector.extract_strided_slice %940 {offsets = [19, 0], sizes = [1, 16], strides = [1, 1]} : vector<25x16xf32> to vector<1x16xf32>
    %1156 = vector.broadcast %1155 : vector<1x16xf32> to vector<49x16xf32>
    %1157 = arith.mulf %1154, %1156 : vector<49x16xf32>
    %1158 = arith.addf %1147, %1157 : vector<49x16xf32>
    %1159 = vector.extract_strided_slice %936 {offsets = [12, 0], sizes = [37, 16], strides = [1, 1]} : vector<49x16xf32> to vector<37x16xf32>
    %1160 = vector.extract_strided_slice %936 {offsets = [0, 0], sizes = [12, 16], strides = [1, 1]} : vector<49x16xf32> to vector<12x16xf32>
    %1161 = tpu.concatenate %1159, %1160 in 0 : vector<37x16xf32>, vector<12x16xf32> -> vector<49x16xf32>
    %1162 = vector.extract_strided_slice %2 {offsets = [20, 0, 0], sizes = [1, 49, 1], strides = [1, 1, 1]} : vector<25x49x1xf32> to vector<1x49x1xf32>
    %1163 = vector.shape_cast %1162 : vector<1x49x1xf32> to vector<49x1xf32>
    %1164 = vector.broadcast %1163 : vector<49x1xf32> to vector<49x16xf32>
    %1165 = arith.mulf %1161, %1164 : vector<49x16xf32>
    %1166 = vector.extract_strided_slice %940 {offsets = [20, 0], sizes = [1, 16], strides = [1, 1]} : vector<25x16xf32> to vector<1x16xf32>
    %1167 = vector.broadcast %1166 : vector<1x16xf32> to vector<49x16xf32>
    %1168 = arith.mulf %1165, %1167 : vector<49x16xf32>
    %1169 = arith.addf %1158, %1168 : vector<49x16xf32>
    %1170 = vector.extract_strided_slice %936 {offsets = [13, 0], sizes = [36, 16], strides = [1, 1]} : vector<49x16xf32> to vector<36x16xf32>
    %1171 = vector.extract_strided_slice %936 {offsets = [0, 0], sizes = [13, 16], strides = [1, 1]} : vector<49x16xf32> to vector<13x16xf32>
    %1172 = tpu.concatenate %1170, %1171 in 0 : vector<36x16xf32>, vector<13x16xf32> -> vector<49x16xf32>
    %1173 = vector.extract_strided_slice %2 {offsets = [21, 0, 0], sizes = [1, 49, 1], strides = [1, 1, 1]} : vector<25x49x1xf32> to vector<1x49x1xf32>
    %1174 = vector.shape_cast %1173 : vector<1x49x1xf32> to vector<49x1xf32>
    %1175 = vector.broadcast %1174 : vector<49x1xf32> to vector<49x16xf32>
    %1176 = arith.mulf %1172, %1175 : vector<49x16xf32>
    %1177 = vector.extract_strided_slice %940 {offsets = [21, 0], sizes = [1, 16], strides = [1, 1]} : vector<25x16xf32> to vector<1x16xf32>
    %1178 = vector.broadcast %1177 : vector<1x16xf32> to vector<49x16xf32>
    %1179 = arith.mulf %1176, %1178 : vector<49x16xf32>
    %1180 = arith.addf %1169, %1179 : vector<49x16xf32>
    %1181 = vector.extract_strided_slice %936 {offsets = [14, 0], sizes = [35, 16], strides = [1, 1]} : vector<49x16xf32> to vector<35x16xf32>
    %1182 = vector.extract_strided_slice %936 {offsets = [0, 0], sizes = [14, 16], strides = [1, 1]} : vector<49x16xf32> to vector<14x16xf32>
    %1183 = tpu.concatenate %1181, %1182 in 0 : vector<35x16xf32>, vector<14x16xf32> -> vector<49x16xf32>
    %1184 = vector.extract_strided_slice %2 {offsets = [22, 0, 0], sizes = [1, 49, 1], strides = [1, 1, 1]} : vector<25x49x1xf32> to vector<1x49x1xf32>
    %1185 = vector.shape_cast %1184 : vector<1x49x1xf32> to vector<49x1xf32>
    %1186 = vector.broadcast %1185 : vector<49x1xf32> to vector<49x16xf32>
    %1187 = arith.mulf %1183, %1186 : vector<49x16xf32>
    %1188 = vector.extract_strided_slice %940 {offsets = [22, 0], sizes = [1, 16], strides = [1, 1]} : vector<25x16xf32> to vector<1x16xf32>
    %1189 = vector.broadcast %1188 : vector<1x16xf32> to vector<49x16xf32>
    %1190 = arith.mulf %1187, %1189 : vector<49x16xf32>
    %1191 = arith.addf %1180, %1190 : vector<49x16xf32>
    %1192 = vector.extract_strided_slice %936 {offsets = [15, 0], sizes = [34, 16], strides = [1, 1]} : vector<49x16xf32> to vector<34x16xf32>
    %1193 = vector.extract_strided_slice %936 {offsets = [0, 0], sizes = [15, 16], strides = [1, 1]} : vector<49x16xf32> to vector<15x16xf32>
    %1194 = tpu.concatenate %1192, %1193 in 0 : vector<34x16xf32>, vector<15x16xf32> -> vector<49x16xf32>
    %1195 = vector.extract_strided_slice %2 {offsets = [23, 0, 0], sizes = [1, 49, 1], strides = [1, 1, 1]} : vector<25x49x1xf32> to vector<1x49x1xf32>
    %1196 = vector.shape_cast %1195 : vector<1x49x1xf32> to vector<49x1xf32>
    %1197 = vector.broadcast %1196 : vector<49x1xf32> to vector<49x16xf32>
    %1198 = arith.mulf %1194, %1197 : vector<49x16xf32>
    %1199 = vector.extract_strided_slice %940 {offsets = [23, 0], sizes = [1, 16], strides = [1, 1]} : vector<25x16xf32> to vector<1x16xf32>
    %1200 = vector.broadcast %1199 : vector<1x16xf32> to vector<49x16xf32>
    %1201 = arith.mulf %1198, %1200 : vector<49x16xf32>
    %1202 = arith.addf %1191, %1201 : vector<49x16xf32>
    %1203 = vector.extract_strided_slice %936 {offsets = [16, 0], sizes = [33, 16], strides = [1, 1]} : vector<49x16xf32> to vector<33x16xf32>
    %1204 = vector.extract_strided_slice %936 {offsets = [0, 0], sizes = [16, 16], strides = [1, 1]} : vector<49x16xf32> to vector<16x16xf32>
    %1205 = tpu.concatenate %1203, %1204 in 0 : vector<33x16xf32>, vector<16x16xf32> -> vector<49x16xf32>
    %1206 = vector.extract_strided_slice %2 {offsets = [24, 0, 0], sizes = [1, 49, 1], strides = [1, 1, 1]} : vector<25x49x1xf32> to vector<1x49x1xf32>
    %1207 = vector.shape_cast %1206 : vector<1x49x1xf32> to vector<49x1xf32>
    %1208 = vector.broadcast %1207 : vector<49x1xf32> to vector<49x16xf32>
    %1209 = arith.mulf %1205, %1208 : vector<49x16xf32>
    %1210 = vector.extract_strided_slice %940 {offsets = [24, 0], sizes = [1, 16], strides = [1, 1]} : vector<25x16xf32> to vector<1x16xf32>
    %1211 = vector.broadcast %1210 : vector<1x16xf32> to vector<49x16xf32>
    %1212 = arith.mulf %1209, %1211 : vector<49x16xf32>
    %1213 = arith.addf %1202, %1212 : vector<49x16xf32>
    %c3_80 = arith.constant 3 : index
    %c0_81 = arith.constant 0 : index
    %c0_82 = arith.constant 0 : index
    %1214 = vector.load %arg5[%c3_80, %c0_81, %c0_82] : memref<4x1x16xf32, #tpu.memory_space<vmem>>, vector<1x1x16xf32>
    %1215 = vector.shape_cast %1214 : vector<1x1x16xf32> to vector<1x16xf32>
    %1216 = vector.broadcast %1215 : vector<1x16xf32> to vector<49x16xf32>
    %1217 = arith.addf %1213, %1216 : vector<49x16xf32>
    %cst_83 = arith.constant dense<0.000000e+00> : vector<49x49xf32>
    %1218 = tpu.matmul %1217, %937, %cst_83 {dimension_numbers = #tpu.dot_dimension_numbers<[1], [1], [0], [0], [0, 0, 1, 0], [], []>} : vector<49x16xf32>, vector<49x16xf32>, vector<49x49xf32> -> vector<49x49xf32>
    %cst_84 = arith.constant 2.500000e-01 : f32
    %1219 = vector.broadcast %cst_84 : f32 to vector<49x49xf32>
    %1220 = arith.mulf %1218, %1219 : vector<49x49xf32>
    %c3_85 = arith.constant 3 : index
    %c0_86 = arith.constant 0 : index
    %c0_87 = arith.constant 0 : index
    %1221 = vector.load %arg7[%c3_85, %c0_86, %c0_87] : memref<4x49x49xf32, #tpu.memory_space<vmem>>, vector<1x49x49xf32>
    %1222 = vector.shape_cast %1221 : vector<1x49x49xf32> to vector<49x49xf32>
    %1223 = arith.addf %1220, %1222 : vector<49x49xf32>
    %cst_88 = arith.constant dense<0xFF800000> : vector<49xf32>
    %1224 = vector.multi_reduction <maximumf>, %1223, %cst_88 [1] : vector<49x49xf32> to vector<49xf32>
    %1225 = vector.shape_cast %1224 : vector<49xf32> to vector<49x1xf32>
    %1226 = vector.broadcast %1225 : vector<49x1xf32> to vector<49x49xf32>
    %1227 = arith.subf %1223, %1226 : vector<49x49xf32>
    %1228 = math.exp %1227 : vector<49x49xf32>
    %cst_89 = arith.constant dense<0.000000e+00> : vector<49xf32>
    %1229 = vector.multi_reduction <add>, %1228, %cst_89 [1] : vector<49x49xf32> to vector<49xf32>
    %1230 = vector.shape_cast %1229 : vector<49xf32> to vector<49x1xf32>
    %1231 = tpu.reciprocal %1230 {approx = true} : vector<49x1xf32> -> vector<49x1xf32>
    %1232 = vector.broadcast %1231 : vector<49x1xf32> to vector<49x49xf32>
    %1233 = arith.mulf %1228, %1232 : vector<49x49xf32>
    %cst_90 = arith.constant dense<0.000000e+00> : vector<49x8xf32>
    %1234 = tpu.matmul %1233, %938, %cst_90 {dimension_numbers = #tpu.dot_dimension_numbers<[1], [0], [0], [1], [0, 0, 1, 1], [], []>} : vector<49x49xf32>, vector<49x8xf32>, vector<49x8xf32> -> vector<49x8xf32>
    %1235 = tpu.concatenate %310, %618, %926, %1234 in 1 : vector<49x8xf32>, vector<49x8xf32>, vector<49x8xf32>, vector<49x8xf32> -> vector<49x32xf32>
    %cst_91 = arith.constant 0.000000e+00 : f32
    %1236 = vector.broadcast %cst_91 : f32 to vector<49x32xf32>
    %1237 = arith.maximumf %1235, %1236 : vector<49x32xf32>
    %c0_92 = arith.constant 0 : index
    %c0_93 = arith.constant 0 : index
    %1238 = vector.load %arg8[%c0_92, %c0_93] : memref<32x32xf32, #tpu.memory_space<vmem>>, vector<32x32xf32>
    %cst_94 = arith.constant dense<0.000000e+00> : vector<49x32xf32>
    %1239 = tpu.matmul %1237, %1238, %cst_94 {dimension_numbers = #tpu.dot_dimension_numbers<[1], [0], [0], [1], [0, 0, 1, 1], [], []>} : vector<49x32xf32>, vector<32x32xf32>, vector<49x32xf32> -> vector<49x32xf32>
    %c0_95 = arith.constant 0 : index
    %c0_96 = arith.constant 0 : index
    %1240 = vector.load %arg9[%c0_95, %c0_96] : memref<1x32xf32, #tpu.memory_space<vmem>>, vector<1x32xf32>
    %1241 = vector.broadcast %1240 : vector<1x32xf32> to vector<49x32xf32>
    %1242 = arith.addf %1239, %1241 : vector<49x32xf32>
    %1243 = arith.addf %1, %1242 : vector<49x32xf32>
    %1244 = vector.extract_strided_slice %3 {offsets = [0, 0], sizes = [1, 32], strides = [1, 1]} : vector<4x32xf32> to vector<1x32xf32>
    %1245 = vector.extract_strided_slice %3 {offsets = [1, 0], sizes = [1, 32], strides = [1, 1]} : vector<4x32xf32> to vector<1x32xf32>
    %cst_97 = arith.constant dense<0.000000e+00> : vector<49xf32>
    %1246 = vector.multi_reduction <add>, %1243, %cst_97 [1] : vector<49x32xf32> to vector<49xf32>
    %1247 = vector.shape_cast %1246 : vector<49xf32> to vector<49x1xf32>
    %cst_98 = arith.constant 3.200000e+01 : f32
    %1248 = vector.broadcast %cst_98 : f32 to vector<49x1xf32>
    %1249 = arith.divf %1247, %1248 : vector<49x1xf32>
    %1250 = vector.broadcast %1249 : vector<49x1xf32> to vector<49x32xf32>
    %1251 = arith.subf %1243, %1250 : vector<49x32xf32>
    %1252 = arith.mulf %1251, %1251 : vector<49x32xf32>
    %cst_99 = arith.constant dense<0.000000e+00> : vector<49xf32>
    %1253 = vector.multi_reduction <add>, %1252, %cst_99 [1] : vector<49x32xf32> to vector<49xf32>
    %1254 = vector.shape_cast %1253 : vector<49xf32> to vector<49x1xf32>
    %cst_100 = arith.constant 3.200000e+01 : f32
    %1255 = vector.broadcast %cst_100 : f32 to vector<49x1xf32>
    %1256 = arith.divf %1254, %1255 : vector<49x1xf32>
    %cst_101 = arith.constant 9.99999997E-7 : f32
    %1257 = vector.broadcast %cst_101 : f32 to vector<49x1xf32>
    %1258 = arith.addf %1256, %1257 : vector<49x1xf32>
    %1259 = math.rsqrt %1258 : vector<49x1xf32>
    %1260 = vector.broadcast %1259 : vector<49x1xf32> to vector<49x32xf32>
    %1261 = arith.mulf %1251, %1260 : vector<49x32xf32>
    %1262 = vector.broadcast %1244 : vector<1x32xf32> to vector<49x32xf32>
    %1263 = arith.mulf %1261, %1262 : vector<49x32xf32>
    %1264 = vector.broadcast %1245 : vector<1x32xf32> to vector<49x32xf32>
    %1265 = arith.addf %1263, %1264 : vector<49x32xf32>
    %c0_102 = arith.constant 0 : index
    %c0_103 = arith.constant 0 : index
    %1266 = vector.load %arg10[%c0_102, %c0_103] : memref<32x128xf32, #tpu.memory_space<vmem>>, vector<32x128xf32>
    %cst_104 = arith.constant dense<0.000000e+00> : vector<49x128xf32>
    %1267 = tpu.matmul %1265, %1266, %cst_104 {dimension_numbers = #tpu.dot_dimension_numbers<[1], [0], [0], [1], [0, 0, 1, 1], [], []>} : vector<49x32xf32>, vector<32x128xf32>, vector<49x128xf32> -> vector<49x128xf32>
    %c0_105 = arith.constant 0 : index
    %c0_106 = arith.constant 0 : index
    %1268 = vector.load %arg11[%c0_105, %c0_106] : memref<1x128xf32, #tpu.memory_space<vmem>>, vector<1x128xf32>
    %1269 = vector.broadcast %1268 : vector<1x128xf32> to vector<49x128xf32>
    %1270 = arith.addf %1267, %1269 : vector<49x128xf32>
    %1271 = arith.mulf %1270, %1270 : vector<49x128xf32>
    %1272 = arith.mulf %1270, %1271 : vector<49x128xf32>
    %cst_107 = arith.constant 4.471500e-02 : f32
    %1273 = vector.broadcast %cst_107 : f32 to vector<49x128xf32>
    %1274 = arith.mulf %1273, %1272 : vector<49x128xf32>
    %1275 = arith.addf %1270, %1274 : vector<49x128xf32>
    %cst_108 = arith.constant 0.797884583 : f32
    %1276 = vector.broadcast %cst_108 : f32 to vector<49x128xf32>
    %1277 = arith.mulf %1276, %1275 : vector<49x128xf32>
    %1278 = math.tanh %1277 : vector<49x128xf32>
    %cst_109 = arith.constant 1.000000e+00 : f32
    %1279 = vector.broadcast %cst_109 : f32 to vector<49x128xf32>
    %1280 = arith.addf %1279, %1278 : vector<49x128xf32>
    %cst_110 = arith.constant 5.000000e-01 : f32
    %1281 = vector.broadcast %cst_110 : f32 to vector<49x128xf32>
    %1282 = arith.mulf %1281, %1280 : vector<49x128xf32>
    %1283 = arith.mulf %1270, %1282 : vector<49x128xf32>
    %c0_111 = arith.constant 0 : index
    %c0_112 = arith.constant 0 : index
    %1284 = vector.load %arg12[%c0_111, %c0_112] : memref<128x32xf32, #tpu.memory_space<vmem>>, vector<128x32xf32>
    %cst_113 = arith.constant dense<0.000000e+00> : vector<49x32xf32>
    %1285 = tpu.matmul %1283, %1284, %cst_113 {dimension_numbers = #tpu.dot_dimension_numbers<[1], [0], [0], [1], [0, 0, 1, 1], [], []>} : vector<49x128xf32>, vector<128x32xf32>, vector<49x32xf32> -> vector<49x32xf32>
    %c0_114 = arith.constant 0 : index
    %c0_115 = arith.constant 0 : index
    %1286 = vector.load %arg13[%c0_114, %c0_115] : memref<1x32xf32, #tpu.memory_space<vmem>>, vector<1x32xf32>
    %1287 = vector.broadcast %1286 : vector<1x32xf32> to vector<49x32xf32>
    %1288 = arith.addf %1285, %1287 : vector<49x32xf32>
    %1289 = arith.addf %1265, %1288 : vector<49x32xf32>
    %1290 = vector.extract_strided_slice %3 {offsets = [2, 0], sizes = [1, 32], strides = [1, 1]} : vector<4x32xf32> to vector<1x32xf32>
    %1291 = vector.extract_strided_slice %3 {offsets = [3, 0], sizes = [1, 32], strides = [1, 1]} : vector<4x32xf32> to vector<1x32xf32>
    %cst_116 = arith.constant dense<0.000000e+00> : vector<49xf32>
    %1292 = vector.multi_reduction <add>, %1289, %cst_116 [1] : vector<49x32xf32> to vector<49xf32>
    %1293 = vector.shape_cast %1292 : vector<49xf32> to vector<49x1xf32>
    %cst_117 = arith.constant 3.200000e+01 : f32
    %1294 = vector.broadcast %cst_117 : f32 to vector<49x1xf32>
    %1295 = arith.divf %1293, %1294 : vector<49x1xf32>
    %1296 = vector.broadcast %1295 : vector<49x1xf32> to vector<49x32xf32>
    %1297 = arith.subf %1289, %1296 : vector<49x32xf32>
    %1298 = arith.mulf %1297, %1297 : vector<49x32xf32>
    %cst_118 = arith.constant dense<0.000000e+00> : vector<49xf32>
    %1299 = vector.multi_reduction <add>, %1298, %cst_118 [1] : vector<49x32xf32> to vector<49xf32>
    %1300 = vector.shape_cast %1299 : vector<49xf32> to vector<49x1xf32>
    %cst_119 = arith.constant 3.200000e+01 : f32
    %1301 = vector.broadcast %cst_119 : f32 to vector<49x1xf32>
    %1302 = arith.divf %1300, %1301 : vector<49x1xf32>
    %cst_120 = arith.constant 9.99999997E-7 : f32
    %1303 = vector.broadcast %cst_120 : f32 to vector<49x1xf32>
    %1304 = arith.addf %1302, %1303 : vector<49x1xf32>
    %1305 = math.rsqrt %1304 : vector<49x1xf32>
    %1306 = vector.broadcast %1305 : vector<49x1xf32> to vector<49x32xf32>
    %1307 = arith.mulf %1297, %1306 : vector<49x32xf32>
    %1308 = vector.broadcast %1290 : vector<1x32xf32> to vector<49x32xf32>
    %1309 = arith.mulf %1307, %1308 : vector<49x32xf32>
    %1310 = vector.broadcast %1291 : vector<1x32xf32> to vector<49x32xf32>
    %1311 = arith.addf %1309, %1310 : vector<49x32xf32>
    %c0_121 = arith.constant 0 : index
    %c0_122 = arith.constant 0 : index
    %c0_123 = arith.constant 0 : index
    %1312 = vector.load %arg15[%c0_121, %c0_122, %c0_123] : memref<1x49x32xf32, #tpu.memory_space<vmem>>, vector<1x49x32xf32>
    %1313 = vector.shape_cast %1312 : vector<1x49x32xf32> to vector<49x32xf32>
    %1314 = vector.shape_cast %1311 : vector<49x32xf32> to vector<1x49x32xf32>
    tpu.vector_store %arg15[%c0_121, %c0_122, %c0_123], %1314 {strides = array<i32>} : memref<1x49x32xf32, #tpu.memory_space<vmem>>, vector<1x49x32xf32>,
    return
  }
  func.func @transform_0(%arg0: i32) -> (i32, i32, i32) {
    %c0_i32 = arith.constant 0 : i32
    %c0_i32_0 = arith.constant 0 : i32
    %c0_i32_1 = arith.constant 0 : i32
    return %arg0, %c0_i32, %c0_i32_0 : i32, i32, i32
  }
  func.func @transform_1(%arg0: i32) -> (i32, i32, i32) {
    %c0_i32 = arith.constant 0 : i32
    %c0_i32_0 = arith.constant 0 : i32
    %c0_i32_1 = arith.constant 0 : i32
    %c0_i32_2 = arith.constant 0 : i32
    return %c0_i32, %c0_i32_0, %c0_i32_1 : i32, i32, i32
  }
  func.func @transform_2(%arg0: i32) -> (i32, i32, i32) {
    %c0_i32 = arith.constant 0 : i32
    %c0_i32_0 = arith.constant 0 : i32
    %c0_i32_1 = arith.constant 0 : i32
    %c0_i32_2 = arith.constant 0 : i32
    return %c0_i32, %c0_i32_0, %c0_i32_1 : i32, i32, i32
  }
  func.func @transform_3(%arg0: i32) -> (i32, i32, i32) {
    %c0_i32 = arith.constant 0 : i32
    %c0_i32_0 = arith.constant 0 : i32
    %c0_i32_1 = arith.constant 0 : i32
    %c0_i32_2 = arith.constant 0 : i32
    return %c0_i32, %c0_i32_0, %c0_i32_1 : i32, i32, i32
  }
  func.func @transform_4(%arg0: i32) -> (i32, i32, i32) {
    %c0_i32 = arith.constant 0 : i32
    %c0_i32_0 = arith.constant 0 : i32
    %c0_i32_1 = arith.constant 0 : i32
    %c0_i32_2 = arith.constant 0 : i32
    return %c0_i32, %c0_i32_0, %c0_i32_1 : i32, i32, i32
  }
  func.func @transform_5(%arg0: i32) -> (i32, i32, i32) {
    %c0_i32 = arith.constant 0 : i32
    %c0_i32_0 = arith.constant 0 : i32
    %c0_i32_1 = arith.constant 0 : i32
    %c0_i32_2 = arith.constant 0 : i32
    return %c0_i32, %c0_i32_0, %c0_i32_1 : i32, i32, i32
  }
  func.func @transform_6(%arg0: i32) -> (i32, i32, i32) {
    %c0_i32 = arith.constant 0 : i32
    %c0_i32_0 = arith.constant 0 : i32
    %c0_i32_1 = arith.constant 0 : i32
    %c0_i32_2 = arith.constant 0 : i32
    return %c0_i32, %c0_i32_0, %c0_i32_1 : i32, i32, i32
  }
  func.func @transform_7(%arg0: i32) -> (i32, i32) {
    %c0_i32 = arith.constant 0 : i32
    %c0_i32_0 = arith.constant 0 : i32
    %c0_i32_1 = arith.constant 0 : i32
    return %c0_i32, %c0_i32_0 : i32, i32
  }
  func.func @transform_8(%arg0: i32) -> (i32, i32) {
    %c0_i32 = arith.constant 0 : i32
    %c0_i32_0 = arith.constant 0 : i32
    %c0_i32_1 = arith.constant 0 : i32
    return %c0_i32, %c0_i32_0 : i32, i32
  }
  func.func @transform_9(%arg0: i32) -> (i32, i32) {
    %c0_i32 = arith.constant 0 : i32
    %c0_i32_0 = arith.constant 0 : i32
    %c0_i32_1 = arith.constant 0 : i32
    return %c0_i32, %c0_i32_0 : i32, i32
  }
  func.func @transform_10(%arg0: i32) -> (i32, i32) {
    %c0_i32 = arith.constant 0 : i32
    %c0_i32_0 = arith.constant 0 : i32
    %c0_i32_1 = arith.constant 0 : i32
    return %c0_i32, %c0_i32_0 : i32, i32
  }
  func.func @transform_11(%arg0: i32) -> (i32, i32) {
    %c0_i32 = arith.constant 0 : i32
    %c0_i32_0 = arith.constant 0 : i32
    %c0_i32_1 = arith.constant 0 : i32
    return %c0_i32, %c0_i32_0 : i32, i32
  }
  func.func @transform_12(%arg0: i32) -> (i32, i32) {
    %c0_i32 = arith.constant 0 : i32
    %c0_i32_0 = arith.constant 0 : i32
    %c0_i32_1 = arith.constant 0 : i32
    return %c0_i32, %c0_i32_0 : i32, i32
  }
  func.func @transform_13(%arg0: i32) -> (i32, i32) {
    %c0_i32 = arith.constant 0 : i32
    %c0_i32_0 = arith.constant 0 : i32
    %c0_i32_1 = arith.constant 0 : i32
    return %c0_i32, %c0_i32_0 : i32, i32
  }
  func.func @transform_14(%arg0: i32) -> (i32, i32, i32) {
    %c0_i32 = arith.constant 0 : i32
    %c0_i32_0 = arith.constant 0 : i32
    %c0_i32_1 = arith.constant 0 : i32
    return %arg0, %c0_i32, %c0_i32_0 : i32, i32, i32
  }
}

</mosaic_0001>

<llo_original>
// kernel: transformer_encoder_layer.1
$region0: #{transformer_encoder_layer.1}
  #allocation0 [shape = 'u32[]', space=smem, size = 0x4, offset = 0x4, fixed_abs, tag = 'smem constant byte address 0x4 - core index']
  #allocation1 [shape = 'u32[144,128]{1,0:T(1,128)}', space=vmem, size = 0x12000, scoped, tag = 'internal scratch']
  %s0 = inlined_call_operand.vmem [shape: f32[8,49,32], index: 0, kind: input, shape index: {}]
  %s1 = inlined_call_operand.vmem [shape: f32[4,8,40], index: 1, kind: input, shape index: {}]
  %s2 = inlined_call_operand.vmem [shape: f32[4,1,40], index: 2, kind: input, shape index: {}]
  %s3 = inlined_call_operand.vmem [shape: f32[4,25,16], index: 3, kind: input, shape index: {}]
  %s4 = inlined_call_operand.vmem [shape: f32[4,1,16], index: 4, kind: input, shape index: {}]
  %s5 = inlined_call_operand.vmem [shape: f32[25,49,1], index: 5, kind: input, shape index: {}]
  %s6 = inlined_call_operand.vmem [shape: f32[4,49,49], index: 6, kind: input, shape index: {}]
  %s7 = inlined_call_operand.vmem [shape: f32[32,32], index: 7, kind: input, shape index: {}]
  %s8 = inlined_call_operand.vmem [shape: f32[1,32], index: 8, kind: input, shape index: {}]
  %s9 = inlined_call_operand.vmem [shape: f32[32,128], index: 9, kind: input, shape index: {}]
  %s10 = inlined_call_operand.vmem [shape: f32[1,128], index: 10, kind: input, shape index: {}]
  %s11 = inlined_call_operand.vmem [shape: f32[128,32], index: 11, kind: input, shape index: {}]
  %s12 = inlined_call_operand.vmem [shape: f32[1,32], index: 12, kind: input, shape index: {}]
  %s13 = inlined_call_operand.vmem [shape: f32[4,32], index: 13, kind: input, shape index: {}]
  %s14 = inlined_call_operand.vmem [shape: f32[8,49,32], index: 14, kind: output, shape index: {}]
  %s15 = sld [smem:[#allocation0]]
  $region89: #{transformer_encoder_layer.1} parent=0
    _
  %s17 = ssub.s32 1, %s15
  %s18 = scalar_select 0, %s17, %s15
  loop: start=0, step=1, limit=10
  $region2: #{transformer_encoder_layer.1} parent=0 // loop_pre_header
    _
  $region3: #{transformer_encoder_layer.1} parent=0 // loop_header
    %s20 = sphi 0, %s24
    %p21 = scmp.ge.s32.totalorder %s20, 10
    %s30 = sphi 0, %s32
    %s33 = sphi 0, %s30
    %s34 = sphi 0, %s33
    %s50 = sphi 0, %s34
    %s54 = sphi 0, %s54
    %s56 = sphi 0, %s54
    %s57 = sphi 0, %s56
    %s71 = sphi 0, %s57
    %s75 = sphi 0, %s75
    %s77 = sphi 0, %s75
    %s78 = sphi 0, %s77
    %s92 = sphi 0, %s78
    %s96 = sphi 0, %s96
    %s98 = sphi 0, %s96
    %s99 = sphi 0, %s98
    %s113 = sphi 0, %s99
    %s117 = sphi 0, %s117
    %s119 = sphi 0, %s117
    %s120 = sphi 0, %s119
    %s134 = sphi 0, %s120
    %s138 = sphi 0, %s138
    %s140 = sphi 0, %s138
    %s141 = sphi 0, %s140
    %s155 = sphi 0, %s141
    %s159 = sphi 0, %s159
    %s161 = sphi 0, %s159
    %s162 = sphi 0, %s161
    %s176 = sphi 0, %s162
    %s180 = sphi 0, %s180
    %s182 = sphi 0, %s180
    %s183 = sphi 0, %s182
    %s197 = sphi 0, %s183
    %s201 = sphi 0, %s201
    %s203 = sphi 0, %s201
    %s204 = sphi 0, %s203
    %s218 = sphi 0, %s204
    %s222 = sphi 0, %s222
    %s224 = sphi 0, %s222
    %s225 = sphi 0, %s224
    %s239 = sphi 0, %s225
    %s243 = sphi 0, %s243
    %s245 = sphi 0, %s243
    %s246 = sphi 0, %s245
    %s260 = sphi 0, %s246
    %s264 = sphi 0, %s264
    %s266 = sphi 0, %s264
    %s267 = sphi 0, %s266
    %s281 = sphi 0, %s267
    %s285 = sphi 0, %s285
    %s287 = sphi 0, %s285
    %s288 = sphi 0, %s287
    %s302 = sphi 0, %s288
    %s306 = sphi 0, %s306
    %s308 = sphi 0, %s306
    %s309 = sphi 0, %s308
    %s323 = sphi 0, %s309
    %s329 = sphi 0, %s331
    %s332 = sphi 0, %s329
    %s333 = sphi 0, %s332
    %s349 = sphi 0, %s333
  $region4: #{transformer_encoder_layer.1} parent=0 // loop_header_branch
    %23 = sbr.rel (%p21) target = $region8
  $region5: #{transformer_encoder_layer.1} parent=0 // loop_body
    %s25 = ssub.s32 %s20, 1
    %s26 = ssub.s32 %s20, 2
    %s27 = sadd.s32 %s20, 1
    %s28 = ssub.s32 %s20, %s27
    %p29 = scmp.eq.s32.totalorder %s28, 0
    %s31 = sadd.s32 %s30, 1
    %s32 = scalar_select %p29, %s30, %s31
    %p35 = pneg %p29
    %p36 = scmp.eq.s32.totalorder %s20, 7
    %p37 = por %p35, %p36
    %p38 = scmp.ne.s32.totalorder %s30, %s33
    %p39 = scmp.eq.s32.totalorder %s20, 0
    %p40 = por %p38, %p39
    %p41 = scmp.ne.s32.totalorder %s30, %s33
    %p42 = scmp.eq.s32.totalorder %s25, 7
    %p43 = por %p41, %p42
    %p44 = scmp.ne.s32.totalorder %s33, %s34
    %p45 = scmp.eq.s32.totalorder %s25, 0
    %p46 = por %p44, %p45
    %p47 = scmp.ne.s32.totalorder %s33, %s34
    %p48 = scmp.eq.s32.totalorder %s26, 7
    %p49 = por %p47, %p48
    %p51 = scmp.ne.s32.totalorder %s34, %s50
    %p52 = scmp.eq.s32.totalorder %s26, 0
    %p53 = por %p51, %p52
    %s55 = sadd.s32 %s54, 1
    %p58 = scmp.eq.s32.totalorder %s20, 7
    %p59 = scmp.ne.s32.totalorder %s54, %s56
    %p60 = scmp.eq.s32.totalorder %s20, 0
    %p61 = por %p59, %p60
    %p62 = scmp.ne.s32.totalorder %s54, %s56
    %p63 = scmp.eq.s32.totalorder %s25, 7
    %p64 = por %p62, %p63
    %p65 = scmp.ne.s32.totalorder %s56, %s57
    %p66 = scmp.eq.s32.totalorder %s25, 0
    %p67 = por %p65, %p66
    %p68 = scmp.ne.s32.totalorder %s56, %s57
    %p69 = scmp.eq.s32.totalorder %s26, 7
    %p70 = por %p68, %p69
    %p72 = scmp.ne.s32.totalorder %s57, %s71
    %p73 = scmp.eq.s32.totalorder %s26, 0
    %p74 = por %p72, %p73
    %s76 = sadd.s32 %s75, 1
    %p79 = scmp.eq.s32.totalorder %s20, 7
    %p80 = scmp.ne.s32.totalorder %s75, %s77
    %p81 = scmp.eq.s32.totalorder %s20, 0
    %p82 = por %p80, %p81
    %p83 = scmp.ne.s32.totalorder %s75, %s77
    %p84 = scmp.eq.s32.totalorder %s25, 7
    %p85 = por %p83, %p84
    %p86 = scmp.ne.s32.totalorder %s77, %s78
    %p87 = scmp.eq.s32.totalorder %s25, 0
    %p88 = por %p86, %p87
    %p89 = scmp.ne.s32.totalorder %s77, %s78
    %p90 = scmp.eq.s32.totalorder %s26, 7
    %p91 = por %p89, %p90
    %p93 = scmp.ne.s32.totalorder %s78, %s92
    %p94 = scmp.eq.s32.totalorder %s26, 0
    %p95 = por %p93, %p94
    %s97 = sadd.s32 %s96, 1
    %p100 = scmp.eq.s32.totalorder %s20, 7
    %p101 = scmp.ne.s32.totalorder %s96, %s98
    %p102 = scmp.eq.s32.totalorder %s20, 0
    %p103 = por %p101, %p102
    %p104 = scmp.ne.s32.totalorder %s96, %s98
    %p105 = scmp.eq.s32.totalorder %s25, 7
    %p106 = por %p104, %p105
    %p107 = scmp.ne.s32.totalorder %s98, %s99
    %p108 = scmp.eq.s32.totalorder %s25, 0
    %p109 = por %p107, %p108
    %p110 = scmp.ne.s32.totalorder %s98, %s99
    %p111 = scmp.eq.s32.totalorder %s26, 7
    %p112 = por %p110, %p111
    %p114 = scmp.ne.s32.totalorder %s99, %s113
    %p115 = scmp.eq.s32.totalorder %s26, 0
    %p116 = por %p114, %p115
    %s118 = sadd.s32 %s117, 1
    %p121 = scmp.eq.s32.totalorder %s20, 7
    %p122 = scmp.ne.s32.totalorder %s117, %s119
    %p123 = scmp.eq.s32.totalorder %s20, 0
    %p124 = por %p122, %p123
    %p125 = scmp.ne.s32.totalorder %s117, %s119
    %p126 = scmp.eq.s32.totalorder %s25, 7
    %p127 = por %p125, %p126
    %p128 = scmp.ne.s32.totalorder %s119, %s120
    %p129 = scmp.eq.s32.totalorder %s25, 0
    %p130 = por %p128, %p129
    %p131 = scmp.ne.s32.totalorder %s119, %s120
    %p132 = scmp.eq.s32.totalorder %s26, 7
    %p133 = por %p131, %p132
    %p135 = scmp.ne.s32.totalorder %s120, %s134
    %p136 = scmp.eq.s32.totalorder %s26, 0
    %p137 = por %p135, %p136
    %s139 = sadd.s32 %s138, 1
    %p142 = scmp.eq.s32.totalorder %s20, 7
    %p143 = scmp.ne.s32.totalorder %s138, %s140
    %p144 = scmp.eq.s32.totalorder %s20, 0
    %p145 = por %p143, %p144
    %p146 = scmp.ne.s32.totalorder %s138, %s140
    %p147 = scmp.eq.s32.totalorder %s25, 7
    %p148 = por %p146, %p147
    %p149 = scmp.ne.s32.totalorder %s140, %s141
    %p150 = scmp.eq.s32.totalorder %s25, 0
    %p151 = por %p149, %p150
    %p152 = scmp.ne.s32.totalorder %s140, %s141
    %p153 = scmp.eq.s32.totalorder %s26, 7
    %p154 = por %p152, %p153
    %p156 = scmp.ne.s32.totalorder %s141, %s155
    %p157 = scmp.eq.s32.totalorder %s26, 0
    %p158 = por %p156, %p157
    %s160 = sadd.s32 %s159, 1
    %p163 = scmp.eq.s32.totalorder %s20, 7
    %p164 = scmp.ne.s32.totalorder %s159, %s161
    %p165 = scmp.eq.s32.totalorder %s20, 0
    %p166 = por %p164, %p165
    %p167 = scmp.ne.s32.totalorder %s159, %s161
    %p168 = scmp.eq.s32.totalorder %s25, 7
    %p169 = por %p167, %p168
    %p170 = scmp.ne.s32.totalorder %s161, %s162
    %p171 = scmp.eq.s32.totalorder %s25, 0
    %p172 = por %p170, %p171
    %p173 = scmp.ne.s32.totalorder %s161, %s162
    %p174 = scmp.eq.s32.totalorder %s26, 7
    %p175 = por %p173, %p174
    %p177 = scmp.ne.s32.totalorder %s162, %s176
    %p178 = scmp.eq.s32.totalorder %s26, 0
    %p179 = por %p177, %p178
    %s181 = sadd.s32 %s180, 1
    %p184 = scmp.eq.s32.totalorder %s20, 7
    %p185 = scmp.ne.s32.totalorder %s180, %s182
    %p186 = scmp.eq.s32.totalorder %s20, 0
    %p187 = por %p185, %p186
    %p188 = scmp.ne.s32.totalorder %s180, %s182
    %p189 = scmp.eq.s32.totalorder %s25, 7
    %p190 = por %p188, %p189
    %p191 = scmp.ne.s32.totalorder %s182, %s183
    %p192 = scmp.eq.s32.totalorder %s25, 0
    %p193 = por %p191, %p192
    %p194 = scmp.ne.s32.totalorder %s182, %s183
    %p195 = scmp.eq.s32.totalorder %s26, 7
    %p196 = por %p194, %p195
    %p198 = scmp.ne.s32.totalorder %s183, %s197
    %p199 = scmp.eq.s32.totalorder %s26, 0
    %p200 = por %p198, %p199
    %s202 = sadd.s32 %s201, 1
    %p205 = scmp.eq.s32.totalorder %s20, 7
    %p206 = scmp.ne.s32.totalorder %s201, %s203
    %p207 = scmp.eq.s32.totalorder %s20, 0
    %p208 = por %p206, %p207
    %p209 = scmp.ne.s32.totalorder %s201, %s203
    %p210 = scmp.eq.s32.totalorder %s25, 7
    %p211 = por %p209, %p210
    %p212 = scmp.ne.s32.totalorder %s203, %s204
    %p213 = scmp.eq.s32.totalorder %s25, 0
    %p214 = por %p212, %p213
    %p215 = scmp.ne.s32.totalorder %s203, %s204
    %p216 = scmp.eq.s32.totalorder %s26, 7
    %p217 = por %p215, %p216
    %p219 = scmp.ne.s32.totalorder %s204, %s218
    %p220 = scmp.eq.s32.totalorder %s26, 0
    %p221 = por %p219, %p220
    %s223 = sadd.s32 %s222, 1
    %p226 = scmp.eq.s32.totalorder %s20, 7
    %p227 = scmp.ne.s32.totalorder %s222, %s224
    %p228 = scmp.eq.s32.totalorder %s20, 0
    %p229 = por %p227, %p228
    %p230 = scmp.ne.s32.totalorder %s222, %s224
    %p231 = scmp.eq.s32.totalorder %s25, 7
    %p232 = por %p230, %p231
    %p233 = scmp.ne.s32.totalorder %s224, %s225
    %p234 = scmp.eq.s32.totalorder %s25, 0
    %p235 = por %p233, %p234
    %p236 = scmp.ne.s32.totalorder %s224, %s225
    %p237 = scmp.eq.s32.totalorder %s26, 7
    %p238 = por %p236, %p237
    %p240 = scmp.ne.s32.totalorder %s225, %s239
    %p241 = scmp.eq.s32.totalorder %s26, 0
    %p242 = por %p240, %p241
    %s244 = sadd.s32 %s243, 1
    %p247 = scmp.eq.s32.totalorder %s20, 7
    %p248 = scmp.ne.s32.totalorder %s243, %s245
    %p249 = scmp.eq.s32.totalorder %s20, 0
    %p250 = por %p248, %p249
    %p251 = scmp.ne.s32.totalorder %s243, %s245
    %p252 = scmp.eq.s32.totalorder %s25, 7
    %p253 = por %p251, %p252
    %p254 = scmp.ne.s32.totalorder %s245, %s246
    %p255 = scmp.eq.s32.totalorder %s25, 0
    %p256 = por %p254, %p255
    %p257 = scmp.ne.s32.totalorder %s245, %s246
    %p258 = scmp.eq.s32.totalorder %s26, 7
    %p259 = por %p257, %p258
    %p261 = scmp.ne.s32.totalorder %s246, %s260
    %p262 = scmp.eq.s32.totalorder %s26, 0
    %p263 = por %p261, %p262
    %s265 = sadd.s32 %s264, 1
    %p268 = scmp.eq.s32.totalorder %s20, 7
    %p269 = scmp.ne.s32.totalorder %s264, %s266
    %p270 = scmp.eq.s32.totalorder %s20, 0
    %p271 = por %p269, %p270
    %p272 = scmp.ne.s32.totalorder %s264, %s266
    %p273 = scmp.eq.s32.totalorder %s25, 7
    %p274 = por %p272, %p273
    %p275 = scmp.ne.s32.totalorder %s266, %s267
    %p276 = scmp.eq.s32.totalorder %s25, 0
    %p277 = por %p275, %p276
    %p278 = scmp.ne.s32.totalorder %s266, %s267
    %p279 = scmp.eq.s32.totalorder %s26, 7
    %p280 = por %p278, %p279
    %p282 = scmp.ne.s32.totalorder %s267, %s281
    %p283 = scmp.eq.s32.totalorder %s26, 0
    %p284 = por %p282, %p283
    %s286 = sadd.s32 %s285, 1
    %p289 = scmp.eq.s32.totalorder %s20, 7
    %p290 = scmp.ne.s32.totalorder %s285, %s287
    %p291 = scmp.eq.s32.totalorder %s20, 0
    %p292 = por %p290, %p291
    %p293 = scmp.ne.s32.totalorder %s285, %s287
    %p294 = scmp.eq.s32.totalorder %s25, 7
    %p295 = por %p293, %p294
    %p296 = scmp.ne.s32.totalorder %s287, %s288
    %p297 = scmp.eq.s32.totalorder %s25, 0
    %p298 = por %p296, %p297
    %p299 = scmp.ne.s32.totalorder %s287, %s288
    %p300 = scmp.eq.s32.totalorder %s26, 7
    %p301 = por %p299, %p300
    %p303 = scmp.ne.s32.totalorder %s288, %s302
    %p304 = scmp.eq.s32.totalorder %s26, 0
    %p305 = por %p303, %p304
    %s307 = sadd.s32 %s306, 1
    %p310 = scmp.eq.s32.totalorder %s20, 7
    %p311 = scmp.ne.s32.totalorder %s306, %s308
    %p312 = scmp.eq.s32.totalorder %s20, 0
    %p313 = por %p311, %p312
    %p314 = scmp.ne.s32.totalorder %s306, %s308
    %p315 = scmp.eq.s32.totalorder %s25, 7
    %p316 = por %p314, %p315
    %p317 = scmp.ne.s32.totalorder %s308, %s309
    %p318 = scmp.eq.s32.totalorder %s25, 0
    %p319 = por %p317, %p318
    %p320 = scmp.ne.s32.totalorder %s308, %s309
    %p321 = scmp.eq.s32.totalorder %s26, 7
    %p322 = por %p320, %p321
    %p324 = scmp.ne.s32.totalorder %s309, %s323
    %p325 = scmp.eq.s32.totalorder %s26, 0
    %p326 = por %p324, %p325
    %s327 = ssub.s32 %s20, %s27
    %p328 = scmp.eq.s32.totalorder %s327, 0
    %s330 = sadd.s32 %s329, 1
    %s331 = scalar_select %p328, %s329, %s330
    %p334 = pneg %p328
    %p335 = scmp.eq.s32.totalorder %s20, 7
    %p336 = por %p334, %p335
    %p337 = scmp.ne.s32.totalorder %s329, %s332
    %p338 = scmp.eq.s32.totalorder %s20, 0
    %p339 = por %p337, %p338
    %p340 = scmp.ne.s32.totalorder %s329, %s332
    %p341 = scmp.eq.s32.totalorder %s25, 7
    %p342 = por %p340, %p341
    %p343 = scmp.ne.s32.totalorder %s332, %s333
    %p344 = scmp.eq.s32.totalorder %s25, 0
    %p345 = por %p343, %p344
    %p346 = scmp.ne.s32.totalorder %s332, %s333
    %p347 = scmp.eq.s32.totalorder %s26, 7
    %p348 = por %p346, %p347
    %p350 = scmp.ne.s32.totalorder %s333, %s349
    %p351 = scmp.eq.s32.totalorder %s26, 0
    %p352 = por %p350, %p351
    %p353 = scmp.le.s32.totalorder 1, %s20
    %p354 = scmp.lt.s32.totalorder %s20, 9
    %p355 = pnand %p353, %p354
    %p356 = pneg %p355
    // Predicated region
    $region9: #{transformer_encoder_layer.1} parent=5 // pred_check
      _
    $region10: #{transformer_encoder_layer.1} parent=5 // pred_check_branch
      %358 = sbr.rel (%p355) target = $region12
    $region11: #{transformer_encoder_layer.1} parent=5 // pred_region
      %s359 = ssub.s32 %s20, 1
      // Predicated region
      $region13: #{transformer_encoder_layer.1} parent=11 // pred_check
        %p360 = pneg %p67
      $region14: #{transformer_encoder_layer.1} parent=11 // pred_check_branch
        %362 = sbr.rel (%p360) target = $region16
      $region15: #{transformer_encoder_layer.1} parent=11 // pred_region
        _
      $region16: #{transformer_encoder_layer.1} parent=11 // pred_fallthru
        _
      // Predicated region
      $region17: #{transformer_encoder_layer.1} parent=11 // pred_check
        %p363 = pneg %p88
      $region18: #{transformer_encoder_layer.1} parent=11 // pred_check_branch
        %365 = sbr.rel (%p363) target = $region20
      $region19: #{transformer_encoder_layer.1} parent=11 // pred_region
        _
      $region20: #{transformer_encoder_layer.1} parent=11 // pred_fallthru
        _
      // Predicated region
      $region21: #{transformer_encoder_layer.1} parent=11 // pred_check
        %p366 = pneg %p109
      $region22: #{transformer_encoder_layer.1} parent=11 // pred_check_branch
        %368 = sbr.rel (%p366) target = $region24
      $region23: #{transformer_encoder_layer.1} parent=11 // pred_region
        _
      $region24: #{transformer_encoder_layer.1} parent=11 // pred_fallthru
        _
      // Predicated region
      $region25: #{transformer_encoder_layer.1} parent=11 // pred_check
        %p369 = pneg %p130
      $region26: #{transformer_encoder_layer.1} parent=11 // pred_check_branch
        %371 = sbr.rel (%p369) target = $region28
      $region27: #{transformer_encoder_layer.1} parent=11 // pred_region
        _
      $region28: #{transformer_encoder_layer.1} parent=11 // pred_fallthru
        _
      // Predicated region
      $region29: #{transformer_encoder_layer.1} parent=11 // pred_check
        %p372 = pneg %p151
      $region30: #{transformer_encoder_layer.1} parent=11 // pred_check_branch
        %374 = sbr.rel (%p372) target = $region32
      $region31: #{transformer_encoder_layer.1} parent=11 // pred_region
        _
      $region32: #{transformer_encoder_layer.1} parent=11 // pred_fallthru
        _
      // Predicated region
      $region33: #{transformer_encoder_layer.1} parent=11 // pred_check
        %p375 = pneg %p172
      $region34: #{transformer_encoder_layer.1} parent=11 // pred_check_branch
        %377 = sbr.rel (%p375) target = $region36
      $region35: #{transformer_encoder_layer.1} parent=11 // pred_region
        _
      $region36: #{transformer_encoder_layer.1} parent=11 // pred_fallthru
        _
      // Predicated region
      $region37: #{transformer_encoder_layer.1} parent=11 // pred_check
        %p378 = pneg %p193
      $region38: #{transformer_encoder_layer.1} parent=11 // pred_check_branch
        %380 = sbr.rel (%p378) target = $region40
      $region39: #{transformer_encoder_layer.1} parent=11 // pred_region
        _
      $region40: #{transformer_encoder_layer.1} parent=11 // pred_fallthru
        _
      // Predicated region
      $region41: #{transformer_encoder_layer.1} parent=11 // pred_check
        %p381 = pneg %p214
      $region42: #{transformer_encoder_layer.1} parent=11 // pred_check_branch
        %383 = sbr.rel (%p381) target = $region44
      $region43: #{transformer_encoder_layer.1} parent=11 // pred_region
        _
      $region44: #{transformer_encoder_layer.1} parent=11 // pred_fallthru
        _
      // Predicated region
      $region45: #{transformer_encoder_layer.1} parent=11 // pred_check
        %p384 = pneg %p235
      $region46: #{transformer_encoder_layer.1} parent=11 // pred_check_branch
        %386 = sbr.rel (%p384) target = $region48
      $region47: #{transformer_encoder_layer.1} parent=11 // pred_region
        _
      $region48: #{transformer_encoder_layer.1} parent=11 // pred_fallthru
        _
      // Predicated region
      $region49: #{transformer_encoder_layer.1} parent=11 // pred_check
        %p387 = pneg %p256
      $region50: #{transformer_encoder_layer.1} parent=11 // pred_check_branch
        %389 = sbr.rel (%p387) target = $region52
      $region51: #{transformer_encoder_layer.1} parent=11 // pred_region
        _
      $region52: #{transformer_encoder_layer.1} parent=11 // pred_fallthru
        _
      // Predicated region
      $region53: #{transformer_encoder_layer.1} parent=11 // pred_check
        %p390 = pneg %p277
      $region54: #{transformer_encoder_layer.1} parent=11 // pred_check_branch
        %392 = sbr.rel (%p390) target = $region56
      $region55: #{transformer_encoder_layer.1} parent=11 // pred_region
        _
      $region56: #{transformer_encoder_layer.1} parent=11 // pred_fallthru
        _
      // Predicated region
      $region57: #{transformer_encoder_layer.1} parent=11 // pred_check
        %p393 = pneg %p298
      $region58: #{transformer_encoder_layer.1} parent=11 // pred_check_branch
        %395 = sbr.rel (%p393) target = $region60
      $region59: #{transformer_encoder_layer.1} parent=11 // pred_region
        _
      $region60: #{transformer_encoder_layer.1} parent=11 // pred_fallthru
        _
      // Predicated region
      $region61: #{transformer_encoder_layer.1} parent=11 // pred_check
        %p396 = pneg %p319
      $region62: #{transformer_encoder_layer.1} parent=11 // pred_check_branch
        %398 = sbr.rel (%p396) target = $region64
      $region63: #{transformer_encoder_layer.1} parent=11 // pred_region
        _
      $region64: #{transformer_encoder_layer.1} parent=11 // pred_fallthru
        _
    $region12: #{transformer_encoder_layer.1} parent=5 // pred_fallthru
      _
    %p399 = scmp.lt.s32.totalorder %s20, 8
    // Predicated region
    $region65: #{transformer_encoder_layer.1} parent=5 // pred_check
      %p400 = pneg %p399
    $region66: #{transformer_encoder_layer.1} parent=5 // pred_check_branch
      %402 = sbr.rel (%p400) target = $region68
    $region67: #{transformer_encoder_layer.1} parent=5 // pred_region
      // Predicated region
      $region69: #{transformer_encoder_layer.1} parent=67 // pred_check
        %p403 = pneg %p40
      $region70: #{transformer_encoder_layer.1} parent=67 // pred_check_branch
        %405 = sbr.rel (%p403) target = $region72
      $region71: #{transformer_encoder_layer.1} parent=67 // pred_region
        %p406 = scmp.lt.s32.totalorder %s20, 7
        %s407 = scalar_select %p406, %s20, 7
        %s408 = smul.addr %s407, 7
        %s409 = smul.addr %s408, 8
        %s410 = scalar_lea.vmem %s0, %s409
      $region72: #{transformer_encoder_layer.1} parent=67 // pred_fallthru
        _
    $region68: #{transformer_encoder_layer.1} parent=5 // pred_fallthru
      _
    %p411 = scmp.le.s32.totalorder 1, %s20
    %p412 = scmp.lt.s32.totalorder %s20, 9
    %p413 = pnand %p411, %p412
    %p414 = pneg %p413
    // Predicated region
    $region73: #{transformer_encoder_layer.1} parent=5 // pred_check
      _
    $region74: #{transformer_encoder_layer.1} parent=5 // pred_check_branch
      %416 = sbr.rel (%p413) target = $region76
    $region75: #{transformer_encoder_layer.1} parent=5 // pred_region
      %s417 = ssub.s32 %s20, 1
      %p418 = scmp.lt.s32.totalorder %s25, 7
      %s419 = scalar_select %p418, %s25, 7
      %s420 = smul.addr %s419, 7
      %s421 = smul.addr %s420, 8
      %s422 = scalar_lea.vmem %s0, %s421
      %p423 = pneg %p46
      %p424 = pneg %p43
      %p425 = pneg %p67
      %p426 = pneg %p64
      %p427 = pneg %p88
      %p428 = pneg %p85
      %p429 = pneg %p109
      %p430 = pneg %p106
      %p431 = pneg %p130
      %p432 = pneg %p127
      %p433 = pneg %p151
      %p434 = pneg %p148
      %p435 = pneg %p172
      %p436 = pneg %p169
      %p437 = pneg %p193
      %p438 = pneg %p190
      %p439 = pneg %p214
      %p440 = pneg %p211
      %p441 = pneg %p235
      %p442 = pneg %p232
      %p443 = pneg %p256
      %p444 = pneg %p253
      %p445 = pneg %p277
      %p446 = pneg %p274
      %p447 = pneg %p298
      %p448 = pneg %p295
      %p449 = pneg %p319
      %p450 = pneg %p316
      %p451 = pneg %p345
      %p452 = pneg %p342
      %p453 = scmp.lt.s32.totalorder %s25, 7
      %s454 = scalar_select %p453, %s25, 7
      %s455 = smul.addr %s454, 7
      %s456 = smul.addr %s455, 8
      %s457 = scalar_lea.vmem %s14, %s456
      %p458 = scmp.lt.s32.totalorder %s25, 7
      %s459 = scalar_select %p458, %s25, 7
      %s460 = smul.addr %s459, 7
      %s461 = smul.addr %s460, 8
      %s462 = scalar_lea.vmem %s0, %s461
      %p463 = scmp.lt.s32.totalorder %s25, 7
      %s464 = scalar_select %p463, %s25, 7
      %s465 = smul.addr %s464, 7
      %s466 = smul.addr %s465, 8
      %s467 = scalar_lea.vmem %s14, %s466
      %v468 = vld [vmem:[%s462] sm:$0xff]
      %v469 = vld [vmem:[%s462 + $0x8] sm:$0xff]
      %v470 = vld [vmem:[%s462 + $0x10] sm:$0xff]
      %v471 = vld [vmem:[%s462 + $0x18] sm:$0xff]
      %v472 = vld [vmem:[%s462 + $0x20] sm:$0xff]
      %v473 = vld [vmem:[%s462 + $0x28] sm:$0xff]
      %v474 = vld [vmem:[%s462 + $0x30] sm:$0x1]
      %v475 = vld [vmem:[%s5] sm:$0xff]
      %v476 = vld [vmem:[%s5 + $0x8] sm:$0xff]
      %v477 = vld [vmem:[%s5 + $0x10] sm:$0xff]
      %v478 = vld [vmem:[%s5 + $0x18] sm:$0xff]
      %v479 = vld [vmem:[%s5 + $0x20] sm:$0xff]
      %v480 = vld [vmem:[%s5 + $0x28] sm:$0xff]
      %v481 = vld [vmem:[%s5 + $0x30] sm:$0x1]
      %v482 = vld [vmem:[%s5 + $0x38] sm:$0xff]
      %v483 = vld [vmem:[%s5 + $0x40] sm:$0xff]
      %v484 = vld [vmem:[%s5 + $0x48] sm:$0xff]
      %v485 = vld [vmem:[%s5 + $0x50] sm:$0xff]
      %v486 = vld [vmem:[%s5 + $0x58] sm:$0xff]
      %v487 = vld [vmem:[%s5 + $0x60] sm:$0xff]
      %v488 = vld [vmem:[%s5 + $0x68] sm:$0x1]
      %v489 = vld [vmem:[%s5 + $0x70] sm:$0xff]
      %v490 = vld [vmem:[%s5 + $0x78] sm:$0xff]
      %v491 = vld [vmem:[%s5 + $0x80] sm:$0xff]
      %v492 = vld [vmem:[%s5 + $0x88] sm:$0xff]
      %v493 = vld [vmem:[%s5 + $0x90] sm:$0xff]
      %v494 = vld [vmem:[%s5 + $0x98] sm:$0xff]
      %v495 = vld [vmem:[%s5 + $0xa0] sm:$0x1]
      %v496 = vld [vmem:[%s5 + $0xa8] sm:$0xff]
      %v497 = vld [vmem:[%s5 + $0xb0] sm:$0xff]
      %v498 = vld [vmem:[%s5 + $0xb8] sm:$0xff]
      %v499 = vld [vmem:[%s5 + $0xc0] sm:$0xff]
      %v500 = vld [vmem:[%s5 + $0xc8] sm:$0xff]
      %v501 = vld [vmem:[%s5 + $0xd0] sm:$0xff]
      %v502 = vld [vmem:[%s5 + $0xd8] sm:$0x1]
      %v503 = vld [vmem:[%s5 + $0xe0] sm:$0xff]
      %v504 = vld [vmem:[%s5 + $0xe8] sm:$0xff]
      %v505 = vld [vmem:[%s5 + $0xf0] sm:$0xff]
      %v506 = vld [vmem:[%s5 + $0xf8] sm:$0xff]
      %v507 = vld [vmem:[%s5 + $0x100] sm:$0xff]
      %v508 = vld [vmem:[%s5 + $0x108] sm:$0xff]
      %v509 = vld [vmem:[%s5 + $0x110] sm:$0x1]
      %v510 = vld [vmem:[%s5 + $0x118] sm:$0xff]
      %v511 = vld [vmem:[%s5 + $0x120] sm:$0xff]
      %v512 = vld [vmem:[%s5 + $0x128] sm:$0xff]
      %v513 = vld [vmem:[%s5 + $0x130] sm:$0xff]
      %v514 = vld [vmem:[%s5 + $0x138] sm:$0xff]
      %v515 = vld [vmem:[%s5 + $0x140] sm:$0xff]
      %v516 = vld [vmem:[%s5 + $0x148] sm:$0x1]
      %v517 = vld [vmem:[%s5 + $0x150] sm:$0xff]
      %v518 = vld [vmem:[%s5 + $0x158] sm:$0xff]
      %v519 = vld [vmem:[%s5 + $0x160] sm:$0xff]
      %v520 = vld [vmem:[%s5 + $0x168] sm:$0xff]
      %v521 = vld [vmem:[%s5 + $0x170] sm:$0xff]
      %v522 = vld [vmem:[%s5 + $0x178] sm:$0xff]
      %v523 = vld [vmem:[%s5 + $0x180] sm:$0x1]
      %v524 = vld [vmem:[%s5 + $0x188] sm:$0xff]
      %v525 = vld [vmem:[%s5 + $0x190] sm:$0xff]
      %v526 = vld [vmem:[%s5 + $0x198] sm:$0xff]
      %v527 = vld [vmem:[%s5 + $0x1a0] sm:$0xff]
      %v528 = vld [vmem:[%s5 + $0x1a8] sm:$0xff]
      %v529 = vld [vmem:[%s5 + $0x1b0] sm:$0xff]
      %v530 = vld [vmem:[%s5 + $0x1b8] sm:$0x1]
      %v531 = vld [vmem:[%s5 + $0x1c0] sm:$0xff]
      %v532 = vld [vmem:[%s5 + $0x1c8] sm:$0xff]
      %v533 = vld [vmem:[%s5 + $0x1d0] sm:$0xff]
      %v534 = vld [vmem:[%s5 + $0x1d8] sm:$0xff]
      %v535 = vld [vmem:[%s5 + $0x1e0] sm:$0xff]
      %v536 = vld [vmem:[%s5 + $0x1e8] sm:$0xff]
      %v537 = vld [vmem:[%s5 + $0x1f0] sm:$0x1]
      %v538 = vld [vmem:[%s5 + $0x1f8] sm:$0xff]
      %v539 = vld [vmem:[%s5 + $0x200] sm:$0xff]
      %v540 = vld [vmem:[%s5 + $0x208] sm:$0xff]
      %v541 = vld [vmem:[%s5 + $0x210] sm:$0xff]
      %v542 = vld [vmem:[%s5 + $0x218] sm:$0xff]
      %v543 = vld [vmem:[%s5 + $0x220] sm:$0xff]
      %v544 = vld [vmem:[%s5 + $0x228] sm:$0x1]
      %v545 = vld [vmem:[%s5 + $0x230] sm:$0xff]
      %v546 = vld [vmem:[%s5 + $0x238] sm:$0xff]
      %v547 = vld [vmem:[%s5 + $0x240] sm:$0xff]
      %v548 = vld [vmem:[%s5 + $0x248] sm:$0xff]
      %v549 = vld [vmem:[%s5 + $0x250] sm:$0xff]
      %v550 = vld [vmem:[%s5 + $0x258] sm:$0xff]
      %v551 = vld [vmem:[%s5 + $0x260] sm:$0x1]
      %v552 = vld [vmem:[%s5 + $0x268] sm:$0xff]
      %v553 = vld [vmem:[%s5 + $0x270] sm:$0xff]
      %v554 = vld [vmem:[%s5 + $0x278] sm:$0xff]
      %v555 = vld [vmem:[%s5 + $0x280] sm:$0xff]
      %v556 = vld [vmem:[%s5 + $0x288] sm:$0xff]
      %v557 = vld [vmem:[%s5 + $0x290] sm:$0xff]
      %v558 = vld [vmem:[%s5 + $0x298] sm:$0x1]
      %v559 = vld [vmem:[%s5 + $0x2a0] sm:$0xff]
      %v560 = vld [vmem:[%s5 + $0x2a8] sm:$0xff]
      %v561 = vld [vmem:[%s5 + $0x2b0] sm:$0xff]
      %v562 = vld [vmem:[%s5 + $0x2b8] sm:$0xff]
      %v563 = vld [vmem:[%s5 + $0x2c0] sm:$0xff]
      %v564 = vld [vmem:[%s5 + $0x2c8] sm:$0xff]
      %v565 = vld [vmem:[%s5 + $0x2d0] sm:$0x1]
      %v566 = vld [vmem:[%s5 + $0x2d8] sm:$0xff]
      %v567 = vld [vmem:[%s5 + $0x2e0] sm:$0xff]
      %v568 = vld [vmem:[%s5 + $0x2e8] sm:$0xff]
      %v569 = vld [vmem:[%s5 + $0x2f0] sm:$0xff]
      %v570 = vld [vmem:[%s5 + $0x2f8] sm:$0xff]
      %v571 = vld [vmem:[%s5 + $0x300] sm:$0xff]
      %v572 = vld [vmem:[%s5 + $0x308] sm:$0x1]
      %v573 = vld [vmem:[%s5 + $0x310] sm:$0xff]
      %v574 = vld [vmem:[%s5 + $0x318] sm:$0xff]
      %v575 = vld [vmem:[%s5 + $0x320] sm:$0xff]
      %v576 = vld [vmem:[%s5 + $0x328] sm:$0xff]
      %v577 = vld [vmem:[%s5 + $0x330] sm:$0xff]
      %v578 = vld [vmem:[%s5 + $0x338] sm:$0xff]
      %v579 = vld [vmem:[%s5 + $0x340] sm:$0x1]
      %v580 = vld [vmem:[%s5 + $0x348] sm:$0xff]
      %v581 = vld [vmem:[%s5 + $0x350] sm:$0xff]
      %v582 = vld [vmem:[%s5 + $0x358] sm:$0xff]
      %v583 = vld [vmem:[%s5 + $0x360] sm:$0xff]
      %v584 = vld [vmem:[%s5 + $0x368] sm:$0xff]
      %v585 = vld [vmem:[%s5 + $0x370] sm:$0xff]
      %v586 = vld [vmem:[%s5 + $0x378] sm:$0x1]
      %v587 = vld [vmem:[%s5 + $0x380] sm:$0xff]
      %v588 = vld [vmem:[%s5 + $0x388] sm:$0xff]
      %v589 = vld [vmem:[%s5 + $0x390] sm:$0xff]
      %v590 = vld [vmem:[%s5 + $0x398] sm:$0xff]
      %v591 = vld [vmem:[%s5 + $0x3a0] sm:$0xff]
      %v592 = vld [vmem:[%s5 + $0x3a8] sm:$0xff]
      %v593 = vld [vmem:[%s5 + $0x3b0] sm:$0x1]
      %v594 = vld [vmem:[%s5 + $0x3b8] sm:$0xff]
      %v595 = vld [vmem:[%s5 + $0x3c0] sm:$0xff]
      %v596 = vld [vmem:[%s5 + $0x3c8] sm:$0xff]
      %v597 = vld [vmem:[%s5 + $0x3d0] sm:$0xff]
      %v598 = vld [vmem:[%s5 + $0x3d8] sm:$0xff]
      %v599 = vld [vmem:[%s5 + $0x3e0] sm:$0xff]
      %v600 = vld [vmem:[%s5 + $0x3e8] sm:$0x1]
      %v601 = vld [vmem:[%s5 + $0x3f0] sm:$0xff]
      %v602 = vld [vmem:[%s5 + $0x3f8] sm:$0xff]
      %v603 = vld [vmem:[%s5 + $0x400] sm:$0xff]
      %v604 = vld [vmem:[%s5 + $0x408] sm:$0xff]
      %v605 = vld [vmem:[%s5 + $0x410] sm:$0xff]
      %v606 = vld [vmem:[%s5 + $0x418] sm:$0xff]
      %v607 = vld [vmem:[%s5 + $0x420] sm:$0x1]
      %v608 = vld [vmem:[%s5 + $0x428] sm:$0xff]
      %v609 = vld [vmem:[%s5 + $0x430] sm:$0xff]
      %v610 = vld [vmem:[%s5 + $0x438] sm:$0xff]
      %v611 = vld [vmem:[%s5 + $0x440] sm:$0xff]
      %v612 = vld [vmem:[%s5 + $0x448] sm:$0xff]
      %v613 = vld [vmem:[%s5 + $0x450] sm:$0xff]
      %v614 = vld [vmem:[%s5 + $0x458] sm:$0x1]
      %v615 = vld [vmem:[%s5 + $0x460] sm:$0xff]
      %v616 = vld [vmem:[%s5 + $0x468] sm:$0xff]
      %v617 = vld [vmem:[%s5 + $0x470] sm:$0xff]
      %v618 = vld [vmem:[%s5 + $0x478] sm:$0xff]
      %v619 = vld [vmem:[%s5 + $0x480] sm:$0xff]
      %v620 = vld [vmem:[%s5 + $0x488] sm:$0xff]
      %v621 = vld [vmem:[%s5 + $0x490] sm:$0x1]
      %v622 = vld [vmem:[%s5 + $0x498] sm:$0xff]
      %v623 = vld [vmem:[%s5 + $0x4a0] sm:$0xff]
      %v624 = vld [vmem:[%s5 + $0x4a8] sm:$0xff]
      %v625 = vld [vmem:[%s5 + $0x4b0] sm:$0xff]
      %v626 = vld [vmem:[%s5 + $0x4b8] sm:$0xff]
      %v627 = vld [vmem:[%s5 + $0x4c0] sm:$0xff]
      %v628 = vld [vmem:[%s5 + $0x4c8] sm:$0x1]
      %v629 = vld [vmem:[%s5 + $0x4d0] sm:$0xff]
      %v630 = vld [vmem:[%s5 + $0x4d8] sm:$0xff]
      %v631 = vld [vmem:[%s5 + $0x4e0] sm:$0xff]
      %v632 = vld [vmem:[%s5 + $0x4e8] sm:$0xff]
      %v633 = vld [vmem:[%s5 + $0x4f0] sm:$0xff]
      %v634 = vld [vmem:[%s5 + $0x4f8] sm:$0xff]
      %v635 = vld [vmem:[%s5 + $0x500] sm:$0x1]
      %v636 = vld [vmem:[%s5 + $0x508] sm:$0xff]
      %v637 = vld [vmem:[%s5 + $0x510] sm:$0xff]
      %v638 = vld [vmem:[%s5 + $0x518] sm:$0xff]
      %v639 = vld [vmem:[%s5 + $0x520] sm:$0xff]
      %v640 = vld [vmem:[%s5 + $0x528] sm:$0xff]
      %v641 = vld [vmem:[%s5 + $0x530] sm:$0xff]
      %v642 = vld [vmem:[%s5 + $0x538] sm:$0x1]
      %v643 = vld [vmem:[%s5 + $0x540] sm:$0xff]
      %v644 = vld [vmem:[%s5 + $0x548] sm:$0xff]
      %v645 = vld [vmem:[%s5 + $0x550] sm:$0xff]
      %v646 = vld [vmem:[%s5 + $0x558] sm:$0xff]
      %v647 = vld [vmem:[%s5 + $0x560] sm:$0xff]
      %v648 = vld [vmem:[%s5 + $0x568] sm:$0xff]
      %v649 = vld [vmem:[%s5 + $0x570] sm:$0x1]
      %v650 = vld [vmem:[%s13] sm:$0xf]
      %v651 = vld [vmem:[%s1] sm:$0xff]
      %v652 = vld [vmem:[%s2] sm:$0x1]
      %v654 = vlaneseq
      %v655 = vshrl.u32 %v654, 7
      %v656 = vsub.s32 0, %v655
      %v657 = vrot.slane %v652, %v656
      %vm659 = vcmask 64512
      %v661 = vsel %vm659, %v468, 0
      %v664 = vsel %vm659, %v469, 0
      %v667 = vsel %vm659, %v470, 0
      %v670 = vsel %vm659, %v471, 0
      %v673 = vsel %vm659, %v472, 0
      %v676 = vsel %vm659, %v473, 0
      %v679 = vsel %vm659, %v474, 0
      %681 = vmatprep.subr.mxu0 0.0
      %682 = vmatpush1.msra.mxu0 %v651
      %683 = vmatprep.subr.mxu0 0.0
      %684 = vmatpush1.msra.mxu0 0.0
      %685 = vmatprep.subr.mxu0 0.0
      %686 = vmatpush1.msra.mxu0 0.0
      %687 = vmatprep.subr.mxu0 0.0
      %688 = vmatpush1.msra.mxu0 0.0
      %689 = vmatprep.subr.mxu0 0.0
      %690 = vmatpush1.msra.mxu0 0.0
      %691 = vmatprep.subr.mxu0 0.0
      %692 = vmatpush1.msra.mxu0 0.0
      %693 = vmatprep.subr.mxu0 0.0
      %694 = vmatpush1.msra.mxu0 0.0
      %695 = vmatprep.subr.mxu0 0.0
      %696 = vmatpush1.msra.mxu0 0.0
      %697 = vmatprep.subr.mxu0 0.0
      %698 = vmatpush1.msra.mxu0 0.0
      %699 = vmatprep.subr.mxu0 0.0
      %700 = vmatpush1.msra.mxu0 0.0
      %701 = vmatprep.subr.mxu0 0.0
      %702 = vmatpush1.msra.mxu0 0.0
      %703 = vmatprep.subr.mxu0 0.0
      %704 = vmatpush1.msra.mxu0 0.0
      %705 = vmatprep.subr.mxu0 0.0
      %706 = vmatpush1.msra.mxu0 0.0
      %707 = vmatprep.subr.mxu0 0.0
      %708 = vmatpush1.msra.mxu0 0.0
      %709 = vmatprep.subr.mxu0 0.0
      %710 = vmatpush1.msra.mxu0 0.0
      %711 = vmatprep.subr.mxu0 0.0
      %712 = vmatpush1.msra.mxu0 0.0
      %713 = vmatprep.subr.mxu0 0.0
      %714 = vmatpush1.msra.mxu0 0.0
      %715 = vmatprep.subr.mxu0 0.0
      %716 = vmatpush1.msra.mxu0 0.0
      %717 = vmatprep.subr.mxu0 0.0
      %718 = vmatpush1.msra.mxu0 0.0
      %719 = vmatprep.subr.mxu0 0.0
      %720 = vmatpush1.msra.mxu0 0.0
      %721 = vmatprep.subr.mxu0 0.0
      %722 = vmatpush1.msra.mxu0 0.0
      %723 = vmatprep.subr.mxu0 0.0
      %724 = vmatpush1.msra.mxu0 0.0
      %725 = vmatprep.subr.mxu0 0.0
      %726 = vmatpush1.msra.mxu0 0.0
      %727 = vmatprep.subr.mxu0 0.0
      %728 = vmatpush1.msra.mxu0 0.0
      %729 = vmatprep.subr.mxu0 0.0
      %730 = vmatpush1.msra.mxu0 0.0
      %731 = vmatprep.subr.mxu0 0.0
      %732 = vmatpush1.msra.mxu0 0.0
      %733 = vmatprep.subr.mxu0 0.0
      %734 = vmatpush1.msra.mxu0 0.0
      %735 = vmatprep.subr.mxu0 0.0
      %736 = vmatpush1.msra.mxu0 0.0
      %737 = vmatprep.subr.mxu0 0.0
      %738 = vmatpush1.msra.mxu0 0.0
      %739 = vmatprep.subr.mxu0 0.0
      %740 = vmatpush1.msra.mxu0 0.0
      %741 = vmatprep.subr.mxu0 0.0
      %742 = vmatpush1.msra.mxu0 0.0
      %743 = vmatprep.subr.mxu0 0.0
      %744 = vmatpush1.msra.mxu0 0.0
      %745 = vmatprep.mubr.f32.mxu0 0.0
      %746 = vmatmul.mubr.f32.gmra.mrb[0].mxu0 %v661
      %v747 = vpop.f32.mrb[0].mxu0
      %v748 = vadd.f32 %v657, %v747
      %v749 = vpop.f32.mrb[0].mxu0
      %750 = vmatprep.mubr.f32.mxu0 0.0
      %751 = vmatmul.mubr.f32.gmra.mrb[0].mxu0 %v664
      %v752 = vpop.f32.mrb[0].mxu0
      %v753 = vadd.f32 %v657, %v752
      %v754 = vpop.f32.mrb[0].mxu0
      %755 = vmatprep.mubr.f32.mxu0 0.0
      %756 = vmatmul.mubr.f32.gmra.mrb[0].mxu0 %v667
      %v757 = vpop.f32.mrb[0].mxu0
      %v758 = vadd.f32 %v657, %v757
      %v759 = vpop.f32.mrb[0].mxu0
      %760 = vmatprep.mubr.f32.mxu0 0.0
      %761 = vmatmul.mubr.f32.gmra.mrb[0].mxu0 %v670
      %v762 = vpop.f32.mrb[0].mxu0
      %v763 = vadd.f32 %v657, %v762
      %v764 = vpop.f32.mrb[0].mxu0
      %765 = vmatprep.mubr.f32.mxu0 0.0
      %766 = vmatmul.mubr.f32.gmra.mrb[0].mxu0 %v673
      %v767 = vpop.f32.mrb[0].mxu0
      %v768 = vadd.f32 %v657, %v767
      %v769 = vpop.f32.mrb[0].mxu0
      %770 = vmatprep.mubr.f32.mxu0 0.0
      %771 = vmatmul.mubr.f32.gmra.mrb[0].mxu0 %v676
      %v772 = vpop.f32.mrb[0].mxu0
      %v773 = vadd.f32 %v657, %v772
      %v774 = vpop.f32.mrb[0].mxu0
      %775 = vmatprep.mubr.f32.mxu0 0.0
      %776 = vmatmul.mubr.f32.gmra.mrb[0].mxu0 %v679
      %v777 = vpop.f32.mrb[0].mxu0
      %v778 = vadd.f32 %v657, %v777
      %v779 = vpop.f32.mrb[0].mxu0
      %780 = vdwg.mxu0
      %v781 = vld [vmem:[%s3] sm:$0xff]
      %v782 = vld [vmem:[%s3 + $0x8] sm:$0xff]
      %v783 = vld [vmem:[%s3 + $0x10] sm:$0xff]
      %v784 = vld [vmem:[%s3 + $0x18] sm:$0x1]
      %vm788 = vcmask 1046528
      %v789 = vrot.slane %v768, 1
      %v790 = vrot.slane %v773, 1
      %v791 = vsel %vm788, %v789, %v790
      %v792 = vrot.slane %v778, 1
      %v793 = vsel %vm788, %v790, %v792
      %797 = vset.pattern.permute.xlu0 0
      %798 = vperm.xlu0 %797, %v475
      %v799 = vpop.permute.xlu0 %798
      %802 = vset.pattern.permute.xlu0 0
      %803 = vperm.xlu0 %802, %v476
      %v804 = vpop.permute.xlu0 %803
      %807 = vset.pattern.permute.xlu0 0
      %808 = vperm.xlu0 %807, %v477
      %v809 = vpop.permute.xlu0 %808
      %812 = vset.pattern.permute.xlu0 0
      %813 = vperm.xlu0 %812, %v478
      %v814 = vpop.permute.xlu0 %813
      %817 = vset.pattern.permute.xlu0 0
      %818 = vperm.xlu0 %817, %v479
      %v819 = vpop.permute.xlu0 %818
      %822 = vset.pattern.permute.xlu0 0
      %823 = vperm.xlu0 %822, %v480
      %v824 = vpop.permute.xlu0 %823
      %827 = vset.pattern.permute.xlu0 0
      %828 = vperm.xlu0 %827, %v481
      %v829 = vpop.permute.xlu0 %828
      %v831 = vmul.f32 %v791, %v799
      %v832 = vmul.f32 %v793, %v804
      %v833 = vmul.f32 %v748, %v809
      %v834 = vmul.f32 %v753, %v814
      %v835 = vmul.f32 %v758, %v819
      %v836 = vmul.f32 %v763, %v824
      %v837 = vmul.f32 %v768, %v829
      %v838 = vlaneseq
      %v839 = vshrl.u32 %v838, 7
      %v840 = vsub.s32 0, %v839
      %v841 = vrot.slane %v781, %v840
      %v842 = vmul.f32 %v831, %v841
      %v843 = vmul.f32 %v832, %v841
      %v844 = vmul.f32 %v833, %v841
      %v845 = vmul.f32 %v834, %v841
      %v846 = vmul.f32 %v835, %v841
      %v847 = vmul.f32 %v836, %v841
      %v848 = vmul.f32 %v837, %v841
      %v849 = vadd.f32 %v842, 0.0
      %v850 = vadd.f32 %v843, 0.0
      %v851 = vadd.f32 %v844, 0.0
      %v852 = vadd.f32 %v845, 0.0
      %v853 = vadd.f32 %v846, 0.0
      %v854 = vadd.f32 %v847, 0.0
      %v855 = vadd.f32 %v848, 0.0
      %vm856 = vcmask 1045504
      %v857 = vrot.slane %v768, 2
      %v858 = vrot.slane %v773, 2
      %v859 = vsel %vm856, %v857, %v858
      %v860 = vrot.slane %v778, 2
      %v861 = vsel %vm856, %v858, %v860
      %v868 = vrot.slane %v748, 1
      %v869 = vrot.slane %v753, 1
      %v870 = vsel %vm788, %v868, %v869
      %v871 = vrot.slane %v758, 1
      %v872 = vsel %vm788, %v869, %v871
      %v873 = vrot.slane %v763, 1
      %v874 = vsel %vm788, %v871, %v873
      %v875 = vsel %vm788, %v873, %v789
      %v882 = vsel %vm788, %v861, %v868
      %884 = vset.pattern.permute.xlu0 0
      %885 = vperm.xlu0 %884, %v482
      %v886 = vpop.permute.xlu0 %885
      %889 = vset.pattern.permute.xlu0 0
      %890 = vperm.xlu0 %889, %v483
      %v891 = vpop.permute.xlu0 %890
      %894 = vset.pattern.permute.xlu0 0
      %895 = vperm.xlu0 %894, %v484
      %v896 = vpop.permute.xlu0 %895
      %899 = vset.pattern.permute.xlu0 0
      %900 = vperm.xlu0 %899, %v485
      %v901 = vpop.permute.xlu0 %900
      %904 = vset.pattern.permute.xlu0 0
      %905 = vperm.xlu0 %904, %v486
      %v906 = vpop.permute.xlu0 %905
      %909 = vset.pattern.permute.xlu0 0
      %910 = vperm.xlu0 %909, %v487
      %v911 = vpop.permute.xlu0 %910
      %914 = vset.pattern.permute.xlu0 0
      %915 = vperm.xlu0 %914, %v488
      %v916 = vpop.permute.xlu0 %915
      %v918 = vmul.f32 %v859, %v886
      %v919 = vmul.f32 %v882, %v891
      %v920 = vmul.f32 %v870, %v896
      %v921 = vmul.f32 %v872, %v901
      %v922 = vmul.f32 %v874, %v906
      %v923 = vmul.f32 %v875, %v911
      %v924 = vmul.f32 %v789, %v916
      %v925 = vlaneseq
      %v926 = vshrl.u32 %v925, 7
      %v927 = vsub.s32 1, %v926
      %v928 = vrot.slane %v781, %v927
      %v929 = vmul.f32 %v918, %v928
      %v930 = vmul.f32 %v919, %v928
      %v931 = vmul.f32 %v920, %v928
      %v932 = vmul.f32 %v921, %v928
      %v933 = vmul.f32 %v922, %v928
      %v934 = vmul.f32 %v923, %v928
      %v935 = vmul.f32 %v924, %v928
      %v936 = vadd.f32 %v849, %v929
      %v937 = vadd.f32 %v850, %v930
      %v938 = vadd.f32 %v851, %v931
      %v939 = vadd.f32 %v852, %v932
      %v940 = vadd.f32 %v853, %v933
      %v941 = vadd.f32 %v854, %v934
      %v942 = vadd.f32 %v855, %v935
      %vm943 = vcmask 1044480
      %v944 = vrot.slane %v768, 3
      %v945 = vrot.slane %v773, 3
      %v946 = vsel %vm943, %v944, %v945
      %v947 = vrot.slane %v778, 3
      %v948 = vsel %vm943, %v945, %v947
      %v951 = vrot.slane %v748, 2
      %v952 = vrot.slane %v753, 2
      %v953 = vsel %vm856, %v951, %v952
      %v954 = vrot.slane %v758, 2
      %v955 = vsel %vm856, %v952, %v954
      %v956 = vrot.slane %v763, 2
      %v957 = vsel %vm856, %v954, %v956
      %v958 = vsel %vm856, %v956, %v857
      %v965 = vsel %vm856, %v948, %v951
      %967 = vset.pattern.permute.xlu0 0
      %968 = vperm.xlu0 %967, %v489
      %v969 = vpop.permute.xlu0 %968
      %972 = vset.pattern.permute.xlu0 0
      %973 = vperm.xlu0 %972, %v490
      %v974 = vpop.permute.xlu0 %973
      %977 = vset.pattern.permute.xlu0 0
      %978 = vperm.xlu0 %977, %v491
      %v979 = vpop.permute.xlu0 %978
      %982 = vset.pattern.permute.xlu0 0
      %983 = vperm.xlu0 %982, %v492
      %v984 = vpop.permute.xlu0 %983
      %987 = vset.pattern.permute.xlu0 0
      %988 = vperm.xlu0 %987, %v493
      %v989 = vpop.permute.xlu0 %988
      %992 = vset.pattern.permute.xlu0 0
      %993 = vperm.xlu0 %992, %v494
      %v994 = vpop.permute.xlu0 %993
      %997 = vset.pattern.permute.xlu0 0
      %998 = vperm.xlu0 %997, %v495
      %v999 = vpop.permute.xlu0 %998
      %v1001 = vmul.f32 %v946, %v969
      %v1002 = vmul.f32 %v965, %v974
      %v1003 = vmul.f32 %v953, %v979
      %v1004 = vmul.f32 %v955, %v984
      %v1005 = vmul.f32 %v957, %v989
      %v1006 = vmul.f32 %v958, %v994
      %v1007 = vmul.f32 %v857, %v999
      %v1008 = vlaneseq
      %v1009 = vshrl.u32 %v1008, 7
      %v1010 = vsub.s32 2, %v1009
      %v1011 = vrot.slane %v781, %v1010
      %v1012 = vmul.f32 %v1001, %v1011
      %v1013 = vmul.f32 %v1002, %v1011
      %v1014 = vmul.f32 %v1003, %v1011
      %v1015 = vmul.f32 %v1004, %v1011
      %v1016 = vmul.f32 %v1005, %v1011
      %v1017 = vmul.f32 %v1006, %v1011
      %v1018 = vmul.f32 %v1007, %v1011
      %v1019 = vadd.f32 %v936, %v1012
      %v1020 = vadd.f32 %v937, %v1013
      %v1021 = vadd.f32 %v938, %v1014
      %v1022 = vadd.f32 %v939, %v1015
      %v1023 = vadd.f32 %v940, %v1016
      %v1024 = vadd.f32 %v941, %v1017
      %v1025 = vadd.f32 %v942, %v1018
      %vm1026 = vcmask 1043456
      %v1027 = vrot.slane %v768, 4
      %v1028 = vrot.slane %v773, 4
      %v1029 = vsel %vm1026, %v1027, %v1028
      %v1030 = vrot.slane %v778, 4
      %v1031 = vsel %vm1026, %v1028, %v1030
      %v1034 = vrot.slane %v748, 3
      %v1035 = vrot.slane %v753, 3
      %v1036 = vsel %vm943, %v1034, %v1035
      %v1037 = vrot.slane %v758, 3
      %v1038 = vsel %vm943, %v1035, %v1037
      %v1039 = vrot.slane %v763, 3
      %v1040 = vsel %vm943, %v1037, %v1039
      %v1041 = vsel %vm943, %v1039, %v944
      %v1048 = vsel %vm943, %v1031, %v1034
      %1050 = vset.pattern.permute.xlu0 0
      %1051 = vperm.xlu0 %1050, %v496
      %v1052 = vpop.permute.xlu0 %1051
      %1055 = vset.pattern.permute.xlu0 0
      %1056 = vperm.xlu0 %1055, %v497
      %v1057 = vpop.permute.xlu0 %1056
      %1060 = vset.pattern.permute.xlu0 0
      %1061 = vperm.xlu0 %1060, %v498
      %v1062 = vpop.permute.xlu0 %1061
      %1065 = vset.pattern.permute.xlu0 0
      %1066 = vperm.xlu0 %1065, %v499
      %v1067 = vpop.permute.xlu0 %1066
      %1070 = vset.pattern.permute.xlu0 0
      %1071 = vperm.xlu0 %1070, %v500
      %v1072 = vpop.permute.xlu0 %1071
      %1075 = vset.pattern.permute.xlu0 0
      %1076 = vperm.xlu0 %1075, %v501
      %v1077 = vpop.permute.xlu0 %1076
      %1080 = vset.pattern.permute.xlu0 0
      %1081 = vperm.xlu0 %1080, %v502
      %v1082 = vpop.permute.xlu0 %1081
      %v1084 = vmul.f32 %v1029, %v1052
      %v1085 = vmul.f32 %v1048, %v1057
      %v1086 = vmul.f32 %v1036, %v1062
      %v1087 = vmul.f32 %v1038, %v1067
      %v1088 = vmul.f32 %v1040, %v1072
      %v1089 = vmul.f32 %v1041, %v1077
      %v1090 = vmul.f32 %v944, %v1082
      %v1091 = vlaneseq
      %v1092 = vshrl.u32 %v1091, 7
      %v1093 = vsub.s32 3, %v1092
      %v1094 = vrot.slane %v781, %v1093
      %v1095 = vmul.f32 %v1084, %v1094
      %v1096 = vmul.f32 %v1085, %v1094
      %v1097 = vmul.f32 %v1086, %v1094
      %v1098 = vmul.f32 %v1087, %v1094
      %v1099 = vmul.f32 %v1088, %v1094
      %v1100 = vmul.f32 %v1089, %v1094
      %v1101 = vmul.f32 %v1090, %v1094
      %v1102 = vadd.f32 %v1019, %v1095
      %v1103 = vadd.f32 %v1020, %v1096
      %v1104 = vadd.f32 %v1021, %v1097
      %v1105 = vadd.f32 %v1022, %v1098
      %v1106 = vadd.f32 %v1023, %v1099
      %v1107 = vadd.f32 %v1024, %v1100
      %v1108 = vadd.f32 %v1025, %v1101
      %vm1109 = vcmask 1042432
      %v1110 = vrot.slane %v768, 5
      %v1111 = vrot.slane %v773, 5
      %v1112 = vsel %vm1109, %v1110, %v1111
      %v1113 = vrot.slane %v778, 5
      %v1114 = vsel %vm1109, %v1111, %v1113
      %v1117 = vrot.slane %v748, 4
      %v1118 = vrot.slane %v753, 4
      %v1119 = vsel %vm1026, %v1117, %v1118
      %v1120 = vrot.slane %v758, 4
      %v1121 = vsel %vm1026, %v1118, %v1120
      %v1122 = vrot.slane %v763, 4
      %v1123 = vsel %vm1026, %v1120, %v1122
      %v1124 = vsel %vm1026, %v1122, %v1027
      %v1131 = vsel %vm1026, %v1114, %v1117
      %1133 = vset.pattern.permute.xlu0 0
      %1134 = vperm.xlu0 %1133, %v503
      %v1135 = vpop.permute.xlu0 %1134
      %1138 = vset.pattern.permute.xlu0 0
      %1139 = vperm.xlu0 %1138, %v504
      %v1140 = vpop.permute.xlu0 %1139
      %1143 = vset.pattern.permute.xlu0 0
      %1144 = vperm.xlu0 %1143, %v505
      %v1145 = vpop.permute.xlu0 %1144
      %1148 = vset.pattern.permute.xlu0 0
      %1149 = vperm.xlu0 %1148, %v506
      %v1150 = vpop.permute.xlu0 %1149
      %1153 = vset.pattern.permute.xlu0 0
      %1154 = vperm.xlu0 %1153, %v507
      %v1155 = vpop.permute.xlu0 %1154
      %1158 = vset.pattern.permute.xlu0 0
      %1159 = vperm.xlu0 %1158, %v508
      %v1160 = vpop.permute.xlu0 %1159
      %1163 = vset.pattern.permute.xlu0 0
      %1164 = vperm.xlu0 %1163, %v509
      %v1165 = vpop.permute.xlu0 %1164
      %v1167 = vmul.f32 %v1112, %v1135
      %v1168 = vmul.f32 %v1131, %v1140
      %v1169 = vmul.f32 %v1119, %v1145
      %v1170 = vmul.f32 %v1121, %v1150
      %v1171 = vmul.f32 %v1123, %v1155
      %v1172 = vmul.f32 %v1124, %v1160
      %v1173 = vmul.f32 %v1027, %v1165
      %v1174 = vlaneseq
      %v1175 = vshrl.u32 %v1174, 7
      %v1176 = vsub.s32 4, %v1175
      %v1177 = vrot.slane %v781, %v1176
      %v1178 = vmul.f32 %v1167, %v1177
      %v1179 = vmul.f32 %v1168, %v1177
      %v1180 = vmul.f32 %v1169, %v1177
      %v1181 = vmul.f32 %v1170, %v1177
      %v1182 = vmul.f32 %v1171, %v1177
      %v1183 = vmul.f32 %v1172, %v1177
      %v1184 = vmul.f32 %v1173, %v1177
      %v1185 = vadd.f32 %v1102, %v1178
      %v1186 = vadd.f32 %v1103, %v1179
      %v1187 = vadd.f32 %v1104, %v1180
      %v1188 = vadd.f32 %v1105, %v1181
      %v1189 = vadd.f32 %v1106, %v1182
      %v1190 = vadd.f32 %v1107, %v1183
      %v1191 = vadd.f32 %v1108, %v1184
      %vm1192 = vcmask 1040384
      %v1193 = vrot.slane %v748, 7
      %v1194 = vrot.slane %v753, 7
      %v1195 = vsel %vm1192, %v1193, %v1194
      %v1196 = vrot.slane %v758, 7
      %v1197 = vsel %vm1192, %v1194, %v1196
      %v1198 = vrot.slane %v763, 7
      %v1199 = vsel %vm1192, %v1196, %v1198
      %v1200 = vrot.slane %v768, 7
      %v1201 = vsel %vm1192, %v1198, %v1200
      %v1208 = vsel %vm1192, %v778, %v1193
      %1210 = vset.pattern.permute.xlu0 0
      %1211 = vperm.xlu0 %1210, %v510
      %v1212 = vpop.permute.xlu0 %1211
      %1215 = vset.pattern.permute.xlu0 0
      %1216 = vperm.xlu0 %1215, %v511
      %v1217 = vpop.permute.xlu0 %1216
      %1220 = vset.pattern.permute.xlu0 0
      %1221 = vperm.xlu0 %1220, %v512
      %v1222 = vpop.permute.xlu0 %1221
      %1225 = vset.pattern.permute.xlu0 0
      %1226 = vperm.xlu0 %1225, %v513
      %v1227 = vpop.permute.xlu0 %1226
      %1230 = vset.pattern.permute.xlu0 0
      %1231 = vperm.xlu0 %1230, %v514
      %v1232 = vpop.permute.xlu0 %1231
      %1235 = vset.pattern.permute.xlu0 0
      %1236 = vperm.xlu0 %1235, %v515
      %v1237 = vpop.permute.xlu0 %1236
      %1240 = vset.pattern.permute.xlu0 0
      %1241 = vperm.xlu0 %1240, %v516
      %v1242 = vpop.permute.xlu0 %1241
      %v1244 = vmul.f32 %v773, %v1212
      %v1245 = vmul.f32 %v1208, %v1217
      %v1246 = vmul.f32 %v1195, %v1222
      %v1247 = vmul.f32 %v1197, %v1227
      %v1248 = vmul.f32 %v1199, %v1232
      %v1249 = vmul.f32 %v1201, %v1237
      %v1250 = vmul.f32 %v1200, %v1242
      %v1251 = vlaneseq
      %v1252 = vshrl.u32 %v1251, 7
      %v1253 = vsub.s32 5, %v1252
      %v1254 = vrot.slane %v781, %v1253
      %v1255 = vmul.f32 %v1244, %v1254
      %v1256 = vmul.f32 %v1245, %v1254
      %v1257 = vmul.f32 %v1246, %v1254
      %v1258 = vmul.f32 %v1247, %v1254
      %v1259 = vmul.f32 %v1248, %v1254
      %v1260 = vmul.f32 %v1249, %v1254
      %v1261 = vmul.f32 %v1250, %v1254
      %v1262 = vadd.f32 %v1185, %v1255
      %v1263 = vadd.f32 %v1186, %v1256
      %v1264 = vadd.f32 %v1187, %v1257
      %v1265 = vadd.f32 %v1188, %v1258
      %v1266 = vadd.f32 %v1189, %v1259
      %v1267 = vadd.f32 %v1190, %v1260
      %v1268 = vadd.f32 %v1191, %v1261
      %1270 = vset.pattern.permute.xlu0 0
      %1271 = vperm.xlu0 %1270, %v517
      %v1272 = vpop.permute.xlu0 %1271
      %1275 = vset.pattern.permute.xlu0 0
      %1276 = vperm.xlu0 %1275, %v518
      %v1277 = vpop.permute.xlu0 %1276
      %1280 = vset.pattern.permute.xlu0 0
      %1281 = vperm.xlu0 %1280, %v519
      %v1282 = vpop.permute.xlu0 %1281
      %1285 = vset.pattern.permute.xlu0 0
      %1286 = vperm.xlu0 %1285, %v520
      %v1287 = vpop.permute.xlu0 %1286
      %1290 = vset.pattern.permute.xlu0 0
      %1291 = vperm.xlu0 %1290, %v521
      %v1292 = vpop.permute.xlu0 %1291
      %1295 = vset.pattern.permute.xlu0 0
      %1296 = vperm.xlu0 %1295, %v522
      %v1297 = vpop.permute.xlu0 %1296
      %1300 = vset.pattern.permute.xlu0 0
      %1301 = vperm.xlu0 %1300, %v523
      %v1302 = vpop.permute.xlu0 %1301
      %v1304 = vmul.f32 %v793, %v1272
      %v1305 = vmul.f32 %v748, %v1277
      %v1306 = vmul.f32 %v753, %v1282
      %v1307 = vmul.f32 %v758, %v1287
      %v1308 = vmul.f32 %v763, %v1292
      %v1309 = vmul.f32 %v768, %v1297
      %v1310 = vmul.f32 %v773, %v1302
      %v1311 = vlaneseq
      %v1312 = vshrl.u32 %v1311, 7
      %v1313 = vsub.s32 6, %v1312
      %v1314 = vrot.slane %v781, %v1313
      %v1315 = vmul.f32 %v1304, %v1314
      %v1316 = vmul.f32 %v1305, %v1314
      %v1317 = vmul.f32 %v1306, %v1314
      %v1318 = vmul.f32 %v1307, %v1314
      %v1319 = vmul.f32 %v1308, %v1314
      %v1320 = vmul.f32 %v1309, %v1314
      %v1321 = vmul.f32 %v1310, %v1314
      %v1322 = vadd.f32 %v1262, %v1315
      %v1323 = vadd.f32 %v1263, %v1316
      %v1324 = vadd.f32 %v1264, %v1317
      %v1325 = vadd.f32 %v1265, %v1318
      %v1326 = vadd.f32 %v1266, %v1319
      %v1327 = vadd.f32 %v1267, %v1320
      %v1328 = vadd.f32 %v1268, %v1321
      %1331 = vset.pattern.permute.xlu0 0
      %1332 = vperm.xlu0 %1331, %v524
      %v1333 = vpop.permute.xlu0 %1332
      %1336 = vset.pattern.permute.xlu0 0
      %1337 = vperm.xlu0 %1336, %v525
      %v1338 = vpop.permute.xlu0 %1337
      %1341 = vset.pattern.permute.xlu0 0
      %1342 = vperm.xlu0 %1341, %v526
      %v1343 = vpop.permute.xlu0 %1342
      %1346 = vset.pattern.permute.xlu0 0
      %1347 = vperm.xlu0 %1346, %v527
      %v1348 = vpop.permute.xlu0 %1347
      %1351 = vset.pattern.permute.xlu0 0
      %1352 = vperm.xlu0 %1351, %v528
      %v1353 = vpop.permute.xlu0 %1352
      %1356 = vset.pattern.permute.xlu0 0
      %1357 = vperm.xlu0 %1356, %v529
      %v1358 = vpop.permute.xlu0 %1357
      %1361 = vset.pattern.permute.xlu0 0
      %1362 = vperm.xlu0 %1361, %v530
      %v1363 = vpop.permute.xlu0 %1362
      %v1365 = vmul.f32 %v882, %v1333
      %v1366 = vmul.f32 %v870, %v1338
      %v1367 = vmul.f32 %v872, %v1343
      %v1368 = vmul.f32 %v874, %v1348
      %v1369 = vmul.f32 %v875, %v1353
      %v1370 = vmul.f32 %v791, %v1358
      %v1371 = vmul.f32 %v790, %v1363
      %v1372 = vlaneseq
      %v1373 = vshrl.u32 %v1372, 7
      %v1374 = vsub.s32 7, %v1373
      %v1375 = vrot.slane %v781, %v1374
      %v1376 = vmul.f32 %v1365, %v1375
      %v1377 = vmul.f32 %v1366, %v1375
      %v1378 = vmul.f32 %v1367, %v1375
      %v1379 = vmul.f32 %v1368, %v1375
      %v1380 = vmul.f32 %v1369, %v1375
      %v1381 = vmul.f32 %v1370, %v1375
      %v1382 = vmul.f32 %v1371, %v1375
      %v1383 = vadd.f32 %v1322, %v1376
      %v1384 = vadd.f32 %v1323, %v1377
      %v1385 = vadd.f32 %v1324, %v1378
      %v1386 = vadd.f32 %v1325, %v1379
      %v1387 = vadd.f32 %v1326, %v1380
      %v1388 = vadd.f32 %v1327, %v1381
      %v1389 = vadd.f32 %v1328, %v1382
      %1392 = vset.pattern.permute.xlu0 0
      %1393 = vperm.xlu0 %1392, %v531
      %v1394 = vpop.permute.xlu0 %1393
      %1397 = vset.pattern.permute.xlu0 0
      %1398 = vperm.xlu0 %1397, %v532
      %v1399 = vpop.permute.xlu0 %1398
      %1402 = vset.pattern.permute.xlu0 0
      %1403 = vperm.xlu0 %1402, %v533
      %v1404 = vpop.permute.xlu0 %1403
      %1407 = vset.pattern.permute.xlu0 0
      %1408 = vperm.xlu0 %1407, %v534
      %v1409 = vpop.permute.xlu0 %1408
      %1412 = vset.pattern.permute.xlu0 0
      %1413 = vperm.xlu0 %1412, %v535
      %v1414 = vpop.permute.xlu0 %1413
      %1417 = vset.pattern.permute.xlu0 0
      %1418 = vperm.xlu0 %1417, %v536
      %v1419 = vpop.permute.xlu0 %1418
      %1422 = vset.pattern.permute.xlu0 0
      %1423 = vperm.xlu0 %1422, %v537
      %v1424 = vpop.permute.xlu0 %1423
      %v1426 = vmul.f32 %v965, %v1394
      %v1427 = vmul.f32 %v953, %v1399
      %v1428 = vmul.f32 %v955, %v1404
      %v1429 = vmul.f32 %v957, %v1409
      %v1430 = vmul.f32 %v958, %v1414
      %v1431 = vmul.f32 %v859, %v1419
      %v1432 = vmul.f32 %v858, %v1424
      %v1433 = vlaneseq
      %v1434 = vshrl.u32 %v1433, 7
      %v1435 = vsub.s32 0, %v1434
      %v1436 = vrot.slane %v782, %v1435
      %v1437 = vmul.f32 %v1426, %v1436
      %v1438 = vmul.f32 %v1427, %v1436
      %v1439 = vmul.f32 %v1428, %v1436
      %v1440 = vmul.f32 %v1429, %v1436
      %v1441 = vmul.f32 %v1430, %v1436
      %v1442 = vmul.f32 %v1431, %v1436
      %v1443 = vmul.f32 %v1432, %v1436
      %v1444 = vadd.f32 %v1383, %v1437
      %v1445 = vadd.f32 %v1384, %v1438
      %v1446 = vadd.f32 %v1385, %v1439
      %v1447 = vadd.f32 %v1386, %v1440
      %v1448 = vadd.f32 %v1387, %v1441
      %v1449 = vadd.f32 %v1388, %v1442
      %v1450 = vadd.f32 %v1389, %v1443
      %1453 = vset.pattern.permute.xlu0 0
      %1454 = vperm.xlu0 %1453, %v538
      %v1455 = vpop.permute.xlu0 %1454
      %1458 = vset.pattern.permute.xlu0 0
      %1459 = vperm.xlu0 %1458, %v539
      %v1460 = vpop.permute.xlu0 %1459
      %1463 = vset.pattern.permute.xlu0 0
      %1464 = vperm.xlu0 %1463, %v540
      %v1465 = vpop.permute.xlu0 %1464
      %1468 = vset.pattern.permute.xlu0 0
      %1469 = vperm.xlu0 %1468, %v541
      %v1470 = vpop.permute.xlu0 %1469
      %1473 = vset.pattern.permute.xlu0 0
      %1474 = vperm.xlu0 %1473, %v542
      %v1475 = vpop.permute.xlu0 %1474
      %1478 = vset.pattern.permute.xlu0 0
      %1479 = vperm.xlu0 %1478, %v543
      %v1480 = vpop.permute.xlu0 %1479
      %1483 = vset.pattern.permute.xlu0 0
      %1484 = vperm.xlu0 %1483, %v544
      %v1485 = vpop.permute.xlu0 %1484
      %v1487 = vmul.f32 %v1048, %v1455
      %v1488 = vmul.f32 %v1036, %v1460
      %v1489 = vmul.f32 %v1038, %v1465
      %v1490 = vmul.f32 %v1040, %v1470
      %v1491 = vmul.f32 %v1041, %v1475
      %v1492 = vmul.f32 %v946, %v1480
      %v1493 = vmul.f32 %v945, %v1485
      %v1494 = vlaneseq
      %v1495 = vshrl.u32 %v1494, 7
      %v1496 = vsub.s32 1, %v1495
      %v1497 = vrot.slane %v782, %v1496
      %v1498 = vmul.f32 %v1487, %v1497
      %v1499 = vmul.f32 %v1488, %v1497
      %v1500 = vmul.f32 %v1489, %v1497
      %v1501 = vmul.f32 %v1490, %v1497
      %v1502 = vmul.f32 %v1491, %v1497
      %v1503 = vmul.f32 %v1492, %v1497
      %v1504 = vmul.f32 %v1493, %v1497
      %v1505 = vadd.f32 %v1444, %v1498
      %v1506 = vadd.f32 %v1445, %v1499
      %v1507 = vadd.f32 %v1446, %v1500
      %v1508 = vadd.f32 %v1447, %v1501
      %v1509 = vadd.f32 %v1448, %v1502
      %v1510 = vadd.f32 %v1449, %v1503
      %v1511 = vadd.f32 %v1450, %v1504
      %v1512 = vrot.slane %v773, 7
      %v1513 = vrot.slane %v778, 7
      %v1514 = vsel %vm1192, %v1512, %v1513
      %vm1516 = vcmask 1041408
      %v1517 = vrot.slane %v748, 6
      %v1518 = vrot.slane %v753, 6
      %v1519 = vsel %vm1516, %v1517, %v1518
      %v1520 = vrot.slane %v758, 6
      %v1521 = vsel %vm1516, %v1518, %v1520
      %v1522 = vrot.slane %v763, 6
      %v1523 = vsel %vm1516, %v1520, %v1522
      %v1524 = vrot.slane %v768, 6
      %v1525 = vsel %vm1516, %v1522, %v1524
      %v1526 = vrot.slane %v773, 6
      %v1527 = vsel %vm1516, %v1524, %v1526
      %v1535 = vsel %vm1516, %v1514, %v1517
      %1537 = vset.pattern.permute.xlu0 0
      %1538 = vperm.xlu0 %1537, %v545
      %v1539 = vpop.permute.xlu0 %1538
      %1542 = vset.pattern.permute.xlu0 0
      %1543 = vperm.xlu0 %1542, %v546
      %v1544 = vpop.permute.xlu0 %1543
      %1547 = vset.pattern.permute.xlu0 0
      %1548 = vperm.xlu0 %1547, %v547
      %v1549 = vpop.permute.xlu0 %1548
      %1552 = vset.pattern.permute.xlu0 0
      %1553 = vperm.xlu0 %1552, %v548
      %v1554 = vpop.permute.xlu0 %1553
      %1557 = vset.pattern.permute.xlu0 0
      %1558 = vperm.xlu0 %1557, %v549
      %v1559 = vpop.permute.xlu0 %1558
      %1562 = vset.pattern.permute.xlu0 0
      %1563 = vperm.xlu0 %1562, %v550
      %v1564 = vpop.permute.xlu0 %1563
      %1567 = vset.pattern.permute.xlu0 0
      %1568 = vperm.xlu0 %1567, %v551
      %v1569 = vpop.permute.xlu0 %1568
      %v1571 = vmul.f32 %v1535, %v1539
      %v1572 = vmul.f32 %v1519, %v1544
      %v1573 = vmul.f32 %v1521, %v1549
      %v1574 = vmul.f32 %v1523, %v1554
      %v1575 = vmul.f32 %v1525, %v1559
      %v1576 = vmul.f32 %v1527, %v1564
      %v1577 = vmul.f32 %v1526, %v1569
      %v1578 = vlaneseq
      %v1579 = vshrl.u32 %v1578, 7
      %v1580 = vsub.s32 2, %v1579
      %v1581 = vrot.slane %v782, %v1580
      %v1582 = vmul.f32 %v1571, %v1581
      %v1583 = vmul.f32 %v1572, %v1581
      %v1584 = vmul.f32 %v1573, %v1581
      %v1585 = vmul.f32 %v1574, %v1581
      %v1586 = vmul.f32 %v1575, %v1581
      %v1587 = vmul.f32 %v1576, %v1581
      %v1588 = vmul.f32 %v1577, %v1581
      %v1589 = vadd.f32 %v1505, %v1582
      %v1590 = vadd.f32 %v1506, %v1583
      %v1591 = vadd.f32 %v1507, %v1584
      %v1592 = vadd.f32 %v1508, %v1585
      %v1593 = vadd.f32 %v1509, %v1586
      %v1594 = vadd.f32 %v1510, %v1587
      %v1595 = vadd.f32 %v1511, %v1588
      %v1596 = vsel %vm1192, %v1200, %v1512
      %1600 = vset.pattern.permute.xlu0 0
      %1601 = vperm.xlu0 %1600, %v552
      %v1602 = vpop.permute.xlu0 %1601
      %1605 = vset.pattern.permute.xlu0 0
      %1606 = vperm.xlu0 %1605, %v553
      %v1607 = vpop.permute.xlu0 %1606
      %1610 = vset.pattern.permute.xlu0 0
      %1611 = vperm.xlu0 %1610, %v554
      %v1612 = vpop.permute.xlu0 %1611
      %1615 = vset.pattern.permute.xlu0 0
      %1616 = vperm.xlu0 %1615, %v555
      %v1617 = vpop.permute.xlu0 %1616
      %1620 = vset.pattern.permute.xlu0 0
      %1621 = vperm.xlu0 %1620, %v556
      %v1622 = vpop.permute.xlu0 %1621
      %1625 = vset.pattern.permute.xlu0 0
      %1626 = vperm.xlu0 %1625, %v557
      %v1627 = vpop.permute.xlu0 %1626
      %1630 = vset.pattern.permute.xlu0 0
      %1631 = vperm.xlu0 %1630, %v558
      %v1632 = vpop.permute.xlu0 %1631
      %v1634 = vmul.f32 %v1208, %v1602
      %v1635 = vmul.f32 %v1195, %v1607
      %v1636 = vmul.f32 %v1197, %v1612
      %v1637 = vmul.f32 %v1199, %v1617
      %v1638 = vmul.f32 %v1201, %v1622
      %v1639 = vmul.f32 %v1596, %v1627
      %v1640 = vmul.f32 %v1512, %v1632
      %v1641 = vlaneseq
      %v1642 = vshrl.u32 %v1641, 7
      %v1643 = vsub.s32 3, %v1642
      %v1644 = vrot.slane %v782, %v1643
      %v1645 = vmul.f32 %v1634, %v1644
      %v1646 = vmul.f32 %v1635, %v1644
      %v1647 = vmul.f32 %v1636, %v1644
      %v1648 = vmul.f32 %v1637, %v1644
      %v1649 = vmul.f32 %v1638, %v1644
      %v1650 = vmul.f32 %v1639, %v1644
      %v1651 = vmul.f32 %v1640, %v1644
      %v1652 = vadd.f32 %v1589, %v1645
      %v1653 = vadd.f32 %v1590, %v1646
      %v1654 = vadd.f32 %v1591, %v1647
      %v1655 = vadd.f32 %v1592, %v1648
      %v1656 = vadd.f32 %v1593, %v1649
      %v1657 = vadd.f32 %v1594, %v1650
      %v1658 = vadd.f32 %v1595, %v1651
      %1660 = vset.pattern.permute.xlu0 0
      %1661 = vperm.xlu0 %1660, %v559
      %v1662 = vpop.permute.xlu0 %1661
      %1665 = vset.pattern.permute.xlu0 0
      %1666 = vperm.xlu0 %1665, %v560
      %v1667 = vpop.permute.xlu0 %1666
      %1670 = vset.pattern.permute.xlu0 0
      %1671 = vperm.xlu0 %1670, %v561
      %v1672 = vpop.permute.xlu0 %1671
      %1675 = vset.pattern.permute.xlu0 0
      %1676 = vperm.xlu0 %1675, %v562
      %v1677 = vpop.permute.xlu0 %1676
      %1680 = vset.pattern.permute.xlu0 0
      %1681 = vperm.xlu0 %1680, %v563
      %v1682 = vpop.permute.xlu0 %1681
      %1685 = vset.pattern.permute.xlu0 0
      %1686 = vperm.xlu0 %1685, %v564
      %v1687 = vpop.permute.xlu0 %1686
      %1690 = vset.pattern.permute.xlu0 0
      %1691 = vperm.xlu0 %1690, %v565
      %v1692 = vpop.permute.xlu0 %1691
      %v1694 = vmul.f32 %v748, %v1662
      %v1695 = vmul.f32 %v753, %v1667
      %v1696 = vmul.f32 %v758, %v1672
      %v1697 = vmul.f32 %v763, %v1677
      %v1698 = vmul.f32 %v768, %v1682
      %v1699 = vmul.f32 %v773, %v1687
      %v1700 = vmul.f32 %v778, %v1692
      %v1701 = vlaneseq
      %v1702 = vshrl.u32 %v1701, 7
      %v1703 = vsub.s32 4, %v1702
      %v1704 = vrot.slane %v782, %v1703
      %v1705 = vmul.f32 %v1694, %v1704
      %v1706 = vmul.f32 %v1695, %v1704
      %v1707 = vmul.f32 %v1696, %v1704
      %v1708 = vmul.f32 %v1697, %v1704
      %v1709 = vmul.f32 %v1698, %v1704
      %v1710 = vmul.f32 %v1699, %v1704
      %v1711 = vmul.f32 %v1700, %v1704
      %v1712 = vadd.f32 %v1652, %v1705
      %v1713 = vadd.f32 %v1653, %v1706
      %v1714 = vadd.f32 %v1654, %v1707
      %v1715 = vadd.f32 %v1655, %v1708
      %v1716 = vadd.f32 %v1656, %v1709
      %v1717 = vadd.f32 %v1657, %v1710
      %v1718 = vadd.f32 %v1658, %v1711
      %1720 = vset.pattern.permute.xlu0 0
      %1721 = vperm.xlu0 %1720, %v566
      %v1722 = vpop.permute.xlu0 %1721
      %1725 = vset.pattern.permute.xlu0 0
      %1726 = vperm.xlu0 %1725, %v567
      %v1727 = vpop.permute.xlu0 %1726
      %1730 = vset.pattern.permute.xlu0 0
      %1731 = vperm.xlu0 %1730, %v568
      %v1732 = vpop.permute.xlu0 %1731
      %1735 = vset.pattern.permute.xlu0 0
      %1736 = vperm.xlu0 %1735, %v569
      %v1737 = vpop.permute.xlu0 %1736
      %1740 = vset.pattern.permute.xlu0 0
      %1741 = vperm.xlu0 %1740, %v570
      %v1742 = vpop.permute.xlu0 %1741
      %1745 = vset.pattern.permute.xlu0 0
      %1746 = vperm.xlu0 %1745, %v571
      %v1747 = vpop.permute.xlu0 %1746
      %1750 = vset.pattern.permute.xlu0 0
      %1751 = vperm.xlu0 %1750, %v572
      %v1752 = vpop.permute.xlu0 %1751
      %v1754 = vmul.f32 %v870, %v1722
      %v1755 = vmul.f32 %v872, %v1727
      %v1756 = vmul.f32 %v874, %v1732
      %v1757 = vmul.f32 %v875, %v1737
      %v1758 = vmul.f32 %v791, %v1742
      %v1759 = vmul.f32 %v793, %v1747
      %v1760 = vmul.f32 %v748, %v1752
      %v1761 = vlaneseq
      %v1762 = vshrl.u32 %v1761, 7
      %v1763 = vsub.s32 5, %v1762
      %v1764 = vrot.slane %v782, %v1763
      %v1765 = vmul.f32 %v1754, %v1764
      %v1766 = vmul.f32 %v1755, %v1764
      %v1767 = vmul.f32 %v1756, %v1764
      %v1768 = vmul.f32 %v1757, %v1764
      %v1769 = vmul.f32 %v1758, %v1764
      %v1770 = vmul.f32 %v1759, %v1764
      %v1771 = vmul.f32 %v1760, %v1764
      %v1772 = vadd.f32 %v1712, %v1765
      %v1773 = vadd.f32 %v1713, %v1766
      %v1774 = vadd.f32 %v1714, %v1767
      %v1775 = vadd.f32 %v1715, %v1768
      %v1776 = vadd.f32 %v1716, %v1769
      %v1777 = vadd.f32 %v1717, %v1770
      %v1778 = vadd.f32 %v1718, %v1771
      %1780 = vset.pattern.permute.xlu0 0
      %1781 = vperm.xlu0 %1780, %v573
      %v1782 = vpop.permute.xlu0 %1781
      %1785 = vset.pattern.permute.xlu0 0
      %1786 = vperm.xlu0 %1785, %v574
      %v1787 = vpop.permute.xlu0 %1786
      %1790 = vset.pattern.permute.xlu0 0
      %1791 = vperm.xlu0 %1790, %v575
      %v1792 = vpop.permute.xlu0 %1791
      %1795 = vset.pattern.permute.xlu0 0
      %1796 = vperm.xlu0 %1795, %v576
      %v1797 = vpop.permute.xlu0 %1796
      %1800 = vset.pattern.permute.xlu0 0
      %1801 = vperm.xlu0 %1800, %v577
      %v1802 = vpop.permute.xlu0 %1801
      %1805 = vset.pattern.permute.xlu0 0
      %1806 = vperm.xlu0 %1805, %v578
      %v1807 = vpop.permute.xlu0 %1806
      %1810 = vset.pattern.permute.xlu0 0
      %1811 = vperm.xlu0 %1810, %v579
      %v1812 = vpop.permute.xlu0 %1811
      %v1814 = vmul.f32 %v953, %v1782
      %v1815 = vmul.f32 %v955, %v1787
      %v1816 = vmul.f32 %v957, %v1792
      %v1817 = vmul.f32 %v958, %v1797
      %v1818 = vmul.f32 %v859, %v1802
      %v1819 = vmul.f32 %v882, %v1807
      %v1820 = vmul.f32 %v868, %v1812
      %v1821 = vlaneseq
      %v1822 = vshrl.u32 %v1821, 7
      %v1823 = vsub.s32 6, %v1822
      %v1824 = vrot.slane %v782, %v1823
      %v1825 = vmul.f32 %v1814, %v1824
      %v1826 = vmul.f32 %v1815, %v1824
      %v1827 = vmul.f32 %v1816, %v1824
      %v1828 = vmul.f32 %v1817, %v1824
      %v1829 = vmul.f32 %v1818, %v1824
      %v1830 = vmul.f32 %v1819, %v1824
      %v1831 = vmul.f32 %v1820, %v1824
      %v1832 = vadd.f32 %v1772, %v1825
      %v1833 = vadd.f32 %v1773, %v1826
      %v1834 = vadd.f32 %v1774, %v1827
      %v1835 = vadd.f32 %v1775, %v1828
      %v1836 = vadd.f32 %v1776, %v1829
      %v1837 = vadd.f32 %v1777, %v1830
      %v1838 = vadd.f32 %v1778, %v1831
      %v1839 = vrot.slane %v748, 5
      %v1840 = vrot.slane %v753, 5
      %v1841 = vsel %vm1109, %v1839, %v1840
      %v1842 = vrot.slane %v758, 5
      %v1843 = vsel %vm1109, %v1840, %v1842
      %v1844 = vrot.slane %v763, 5
      %v1845 = vsel %vm1109, %v1842, %v1844
      %v1846 = vsel %vm1109, %v1844, %v1110
      %1852 = vset.pattern.permute.xlu0 0
      %1853 = vperm.xlu0 %1852, %v580
      %v1854 = vpop.permute.xlu0 %1853
      %1857 = vset.pattern.permute.xlu0 0
      %1858 = vperm.xlu0 %1857, %v581
      %v1859 = vpop.permute.xlu0 %1858
      %1862 = vset.pattern.permute.xlu0 0
      %1863 = vperm.xlu0 %1862, %v582
      %v1864 = vpop.permute.xlu0 %1863
      %1867 = vset.pattern.permute.xlu0 0
      %1868 = vperm.xlu0 %1867, %v583
      %v1869 = vpop.permute.xlu0 %1868
      %1872 = vset.pattern.permute.xlu0 0
      %1873 = vperm.xlu0 %1872, %v584
      %v1874 = vpop.permute.xlu0 %1873
      %1877 = vset.pattern.permute.xlu0 0
      %1878 = vperm.xlu0 %1877, %v585
      %v1879 = vpop.permute.xlu0 %1878
      %1882 = vset.pattern.permute.xlu0 0
      %1883 = vperm.xlu0 %1882, %v586
      %v1884 = vpop.permute.xlu0 %1883
      %v1886 = vmul.f32 %v1841, %v1854
      %v1887 = vmul.f32 %v1843, %v1859
      %v1888 = vmul.f32 %v1845, %v1864
      %v1889 = vmul.f32 %v1846, %v1869
      %v1890 = vmul.f32 %v1112, %v1874
      %v1891 = vmul.f32 %v1131, %v1879
      %v1892 = vmul.f32 %v1117, %v1884
      %v1893 = vlaneseq
      %v1894 = vshrl.u32 %v1893, 7
      %v1895 = vsub.s32 7, %v1894
      %v1896 = vrot.slane %v782, %v1895
      %v1897 = vmul.f32 %v1886, %v1896
      %v1898 = vmul.f32 %v1887, %v1896
      %v1899 = vmul.f32 %v1888, %v1896
      %v1900 = vmul.f32 %v1889, %v1896
      %v1901 = vmul.f32 %v1890, %v1896
      %v1902 = vmul.f32 %v1891, %v1896
      %v1903 = vmul.f32 %v1892, %v1896
      %v1904 = vadd.f32 %v1832, %v1897
      %v1905 = vadd.f32 %v1833, %v1898
      %v1906 = vadd.f32 %v1834, %v1899
      %v1907 = vadd.f32 %v1835, %v1900
      %v1908 = vadd.f32 %v1836, %v1901
      %v1909 = vadd.f32 %v1837, %v1902
      %v1910 = vadd.f32 %v1838, %v1903
      %v1911 = vrot.slane %v778, 6
      %v1912 = vsel %vm1516, %v1526, %v1911
      %v1915 = vsel %vm1109, %v1912, %v1839
      %1917 = vset.pattern.permute.xlu0 0
      %1918 = vperm.xlu0 %1917, %v587
      %v1919 = vpop.permute.xlu0 %1918
      %1922 = vset.pattern.permute.xlu0 0
      %1923 = vperm.xlu0 %1922, %v588
      %v1924 = vpop.permute.xlu0 %1923
      %1927 = vset.pattern.permute.xlu0 0
      %1928 = vperm.xlu0 %1927, %v589
      %v1929 = vpop.permute.xlu0 %1928
      %1932 = vset.pattern.permute.xlu0 0
      %1933 = vperm.xlu0 %1932, %v590
      %v1934 = vpop.permute.xlu0 %1933
      %1937 = vset.pattern.permute.xlu0 0
      %1938 = vperm.xlu0 %1937, %v591
      %v1939 = vpop.permute.xlu0 %1938
      %1942 = vset.pattern.permute.xlu0 0
      %1943 = vperm.xlu0 %1942, %v592
      %v1944 = vpop.permute.xlu0 %1943
      %1947 = vset.pattern.permute.xlu0 0
      %1948 = vperm.xlu0 %1947, %v593
      %v1949 = vpop.permute.xlu0 %1948
      %v1951 = vmul.f32 %v1519, %v1919
      %v1952 = vmul.f32 %v1521, %v1924
      %v1953 = vmul.f32 %v1523, %v1929
      %v1954 = vmul.f32 %v1525, %v1934
      %v1955 = vmul.f32 %v1527, %v1939
      %v1956 = vmul.f32 %v1915, %v1944
      %v1957 = vmul.f32 %v1839, %v1949
      %v1958 = vlaneseq
      %v1959 = vshrl.u32 %v1958, 7
      %v1960 = vsub.s32 0, %v1959
      %v1961 = vrot.slane %v783, %v1960
      %v1962 = vmul.f32 %v1951, %v1961
      %v1963 = vmul.f32 %v1952, %v1961
      %v1964 = vmul.f32 %v1953, %v1961
      %v1965 = vmul.f32 %v1954, %v1961
      %v1966 = vmul.f32 %v1955, %v1961
      %v1967 = vmul.f32 %v1956, %v1961
      %v1968 = vmul.f32 %v1957, %v1961
      %v1969 = vadd.f32 %v1904, %v1962
      %v1970 = vadd.f32 %v1905, %v1963
      %v1971 = vadd.f32 %v1906, %v1964
      %v1972 = vadd.f32 %v1907, %v1965
      %v1973 = vadd.f32 %v1908, %v1966
      %v1974 = vadd.f32 %v1909, %v1967
      %v1975 = vadd.f32 %v1910, %v1968
      %1977 = vset.pattern.permute.xlu0 0
      %1978 = vperm.xlu0 %1977, %v594
      %v1979 = vpop.permute.xlu0 %1978
      %1982 = vset.pattern.permute.xlu0 0
      %1983 = vperm.xlu0 %1982, %v595
      %v1984 = vpop.permute.xlu0 %1983
      %1987 = vset.pattern.permute.xlu0 0
      %1988 = vperm.xlu0 %1987, %v596
      %v1989 = vpop.permute.xlu0 %1988
      %1992 = vset.pattern.permute.xlu0 0
      %1993 = vperm.xlu0 %1992, %v597
      %v1994 = vpop.permute.xlu0 %1993
      %1997 = vset.pattern.permute.xlu0 0
      %1998 = vperm.xlu0 %1997, %v598
      %v1999 = vpop.permute.xlu0 %1998
      %2002 = vset.pattern.permute.xlu0 0
      %2003 = vperm.xlu0 %2002, %v599
      %v2004 = vpop.permute.xlu0 %2003
      %2007 = vset.pattern.permute.xlu0 0
      %2008 = vperm.xlu0 %2007, %v600
      %v2009 = vpop.permute.xlu0 %2008
      %v2011 = vmul.f32 %v1195, %v1979
      %v2012 = vmul.f32 %v1197, %v1984
      %v2013 = vmul.f32 %v1199, %v1989
      %v2014 = vmul.f32 %v1201, %v1994
      %v2015 = vmul.f32 %v1596, %v1999
      %v2016 = vmul.f32 %v1535, %v2004
      %v2017 = vmul.f32 %v1517, %v2009
      %v2018 = vlaneseq
      %v2019 = vshrl.u32 %v2018, 7
      %v2020 = vsub.s32 1, %v2019
      %v2021 = vrot.slane %v783, %v2020
      %v2022 = vmul.f32 %v2011, %v2021
      %v2023 = vmul.f32 %v2012, %v2021
      %v2024 = vmul.f32 %v2013, %v2021
      %v2025 = vmul.f32 %v2014, %v2021
      %v2026 = vmul.f32 %v2015, %v2021
      %v2027 = vmul.f32 %v2016, %v2021
      %v2028 = vmul.f32 %v2017, %v2021
      %v2029 = vadd.f32 %v1969, %v2022
      %v2030 = vadd.f32 %v1970, %v2023
      %v2031 = vadd.f32 %v1971, %v2024
      %v2032 = vadd.f32 %v1972, %v2025
      %v2033 = vadd.f32 %v1973, %v2026
      %v2034 = vadd.f32 %v1974, %v2027
      %v2035 = vadd.f32 %v1975, %v2028
      %2037 = vset.pattern.permute.xlu0 0
      %2038 = vperm.xlu0 %2037, %v601
      %v2039 = vpop.permute.xlu0 %2038
      %2042 = vset.pattern.permute.xlu0 0
      %2043 = vperm.xlu0 %2042, %v602
      %v2044 = vpop.permute.xlu0 %2043
      %2047 = vset.pattern.permute.xlu0 0
      %2048 = vperm.xlu0 %2047, %v603
      %v2049 = vpop.permute.xlu0 %2048
      %2052 = vset.pattern.permute.xlu0 0
      %2053 = vperm.xlu0 %2052, %v604
      %v2054 = vpop.permute.xlu0 %2053
      %2057 = vset.pattern.permute.xlu0 0
      %2058 = vperm.xlu0 %2057, %v605
      %v2059 = vpop.permute.xlu0 %2058
      %2062 = vset.pattern.permute.xlu0 0
      %2063 = vperm.xlu0 %2062, %v606
      %v2064 = vpop.permute.xlu0 %2063
      %2067 = vset.pattern.permute.xlu0 0
      %2068 = vperm.xlu0 %2067, %v607
      %v2069 = vpop.permute.xlu0 %2068
      %v2071 = vmul.f32 %v753, %v2039
      %v2072 = vmul.f32 %v758, %v2044
      %v2073 = vmul.f32 %v763, %v2049
      %v2074 = vmul.f32 %v768, %v2054
      %v2075 = vmul.f32 %v773, %v2059
      %v2076 = vmul.f32 %v1208, %v2064
      %v2077 = vmul.f32 %v1193, %v2069
      %v2078 = vlaneseq
      %v2079 = vshrl.u32 %v2078, 7
      %v2080 = vsub.s32 2, %v2079
      %v2081 = vrot.slane %v783, %v2080
      %v2082 = vmul.f32 %v2071, %v2081
      %v2083 = vmul.f32 %v2072, %v2081
      %v2084 = vmul.f32 %v2073, %v2081
      %v2085 = vmul.f32 %v2074, %v2081
      %v2086 = vmul.f32 %v2075, %v2081
      %v2087 = vmul.f32 %v2076, %v2081
      %v2088 = vmul.f32 %v2077, %v2081
      %v2089 = vadd.f32 %v2029, %v2082
      %v2090 = vadd.f32 %v2030, %v2083
      %v2091 = vadd.f32 %v2031, %v2084
      %v2092 = vadd.f32 %v2032, %v2085
      %v2093 = vadd.f32 %v2033, %v2086
      %v2094 = vadd.f32 %v2034, %v2087
      %v2095 = vadd.f32 %v2035, %v2088
      %2097 = vset.pattern.permute.xlu0 0
      %2098 = vperm.xlu0 %2097, %v608
      %v2099 = vpop.permute.xlu0 %2098
      %2102 = vset.pattern.permute.xlu0 0
      %2103 = vperm.xlu0 %2102, %v609
      %v2104 = vpop.permute.xlu0 %2103
      %2107 = vset.pattern.permute.xlu0 0
      %2108 = vperm.xlu0 %2107, %v610
      %v2109 = vpop.permute.xlu0 %2108
      %2112 = vset.pattern.permute.xlu0 0
      %2113 = vperm.xlu0 %2112, %v611
      %v2114 = vpop.permute.xlu0 %2113
      %2117 = vset.pattern.permute.xlu0 0
      %2118 = vperm.xlu0 %2117, %v612
      %v2119 = vpop.permute.xlu0 %2118
      %2122 = vset.pattern.permute.xlu0 0
      %2123 = vperm.xlu0 %2122, %v613
      %v2124 = vpop.permute.xlu0 %2123
      %2127 = vset.pattern.permute.xlu0 0
      %2128 = vperm.xlu0 %2127, %v614
      %v2129 = vpop.permute.xlu0 %2128
      %v2131 = vmul.f32 %v872, %v2099
      %v2132 = vmul.f32 %v874, %v2104
      %v2133 = vmul.f32 %v875, %v2109
      %v2134 = vmul.f32 %v791, %v2114
      %v2135 = vmul.f32 %v793, %v2119
      %v2136 = vmul.f32 %v748, %v2124
      %v2137 = vmul.f32 %v753, %v2129
      %v2138 = vlaneseq
      %v2139 = vshrl.u32 %v2138, 7
      %v2140 = vsub.s32 3, %v2139
      %v2141 = vrot.slane %v783, %v2140
      %v2142 = vmul.f32 %v2131, %v2141
      %v2143 = vmul.f32 %v2132, %v2141
      %v2144 = vmul.f32 %v2133, %v2141
      %v2145 = vmul.f32 %v2134, %v2141
      %v2146 = vmul.f32 %v2135, %v2141
      %v2147 = vmul.f32 %v2136, %v2141
      %v2148 = vmul.f32 %v2137, %v2141
      %v2149 = vadd.f32 %v2089, %v2142
      %v2150 = vadd.f32 %v2090, %v2143
      %v2151 = vadd.f32 %v2091, %v2144
      %v2152 = vadd.f32 %v2092, %v2145
      %v2153 = vadd.f32 %v2093, %v2146
      %v2154 = vadd.f32 %v2094, %v2147
      %v2155 = vadd.f32 %v2095, %v2148
      %2158 = vset.pattern.permute.xlu0 0
      %2159 = vperm.xlu0 %2158, %v615
      %v2160 = vpop.permute.xlu0 %2159
      %2163 = vset.pattern.permute.xlu0 0
      %2164 = vperm.xlu0 %2163, %v616
      %v2165 = vpop.permute.xlu0 %2164
      %2168 = vset.pattern.permute.xlu0 0
      %2169 = vperm.xlu0 %2168, %v617
      %v2170 = vpop.permute.xlu0 %2169
      %2173 = vset.pattern.permute.xlu0 0
      %2174 = vperm.xlu0 %2173, %v618
      %v2175 = vpop.permute.xlu0 %2174
      %2178 = vset.pattern.permute.xlu0 0
      %2179 = vperm.xlu0 %2178, %v619
      %v2180 = vpop.permute.xlu0 %2179
      %2183 = vset.pattern.permute.xlu0 0
      %2184 = vperm.xlu0 %2183, %v620
      %v2185 = vpop.permute.xlu0 %2184
      %2188 = vset.pattern.permute.xlu0 0
      %2189 = vperm.xlu0 %2188, %v621
      %v2190 = vpop.permute.xlu0 %2189
      %v2192 = vmul.f32 %v1121, %v2160
      %v2193 = vmul.f32 %v1123, %v2165
      %v2194 = vmul.f32 %v1124, %v2170
      %v2195 = vmul.f32 %v1029, %v2175
      %v2196 = vmul.f32 %v1048, %v2180
      %v2197 = vmul.f32 %v1036, %v2185
      %v2198 = vmul.f32 %v1035, %v2190
      %v2199 = vlaneseq
      %v2200 = vshrl.u32 %v2199, 7
      %v2201 = vsub.s32 4, %v2200
      %v2202 = vrot.slane %v783, %v2201
      %v2203 = vmul.f32 %v2192, %v2202
      %v2204 = vmul.f32 %v2193, %v2202
      %v2205 = vmul.f32 %v2194, %v2202
      %v2206 = vmul.f32 %v2195, %v2202
      %v2207 = vmul.f32 %v2196, %v2202
      %v2208 = vmul.f32 %v2197, %v2202
      %v2209 = vmul.f32 %v2198, %v2202
      %v2210 = vadd.f32 %v2149, %v2203
      %v2211 = vadd.f32 %v2150, %v2204
      %v2212 = vadd.f32 %v2151, %v2205
      %v2213 = vadd.f32 %v2152, %v2206
      %v2214 = vadd.f32 %v2153, %v2207
      %v2215 = vadd.f32 %v2154, %v2208
      %v2216 = vadd.f32 %v2155, %v2209
      %2219 = vset.pattern.permute.xlu0 0
      %2220 = vperm.xlu0 %2219, %v622
      %v2221 = vpop.permute.xlu0 %2220
      %2224 = vset.pattern.permute.xlu0 0
      %2225 = vperm.xlu0 %2224, %v623
      %v2226 = vpop.permute.xlu0 %2225
      %2229 = vset.pattern.permute.xlu0 0
      %2230 = vperm.xlu0 %2229, %v624
      %v2231 = vpop.permute.xlu0 %2230
      %2234 = vset.pattern.permute.xlu0 0
      %2235 = vperm.xlu0 %2234, %v625
      %v2236 = vpop.permute.xlu0 %2235
      %2239 = vset.pattern.permute.xlu0 0
      %2240 = vperm.xlu0 %2239, %v626
      %v2241 = vpop.permute.xlu0 %2240
      %2244 = vset.pattern.permute.xlu0 0
      %2245 = vperm.xlu0 %2244, %v627
      %v2246 = vpop.permute.xlu0 %2245
      %2249 = vset.pattern.permute.xlu0 0
      %2250 = vperm.xlu0 %2249, %v628
      %v2251 = vpop.permute.xlu0 %2250
      %v2253 = vmul.f32 %v1843, %v2221
      %v2254 = vmul.f32 %v1845, %v2226
      %v2255 = vmul.f32 %v1846, %v2231
      %v2256 = vmul.f32 %v1112, %v2236
      %v2257 = vmul.f32 %v1131, %v2241
      %v2258 = vmul.f32 %v1119, %v2246
      %v2259 = vmul.f32 %v1118, %v2251
      %v2260 = vlaneseq
      %v2261 = vshrl.u32 %v2260, 7
      %v2262 = vsub.s32 5, %v2261
      %v2263 = vrot.slane %v783, %v2262
      %v2264 = vmul.f32 %v2253, %v2263
      %v2265 = vmul.f32 %v2254, %v2263
      %v2266 = vmul.f32 %v2255, %v2263
      %v2267 = vmul.f32 %v2256, %v2263
      %v2268 = vmul.f32 %v2257, %v2263
      %v2269 = vmul.f32 %v2258, %v2263
      %v2270 = vmul.f32 %v2259, %v2263
      %v2271 = vadd.f32 %v2210, %v2264
      %v2272 = vadd.f32 %v2211, %v2265
      %v2273 = vadd.f32 %v2212, %v2266
      %v2274 = vadd.f32 %v2213, %v2267
      %v2275 = vadd.f32 %v2214, %v2268
      %v2276 = vadd.f32 %v2215, %v2269
      %v2277 = vadd.f32 %v2216, %v2270
      %2280 = vset.pattern.permute.xlu0 0
      %2281 = vperm.xlu0 %2280, %v629
      %v2282 = vpop.permute.xlu0 %2281
      %2285 = vset.pattern.permute.xlu0 0
      %2286 = vperm.xlu0 %2285, %v630
      %v2287 = vpop.permute.xlu0 %2286
      %2290 = vset.pattern.permute.xlu0 0
      %2291 = vperm.xlu0 %2290, %v631
      %v2292 = vpop.permute.xlu0 %2291
      %2295 = vset.pattern.permute.xlu0 0
      %2296 = vperm.xlu0 %2295, %v632
      %v2297 = vpop.permute.xlu0 %2296
      %2300 = vset.pattern.permute.xlu0 0
      %2301 = vperm.xlu0 %2300, %v633
      %v2302 = vpop.permute.xlu0 %2301
      %2305 = vset.pattern.permute.xlu0 0
      %2306 = vperm.xlu0 %2305, %v634
      %v2307 = vpop.permute.xlu0 %2306
      %2310 = vset.pattern.permute.xlu0 0
      %2311 = vperm.xlu0 %2310, %v635
      %v2312 = vpop.permute.xlu0 %2311
      %v2314 = vmul.f32 %v1521, %v2282
      %v2315 = vmul.f32 %v1523, %v2287
      %v2316 = vmul.f32 %v1525, %v2292
      %v2317 = vmul.f32 %v1527, %v2297
      %v2318 = vmul.f32 %v1915, %v2302
      %v2319 = vmul.f32 %v1841, %v2307
      %v2320 = vmul.f32 %v1840, %v2312
      %v2321 = vlaneseq
      %v2322 = vshrl.u32 %v2321, 7
      %v2323 = vsub.s32 6, %v2322
      %v2324 = vrot.slane %v783, %v2323
      %v2325 = vmul.f32 %v2314, %v2324
      %v2326 = vmul.f32 %v2315, %v2324
      %v2327 = vmul.f32 %v2316, %v2324
      %v2328 = vmul.f32 %v2317, %v2324
      %v2329 = vmul.f32 %v2318, %v2324
      %v2330 = vmul.f32 %v2319, %v2324
      %v2331 = vmul.f32 %v2320, %v2324
      %v2332 = vadd.f32 %v2271, %v2325
      %v2333 = vadd.f32 %v2272, %v2326
      %v2334 = vadd.f32 %v2273, %v2327
      %v2335 = vadd.f32 %v2274, %v2328
      %v2336 = vadd.f32 %v2275, %v2329
      %v2337 = vadd.f32 %v2276, %v2330
      %v2338 = vadd.f32 %v2277, %v2331
      %2341 = vset.pattern.permute.xlu0 0
      %2342 = vperm.xlu0 %2341, %v636
      %v2343 = vpop.permute.xlu0 %2342
      %2346 = vset.pattern.permute.xlu0 0
      %2347 = vperm.xlu0 %2346, %v637
      %v2348 = vpop.permute.xlu0 %2347
      %2351 = vset.pattern.permute.xlu0 0
      %2352 = vperm.xlu0 %2351, %v638
      %v2353 = vpop.permute.xlu0 %2352
      %2356 = vset.pattern.permute.xlu0 0
      %2357 = vperm.xlu0 %2356, %v639
      %v2358 = vpop.permute.xlu0 %2357
      %2361 = vset.pattern.permute.xlu0 0
      %2362 = vperm.xlu0 %2361, %v640
      %v2363 = vpop.permute.xlu0 %2362
      %2366 = vset.pattern.permute.xlu0 0
      %2367 = vperm.xlu0 %2366, %v641
      %v2368 = vpop.permute.xlu0 %2367
      %2371 = vset.pattern.permute.xlu0 0
      %2372 = vperm.xlu0 %2371, %v642
      %v2373 = vpop.permute.xlu0 %2372
      %v2375 = vmul.f32 %v1197, %v2343
      %v2376 = vmul.f32 %v1199, %v2348
      %v2377 = vmul.f32 %v1201, %v2353
      %v2378 = vmul.f32 %v1596, %v2358
      %v2379 = vmul.f32 %v1535, %v2363
      %v2380 = vmul.f32 %v1519, %v2368
      %v2381 = vmul.f32 %v1518, %v2373
      %v2382 = vlaneseq
      %v2383 = vshrl.u32 %v2382, 7
      %v2384 = vsub.s32 7, %v2383
      %v2385 = vrot.slane %v783, %v2384
      %v2386 = vmul.f32 %v2375, %v2385
      %v2387 = vmul.f32 %v2376, %v2385
      %v2388 = vmul.f32 %v2377, %v2385
      %v2389 = vmul.f32 %v2378, %v2385
      %v2390 = vmul.f32 %v2379, %v2385
      %v2391 = vmul.f32 %v2380, %v2385
      %v2392 = vmul.f32 %v2381, %v2385
      %v2393 = vadd.f32 %v2332, %v2386
      %v2394 = vadd.f32 %v2333, %v2387
      %v2395 = vadd.f32 %v2334, %v2388
      %v2396 = vadd.f32 %v2335, %v2389
      %v2397 = vadd.f32 %v2336, %v2390
      %v2398 = vadd.f32 %v2337, %v2391
      %v2399 = vadd.f32 %v2338, %v2392
      %2402 = vset.pattern.permute.xlu0 0
      %2403 = vperm.xlu0 %2402, %v643
      %v2404 = vpop.permute.xlu0 %2403
      %2407 = vset.pattern.permute.xlu0 0
      %2408 = vperm.xlu0 %2407, %v644
      %v2409 = vpop.permute.xlu0 %2408
      %2412 = vset.pattern.permute.xlu0 0
      %2413 = vperm.xlu0 %2412, %v645
      %v2414 = vpop.permute.xlu0 %2413
      %2417 = vset.pattern.permute.xlu0 0
      %2418 = vperm.xlu0 %2417, %v646
      %v2419 = vpop.permute.xlu0 %2418
      %2422 = vset.pattern.permute.xlu0 0
      %2423 = vperm.xlu0 %2422, %v647
      %v2424 = vpop.permute.xlu0 %2423
      %2427 = vset.pattern.permute.xlu0 0
      %2428 = vperm.xlu0 %2427, %v648
      %v2429 = vpop.permute.xlu0 %2428
      %2432 = vset.pattern.permute.xlu0 0
      %2433 = vperm.xlu0 %2432, %v649
      %v2434 = vpop.permute.xlu0 %2433
      %v2436 = vmul.f32 %v758, %v2404
      %v2437 = vmul.f32 %v763, %v2409
      %v2438 = vmul.f32 %v768, %v2414
      %v2439 = vmul.f32 %v773, %v2419
      %v2440 = vmul.f32 %v1208, %v2424
      %v2441 = vmul.f32 %v1195, %v2429
      %v2442 = vmul.f32 %v1194, %v2434
      %v2443 = vlaneseq
      %v2444 = vshrl.u32 %v2443, 7
      %v2445 = vsub.s32 0, %v2444
      %v2446 = vrot.slane %v784, %v2445
      %v2447 = vmul.f32 %v2436, %v2446
      %v2448 = vmul.f32 %v2437, %v2446
      %v2449 = vmul.f32 %v2438, %v2446
      %v2450 = vmul.f32 %v2439, %v2446
      %v2451 = vmul.f32 %v2440, %v2446
      %v2452 = vmul.f32 %v2441, %v2446
      %v2453 = vmul.f32 %v2442, %v2446
      %v2454 = vadd.f32 %v2393, %v2447
      %v2455 = vadd.f32 %v2394, %v2448
      %v2456 = vadd.f32 %v2395, %v2449
      %v2457 = vadd.f32 %v2396, %v2450
      %v2458 = vadd.f32 %v2397, %v2451
      %v2459 = vadd.f32 %v2398, %v2452
      %v2460 = vadd.f32 %v2399, %v2453
      %v2461 = vld [vmem:[%s4] sm:$0x1]
      %v2463 = vlaneseq
      %v2464 = vshrl.u32 %v2463, 7
      %v2465 = vsub.s32 0, %v2464
      %v2466 = vrot.slane %v2461, %v2465
      %v2468 = vadd.f32 %v2454, %v2466
      %v2469 = vadd.f32 %v2455, %v2466
      %v2470 = vadd.f32 %v2456, %v2466
      %v2471 = vadd.f32 %v2457, %v2466
      %v2472 = vadd.f32 %v2458, %v2466
      %v2473 = vadd.f32 %v2459, %v2466
      %v2474 = vadd.f32 %v2460, %v2466
      %2475 = vrot.lane.b32.xlu0 %v748, 112
      %v2476 = vpop.permute.xlu0 %2475
      %2477 = vrot.lane.b32.xlu0 %v753, 112
      %v2478 = vpop.permute.xlu0 %2477
      %2479 = vrot.lane.b32.xlu0 %v758, 112
      %v2480 = vpop.permute.xlu0 %2479
      %2481 = vrot.lane.b32.xlu0 %v763, 112
      %v2482 = vpop.permute.xlu0 %2481
      %2483 = vrot.lane.b32.xlu0 %v768, 112
      %v2484 = vpop.permute.xlu0 %2483
      %2485 = vrot.lane.b32.xlu0 %v773, 112
      %v2486 = vpop.permute.xlu0 %2485
      %2487 = vrot.lane.b32.xlu0 %v778, 112
      %v2488 = vpop.permute.xlu0 %2487
      %vm2489 = vcmask 130048
      %v2491 = vsel %vm2489, %v2468, 0
      %v2494 = vsel %vm2489, %v2469, 0
      %v2497 = vsel %vm2489, %v2470, 0
      %v2500 = vsel %vm2489, %v2471, 0
      %v2503 = vsel %vm2489, %v2472, 0
      %v2506 = vsel %vm2489, %v2473, 0
      %v2509 = vsel %vm2489, %v2474, 0
      %v2511 = vsel %vm2489, %v2476, 0
      %v2513 = vsel %vm2489, %v2478, 0
      %v2515 = vsel %vm2489, %v2480, 0
      %v2517 = vsel %vm2489, %v2482, 0
      %v2519 = vsel %vm2489, %v2484, 0
      %v2521 = vsel %vm2489, %v2486, 0
      %v2523 = vsel %vm2489, %v2488, 0
      %2525 = vmatprep.subr.mxu0 0.0
      %2526 = vmatpush1.xpose.msra.mxu0 %v2511
      %2527 = vmatprep.subr.mxu0 0.0
      %2528 = vmatpush1.xpose.msra.mxu0 %v2513
      %2529 = vmatprep.subr.mxu0 0.0
      %2530 = vmatpush1.xpose.msra.mxu0 %v2515
      %2531 = vmatprep.subr.mxu0 0.0
      %2532 = vmatpush1.xpose.msra.mxu0 %v2517
      %2533 = vmatprep.subr.mxu0 0.0
      %2534 = vmatpush1.xpose.msra.mxu0 %v2519
      %2535 = vmatprep.subr.mxu0 0.0
      %2536 = vmatpush1.xpose.msra.mxu0 %v2521
      %2537 = vmatprep.subr.mxu0 0.0
      %2538 = vmatpush1.xpose.msra.mxu0 %v2523
      %2539 = vmatprep.subr.mxu0 0.0
      %2540 = vmatpush1.xpose.msra.mxu0 0.0
      %2541 = vmatprep.subr.mxu0 0.0
      %2542 = vmatpush1.xpose.msra.mxu0 0.0
      %2543 = vmatprep.subr.mxu0 0.0
      %2544 = vmatpush1.xpose.msra.mxu0 0.0
      %2545 = vmatprep.subr.mxu0 0.0
      %2546 = vmatpush1.xpose.msra.mxu0 0.0
      %2547 = vmatprep.subr.mxu0 0.0
      %2548 = vmatpush1.xpose.msra.mxu0 0.0
      %2549 = vmatprep.subr.mxu0 0.0
      %2550 = vmatpush1.xpose.msra.mxu0 0.0
      %2551 = vmatprep.subr.mxu0 0.0
      %2552 = vmatpush1.xpose.msra.mxu0 0.0
      %2553 = vmatprep.subr.mxu0 0.0
      %2554 = vmatpush1.xpose.msra.mxu0 0.0
      %2555 = vmatprep.subr.mxu0 0.0
      %2556 = vmatpush1.xpose.msra.mxu0 0.0
      %2557 = vmatprep.subr.mxu0 0.0
      %2558 = vmatpush1.xpose.msra.mxu0 0.0
      %2559 = vmatprep.subr.mxu0 0.0
      %2560 = vmatpush1.xpose.msra.mxu0 0.0
      %2561 = vmatprep.subr.mxu0 0.0
      %2562 = vmatpush1.xpose.msra.mxu0 0.0
      %2563 = vmatprep.subr.mxu0 0.0
      %2564 = vmatpush1.xpose.msra.mxu0 0.0
      %2565 = vmatprep.subr.mxu0 0.0
      %2566 = vmatpush1.xpose.msra.mxu0 0.0
      %2567 = vmatprep.subr.mxu0 0.0
      %2568 = vmatpush1.xpose.msra.mxu0 0.0
      %2569 = vmatprep.subr.mxu0 0.0
      %2570 = vmatpush1.xpose.msra.mxu0 0.0
      %2571 = vmatprep.subr.mxu0 0.0
      %2572 = vmatpush1.xpose.msra.mxu0 0.0
      %2573 = vmatprep.subr.mxu0 0.0
      %2574 = vmatpush1.xpose.msra.mxu0 0.0
      %2575 = vmatprep.subr.mxu0 0.0
      %2576 = vmatpush1.xpose.msra.mxu0 0.0
      %2577 = vmatprep.subr.mxu0 0.0
      %2578 = vmatpush1.xpose.msra.mxu0 0.0
      %2579 = vmatprep.subr.mxu0 0.0
      %2580 = vmatpush1.xpose.msra.mxu0 0.0
      %2581 = vmatprep.subr.mxu0 0.0
      %2582 = vmatpush1.xpose.msra.mxu0 0.0
      %2583 = vmatprep.subr.mxu0 0.0
      %2584 = vmatpush1.xpose.msra.mxu0 0.0
      %2585 = vmatprep.subr.mxu0 0.0
      %2586 = vmatpush1.xpose.msra.mxu0 0.0
      %2587 = vmatprep.subr.mxu0 0.0
      %2588 = vmatpush1.xpose.msra.mxu0 0.0
      %2589 = vmatprep.mubr.f32.mxu0 0.0
      %2590 = vmatmul.mubr.f32.gmra.mrb[0].mxu0 %v2491
      %v2591 = vpop.f32.mrb[0].mxu0
      %v2592 = vadd.f32 0.0, %v2591
      %v2593 = vpop.f32.mrb[0].mxu0
      %2594 = vmatprep.mubr.f32.mxu0 0.0
      %2595 = vmatmul.mubr.f32.gmra.mrb[0].mxu0 %v2494
      %v2596 = vpop.f32.mrb[0].mxu0
      %v2597 = vadd.f32 0.0, %v2596
      %v2598 = vpop.f32.mrb[0].mxu0
      %2599 = vmatprep.mubr.f32.mxu0 0.0
      %2600 = vmatmul.mubr.f32.gmra.mrb[0].mxu0 %v2497
      %v2601 = vpop.f32.mrb[0].mxu0
      %v2602 = vadd.f32 0.0, %v2601
      %v2603 = vpop.f32.mrb[0].mxu0
      %2604 = vmatprep.mubr.f32.mxu0 0.0
      %2605 = vmatmul.mubr.f32.gmra.mrb[0].mxu0 %v2500
      %v2606 = vpop.f32.mrb[0].mxu0
      %v2607 = vadd.f32 0.0, %v2606
      %v2608 = vpop.f32.mrb[0].mxu0
      %2609 = vmatprep.mubr.f32.mxu0 0.0
      %2610 = vmatmul.mubr.f32.gmra.mrb[0].mxu0 %v2503
      %v2611 = vpop.f32.mrb[0].mxu0
      %v2612 = vadd.f32 0.0, %v2611
      %v2613 = vpop.f32.mrb[0].mxu0
      %2614 = vmatprep.mubr.f32.mxu0 0.0
      %2615 = vmatmul.mubr.f32.gmra.mrb[0].mxu0 %v2506
      %v2616 = vpop.f32.mrb[0].mxu0
      %v2617 = vadd.f32 0.0, %v2616
      %v2618 = vpop.f32.mrb[0].mxu0
      %2619 = vmatprep.mubr.f32.mxu0 0.0
      %2620 = vmatmul.mubr.f32.gmra.mrb[0].mxu0 %v2509
      %v2621 = vpop.f32.mrb[0].mxu0
      %v2622 = vadd.f32 0.0, %v2621
      %v2623 = vpop.f32.mrb[0].mxu0
      %2624 = vdwg.mxu0
      %v2625 = vmul.f32 %v2592, 0.25
      %v2626 = vmul.f32 %v2597, 0.25
      %v2627 = vmul.f32 %v2602, 0.25
      %v2628 = vmul.f32 %v2607, 0.25
      %v2629 = vmul.f32 %v2612, 0.25
      %v2630 = vmul.f32 %v2617, 0.25
      %v2631 = vmul.f32 %v2622, 0.25
      %v2632 = vld [vmem:[%s6] sm:$0xff]
      %v2633 = vld [vmem:[%s6 + $0x8] sm:$0xff]
      %v2634 = vld [vmem:[%s6 + $0x10] sm:$0xff]
      %v2635 = vld [vmem:[%s6 + $0x18] sm:$0xff]
      %v2636 = vld [vmem:[%s6 + $0x20] sm:$0xff]
      %v2637 = vld [vmem:[%s6 + $0x28] sm:$0xff]
      %v2638 = vld [vmem:[%s6 + $0x30] sm:$0x1]
      %v2639 = vadd.f32 %v2625, %v2632
      %v2640 = vadd.f32 %v2626, %v2633
      %v2641 = vadd.f32 %v2627, %v2634
      %v2642 = vadd.f32 %v2628, %v2635
      %v2643 = vadd.f32 %v2629, %v2636
      %v2644 = vadd.f32 %v2630, %v2637
      %v2645 = vadd.f32 %v2631, %v2638
      %vm2646 = vcmask 400384
      %v2647 = vsel %vm2646, %v2639, -inf
      %2648 = vmax.xlane.f32.xlu0 %v2647
      %v2649 = vpop.xlane.xlu0 %2648
      %v2650 = vsel %vm2646, %v2640, -inf
      %2651 = vmax.xlane.f32.xlu0 %v2650
      %v2652 = vpop.xlane.xlu0 %2651
      %v2653 = vsel %vm2646, %v2641, -inf
      %2654 = vmax.xlane.f32.xlu0 %v2653
      %v2655 = vpop.xlane.xlu0 %2654
      %v2656 = vsel %vm2646, %v2642, -inf
      %2657 = vmax.xlane.f32.xlu0 %v2656
      %v2658 = vpop.xlane.xlu0 %2657
      %v2659 = vsel %vm2646, %v2643, -inf
      %2660 = vmax.xlane.f32.xlu0 %v2659
      %v2661 = vpop.xlane.xlu0 %2660
      %v2662 = vsel %vm2646, %v2644, -inf
      %2663 = vmax.xlane.f32.xlu0 %v2662
      %v2664 = vpop.xlane.xlu0 %2663
      %vm2665 = vcmask 393216
      %v2666 = vsel %vm2665, %v2645, -inf
      %2667 = vmax.xlane.f32.xlu0 %v2666
      %v2668 = vpop.xlane.xlu0 %2667
      %v2669 = vsub.f32 %v2639, %v2649
      %v2670 = vsub.f32 %v2640, %v2652
      %v2671 = vsub.f32 %v2641, %v2655
      %v2672 = vsub.f32 %v2642, %v2658
      %v2673 = vsub.f32 %v2643, %v2661
      %v2674 = vsub.f32 %v2644, %v2664
      %v2675 = vsub.f32 %v2645, %v2668
      %v2676 = vmul.f32 %v2669, 1.442695
      %v2677 = vpow.pop %v2676
      %v2678 = vmul.f32 %v2670, 1.442695
      %v2679 = vpow.pop %v2678
      %v2680 = vmul.f32 %v2671, 1.442695
      %v2681 = vpow.pop %v2680
      %v2682 = vmul.f32 %v2672, 1.442695
      %v2683 = vpow.pop %v2682
      %v2684 = vmul.f32 %v2673, 1.442695
      %v2685 = vpow.pop %v2684
      %v2686 = vmul.f32 %v2674, 1.442695
      %v2687 = vpow.pop %v2686
      %v2688 = vmul.f32 %v2675, 1.442695
      %v2689 = vpow.pop %v2688
      %v2690 = vsel %vm2646, %v2677, 0.0
      %2691 = vadd.xlane.f32.xlu0 %v2690
      %v2692 = vpop.xlane.xlu0 %2691
      %v2693 = vsel %vm2646, %v2679, 0.0
      %2694 = vadd.xlane.f32.xlu0 %v2693
      %v2695 = vpop.xlane.xlu0 %2694
      %v2696 = vsel %vm2646, %v2681, 0.0
      %2697 = vadd.xlane.f32.xlu0 %v2696
      %v2698 = vpop.xlane.xlu0 %2697
      %v2699 = vsel %vm2646, %v2683, 0.0
      %2700 = vadd.xlane.f32.xlu0 %v2699
      %v2701 = vpop.xlane.xlu0 %2700
      %v2702 = vsel %vm2646, %v2685, 0.0
      %2703 = vadd.xlane.f32.xlu0 %v2702
      %v2704 = vpop.xlane.xlu0 %2703
      %v2705 = vsel %vm2646, %v2687, 0.0
      %2706 = vadd.xlane.f32.xlu0 %v2705
      %v2707 = vpop.xlane.xlu0 %2706
      %v2708 = vsel %vm2665, %v2689, 0.0
      %2709 = vadd.xlane.f32.xlu0 %v2708
      %v2710 = vpop.xlane.xlu0 %2709
      %v2711 = vrcp.pop %v2692
      %v2712 = vrcp.pop %v2695
      %v2713 = vrcp.pop %v2698
      %v2714 = vrcp.pop %v2701
      %v2715 = vrcp.pop %v2704
      %v2716 = vrcp.pop %v2707
      %v2717 = vrcp.pop %v2710
      %v2718 = vmul.f32 %v2677, %v2711
      %v2719 = vmul.f32 %v2679, %v2712
      %v2720 = vmul.f32 %v2681, %v2713
      %v2721 = vmul.f32 %v2683, %v2714
      %v2722 = vmul.f32 %v2685, %v2715
      %v2723 = vmul.f32 %v2687, %v2716
      %v2724 = vmul.f32 %v2689, %v2717
      %2725 = vrot.lane.b32.xlu0 %v748, 96
      %v2726 = vpop.permute.xlu0 %2725
      %2727 = vrot.lane.b32.xlu0 %v753, 96
      %v2728 = vpop.permute.xlu0 %2727
      %2729 = vrot.lane.b32.xlu0 %v758, 96
      %v2730 = vpop.permute.xlu0 %2729
      %2731 = vrot.lane.b32.xlu0 %v763, 96
      %v2732 = vpop.permute.xlu0 %2731
      %2733 = vrot.lane.b32.xlu0 %v768, 96
      %v2734 = vpop.permute.xlu0 %2733
      %2735 = vrot.lane.b32.xlu0 %v773, 96
      %v2736 = vpop.permute.xlu0 %2735
      %2737 = vrot.lane.b32.xlu0 %v778, 96
      %v2738 = vpop.permute.xlu0 %2737
      %v2746 = vsel %vm2646, %v2718, 0
      %v2749 = vsel %vm2646, %v2719, 0
      %v2752 = vsel %vm2646, %v2720, 0
      %v2755 = vsel %vm2646, %v2721, 0
      %v2758 = vsel %vm2646, %v2722, 0
      %v2761 = vsel %vm2646, %v2723, 0
      %v2764 = vsel %vm2646, %v2724, 0
      %v2766 = vsel %vm1192, %v2738, 0
      %2768 = vmatprep.subr.mxu0 0.0
      %2769 = vmatpush1.msra.mxu0 %v2726
      %2770 = vmatprep.subr.mxu0 0.0
      %2771 = vmatpush1.msra.mxu0 %v2728
      %2772 = vmatprep.subr.mxu0 0.0
      %2773 = vmatpush1.msra.mxu0 %v2730
      %2774 = vmatprep.subr.mxu0 0.0
      %2775 = vmatpush1.msra.mxu0 %v2732
      %2776 = vmatprep.subr.mxu0 0.0
      %2777 = vmatpush1.msra.mxu0 %v2734
      %2778 = vmatprep.subr.mxu0 0.0
      %2779 = vmatpush1.msra.mxu0 %v2736
      %2780 = vmatprep.subr.mxu0 0.0
      %2781 = vmatpush1.msra.mxu0 %v2766
      %2782 = vmatprep.subr.mxu0 0.0
      %2783 = vmatpush1.msra.mxu0 0.0
      %2784 = vmatprep.subr.mxu0 0.0
      %2785 = vmatpush1.msra.mxu0 0.0
      %2786 = vmatprep.subr.mxu0 0.0
      %2787 = vmatpush1.msra.mxu0 0.0
      %2788 = vmatprep.subr.mxu0 0.0
      %2789 = vmatpush1.msra.mxu0 0.0
      %2790 = vmatprep.subr.mxu0 0.0
      %2791 = vmatpush1.msra.mxu0 0.0
      %2792 = vmatprep.subr.mxu0 0.0
      %2793 = vmatpush1.msra.mxu0 0.0
      %2794 = vmatprep.subr.mxu0 0.0
      %2795 = vmatpush1.msra.mxu0 0.0
      %2796 = vmatprep.subr.mxu0 0.0
      %2797 = vmatpush1.msra.mxu0 0.0
      %2798 = vmatprep.subr.mxu0 0.0
      %2799 = vmatpush1.msra.mxu0 0.0
      %2800 = vmatprep.subr.mxu0 0.0
      %2801 = vmatpush1.msra.mxu0 0.0
      %2802 = vmatprep.subr.mxu0 0.0
      %2803 = vmatpush1.msra.mxu0 0.0
      %2804 = vmatprep.subr.mxu0 0.0
      %2805 = vmatpush1.msra.mxu0 0.0
      %2806 = vmatprep.subr.mxu0 0.0
      %2807 = vmatpush1.msra.mxu0 0.0
      %2808 = vmatprep.subr.mxu0 0.0
      %2809 = vmatpush1.msra.mxu0 0.0
      %2810 = vmatprep.subr.mxu0 0.0
      %2811 = vmatpush1.msra.mxu0 0.0
      %2812 = vmatprep.subr.mxu0 0.0
      %2813 = vmatpush1.msra.mxu0 0.0
      %2814 = vmatprep.subr.mxu0 0.0
      %2815 = vmatpush1.msra.mxu0 0.0
      %2816 = vmatprep.subr.mxu0 0.0
      %2817 = vmatpush1.msra.mxu0 0.0
      %2818 = vmatprep.subr.mxu0 0.0
      %2819 = vmatpush1.msra.mxu0 0.0
      %2820 = vmatprep.subr.mxu0 0.0
      %2821 = vmatpush1.msra.mxu0 0.0
      %2822 = vmatprep.subr.mxu0 0.0
      %2823 = vmatpush1.msra.mxu0 0.0
      %2824 = vmatprep.subr.mxu0 0.0
      %2825 = vmatpush1.msra.mxu0 0.0
      %2826 = vmatprep.subr.mxu0 0.0
      %2827 = vmatpush1.msra.mxu0 0.0
      %2828 = vmatprep.subr.mxu0 0.0
      %2829 = vmatpush1.msra.mxu0 0.0
      %2830 = vmatprep.subr.mxu0 0.0
      %2831 = vmatpush1.msra.mxu0 0.0
      %2832 = vmatprep.mubr.f32.mxu0 0.0
      %2833 = vmatmul.mubr.f32.gmra.mrb[0].mxu0 %v2746
      %v2834 = vpop.f32.mrb[0].mxu0
      %v2835 = vadd.f32 0.0, %v2834
      %v2836 = vpop.f32.mrb[0].mxu0
      %2837 = vmatprep.mubr.f32.mxu0 0.0
      %2838 = vmatmul.mubr.f32.gmra.mrb[0].mxu0 %v2749
      %v2839 = vpop.f32.mrb[0].mxu0
      %v2840 = vadd.f32 0.0, %v2839
      %v2841 = vpop.f32.mrb[0].mxu0
      %2842 = vmatprep.mubr.f32.mxu0 0.0
      %2843 = vmatmul.mubr.f32.gmra.mrb[0].mxu0 %v2752
      %v2844 = vpop.f32.mrb[0].mxu0
      %v2845 = vadd.f32 0.0, %v2844
      %v2846 = vpop.f32.mrb[0].mxu0
      %2847 = vmatprep.mubr.f32.mxu0 0.0
      %2848 = vmatmul.mubr.f32.gmra.mrb[0].mxu0 %v2755
      %v2849 = vpop.f32.mrb[0].mxu0
      %v2850 = vadd.f32 0.0, %v2849
      %v2851 = vpop.f32.mrb[0].mxu0
      %2852 = vmatprep.mubr.f32.mxu0 0.0
      %2853 = vmatmul.mubr.f32.gmra.mrb[0].mxu0 %v2758
      %v2854 = vpop.f32.mrb[0].mxu0
      %v2855 = vadd.f32 0.0, %v2854
      %v2856 = vpop.f32.mrb[0].mxu0
      %2857 = vmatprep.mubr.f32.mxu0 0.0
      %2858 = vmatmul.mubr.f32.gmra.mrb[0].mxu0 %v2761
      %v2859 = vpop.f32.mrb[0].mxu0
      %v2860 = vadd.f32 0.0, %v2859
      %v2861 = vpop.f32.mrb[0].mxu0
      %2862 = vmatprep.mubr.f32.mxu0 0.0
      %2863 = vmatmul.mubr.f32.gmra.mrb[0].mxu0 %v2764
      %v2864 = vpop.f32.mrb[0].mxu0
      %v2865 = vadd.f32 0.0, %v2864
      %v2866 = vpop.f32.mrb[0].mxu0
      %2867 = vdwg.mxu0
      %2868 = vrot.lane.b32.xlu0 %v468, 120
      %v2869 = vpop.permute.xlu0 %2868
      %2870 = vrot.lane.b32.xlu0 %v469, 120
      %v2871 = vpop.permute.xlu0 %2870
      %2872 = vrot.lane.b32.xlu0 %v470, 120
      %v2873 = vpop.permute.xlu0 %2872
      %2874 = vrot.lane.b32.xlu0 %v471, 120
      %v2875 = vpop.permute.xlu0 %2874
      %2876 = vrot.lane.b32.xlu0 %v472, 120
      %v2877 = vpop.permute.xlu0 %2876
      %2878 = vrot.lane.b32.xlu0 %v473, 120
      %v2879 = vpop.permute.xlu0 %2878
      %2880 = vrot.lane.b32.xlu0 %v474, 120
      %v2881 = vpop.permute.xlu0 %2880
      %v2889 = vadd.f32 %v2835, %v2869
      %v2890 = vadd.f32 %v2840, %v2871
      %v2891 = vadd.f32 %v2845, %v2873
      %v2892 = vadd.f32 %v2850, %v2875
      %v2893 = vadd.f32 %v2855, %v2877
      %v2894 = vadd.f32 %v2860, %v2879
      %v2895 = vadd.f32 %v2865, %v2881
      %s2896 = scalar_lea.vmem %s1, 8
      %v2897 = vld [vmem:[%s2896] sm:$0xff]
      %s2898 = scalar_lea.vmem %s2, 1
      %v2899 = vld [vmem:[%s2898] sm:$0x1]
      %v2901 = vlaneseq
      %v2902 = vshrl.u32 %v2901, 7
      %v2903 = vsub.s32 0, %v2902
      %v2904 = vrot.slane %v2899, %v2903
      %v2907 = vsel %vm659, %v2889, 0
      %v2910 = vsel %vm659, %v2890, 0
      %v2913 = vsel %vm659, %v2891, 0
      %v2916 = vsel %vm659, %v2892, 0
      %v2919 = vsel %vm659, %v2893, 0
      %v2922 = vsel %vm659, %v2894, 0
      %v2925 = vsel %vm659, %v2895, 0
      %2927 = vmatprep.subr.mxu0 0.0
      %2928 = vmatpush1.msra.mxu0 %v2897
      %2929 = vmatprep.subr.mxu0 0.0
      %2930 = vmatpush1.msra.mxu0 0.0
      %2931 = vmatprep.subr.mxu0 0.0
      %2932 = vmatpush1.msra.mxu0 0.0
      %2933 = vmatprep.subr.mxu0 0.0
      %2934 = vmatpush1.msra.mxu0 0.0
      %2935 = vmatprep.subr.mxu0 0.0
      %2936 = vmatpush1.msra.mxu0 0.0
      %2937 = vmatprep.subr.mxu0 0.0
      %2938 = vmatpush1.msra.mxu0 0.0
      %2939 = vmatprep.subr.mxu0 0.0
      %2940 = vmatpush1.msra.mxu0 0.0
      %2941 = vmatprep.subr.mxu0 0.0
      %2942 = vmatpush1.msra.mxu0 0.0
      %2943 = vmatprep.subr.mxu0 0.0
      %2944 = vmatpush1.msra.mxu0 0.0
      %2945 = vmatprep.subr.mxu0 0.0
      %2946 = vmatpush1.msra.mxu0 0.0
      %2947 = vmatprep.subr.mxu0 0.0
      %2948 = vmatpush1.msra.mxu0 0.0
      %2949 = vmatprep.subr.mxu0 0.0
      %2950 = vmatpush1.msra.mxu0 0.0
      %2951 = vmatprep.subr.mxu0 0.0
      %2952 = vmatpush1.msra.mxu0 0.0
      %2953 = vmatprep.subr.mxu0 0.0
      %2954 = vmatpush1.msra.mxu0 0.0
      %2955 = vmatprep.subr.mxu0 0.0
      %2956 = vmatpush1.msra.mxu0 0.0
      %2957 = vmatprep.subr.mxu0 0.0
      %2958 = vmatpush1.msra.mxu0 0.0
      %2959 = vmatprep.subr.mxu0 0.0
      %2960 = vmatpush1.msra.mxu0 0.0
      %2961 = vmatprep.subr.mxu0 0.0
      %2962 = vmatpush1.msra.mxu0 0.0
      %2963 = vmatprep.subr.mxu0 0.0
      %2964 = vmatpush1.msra.mxu0 0.0
      %2965 = vmatprep.subr.mxu0 0.0
      %2966 = vmatpush1.msra.mxu0 0.0
      %2967 = vmatprep.subr.mxu0 0.0
      %2968 = vmatpush1.msra.mxu0 0.0
      %2969 = vmatprep.subr.mxu0 0.0
      %2970 = vmatpush1.msra.mxu0 0.0
      %2971 = vmatprep.subr.mxu0 0.0
      %2972 = vmatpush1.msra.mxu0 0.0
      %2973 = vmatprep.subr.mxu0 0.0
      %2974 = vmatpush1.msra.mxu0 0.0
      %2975 = vmatprep.subr.mxu0 0.0
      %2976 = vmatpush1.msra.mxu0 0.0
      %2977 = vmatprep.subr.mxu0 0.0
      %2978 = vmatpush1.msra.mxu0 0.0
      %2979 = vmatprep.subr.mxu0 0.0
      %2980 = vmatpush1.msra.mxu0 0.0
      %2981 = vmatprep.subr.mxu0 0.0
      %2982 = vmatpush1.msra.mxu0 0.0
      %2983 = vmatprep.subr.mxu0 0.0
      %2984 = vmatpush1.msra.mxu0 0.0
      %2985 = vmatprep.subr.mxu0 0.0
      %2986 = vmatpush1.msra.mxu0 0.0
      %2987 = vmatprep.subr.mxu0 0.0
      %2988 = vmatpush1.msra.mxu0 0.0
      %2989 = vmatprep.subr.mxu0 0.0
      %2990 = vmatpush1.msra.mxu0 0.0
      %2991 = vmatprep.mubr.f32.mxu0 0.0
      %2992 = vmatmul.mubr.f32.gmra.mrb[0].mxu0 %v2907
      %v2993 = vpop.f32.mrb[0].mxu0
      %v2994 = vadd.f32 %v2904, %v2993
      %v2995 = vpop.f32.mrb[0].mxu0
      %2996 = vmatprep.mubr.f32.mxu0 0.0
      %2997 = vmatmul.mubr.f32.gmra.mrb[0].mxu0 %v2910
      %v2998 = vpop.f32.mrb[0].mxu0
      %v2999 = vadd.f32 %v2904, %v2998
      %v3000 = vpop.f32.mrb[0].mxu0
      %3001 = vmatprep.mubr.f32.mxu0 0.0
      %3002 = vmatmul.mubr.f32.gmra.mrb[0].mxu0 %v2913
      %v3003 = vpop.f32.mrb[0].mxu0
      %v3004 = vadd.f32 %v2904, %v3003
      %v3005 = vpop.f32.mrb[0].mxu0
      %3006 = vmatprep.mubr.f32.mxu0 0.0
      %3007 = vmatmul.mubr.f32.gmra.mrb[0].mxu0 %v2916
      %v3008 = vpop.f32.mrb[0].mxu0
      %v3009 = vadd.f32 %v2904, %v3008
      %v3010 = vpop.f32.mrb[0].mxu0
      %3011 = vmatprep.mubr.f32.mxu0 0.0
      %3012 = vmatmul.mubr.f32.gmra.mrb[0].mxu0 %v2919
      %v3013 = vpop.f32.mrb[0].mxu0
      %v3014 = vadd.f32 %v2904, %v3013
      %v3015 = vpop.f32.mrb[0].mxu0
      %3016 = vmatprep.mubr.f32.mxu0 0.0
      %3017 = vmatmul.mubr.f32.gmra.mrb[0].mxu0 %v2922
      %v3018 = vpop.f32.mrb[0].mxu0
      %v3019 = vadd.f32 %v2904, %v3018
      %v3020 = vpop.f32.mrb[0].mxu0
      %3021 = vmatprep.mubr.f32.mxu0 0.0
      %3022 = vmatmul.mubr.f32.gmra.mrb[0].mxu0 %v2925
      %v3023 = vpop.f32.mrb[0].mxu0
      %v3024 = vadd.f32 %v2904, %v3023
      %v3025 = vpop.f32.mrb[0].mxu0
      %3026 = vdwg.mxu0
      %s3027 = scalar_lea.vmem %s3, 32
      %v3028 = vld [vmem:[%s3027] sm:$0xff]
      %v3029 = vld [vmem:[%s3027 + $0x8] sm:$0xff]
      %v3030 = vld [vmem:[%s3027 + $0x10] sm:$0xff]
      %v3031 = vld [vmem:[%s3027 + $0x18] sm:$0x1]
      %v3035 = vrot.slane %v3014, 1
      %v3036 = vrot.slane %v3019, 1
      %v3037 = vsel %vm788, %v3035, %v3036
      %v3038 = vrot.slane %v3024, 1
      %v3039 = vsel %vm788, %v3036, %v3038
      %v3042 = vmul.f32 %v3037, %v799
      %v3043 = vmul.f32 %v3039, %v804
      %v3044 = vmul.f32 %v2994, %v809
      %v3045 = vmul.f32 %v2999, %v814
      %v3046 = vmul.f32 %v3004, %v819
      %v3047 = vmul.f32 %v3009, %v824
      %v3048 = vmul.f32 %v3014, %v829
      %v3049 = vlaneseq
      %v3050 = vshrl.u32 %v3049, 7
      %v3051 = vsub.s32 0, %v3050
      %v3052 = vrot.slane %v3028, %v3051
      %v3053 = vmul.f32 %v3042, %v3052
      %v3054 = vmul.f32 %v3043, %v3052
      %v3055 = vmul.f32 %v3044, %v3052
      %v3056 = vmul.f32 %v3045, %v3052
      %v3057 = vmul.f32 %v3046, %v3052
      %v3058 = vmul.f32 %v3047, %v3052
      %v3059 = vmul.f32 %v3048, %v3052
      %v3060 = vadd.f32 %v3053, 0.0
      %v3061 = vadd.f32 %v3054, 0.0
      %v3062 = vadd.f32 %v3055, 0.0
      %v3063 = vadd.f32 %v3056, 0.0
      %v3064 = vadd.f32 %v3057, 0.0
      %v3065 = vadd.f32 %v3058, 0.0
      %v3066 = vadd.f32 %v3059, 0.0
      %v3067 = vrot.slane %v3014, 2
      %v3068 = vrot.slane %v3019, 2
      %v3069 = vsel %vm856, %v3067, %v3068
      %v3070 = vrot.slane %v3024, 2
      %v3071 = vsel %vm856, %v3068, %v3070
      %v3078 = vrot.slane %v2994, 1
      %v3079 = vrot.slane %v2999, 1
      %v3080 = vsel %vm788, %v3078, %v3079
      %v3081 = vrot.slane %v3004, 1
      %v3082 = vsel %vm788, %v3079, %v3081
      %v3083 = vrot.slane %v3009, 1
      %v3084 = vsel %vm788, %v3081, %v3083
      %v3085 = vsel %vm788, %v3083, %v3035
      %v3092 = vsel %vm788, %v3071, %v3078
      %v3093 = vmul.f32 %v3069, %v886
      %v3094 = vmul.f32 %v3092, %v891
      %v3095 = vmul.f32 %v3080, %v896
      %v3096 = vmul.f32 %v3082, %v901
      %v3097 = vmul.f32 %v3084, %v906
      %v3098 = vmul.f32 %v3085, %v911
      %v3099 = vmul.f32 %v3035, %v916
      %v3100 = vlaneseq
      %v3101 = vshrl.u32 %v3100, 7
      %v3102 = vsub.s32 1, %v3101
      %v3103 = vrot.slane %v3028, %v3102
      %v3104 = vmul.f32 %v3093, %v3103
      %v3105 = vmul.f32 %v3094, %v3103
      %v3106 = vmul.f32 %v3095, %v3103
      %v3107 = vmul.f32 %v3096, %v3103
      %v3108 = vmul.f32 %v3097, %v3103
      %v3109 = vmul.f32 %v3098, %v3103
      %v3110 = vmul.f32 %v3099, %v3103
      %v3111 = vadd.f32 %v3060, %v3104
      %v3112 = vadd.f32 %v3061, %v3105
      %v3113 = vadd.f32 %v3062, %v3106
      %v3114 = vadd.f32 %v3063, %v3107
      %v3115 = vadd.f32 %v3064, %v3108
      %v3116 = vadd.f32 %v3065, %v3109
      %v3117 = vadd.f32 %v3066, %v3110
      %v3118 = vrot.slane %v3014, 3
      %v3119 = vrot.slane %v3019, 3
      %v3120 = vsel %vm943, %v3118, %v3119
      %v3121 = vrot.slane %v3024, 3
      %v3122 = vsel %vm943, %v3119, %v3121
      %v3125 = vrot.slane %v2994, 2
      %v3126 = vrot.slane %v2999, 2
      %v3127 = vsel %vm856, %v3125, %v3126
      %v3128 = vrot.slane %v3004, 2
      %v3129 = vsel %vm856, %v3126, %v3128
      %v3130 = vrot.slane %v3009, 2
      %v3131 = vsel %vm856, %v3128, %v3130
      %v3132 = vsel %vm856, %v3130, %v3067
      %v3139 = vsel %vm856, %v3122, %v3125
      %v3140 = vmul.f32 %v3120, %v969
      %v3141 = vmul.f32 %v3139, %v974
      %v3142 = vmul.f32 %v3127, %v979
      %v3143 = vmul.f32 %v3129, %v984
      %v3144 = vmul.f32 %v3131, %v989
      %v3145 = vmul.f32 %v3132, %v994
      %v3146 = vmul.f32 %v3067, %v999
      %v3147 = vlaneseq
      %v3148 = vshrl.u32 %v3147, 7
      %v3149 = vsub.s32 2, %v3148
      %v3150 = vrot.slane %v3028, %v3149
      %v3151 = vmul.f32 %v3140, %v3150
      %v3152 = vmul.f32 %v3141, %v3150
      %v3153 = vmul.f32 %v3142, %v3150
      %v3154 = vmul.f32 %v3143, %v3150
      %v3155 = vmul.f32 %v3144, %v3150
      %v3156 = vmul.f32 %v3145, %v3150
      %v3157 = vmul.f32 %v3146, %v3150
      %v3158 = vadd.f32 %v3111, %v3151
      %v3159 = vadd.f32 %v3112, %v3152
      %v3160 = vadd.f32 %v3113, %v3153
      %v3161 = vadd.f32 %v3114, %v3154
      %v3162 = vadd.f32 %v3115, %v3155
      %v3163 = vadd.f32 %v3116, %v3156
      %v3164 = vadd.f32 %v3117, %v3157
      %v3165 = vrot.slane %v3014, 4
      %v3166 = vrot.slane %v3019, 4
      %v3167 = vsel %vm1026, %v3165, %v3166
      %v3168 = vrot.slane %v3024, 4
      %v3169 = vsel %vm1026, %v3166, %v3168
      %v3172 = vrot.slane %v2994, 3
      %v3173 = vrot.slane %v2999, 3
      %v3174 = vsel %vm943, %v3172, %v3173
      %v3175 = vrot.slane %v3004, 3
      %v3176 = vsel %vm943, %v3173, %v3175
      %v3177 = vrot.slane %v3009, 3
      %v3178 = vsel %vm943, %v3175, %v3177
      %v3179 = vsel %vm943, %v3177, %v3118
      %v3186 = vsel %vm943, %v3169, %v3172
      %v3187 = vmul.f32 %v3167, %v1052
      %v3188 = vmul.f32 %v3186, %v1057
      %v3189 = vmul.f32 %v3174, %v1062
      %v3190 = vmul.f32 %v3176, %v1067
      %v3191 = vmul.f32 %v3178, %v1072
      %v3192 = vmul.f32 %v3179, %v1077
      %v3193 = vmul.f32 %v3118, %v1082
      %v3194 = vlaneseq
      %v3195 = vshrl.u32 %v3194, 7
      %v3196 = vsub.s32 3, %v3195
      %v3197 = vrot.slane %v3028, %v3196
      %v3198 = vmul.f32 %v3187, %v3197
      %v3199 = vmul.f32 %v3188, %v3197
      %v3200 = vmul.f32 %v3189, %v3197
      %v3201 = vmul.f32 %v3190, %v3197
      %v3202 = vmul.f32 %v3191, %v3197
      %v3203 = vmul.f32 %v3192, %v3197
      %v3204 = vmul.f32 %v3193, %v3197
      %v3205 = vadd.f32 %v3158, %v3198
      %v3206 = vadd.f32 %v3159, %v3199
      %v3207 = vadd.f32 %v3160, %v3200
      %v3208 = vadd.f32 %v3161, %v3201
      %v3209 = vadd.f32 %v3162, %v3202
      %v3210 = vadd.f32 %v3163, %v3203
      %v3211 = vadd.f32 %v3164, %v3204
      %v3212 = vrot.slane %v3014, 5
      %v3213 = vrot.slane %v3019, 5
      %v3214 = vsel %vm1109, %v3212, %v3213
      %v3215 = vrot.slane %v3024, 5
      %v3216 = vsel %vm1109, %v3213, %v3215
      %v3219 = vrot.slane %v2994, 4
      %v3220 = vrot.slane %v2999, 4
      %v3221 = vsel %vm1026, %v3219, %v3220
      %v3222 = vrot.slane %v3004, 4
      %v3223 = vsel %vm1026, %v3220, %v3222
      %v3224 = vrot.slane %v3009, 4
      %v3225 = vsel %vm1026, %v3222, %v3224
      %v3226 = vsel %vm1026, %v3224, %v3165
      %v3233 = vsel %vm1026, %v3216, %v3219
      %v3234 = vmul.f32 %v3214, %v1135
      %v3235 = vmul.f32 %v3233, %v1140
      %v3236 = vmul.f32 %v3221, %v1145
      %v3237 = vmul.f32 %v3223, %v1150
      %v3238 = vmul.f32 %v3225, %v1155
      %v3239 = vmul.f32 %v3226, %v1160
      %v3240 = vmul.f32 %v3165, %v1165
      %v3241 = vlaneseq
      %v3242 = vshrl.u32 %v3241, 7
      %v3243 = vsub.s32 4, %v3242
      %v3244 = vrot.slane %v3028, %v3243
      %v3245 = vmul.f32 %v3234, %v3244
      %v3246 = vmul.f32 %v3235, %v3244
      %v3247 = vmul.f32 %v3236, %v3244
      %v3248 = vmul.f32 %v3237, %v3244
      %v3249 = vmul.f32 %v3238, %v3244
      %v3250 = vmul.f32 %v3239, %v3244
      %v3251 = vmul.f32 %v3240, %v3244
      %v3252 = vadd.f32 %v3205, %v3245
      %v3253 = vadd.f32 %v3206, %v3246
      %v3254 = vadd.f32 %v3207, %v3247
      %v3255 = vadd.f32 %v3208, %v3248
      %v3256 = vadd.f32 %v3209, %v3249
      %v3257 = vadd.f32 %v3210, %v3250
      %v3258 = vadd.f32 %v3211, %v3251
      %v3259 = vrot.slane %v2994, 7
      %v3260 = vrot.slane %v2999, 7
      %v3261 = vsel %vm1192, %v3259, %v3260
      %v3262 = vrot.slane %v3004, 7
      %v3263 = vsel %vm1192, %v3260, %v3262
      %v3264 = vrot.slane %v3009, 7
      %v3265 = vsel %vm1192, %v3262, %v3264
      %v3266 = vrot.slane %v3014, 7
      %v3267 = vsel %vm1192, %v3264, %v3266
      %v3274 = vsel %vm1192, %v3024, %v3259
      %v3275 = vmul.f32 %v3019, %v1212
      %v3276 = vmul.f32 %v3274, %v1217
      %v3277 = vmul.f32 %v3261, %v1222
      %v3278 = vmul.f32 %v3263, %v1227
      %v3279 = vmul.f32 %v3265, %v1232
      %v3280 = vmul.f32 %v3267, %v1237
      %v3281 = vmul.f32 %v3266, %v1242
      %v3282 = vlaneseq
      %v3283 = vshrl.u32 %v3282, 7
      %v3284 = vsub.s32 5, %v3283
      %v3285 = vrot.slane %v3028, %v3284
      %v3286 = vmul.f32 %v3275, %v3285
      %v3287 = vmul.f32 %v3276, %v3285
      %v3288 = vmul.f32 %v3277, %v3285
      %v3289 = vmul.f32 %v3278, %v3285
      %v3290 = vmul.f32 %v3279, %v3285
      %v3291 = vmul.f32 %v3280, %v3285
      %v3292 = vmul.f32 %v3281, %v3285
      %v3293 = vadd.f32 %v3252, %v3286
      %v3294 = vadd.f32 %v3253, %v3287
      %v3295 = vadd.f32 %v3254, %v3288
      %v3296 = vadd.f32 %v3255, %v3289
      %v3297 = vadd.f32 %v3256, %v3290
      %v3298 = vadd.f32 %v3257, %v3291
      %v3299 = vadd.f32 %v3258, %v3292
      %v3300 = vmul.f32 %v3039, %v1272
      %v3301 = vmul.f32 %v2994, %v1277
      %v3302 = vmul.f32 %v2999, %v1282
      %v3303 = vmul.f32 %v3004, %v1287
      %v3304 = vmul.f32 %v3009, %v1292
      %v3305 = vmul.f32 %v3014, %v1297
      %v3306 = vmul.f32 %v3019, %v1302
      %v3307 = vlaneseq
      %v3308 = vshrl.u32 %v3307, 7
      %v3309 = vsub.s32 6, %v3308
      %v3310 = vrot.slane %v3028, %v3309
      %v3311 = vmul.f32 %v3300, %v3310
      %v3312 = vmul.f32 %v3301, %v3310
      %v3313 = vmul.f32 %v3302, %v3310
      %v3314 = vmul.f32 %v3303, %v3310
      %v3315 = vmul.f32 %v3304, %v3310
      %v3316 = vmul.f32 %v3305, %v3310
      %v3317 = vmul.f32 %v3306, %v3310
      %v3318 = vadd.f32 %v3293, %v3311
      %v3319 = vadd.f32 %v3294, %v3312
      %v3320 = vadd.f32 %v3295, %v3313
      %v3321 = vadd.f32 %v3296, %v3314
      %v3322 = vadd.f32 %v3297, %v3315
      %v3323 = vadd.f32 %v3298, %v3316
      %v3324 = vadd.f32 %v3299, %v3317
      %v3326 = vmul.f32 %v3092, %v1333
      %v3327 = vmul.f32 %v3080, %v1338
      %v3328 = vmul.f32 %v3082, %v1343
      %v3329 = vmul.f32 %v3084, %v1348
      %v3330 = vmul.f32 %v3085, %v1353
      %v3331 = vmul.f32 %v3037, %v1358
      %v3332 = vmul.f32 %v3036, %v1363
      %v3333 = vlaneseq
      %v3334 = vshrl.u32 %v3333, 7
      %v3335 = vsub.s32 7, %v3334
      %v3336 = vrot.slane %v3028, %v3335
      %v3337 = vmul.f32 %v3326, %v3336
      %v3338 = vmul.f32 %v3327, %v3336
      %v3339 = vmul.f32 %v3328, %v3336
      %v3340 = vmul.f32 %v3329, %v3336
      %v3341 = vmul.f32 %v3330, %v3336
      %v3342 = vmul.f32 %v3331, %v3336
      %v3343 = vmul.f32 %v3332, %v3336
      %v3344 = vadd.f32 %v3318, %v3337
      %v3345 = vadd.f32 %v3319, %v3338
      %v3346 = vadd.f32 %v3320, %v3339
      %v3347 = vadd.f32 %v3321, %v3340
      %v3348 = vadd.f32 %v3322, %v3341
      %v3349 = vadd.f32 %v3323, %v3342
      %v3350 = vadd.f32 %v3324, %v3343
      %v3352 = vmul.f32 %v3139, %v1394
      %v3353 = vmul.f32 %v3127, %v1399
      %v3354 = vmul.f32 %v3129, %v1404
      %v3355 = vmul.f32 %v3131, %v1409
      %v3356 = vmul.f32 %v3132, %v1414
      %v3357 = vmul.f32 %v3069, %v1419
      %v3358 = vmul.f32 %v3068, %v1424
      %v3359 = vlaneseq
      %v3360 = vshrl.u32 %v3359, 7
      %v3361 = vsub.s32 0, %v3360
      %v3362 = vrot.slane %v3029, %v3361
      %v3363 = vmul.f32 %v3352, %v3362
      %v3364 = vmul.f32 %v3353, %v3362
      %v3365 = vmul.f32 %v3354, %v3362
      %v3366 = vmul.f32 %v3355, %v3362
      %v3367 = vmul.f32 %v3356, %v3362
      %v3368 = vmul.f32 %v3357, %v3362
      %v3369 = vmul.f32 %v3358, %v3362
      %v3370 = vadd.f32 %v3344, %v3363
      %v3371 = vadd.f32 %v3345, %v3364
      %v3372 = vadd.f32 %v3346, %v3365
      %v3373 = vadd.f32 %v3347, %v3366
      %v3374 = vadd.f32 %v3348, %v3367
      %v3375 = vadd.f32 %v3349, %v3368
      %v3376 = vadd.f32 %v3350, %v3369
      %v3378 = vmul.f32 %v3186, %v1455
      %v3379 = vmul.f32 %v3174, %v1460
      %v3380 = vmul.f32 %v3176, %v1465
      %v3381 = vmul.f32 %v3178, %v1470
      %v3382 = vmul.f32 %v3179, %v1475
      %v3383 = vmul.f32 %v3120, %v1480
      %v3384 = vmul.f32 %v3119, %v1485
      %v3385 = vlaneseq
      %v3386 = vshrl.u32 %v3385, 7
      %v3387 = vsub.s32 1, %v3386
      %v3388 = vrot.slane %v3029, %v3387
      %v3389 = vmul.f32 %v3378, %v3388
      %v3390 = vmul.f32 %v3379, %v3388
      %v3391 = vmul.f32 %v3380, %v3388
      %v3392 = vmul.f32 %v3381, %v3388
      %v3393 = vmul.f32 %v3382, %v3388
      %v3394 = vmul.f32 %v3383, %v3388
      %v3395 = vmul.f32 %v3384, %v3388
      %v3396 = vadd.f32 %v3370, %v3389
      %v3397 = vadd.f32 %v3371, %v3390
      %v3398 = vadd.f32 %v3372, %v3391
      %v3399 = vadd.f32 %v3373, %v3392
      %v3400 = vadd.f32 %v3374, %v3393
      %v3401 = vadd.f32 %v3375, %v3394
      %v3402 = vadd.f32 %v3376, %v3395
      %v3403 = vrot.slane %v3019, 7
      %v3404 = vrot.slane %v3024, 7
      %v3405 = vsel %vm1192, %v3403, %v3404
      %v3407 = vrot.slane %v2994, 6
      %v3408 = vrot.slane %v2999, 6
      %v3409 = vsel %vm1516, %v3407, %v3408
      %v3410 = vrot.slane %v3004, 6
      %v3411 = vsel %vm1516, %v3408, %v3410
      %v3412 = vrot.slane %v3009, 6
      %v3413 = vsel %vm1516, %v3410, %v3412
      %v3414 = vrot.slane %v3014, 6
      %v3415 = vsel %vm1516, %v3412, %v3414
      %v3416 = vrot.slane %v3019, 6
      %v3417 = vsel %vm1516, %v3414, %v3416
      %v3425 = vsel %vm1516, %v3405, %v3407
      %v3426 = vmul.f32 %v3425, %v1539
      %v3427 = vmul.f32 %v3409, %v1544
      %v3428 = vmul.f32 %v3411, %v1549
      %v3429 = vmul.f32 %v3413, %v1554
      %v3430 = vmul.f32 %v3415, %v1559
      %v3431 = vmul.f32 %v3417, %v1564
      %v3432 = vmul.f32 %v3416, %v1569
      %v3433 = vlaneseq
      %v3434 = vshrl.u32 %v3433, 7
      %v3435 = vsub.s32 2, %v3434
      %v3436 = vrot.slane %v3029, %v3435
      %v3437 = vmul.f32 %v3426, %v3436
      %v3438 = vmul.f32 %v3427, %v3436
      %v3439 = vmul.f32 %v3428, %v3436
      %v3440 = vmul.f32 %v3429, %v3436
      %v3441 = vmul.f32 %v3430, %v3436
      %v3442 = vmul.f32 %v3431, %v3436
      %v3443 = vmul.f32 %v3432, %v3436
      %v3444 = vadd.f32 %v3396, %v3437
      %v3445 = vadd.f32 %v3397, %v3438
      %v3446 = vadd.f32 %v3398, %v3439
      %v3447 = vadd.f32 %v3399, %v3440
      %v3448 = vadd.f32 %v3400, %v3441
      %v3449 = vadd.f32 %v3401, %v3442
      %v3450 = vadd.f32 %v3402, %v3443
      %v3451 = vsel %vm1192, %v3266, %v3403
      %v3454 = vmul.f32 %v3274, %v1602
      %v3455 = vmul.f32 %v3261, %v1607
      %v3456 = vmul.f32 %v3263, %v1612
      %v3457 = vmul.f32 %v3265, %v1617
      %v3458 = vmul.f32 %v3267, %v1622
      %v3459 = vmul.f32 %v3451, %v1627
      %v3460 = vmul.f32 %v3403, %v1632
      %v3461 = vlaneseq
      %v3462 = vshrl.u32 %v3461, 7
      %v3463 = vsub.s32 3, %v3462
      %v3464 = vrot.slane %v3029, %v3463
      %v3465 = vmul.f32 %v3454, %v3464
      %v3466 = vmul.f32 %v3455, %v3464
      %v3467 = vmul.f32 %v3456, %v3464
      %v3468 = vmul.f32 %v3457, %v3464
      %v3469 = vmul.f32 %v3458, %v3464
      %v3470 = vmul.f32 %v3459, %v3464
      %v3471 = vmul.f32 %v3460, %v3464
      %v3472 = vadd.f32 %v3444, %v3465
      %v3473 = vadd.f32 %v3445, %v3466
      %v3474 = vadd.f32 %v3446, %v3467
      %v3475 = vadd.f32 %v3447, %v3468
      %v3476 = vadd.f32 %v3448, %v3469
      %v3477 = vadd.f32 %v3449, %v3470
      %v3478 = vadd.f32 %v3450, %v3471
      %v3479 = vmul.f32 %v2994, %v1662
      %v3480 = vmul.f32 %v2999, %v1667
      %v3481 = vmul.f32 %v3004, %v1672
      %v3482 = vmul.f32 %v3009, %v1677
      %v3483 = vmul.f32 %v3014, %v1682
      %v3484 = vmul.f32 %v3019, %v1687
      %v3485 = vmul.f32 %v3024, %v1692
      %v3486 = vlaneseq
      %v3487 = vshrl.u32 %v3486, 7
      %v3488 = vsub.s32 4, %v3487
      %v3489 = vrot.slane %v3029, %v3488
      %v3490 = vmul.f32 %v3479, %v3489
      %v3491 = vmul.f32 %v3480, %v3489
      %v3492 = vmul.f32 %v3481, %v3489
      %v3493 = vmul.f32 %v3482, %v3489
      %v3494 = vmul.f32 %v3483, %v3489
      %v3495 = vmul.f32 %v3484, %v3489
      %v3496 = vmul.f32 %v3485, %v3489
      %v3497 = vadd.f32 %v3472, %v3490
      %v3498 = vadd.f32 %v3473, %v3491
      %v3499 = vadd.f32 %v3474, %v3492
      %v3500 = vadd.f32 %v3475, %v3493
      %v3501 = vadd.f32 %v3476, %v3494
      %v3502 = vadd.f32 %v3477, %v3495
      %v3503 = vadd.f32 %v3478, %v3496
      %v3504 = vmul.f32 %v3080, %v1722
      %v3505 = vmul.f32 %v3082, %v1727
      %v3506 = vmul.f32 %v3084, %v1732
      %v3507 = vmul.f32 %v3085, %v1737
      %v3508 = vmul.f32 %v3037, %v1742
      %v3509 = vmul.f32 %v3039, %v1747
      %v3510 = vmul.f32 %v2994, %v1752
      %v3511 = vlaneseq
      %v3512 = vshrl.u32 %v3511, 7
      %v3513 = vsub.s32 5, %v3512
      %v3514 = vrot.slane %v3029, %v3513
      %v3515 = vmul.f32 %v3504, %v3514
      %v3516 = vmul.f32 %v3505, %v3514
      %v3517 = vmul.f32 %v3506, %v3514
      %v3518 = vmul.f32 %v3507, %v3514
      %v3519 = vmul.f32 %v3508, %v3514
      %v3520 = vmul.f32 %v3509, %v3514
      %v3521 = vmul.f32 %v3510, %v3514
      %v3522 = vadd.f32 %v3497, %v3515
      %v3523 = vadd.f32 %v3498, %v3516
      %v3524 = vadd.f32 %v3499, %v3517
      %v3525 = vadd.f32 %v3500, %v3518
      %v3526 = vadd.f32 %v3501, %v3519
      %v3527 = vadd.f32 %v3502, %v3520
      %v3528 = vadd.f32 %v3503, %v3521
      %v3529 = vmul.f32 %v3127, %v1782
      %v3530 = vmul.f32 %v3129, %v1787
      %v3531 = vmul.f32 %v3131, %v1792
      %v3532 = vmul.f32 %v3132, %v1797
      %v3533 = vmul.f32 %v3069, %v1802
      %v3534 = vmul.f32 %v3092, %v1807
      %v3535 = vmul.f32 %v3078, %v1812
      %v3536 = vlaneseq
      %v3537 = vshrl.u32 %v3536, 7
      %v3538 = vsub.s32 6, %v3537
      %v3539 = vrot.slane %v3029, %v3538
      %v3540 = vmul.f32 %v3529, %v3539
      %v3541 = vmul.f32 %v3530, %v3539
      %v3542 = vmul.f32 %v3531, %v3539
      %v3543 = vmul.f32 %v3532, %v3539
      %v3544 = vmul.f32 %v3533, %v3539
      %v3545 = vmul.f32 %v3534, %v3539
      %v3546 = vmul.f32 %v3535, %v3539
      %v3547 = vadd.f32 %v3522, %v3540
      %v3548 = vadd.f32 %v3523, %v3541
      %v3549 = vadd.f32 %v3524, %v3542
      %v3550 = vadd.f32 %v3525, %v3543
      %v3551 = vadd.f32 %v3526, %v3544
      %v3552 = vadd.f32 %v3527, %v3545
      %v3553 = vadd.f32 %v3528, %v3546
      %v3554 = vrot.slane %v2994, 5
      %v3555 = vrot.slane %v2999, 5
      %v3556 = vsel %vm1109, %v3554, %v3555
      %v3557 = vrot.slane %v3004, 5
      %v3558 = vsel %vm1109, %v3555, %v3557
      %v3559 = vrot.slane %v3009, 5
      %v3560 = vsel %vm1109, %v3557, %v3559
      %v3561 = vsel %vm1109, %v3559, %v3212
      %v3566 = vmul.f32 %v3556, %v1854
      %v3567 = vmul.f32 %v3558, %v1859
      %v3568 = vmul.f32 %v3560, %v1864
      %v3569 = vmul.f32 %v3561, %v1869
      %v3570 = vmul.f32 %v3214, %v1874
      %v3571 = vmul.f32 %v3233, %v1879
      %v3572 = vmul.f32 %v3219, %v1884
      %v3573 = vlaneseq
      %v3574 = vshrl.u32 %v3573, 7
      %v3575 = vsub.s32 7, %v3574
      %v3576 = vrot.slane %v3029, %v3575
      %v3577 = vmul.f32 %v3566, %v3576
      %v3578 = vmul.f32 %v3567, %v3576
      %v3579 = vmul.f32 %v3568, %v3576
      %v3580 = vmul.f32 %v3569, %v3576
      %v3581 = vmul.f32 %v3570, %v3576
      %v3582 = vmul.f32 %v3571, %v3576
      %v3583 = vmul.f32 %v3572, %v3576
      %v3584 = vadd.f32 %v3547, %v3577
      %v3585 = vadd.f32 %v3548, %v3578
      %v3586 = vadd.f32 %v3549, %v3579
      %v3587 = vadd.f32 %v3550, %v3580
      %v3588 = vadd.f32 %v3551, %v3581
      %v3589 = vadd.f32 %v3552, %v3582
      %v3590 = vadd.f32 %v3553, %v3583
      %v3591 = vrot.slane %v3024, 6
      %v3592 = vsel %vm1516, %v3416, %v3591
      %v3595 = vsel %vm1109, %v3592, %v3554
      %v3596 = vmul.f32 %v3409, %v1919
      %v3597 = vmul.f32 %v3411, %v1924
      %v3598 = vmul.f32 %v3413, %v1929
      %v3599 = vmul.f32 %v3415, %v1934
      %v3600 = vmul.f32 %v3417, %v1939
      %v3601 = vmul.f32 %v3595, %v1944
      %v3602 = vmul.f32 %v3554, %v1949
      %v3603 = vlaneseq
      %v3604 = vshrl.u32 %v3603, 7
      %v3605 = vsub.s32 0, %v3604
      %v3606 = vrot.slane %v3030, %v3605
      %v3607 = vmul.f32 %v3596, %v3606
      %v3608 = vmul.f32 %v3597, %v3606
      %v3609 = vmul.f32 %v3598, %v3606
      %v3610 = vmul.f32 %v3599, %v3606
      %v3611 = vmul.f32 %v3600, %v3606
      %v3612 = vmul.f32 %v3601, %v3606
      %v3613 = vmul.f32 %v3602, %v3606
      %v3614 = vadd.f32 %v3584, %v3607
      %v3615 = vadd.f32 %v3585, %v3608
      %v3616 = vadd.f32 %v3586, %v3609
      %v3617 = vadd.f32 %v3587, %v3610
      %v3618 = vadd.f32 %v3588, %v3611
      %v3619 = vadd.f32 %v3589, %v3612
      %v3620 = vadd.f32 %v3590, %v3613
      %v3621 = vmul.f32 %v3261, %v1979
      %v3622 = vmul.f32 %v3263, %v1984
      %v3623 = vmul.f32 %v3265, %v1989
      %v3624 = vmul.f32 %v3267, %v1994
      %v3625 = vmul.f32 %v3451, %v1999
      %v3626 = vmul.f32 %v3425, %v2004
      %v3627 = vmul.f32 %v3407, %v2009
      %v3628 = vlaneseq
      %v3629 = vshrl.u32 %v3628, 7
      %v3630 = vsub.s32 1, %v3629
      %v3631 = vrot.slane %v3030, %v3630
      %v3632 = vmul.f32 %v3621, %v3631
      %v3633 = vmul.f32 %v3622, %v3631
      %v3634 = vmul.f32 %v3623, %v3631
      %v3635 = vmul.f32 %v3624, %v3631
      %v3636 = vmul.f32 %v3625, %v3631
      %v3637 = vmul.f32 %v3626, %v3631
      %v3638 = vmul.f32 %v3627, %v3631
      %v3639 = vadd.f32 %v3614, %v3632
      %v3640 = vadd.f32 %v3615, %v3633
      %v3641 = vadd.f32 %v3616, %v3634
      %v3642 = vadd.f32 %v3617, %v3635
      %v3643 = vadd.f32 %v3618, %v3636
      %v3644 = vadd.f32 %v3619, %v3637
      %v3645 = vadd.f32 %v3620, %v3638
      %v3646 = vmul.f32 %v2999, %v2039
      %v3647 = vmul.f32 %v3004, %v2044
      %v3648 = vmul.f32 %v3009, %v2049
      %v3649 = vmul.f32 %v3014, %v2054
      %v3650 = vmul.f32 %v3019, %v2059
      %v3651 = vmul.f32 %v3274, %v2064
      %v3652 = vmul.f32 %v3259, %v2069
      %v3653 = vlaneseq
      %v3654 = vshrl.u32 %v3653, 7
      %v3655 = vsub.s32 2, %v3654
      %v3656 = vrot.slane %v3030, %v3655
      %v3657 = vmul.f32 %v3646, %v3656
      %v3658 = vmul.f32 %v3647, %v3656
      %v3659 = vmul.f32 %v3648, %v3656
      %v3660 = vmul.f32 %v3649, %v3656
      %v3661 = vmul.f32 %v3650, %v3656
      %v3662 = vmul.f32 %v3651, %v3656
      %v3663 = vmul.f32 %v3652, %v3656
      %v3664 = vadd.f32 %v3639, %v3657
      %v3665 = vadd.f32 %v3640, %v3658
      %v3666 = vadd.f32 %v3641, %v3659
      %v3667 = vadd.f32 %v3642, %v3660
      %v3668 = vadd.f32 %v3643, %v3661
      %v3669 = vadd.f32 %v3644, %v3662
      %v3670 = vadd.f32 %v3645, %v3663
      %v3671 = vmul.f32 %v3082, %v2099
      %v3672 = vmul.f32 %v3084, %v2104
      %v3673 = vmul.f32 %v3085, %v2109
      %v3674 = vmul.f32 %v3037, %v2114
      %v3675 = vmul.f32 %v3039, %v2119
      %v3676 = vmul.f32 %v2994, %v2124
      %v3677 = vmul.f32 %v2999, %v2129
      %v3678 = vlaneseq
      %v3679 = vshrl.u32 %v3678, 7
      %v3680 = vsub.s32 3, %v3679
      %v3681 = vrot.slane %v3030, %v3680
      %v3682 = vmul.f32 %v3671, %v3681
      %v3683 = vmul.f32 %v3672, %v3681
      %v3684 = vmul.f32 %v3673, %v3681
      %v3685 = vmul.f32 %v3674, %v3681
      %v3686 = vmul.f32 %v3675, %v3681
      %v3687 = vmul.f32 %v3676, %v3681
      %v3688 = vmul.f32 %v3677, %v3681
      %v3689 = vadd.f32 %v3664, %v3682
      %v3690 = vadd.f32 %v3665, %v3683
      %v3691 = vadd.f32 %v3666, %v3684
      %v3692 = vadd.f32 %v3667, %v3685
      %v3693 = vadd.f32 %v3668, %v3686
      %v3694 = vadd.f32 %v3669, %v3687
      %v3695 = vadd.f32 %v3670, %v3688
      %v3697 = vmul.f32 %v3223, %v2160
      %v3698 = vmul.f32 %v3225, %v2165
      %v3699 = vmul.f32 %v3226, %v2170
      %v3700 = vmul.f32 %v3167, %v2175
      %v3701 = vmul.f32 %v3186, %v2180
      %v3702 = vmul.f32 %v3174, %v2185
      %v3703 = vmul.f32 %v3173, %v2190
      %v3704 = vlaneseq
      %v3705 = vshrl.u32 %v3704, 7
      %v3706 = vsub.s32 4, %v3705
      %v3707 = vrot.slane %v3030, %v3706
      %v3708 = vmul.f32 %v3697, %v3707
      %v3709 = vmul.f32 %v3698, %v3707
      %v3710 = vmul.f32 %v3699, %v3707
      %v3711 = vmul.f32 %v3700, %v3707
      %v3712 = vmul.f32 %v3701, %v3707
      %v3713 = vmul.f32 %v3702, %v3707
      %v3714 = vmul.f32 %v3703, %v3707
      %v3715 = vadd.f32 %v3689, %v3708
      %v3716 = vadd.f32 %v3690, %v3709
      %v3717 = vadd.f32 %v3691, %v3710
      %v3718 = vadd.f32 %v3692, %v3711
      %v3719 = vadd.f32 %v3693, %v3712
      %v3720 = vadd.f32 %v3694, %v3713
      %v3721 = vadd.f32 %v3695, %v3714
      %v3723 = vmul.f32 %v3558, %v2221
      %v3724 = vmul.f32 %v3560, %v2226
      %v3725 = vmul.f32 %v3561, %v2231
      %v3726 = vmul.f32 %v3214, %v2236
      %v3727 = vmul.f32 %v3233, %v2241
      %v3728 = vmul.f32 %v3221, %v2246
      %v3729 = vmul.f32 %v3220, %v2251
      %v3730 = vlaneseq
      %v3731 = vshrl.u32 %v3730, 7
      %v3732 = vsub.s32 5, %v3731
      %v3733 = vrot.slane %v3030, %v3732
      %v3734 = vmul.f32 %v3723, %v3733
      %v3735 = vmul.f32 %v3724, %v3733
      %v3736 = vmul.f32 %v3725, %v3733
      %v3737 = vmul.f32 %v3726, %v3733
      %v3738 = vmul.f32 %v3727, %v3733
      %v3739 = vmul.f32 %v3728, %v3733
      %v3740 = vmul.f32 %v3729, %v3733
      %v3741 = vadd.f32 %v3715, %v3734
      %v3742 = vadd.f32 %v3716, %v3735
      %v3743 = vadd.f32 %v3717, %v3736
      %v3744 = vadd.f32 %v3718, %v3737
      %v3745 = vadd.f32 %v3719, %v3738
      %v3746 = vadd.f32 %v3720, %v3739
      %v3747 = vadd.f32 %v3721, %v3740
      %v3749 = vmul.f32 %v3411, %v2282
      %v3750 = vmul.f32 %v3413, %v2287
      %v3751 = vmul.f32 %v3415, %v2292
      %v3752 = vmul.f32 %v3417, %v2297
      %v3753 = vmul.f32 %v3595, %v2302
      %v3754 = vmul.f32 %v3556, %v2307
      %v3755 = vmul.f32 %v3555, %v2312
      %v3756 = vlaneseq
      %v3757 = vshrl.u32 %v3756, 7
      %v3758 = vsub.s32 6, %v3757
      %v3759 = vrot.slane %v3030, %v3758
      %v3760 = vmul.f32 %v3749, %v3759
      %v3761 = vmul.f32 %v3750, %v3759
      %v3762 = vmul.f32 %v3751, %v3759
      %v3763 = vmul.f32 %v3752, %v3759
      %v3764 = vmul.f32 %v3753, %v3759
      %v3765 = vmul.f32 %v3754, %v3759
      %v3766 = vmul.f32 %v3755, %v3759
      %v3767 = vadd.f32 %v3741, %v3760
      %v3768 = vadd.f32 %v3742, %v3761
      %v3769 = vadd.f32 %v3743, %v3762
      %v3770 = vadd.f32 %v3744, %v3763
      %v3771 = vadd.f32 %v3745, %v3764
      %v3772 = vadd.f32 %v3746, %v3765
      %v3773 = vadd.f32 %v3747, %v3766
      %v3775 = vmul.f32 %v3263, %v2343
      %v3776 = vmul.f32 %v3265, %v2348
      %v3777 = vmul.f32 %v3267, %v2353
      %v3778 = vmul.f32 %v3451, %v2358
      %v3779 = vmul.f32 %v3425, %v2363
      %v3780 = vmul.f32 %v3409, %v2368
      %v3781 = vmul.f32 %v3408, %v2373
      %v3782 = vlaneseq
      %v3783 = vshrl.u32 %v3782, 7
      %v3784 = vsub.s32 7, %v3783
      %v3785 = vrot.slane %v3030, %v3784
      %v3786 = vmul.f32 %v3775, %v3785
      %v3787 = vmul.f32 %v3776, %v3785
      %v3788 = vmul.f32 %v3777, %v3785
      %v3789 = vmul.f32 %v3778, %v3785
      %v3790 = vmul.f32 %v3779, %v3785
      %v3791 = vmul.f32 %v3780, %v3785
      %v3792 = vmul.f32 %v3781, %v3785
      %v3793 = vadd.f32 %v3767, %v3786
      %v3794 = vadd.f32 %v3768, %v3787
      %v3795 = vadd.f32 %v3769, %v3788
      %v3796 = vadd.f32 %v3770, %v3789
      %v3797 = vadd.f32 %v3771, %v3790
      %v3798 = vadd.f32 %v3772, %v3791
      %v3799 = vadd.f32 %v3773, %v3792
      %v3801 = vmul.f32 %v3004, %v2404
      %v3802 = vmul.f32 %v3009, %v2409
      %v3803 = vmul.f32 %v3014, %v2414
      %v3804 = vmul.f32 %v3019, %v2419
      %v3805 = vmul.f32 %v3274, %v2424
      %v3806 = vmul.f32 %v3261, %v2429
      %v3807 = vmul.f32 %v3260, %v2434
      %v3808 = vlaneseq
      %v3809 = vshrl.u32 %v3808, 7
      %v3810 = vsub.s32 0, %v3809
      %v3811 = vrot.slane %v3031, %v3810
      %v3812 = vmul.f32 %v3801, %v3811
      %v3813 = vmul.f32 %v3802, %v3811
      %v3814 = vmul.f32 %v3803, %v3811
      %v3815 = vmul.f32 %v3804, %v3811
      %v3816 = vmul.f32 %v3805, %v3811
      %v3817 = vmul.f32 %v3806, %v3811
      %v3818 = vmul.f32 %v3807, %v3811
      %v3819 = vadd.f32 %v3793, %v3812
      %v3820 = vadd.f32 %v3794, %v3813
      %v3821 = vadd.f32 %v3795, %v3814
      %v3822 = vadd.f32 %v3796, %v3815
      %v3823 = vadd.f32 %v3797, %v3816
      %v3824 = vadd.f32 %v3798, %v3817
      %v3825 = vadd.f32 %v3799, %v3818
      %s3826 = scalar_lea.vmem %s4, 1
      %v3827 = vld [vmem:[%s3826] sm:$0x1]
      %v3829 = vlaneseq
      %v3830 = vshrl.u32 %v3829, 7
      %v3831 = vsub.s32 0, %v3830
      %v3832 = vrot.slane %v3827, %v3831
      %v3834 = vadd.f32 %v3819, %v3832
      %v3835 = vadd.f32 %v3820, %v3832
      %v3836 = vadd.f32 %v3821, %v3832
      %v3837 = vadd.f32 %v3822, %v3832
      %v3838 = vadd.f32 %v3823, %v3832
      %v3839 = vadd.f32 %v3824, %v3832
      %v3840 = vadd.f32 %v3825, %v3832
      %3841 = vrot.lane.b32.xlu0 %v2994, 112
      %v3842 = vpop.permute.xlu0 %3841
      %3843 = vrot.lane.b32.xlu0 %v2999, 112
      %v3844 = vpop.permute.xlu0 %3843
      %3845 = vrot.lane.b32.xlu0 %v3004, 112
      %v3846 = vpop.permute.xlu0 %3845
      %3847 = vrot.lane.b32.xlu0 %v3009, 112
      %v3848 = vpop.permute.xlu0 %3847
      %3849 = vrot.lane.b32.xlu0 %v3014, 112
      %v3850 = vpop.permute.xlu0 %3849
      %3851 = vrot.lane.b32.xlu0 %v3019, 112
      %v3852 = vpop.permute.xlu0 %3851
      %3853 = vrot.lane.b32.xlu0 %v3024, 112
      %v3854 = vpop.permute.xlu0 %3853
      %v3856 = vsel %vm2489, %v3834, 0
      %v3859 = vsel %vm2489, %v3835, 0
      %v3862 = vsel %vm2489, %v3836, 0
      %v3865 = vsel %vm2489, %v3837, 0
      %v3868 = vsel %vm2489, %v3838, 0
      %v3871 = vsel %vm2489, %v3839, 0
      %v3874 = vsel %vm2489, %v3840, 0
      %v3876 = vsel %vm2489, %v3842, 0
      %v3878 = vsel %vm2489, %v3844, 0
      %v3880 = vsel %vm2489, %v3846, 0
      %v3882 = vsel %vm2489, %v3848, 0
      %v3884 = vsel %vm2489, %v3850, 0
      %v3886 = vsel %vm2489, %v3852, 0
      %v3888 = vsel %vm2489, %v3854, 0
      %3890 = vmatprep.subr.mxu0 0.0
      %3891 = vmatpush1.xpose.msra.mxu0 %v3876
      %3892 = vmatprep.subr.mxu0 0.0
      %3893 = vmatpush1.xpose.msra.mxu0 %v3878
      %3894 = vmatprep.subr.mxu0 0.0
      %3895 = vmatpush1.xpose.msra.mxu0 %v3880
      %3896 = vmatprep.subr.mxu0 0.0
      %3897 = vmatpush1.xpose.msra.mxu0 %v3882
      %3898 = vmatprep.subr.mxu0 0.0
      %3899 = vmatpush1.xpose.msra.mxu0 %v3884
      %3900 = vmatprep.subr.mxu0 0.0
      %3901 = vmatpush1.xpose.msra.mxu0 %v3886
      %3902 = vmatprep.subr.mxu0 0.0
      %3903 = vmatpush1.xpose.msra.mxu0 %v3888
      %3904 = vmatprep.subr.mxu0 0.0
      %3905 = vmatpush1.xpose.msra.mxu0 0.0
      %3906 = vmatprep.subr.mxu0 0.0
      %3907 = vmatpush1.xpose.msra.mxu0 0.0
      %3908 = vmatprep.subr.mxu0 0.0
      %3909 = vmatpush1.xpose.msra.mxu0 0.0
      %3910 = vmatprep.subr.mxu0 0.0
      %3911 = vmatpush1.xpose.msra.mxu0 0.0
      %3912 = vmatprep.subr.mxu0 0.0
      %3913 = vmatpush1.xpose.msra.mxu0 0.0
      %3914 = vmatprep.subr.mxu0 0.0
      %3915 = vmatpush1.xpose.msra.mxu0 0.0
      %3916 = vmatprep.subr.mxu0 0.0
      %3917 = vmatpush1.xpose.msra.mxu0 0.0
      %3918 = vmatprep.subr.mxu0 0.0
      %3919 = vmatpush1.xpose.msra.mxu0 0.0
      %3920 = vmatprep.subr.mxu0 0.0
      %3921 = vmatpush1.xpose.msra.mxu0 0.0
      %3922 = vmatprep.subr.mxu0 0.0
      %3923 = vmatpush1.xpose.msra.mxu0 0.0
      %3924 = vmatprep.subr.mxu0 0.0
      %3925 = vmatpush1.xpose.msra.mxu0 0.0
      %3926 = vmatprep.subr.mxu0 0.0
      %3927 = vmatpush1.xpose.msra.mxu0 0.0
      %3928 = vmatprep.subr.mxu0 0.0
      %3929 = vmatpush1.xpose.msra.mxu0 0.0
      %3930 = vmatprep.subr.mxu0 0.0
      %3931 = vmatpush1.xpose.msra.mxu0 0.0
      %3932 = vmatprep.subr.mxu0 0.0
      %3933 = vmatpush1.xpose.msra.mxu0 0.0
      %3934 = vmatprep.subr.mxu0 0.0
      %3935 = vmatpush1.xpose.msra.mxu0 0.0
      %3936 = vmatprep.subr.mxu0 0.0
      %3937 = vmatpush1.xpose.msra.mxu0 0.0
      %3938 = vmatprep.subr.mxu0 0.0
      %3939 = vmatpush1.xpose.msra.mxu0 0.0
      %3940 = vmatprep.subr.mxu0 0.0
      %3941 = vmatpush1.xpose.msra.mxu0 0.0
      %3942 = vmatprep.subr.mxu0 0.0
      %3943 = vmatpush1.xpose.msra.mxu0 0.0
      %3944 = vmatprep.subr.mxu0 0.0
      %3945 = vmatpush1.xpose.msra.mxu0 0.0
      %3946 = vmatprep.subr.mxu0 0.0
      %3947 = vmatpush1.xpose.msra.mxu0 0.0
      %3948 = vmatprep.subr.mxu0 0.0
      %3949 = vmatpush1.xpose.msra.mxu0 0.0
      %3950 = vmatprep.subr.mxu0 0.0
      %3951 = vmatpush1.xpose.msra.mxu0 0.0
      %3952 = vmatprep.subr.mxu0 0.0
      %3953 = vmatpush1.xpose.msra.mxu0 0.0
      %3954 = vmatprep.mubr.f32.mxu0 0.0
      %3955 = vmatmul.mubr.f32.gmra.mrb[0].mxu0 %v3856
      %v3956 = vpop.f32.mrb[0].mxu0
      %v3957 = vadd.f32 0.0, %v3956
      %v3958 = vpop.f32.mrb[0].mxu0
      %3959 = vmatprep.mubr.f32.mxu0 0.0
      %3960 = vmatmul.mubr.f32.gmra.mrb[0].mxu0 %v3859
      %v3961 = vpop.f32.mrb[0].mxu0
      %v3962 = vadd.f32 0.0, %v3961
      %v3963 = vpop.f32.mrb[0].mxu0
      %3964 = vmatprep.mubr.f32.mxu0 0.0
      %3965 = vmatmul.mubr.f32.gmra.mrb[0].mxu0 %v3862
      %v3966 = vpop.f32.mrb[0].mxu0
      %v3967 = vadd.f32 0.0, %v3966
      %v3968 = vpop.f32.mrb[0].mxu0
      %3969 = vmatprep.mubr.f32.mxu0 0.0
      %3970 = vmatmul.mubr.f32.gmra.mrb[0].mxu0 %v3865
      %v3971 = vpop.f32.mrb[0].mxu0
      %v3972 = vadd.f32 0.0, %v3971
      %v3973 = vpop.f32.mrb[0].mxu0
      %3974 = vmatprep.mubr.f32.mxu0 0.0
      %3975 = vmatmul.mubr.f32.gmra.mrb[0].mxu0 %v3868
      %v3976 = vpop.f32.mrb[0].mxu0
      %v3977 = vadd.f32 0.0, %v3976
      %v3978 = vpop.f32.mrb[0].mxu0
      %3979 = vmatprep.mubr.f32.mxu0 0.0
      %3980 = vmatmul.mubr.f32.gmra.mrb[0].mxu0 %v3871
      %v3981 = vpop.f32.mrb[0].mxu0
      %v3982 = vadd.f32 0.0, %v3981
      %v3983 = vpop.f32.mrb[0].mxu0
      %3984 = vmatprep.mubr.f32.mxu0 0.0
      %3985 = vmatmul.mubr.f32.gmra.mrb[0].mxu0 %v3874
      %v3986 = vpop.f32.mrb[0].mxu0
      %v3987 = vadd.f32 0.0, %v3986
      %v3988 = vpop.f32.mrb[0].mxu0
      %3989 = vdwg.mxu0
      %v3990 = vmul.f32 %v3957, 0.25
      %v3991 = vmul.f32 %v3962, 0.25
      %v3992 = vmul.f32 %v3967, 0.25
      %v3993 = vmul.f32 %v3972, 0.25
      %v3994 = vmul.f32 %v3977, 0.25
      %v3995 = vmul.f32 %v3982, 0.25
      %v3996 = vmul.f32 %v3987, 0.25
      %s3997 = scalar_lea.vmem %s6, 56
      %v3998 = vld [vmem:[%s3997] sm:$0xff]
      %v3999 = vld [vmem:[%s3997 + $0x8] sm:$0xff]
      %v4000 = vld [vmem:[%s3997 + $0x10] sm:$0xff]
      %v4001 = vld [vmem:[%s3997 + $0x18] sm:$0xff]
      %v4002 = vld [vmem:[%s3997 + $0x20] sm:$0xff]
      %v4003 = vld [vmem:[%s3997 + $0x28] sm:$0xff]
      %v4004 = vld [vmem:[%s3997 + $0x30] sm:$0x1]
      %v4005 = vadd.f32 %v3990, %v3998
      %v4006 = vadd.f32 %v3991, %v3999
      %v4007 = vadd.f32 %v3992, %v4000
      %v4008 = vadd.f32 %v3993, %v4001
      %v4009 = vadd.f32 %v3994, %v4002
      %v4010 = vadd.f32 %v3995, %v4003
      %v4011 = vadd.f32 %v3996, %v4004
      %v4012 = vsel %vm2646, %v4005, -inf
      %4013 = vmax.xlane.f32.xlu0 %v4012
      %v4014 = vpop.xlane.xlu0 %4013
      %v4015 = vsel %vm2646, %v4006, -inf
      %4016 = vmax.xlane.f32.xlu0 %v4015
      %v4017 = vpop.xlane.xlu0 %4016
      %v4018 = vsel %vm2646, %v4007, -inf
      %4019 = vmax.xlane.f32.xlu0 %v4018
      %v4020 = vpop.xlane.xlu0 %4019
      %v4021 = vsel %vm2646, %v4008, -inf
      %4022 = vmax.xlane.f32.xlu0 %v4021
      %v4023 = vpop.xlane.xlu0 %4022
      %v4024 = vsel %vm2646, %v4009, -inf
      %4025 = vmax.xlane.f32.xlu0 %v4024
      %v4026 = vpop.xlane.xlu0 %4025
      %v4027 = vsel %vm2646, %v4010, -inf
      %4028 = vmax.xlane.f32.xlu0 %v4027
      %v4029 = vpop.xlane.xlu0 %4028
      %v4030 = vsel %vm2665, %v4011, -inf
      %4031 = vmax.xlane.f32.xlu0 %v4030
      %v4032 = vpop.xlane.xlu0 %4031
      %v4033 = vsub.f32 %v4005, %v4014
      %v4034 = vsub.f32 %v4006, %v4017
      %v4035 = vsub.f32 %v4007, %v4020
      %v4036 = vsub.f32 %v4008, %v4023
      %v4037 = vsub.f32 %v4009, %v4026
      %v4038 = vsub.f32 %v4010, %v4029
      %v4039 = vsub.f32 %v4011, %v4032
      %v4040 = vmul.f32 %v4033, 1.442695
      %v4041 = vpow.pop %v4040
      %v4042 = vmul.f32 %v4034, 1.442695
      %v4043 = vpow.pop %v4042
      %v4044 = vmul.f32 %v4035, 1.442695
      %v4045 = vpow.pop %v4044
      %v4046 = vmul.f32 %v4036, 1.442695
      %v4047 = vpow.pop %v4046
      %v4048 = vmul.f32 %v4037, 1.442695
      %v4049 = vpow.pop %v4048
      %v4050 = vmul.f32 %v4038, 1.442695
      %v4051 = vpow.pop %v4050
      %v4052 = vmul.f32 %v4039, 1.442695
      %v4053 = vpow.pop %v4052
      %v4054 = vsel %vm2646, %v4041, 0.0
      %4055 = vadd.xlane.f32.xlu0 %v4054
      %v4056 = vpop.xlane.xlu0 %4055
      %v4057 = vsel %vm2646, %v4043, 0.0
      %4058 = vadd.xlane.f32.xlu0 %v4057
      %v4059 = vpop.xlane.xlu0 %4058
      %v4060 = vsel %vm2646, %v4045, 0.0
      %4061 = vadd.xlane.f32.xlu0 %v4060
      %v4062 = vpop.xlane.xlu0 %4061
      %v4063 = vsel %vm2646, %v4047, 0.0
      %4064 = vadd.xlane.f32.xlu0 %v4063
      %v4065 = vpop.xlane.xlu0 %4064
      %v4066 = vsel %vm2646, %v4049, 0.0
      %4067 = vadd.xlane.f32.xlu0 %v4066
      %v4068 = vpop.xlane.xlu0 %4067
      %v4069 = vsel %vm2646, %v4051, 0.0
      %4070 = vadd.xlane.f32.xlu0 %v4069
      %v4071 = vpop.xlane.xlu0 %4070
      %v4072 = vsel %vm2665, %v4053, 0.0
      %4073 = vadd.xlane.f32.xlu0 %v4072
      %v4074 = vpop.xlane.xlu0 %4073
      %v4075 = vrcp.pop %v4056
      %v4076 = vrcp.pop %v4059
      %v4077 = vrcp.pop %v4062
      %v4078 = vrcp.pop %v4065
      %v4079 = vrcp.pop %v4068
      %v4080 = vrcp.pop %v4071
      %v4081 = vrcp.pop %v4074
      %v4082 = vmul.f32 %v4041, %v4075
      %v4083 = vmul.f32 %v4043, %v4076
      %v4084 = vmul.f32 %v4045, %v4077
      %v4085 = vmul.f32 %v4047, %v4078
      %v4086 = vmul.f32 %v4049, %v4079
      %v4087 = vmul.f32 %v4051, %v4080
      %v4088 = vmul.f32 %v4053, %v4081
      %4089 = vrot.lane.b32.xlu0 %v2994, 96
      %v4090 = vpop.permute.xlu0 %4089
      %4091 = vrot.lane.b32.xlu0 %v2999, 96
      %v4092 = vpop.permute.xlu0 %4091
      %4093 = vrot.lane.b32.xlu0 %v3004, 96
      %v4094 = vpop.permute.xlu0 %4093
      %4095 = vrot.lane.b32.xlu0 %v3009, 96
      %v4096 = vpop.permute.xlu0 %4095
      %4097 = vrot.lane.b32.xlu0 %v3014, 96
      %v4098 = vpop.permute.xlu0 %4097
      %4099 = vrot.lane.b32.xlu0 %v3019, 96
      %v4100 = vpop.permute.xlu0 %4099
      %4101 = vrot.lane.b32.xlu0 %v3024, 96
      %v4102 = vpop.permute.xlu0 %4101
      %v4110 = vsel %vm2646, %v4082, 0
      %v4113 = vsel %vm2646, %v4083, 0
      %v4116 = vsel %vm2646, %v4084, 0
      %v4119 = vsel %vm2646, %v4085, 0
      %v4122 = vsel %vm2646, %v4086, 0
      %v4125 = vsel %vm2646, %v4087, 0
      %v4128 = vsel %vm2646, %v4088, 0
      %v4130 = vsel %vm1192, %v4102, 0
      %4132 = vmatprep.subr.mxu0 0.0
      %4133 = vmatpush1.msra.mxu0 %v4090
      %4134 = vmatprep.subr.mxu0 0.0
      %4135 = vmatpush1.msra.mxu0 %v4092
      %4136 = vmatprep.subr.mxu0 0.0
      %4137 = vmatpush1.msra.mxu0 %v4094
      %4138 = vmatprep.subr.mxu0 0.0
      %4139 = vmatpush1.msra.mxu0 %v4096
      %4140 = vmatprep.subr.mxu0 0.0
      %4141 = vmatpush1.msra.mxu0 %v4098
      %4142 = vmatprep.subr.mxu0 0.0
      %4143 = vmatpush1.msra.mxu0 %v4100
      %4144 = vmatprep.subr.mxu0 0.0
      %4145 = vmatpush1.msra.mxu0 %v4130
      %4146 = vmatprep.subr.mxu0 0.0
      %4147 = vmatpush1.msra.mxu0 0.0
      %4148 = vmatprep.subr.mxu0 0.0
      %4149 = vmatpush1.msra.mxu0 0.0
      %4150 = vmatprep.subr.mxu0 0.0
      %4151 = vmatpush1.msra.mxu0 0.0
      %4152 = vmatprep.subr.mxu0 0.0
      %4153 = vmatpush1.msra.mxu0 0.0
      %4154 = vmatprep.subr.mxu0 0.0
      %4155 = vmatpush1.msra.mxu0 0.0
      %4156 = vmatprep.subr.mxu0 0.0
      %4157 = vmatpush1.msra.mxu0 0.0
      %4158 = vmatprep.subr.mxu0 0.0
      %4159 = vmatpush1.msra.mxu0 0.0
      %4160 = vmatprep.subr.mxu0 0.0
      %4161 = vmatpush1.msra.mxu0 0.0
      %4162 = vmatprep.subr.mxu0 0.0
      %4163 = vmatpush1.msra.mxu0 0.0
      %4164 = vmatprep.subr.mxu0 0.0
      %4165 = vmatpush1.msra.mxu0 0.0
      %4166 = vmatprep.subr.mxu0 0.0
      %4167 = vmatpush1.msra.mxu0 0.0
      %4168 = vmatprep.subr.mxu0 0.0
      %4169 = vmatpush1.msra.mxu0 0.0
      %4170 = vmatprep.subr.mxu0 0.0
      %4171 = vmatpush1.msra.mxu0 0.0
      %4172 = vmatprep.subr.mxu0 0.0
      %4173 = vmatpush1.msra.mxu0 0.0
      %4174 = vmatprep.subr.mxu0 0.0
      %4175 = vmatpush1.msra.mxu0 0.0
      %4176 = vmatprep.subr.mxu0 0.0
      %4177 = vmatpush1.msra.mxu0 0.0
      %4178 = vmatprep.subr.mxu0 0.0
      %4179 = vmatpush1.msra.mxu0 0.0
      %4180 = vmatprep.subr.mxu0 0.0
      %4181 = vmatpush1.msra.mxu0 0.0
      %4182 = vmatprep.subr.mxu0 0.0
      %4183 = vmatpush1.msra.mxu0 0.0
      %4184 = vmatprep.subr.mxu0 0.0
      %4185 = vmatpush1.msra.mxu0 0.0
      %4186 = vmatprep.subr.mxu0 0.0
      %4187 = vmatpush1.msra.mxu0 0.0
      %4188 = vmatprep.subr.mxu0 0.0
      %4189 = vmatpush1.msra.mxu0 0.0
      %4190 = vmatprep.subr.mxu0 0.0
      %4191 = vmatpush1.msra.mxu0 0.0
      %4192 = vmatprep.subr.mxu0 0.0
      %4193 = vmatpush1.msra.mxu0 0.0
      %4194 = vmatprep.subr.mxu0 0.0
      %4195 = vmatpush1.msra.mxu0 0.0
      %4196 = vmatprep.mubr.f32.mxu0 0.0
      %4197 = vmatmul.mubr.f32.gmra.mrb[0].mxu0 %v4110
      %v4198 = vpop.f32.mrb[0].mxu0
      %v4199 = vadd.f32 0.0, %v4198
      %v4200 = vpop.f32.mrb[0].mxu0
      %4201 = vmatprep.mubr.f32.mxu0 0.0
      %4202 = vmatmul.mubr.f32.gmra.mrb[0].mxu0 %v4113
      %v4203 = vpop.f32.mrb[0].mxu0
      %v4204 = vadd.f32 0.0, %v4203
      %v4205 = vpop.f32.mrb[0].mxu0
      %4206 = vmatprep.mubr.f32.mxu0 0.0
      %4207 = vmatmul.mubr.f32.gmra.mrb[0].mxu0 %v4116
      %v4208 = vpop.f32.mrb[0].mxu0
      %v4209 = vadd.f32 0.0, %v4208
      %v4210 = vpop.f32.mrb[0].mxu0
      %4211 = vmatprep.mubr.f32.mxu0 0.0
      %4212 = vmatmul.mubr.f32.gmra.mrb[0].mxu0 %v4119
      %v4213 = vpop.f32.mrb[0].mxu0
      %v4214 = vadd.f32 0.0, %v4213
      %v4215 = vpop.f32.mrb[0].mxu0
      %4216 = vmatprep.mubr.f32.mxu0 0.0
      %4217 = vmatmul.mubr.f32.gmra.mrb[0].mxu0 %v4122
      %v4218 = vpop.f32.mrb[0].mxu0
      %v4219 = vadd.f32 0.0, %v4218
      %v4220 = vpop.f32.mrb[0].mxu0
      %4221 = vmatprep.mubr.f32.mxu0 0.0
      %4222 = vmatmul.mubr.f32.gmra.mrb[0].mxu0 %v4125
      %v4223 = vpop.f32.mrb[0].mxu0
      %v4224 = vadd.f32 0.0, %v4223
      %v4225 = vpop.f32.mrb[0].mxu0
      %4226 = vmatprep.mubr.f32.mxu0 0.0
      %4227 = vmatmul.mubr.f32.gmra.mrb[0].mxu0 %v4128
      %v4228 = vpop.f32.mrb[0].mxu0
      %v4229 = vadd.f32 0.0, %v4228
      %v4230 = vpop.f32.mrb[0].mxu0
      %4231 = vdwg.mxu0
      %4232 = vrot.lane.b32.xlu0 %v468, 112
      %v4233 = vpop.permute.xlu0 %4232
      %4234 = vrot.lane.b32.xlu0 %v469, 112
      %v4235 = vpop.permute.xlu0 %4234
      %4236 = vrot.lane.b32.xlu0 %v470, 112
      %v4237 = vpop.permute.xlu0 %4236
      %4238 = vrot.lane.b32.xlu0 %v471, 112
      %v4239 = vpop.permute.xlu0 %4238
      %4240 = vrot.lane.b32.xlu0 %v472, 112
      %v4241 = vpop.permute.xlu0 %4240
      %4242 = vrot.lane.b32.xlu0 %v473, 112
      %v4243 = vpop.permute.xlu0 %4242
      %4244 = vrot.lane.b32.xlu0 %v474, 112
      %v4245 = vpop.permute.xlu0 %4244
      %v4253 = vadd.f32 %v4199, %v4233
      %v4254 = vadd.f32 %v4204, %v4235
      %v4255 = vadd.f32 %v4209, %v4237
      %v4256 = vadd.f32 %v4214, %v4239
      %v4257 = vadd.f32 %v4219, %v4241
      %v4258 = vadd.f32 %v4224, %v4243
      %v4259 = vadd.f32 %v4229, %v4245
      %s4260 = scalar_lea.vmem %s1, 16
      %v4261 = vld [vmem:[%s4260] sm:$0xff]
      %s4262 = scalar_lea.vmem %s2, 2
      %v4263 = vld [vmem:[%s4262] sm:$0x1]
      %v4265 = vlaneseq
      %v4266 = vshrl.u32 %v4265, 7
      %v4267 = vsub.s32 0, %v4266
      %v4268 = vrot.slane %v4263, %v4267
      %v4271 = vsel %vm659, %v4253, 0
      %v4274 = vsel %vm659, %v4254, 0
      %v4277 = vsel %vm659, %v4255, 0
      %v4280 = vsel %vm659, %v4256, 0
      %v4283 = vsel %vm659, %v4257, 0
      %v4286 = vsel %vm659, %v4258, 0
      %v4289 = vsel %vm659, %v4259, 0
      %4291 = vmatprep.subr.mxu0 0.0
      %4292 = vmatpush1.msra.mxu0 %v4261
      %4293 = vmatprep.subr.mxu0 0.0
      %4294 = vmatpush1.msra.mxu0 0.0
      %4295 = vmatprep.subr.mxu0 0.0
      %4296 = vmatpush1.msra.mxu0 0.0
      %4297 = vmatprep.subr.mxu0 0.0
      %4298 = vmatpush1.msra.mxu0 0.0
      %4299 = vmatprep.subr.mxu0 0.0
      %4300 = vmatpush1.msra.mxu0 0.0
      %4301 = vmatprep.subr.mxu0 0.0
      %4302 = vmatpush1.msra.mxu0 0.0
      %4303 = vmatprep.subr.mxu0 0.0
      %4304 = vmatpush1.msra.mxu0 0.0
      %4305 = vmatprep.subr.mxu0 0.0
      %4306 = vmatpush1.msra.mxu0 0.0
      %4307 = vmatprep.subr.mxu0 0.0
      %4308 = vmatpush1.msra.mxu0 0.0
      %4309 = vmatprep.subr.mxu0 0.0
      %4310 = vmatpush1.msra.mxu0 0.0
      %4311 = vmatprep.subr.mxu0 0.0
      %4312 = vmatpush1.msra.mxu0 0.0
      %4313 = vmatprep.subr.mxu0 0.0
      %4314 = vmatpush1.msra.mxu0 0.0
      %4315 = vmatprep.subr.mxu0 0.0
      %4316 = vmatpush1.msra.mxu0 0.0
      %4317 = vmatprep.subr.mxu0 0.0
      %4318 = vmatpush1.msra.mxu0 0.0
      %4319 = vmatprep.subr.mxu0 0.0
      %4320 = vmatpush1.msra.mxu0 0.0
      %4321 = vmatprep.subr.mxu0 0.0
      %4322 = vmatpush1.msra.mxu0 0.0
      %4323 = vmatprep.subr.mxu0 0.0
      %4324 = vmatpush1.msra.mxu0 0.0
      %4325 = vmatprep.subr.mxu0 0.0
      %4326 = vmatpush1.msra.mxu0 0.0
      %4327 = vmatprep.subr.mxu0 0.0
      %4328 = vmatpush1.msra.mxu0 0.0
      %4329 = vmatprep.subr.mxu0 0.0
      %4330 = vmatpush1.msra.mxu0 0.0
      %4331 = vmatprep.subr.mxu0 0.0
      %4332 = vmatpush1.msra.mxu0 0.0
      %4333 = vmatprep.subr.mxu0 0.0
      %4334 = vmatpush1.msra.mxu0 0.0
      %4335 = vmatprep.subr.mxu0 0.0
      %4336 = vmatpush1.msra.mxu0 0.0
      %4337 = vmatprep.subr.mxu0 0.0
      %4338 = vmatpush1.msra.mxu0 0.0
      %4339 = vmatprep.subr.mxu0 0.0
      %4340 = vmatpush1.msra.mxu0 0.0
      %4341 = vmatprep.subr.mxu0 0.0
      %4342 = vmatpush1.msra.mxu0 0.0
      %4343 = vmatprep.subr.mxu0 0.0
      %4344 = vmatpush1.msra.mxu0 0.0
      %4345 = vmatprep.subr.mxu0 0.0
      %4346 = vmatpush1.msra.mxu0 0.0
      %4347 = vmatprep.subr.mxu0 0.0
      %4348 = vmatpush1.msra.mxu0 0.0
      %4349 = vmatprep.subr.mxu0 0.0
      %4350 = vmatpush1.msra.mxu0 0.0
      %4351 = vmatprep.subr.mxu0 0.0
      %4352 = vmatpush1.msra.mxu0 0.0
      %4353 = vmatprep.subr.mxu0 0.0
      %4354 = vmatpush1.msra.mxu0 0.0
      %4355 = vmatprep.mubr.f32.mxu0 0.0
      %4356 = vmatmul.mubr.f32.gmra.mrb[0].mxu0 %v4271
      %v4357 = vpop.f32.mrb[0].mxu0
      %v4358 = vadd.f32 %v4268, %v4357
      %v4359 = vpop.f32.mrb[0].mxu0
      %4360 = vmatprep.mubr.f32.mxu0 0.0
      %4361 = vmatmul.mubr.f32.gmra.mrb[0].mxu0 %v4274
      %v4362 = vpop.f32.mrb[0].mxu0
      %v4363 = vadd.f32 %v4268, %v4362
      %v4364 = vpop.f32.mrb[0].mxu0
      %4365 = vmatprep.mubr.f32.mxu0 0.0
      %4366 = vmatmul.mubr.f32.gmra.mrb[0].mxu0 %v4277
      %v4367 = vpop.f32.mrb[0].mxu0
      %v4368 = vadd.f32 %v4268, %v4367
      %v4369 = vpop.f32.mrb[0].mxu0
      %4370 = vmatprep.mubr.f32.mxu0 0.0
      %4371 = vmatmul.mubr.f32.gmra.mrb[0].mxu0 %v4280
      %v4372 = vpop.f32.mrb[0].mxu0
      %v4373 = vadd.f32 %v4268, %v4372
      %v4374 = vpop.f32.mrb[0].mxu0
      %4375 = vmatprep.mubr.f32.mxu0 0.0
      %4376 = vmatmul.mubr.f32.gmra.mrb[0].mxu0 %v4283
      %v4377 = vpop.f32.mrb[0].mxu0
      %v4378 = vadd.f32 %v4268, %v4377
      %v4379 = vpop.f32.mrb[0].mxu0
      %4380 = vmatprep.mubr.f32.mxu0 0.0
      %4381 = vmatmul.mubr.f32.gmra.mrb[0].mxu0 %v4286
      %v4382 = vpop.f32.mrb[0].mxu0
      %v4383 = vadd.f32 %v4268, %v4382
      %v4384 = vpop.f32.mrb[0].mxu0
      %4385 = vmatprep.mubr.f32.mxu0 0.0
      %4386 = vmatmul.mubr.f32.gmra.mrb[0].mxu0 %v4289
      %v4387 = vpop.f32.mrb[0].mxu0
      %v4388 = vadd.f32 %v4268, %v4387
      %v4389 = vpop.f32.mrb[0].mxu0
      %4390 = vdwg.mxu0
      %s4391 = scalar_lea.vmem %s3, 64
      %v4392 = vld [vmem:[%s4391] sm:$0xff]
      %v4393 = vld [vmem:[%s4391 + $0x8] sm:$0xff]
      %v4394 = vld [vmem:[%s4391 + $0x10] sm:$0xff]
      %v4395 = vld [vmem:[%s4391 + $0x18] sm:$0x1]
      %v4399 = vrot.slane %v4378, 1
      %v4400 = vrot.slane %v4383, 1
      %v4401 = vsel %vm788, %v4399, %v4400
      %v4402 = vrot.slane %v4388, 1
      %v4403 = vsel %vm788, %v4400, %v4402
      %v4406 = vmul.f32 %v4401, %v799
      %v4407 = vmul.f32 %v4403, %v804
      %v4408 = vmul.f32 %v4358, %v809
      %v4409 = vmul.f32 %v4363, %v814
      %v4410 = vmul.f32 %v4368, %v819
      %v4411 = vmul.f32 %v4373, %v824
      %v4412 = vmul.f32 %v4378, %v829
      %v4413 = vlaneseq
      %v4414 = vshrl.u32 %v4413, 7
      %v4415 = vsub.s32 0, %v4414
      %v4416 = vrot.slane %v4392, %v4415
      %v4417 = vmul.f32 %v4406, %v4416
      %v4418 = vmul.f32 %v4407, %v4416
      %v4419 = vmul.f32 %v4408, %v4416
      %v4420 = vmul.f32 %v4409, %v4416
      %v4421 = vmul.f32 %v4410, %v4416
      %v4422 = vmul.f32 %v4411, %v4416
      %v4423 = vmul.f32 %v4412, %v4416
      %v4424 = vadd.f32 %v4417, 0.0
      %v4425 = vadd.f32 %v4418, 0.0
      %v4426 = vadd.f32 %v4419, 0.0
      %v4427 = vadd.f32 %v4420, 0.0
      %v4428 = vadd.f32 %v4421, 0.0
      %v4429 = vadd.f32 %v4422, 0.0
      %v4430 = vadd.f32 %v4423, 0.0
      %v4431 = vrot.slane %v4378, 2
      %v4432 = vrot.slane %v4383, 2
      %v4433 = vsel %vm856, %v4431, %v4432
      %v4434 = vrot.slane %v4388, 2
      %v4435 = vsel %vm856, %v4432, %v4434
      %v4442 = vrot.slane %v4358, 1
      %v4443 = vrot.slane %v4363, 1
      %v4444 = vsel %vm788, %v4442, %v4443
      %v4445 = vrot.slane %v4368, 1
      %v4446 = vsel %vm788, %v4443, %v4445
      %v4447 = vrot.slane %v4373, 1
      %v4448 = vsel %vm788, %v4445, %v4447
      %v4449 = vsel %vm788, %v4447, %v4399
      %v4456 = vsel %vm788, %v4435, %v4442
      %v4457 = vmul.f32 %v4433, %v886
      %v4458 = vmul.f32 %v4456, %v891
      %v4459 = vmul.f32 %v4444, %v896
      %v4460 = vmul.f32 %v4446, %v901
      %v4461 = vmul.f32 %v4448, %v906
      %v4462 = vmul.f32 %v4449, %v911
      %v4463 = vmul.f32 %v4399, %v916
      %v4464 = vlaneseq
      %v4465 = vshrl.u32 %v4464, 7
      %v4466 = vsub.s32 1, %v4465
      %v4467 = vrot.slane %v4392, %v4466
      %v4468 = vmul.f32 %v4457, %v4467
      %v4469 = vmul.f32 %v4458, %v4467
      %v4470 = vmul.f32 %v4459, %v4467
      %v4471 = vmul.f32 %v4460, %v4467
      %v4472 = vmul.f32 %v4461, %v4467
      %v4473 = vmul.f32 %v4462, %v4467
      %v4474 = vmul.f32 %v4463, %v4467
      %v4475 = vadd.f32 %v4424, %v4468
      %v4476 = vadd.f32 %v4425, %v4469
      %v4477 = vadd.f32 %v4426, %v4470
      %v4478 = vadd.f32 %v4427, %v4471
      %v4479 = vadd.f32 %v4428, %v4472
      %v4480 = vadd.f32 %v4429, %v4473
      %v4481 = vadd.f32 %v4430, %v4474
      %v4482 = vrot.slane %v4378, 3
      %v4483 = vrot.slane %v4383, 3
      %v4484 = vsel %vm943, %v4482, %v4483
      %v4485 = vrot.slane %v4388, 3
      %v4486 = vsel %vm943, %v4483, %v4485
      %v4489 = vrot.slane %v4358, 2
      %v4490 = vrot.slane %v4363, 2
      %v4491 = vsel %vm856, %v4489, %v4490
      %v4492 = vrot.slane %v4368, 2
      %v4493 = vsel %vm856, %v4490, %v4492
      %v4494 = vrot.slane %v4373, 2
      %v4495 = vsel %vm856, %v4492, %v4494
      %v4496 = vsel %vm856, %v4494, %v4431
      %v4503 = vsel %vm856, %v4486, %v4489
      %v4504 = vmul.f32 %v4484, %v969
      %v4505 = vmul.f32 %v4503, %v974
      %v4506 = vmul.f32 %v4491, %v979
      %v4507 = vmul.f32 %v4493, %v984
      %v4508 = vmul.f32 %v4495, %v989
      %v4509 = vmul.f32 %v4496, %v994
      %v4510 = vmul.f32 %v4431, %v999
      %v4511 = vlaneseq
      %v4512 = vshrl.u32 %v4511, 7
      %v4513 = vsub.s32 2, %v4512
      %v4514 = vrot.slane %v4392, %v4513
      %v4515 = vmul.f32 %v4504, %v4514
      %v4516 = vmul.f32 %v4505, %v4514
      %v4517 = vmul.f32 %v4506, %v4514
      %v4518 = vmul.f32 %v4507, %v4514
      %v4519 = vmul.f32 %v4508, %v4514
      %v4520 = vmul.f32 %v4509, %v4514
      %v4521 = vmul.f32 %v4510, %v4514
      %v4522 = vadd.f32 %v4475, %v4515
      %v4523 = vadd.f32 %v4476, %v4516
      %v4524 = vadd.f32 %v4477, %v4517
      %v4525 = vadd.f32 %v4478, %v4518
      %v4526 = vadd.f32 %v4479, %v4519
      %v4527 = vadd.f32 %v4480, %v4520
      %v4528 = vadd.f32 %v4481, %v4521
      %v4529 = vrot.slane %v4378, 4
      %v4530 = vrot.slane %v4383, 4
      %v4531 = vsel %vm1026, %v4529, %v4530
      %v4532 = vrot.slane %v4388, 4
      %v4533 = vsel %vm1026, %v4530, %v4532
      %v4536 = vrot.slane %v4358, 3
      %v4537 = vrot.slane %v4363, 3
      %v4538 = vsel %vm943, %v4536, %v4537
      %v4539 = vrot.slane %v4368, 3
      %v4540 = vsel %vm943, %v4537, %v4539
      %v4541 = vrot.slane %v4373, 3
      %v4542 = vsel %vm943, %v4539, %v4541
      %v4543 = vsel %vm943, %v4541, %v4482
      %v4550 = vsel %vm943, %v4533, %v4536
      %v4551 = vmul.f32 %v4531, %v1052
      %v4552 = vmul.f32 %v4550, %v1057
      %v4553 = vmul.f32 %v4538, %v1062
      %v4554 = vmul.f32 %v4540, %v1067
      %v4555 = vmul.f32 %v4542, %v1072
      %v4556 = vmul.f32 %v4543, %v1077
      %v4557 = vmul.f32 %v4482, %v1082
      %v4558 = vlaneseq
      %v4559 = vshrl.u32 %v4558, 7
      %v4560 = vsub.s32 3, %v4559
      %v4561 = vrot.slane %v4392, %v4560
      %v4562 = vmul.f32 %v4551, %v4561
      %v4563 = vmul.f32 %v4552, %v4561
      %v4564 = vmul.f32 %v4553, %v4561
      %v4565 = vmul.f32 %v4554, %v4561
      %v4566 = vmul.f32 %v4555, %v4561
      %v4567 = vmul.f32 %v4556, %v4561
      %v4568 = vmul.f32 %v4557, %v4561
      %v4569 = vadd.f32 %v4522, %v4562
      %v4570 = vadd.f32 %v4523, %v4563
      %v4571 = vadd.f32 %v4524, %v4564
      %v4572 = vadd.f32 %v4525, %v4565
      %v4573 = vadd.f32 %v4526, %v4566
      %v4574 = vadd.f32 %v4527, %v4567
      %v4575 = vadd.f32 %v4528, %v4568
      %v4576 = vrot.slane %v4378, 5
      %v4577 = vrot.slane %v4383, 5
      %v4578 = vsel %vm1109, %v4576, %v4577
      %v4579 = vrot.slane %v4388, 5
      %v4580 = vsel %vm1109, %v4577, %v4579
      %v4583 = vrot.slane %v4358, 4
      %v4584 = vrot.slane %v4363, 4
      %v4585 = vsel %vm1026, %v4583, %v4584
      %v4586 = vrot.slane %v4368, 4
      %v4587 = vsel %vm1026, %v4584, %v4586
      %v4588 = vrot.slane %v4373, 4
      %v4589 = vsel %vm1026, %v4586, %v4588
      %v4590 = vsel %vm1026, %v4588, %v4529
      %v4597 = vsel %vm1026, %v4580, %v4583
      %v4598 = vmul.f32 %v4578, %v1135
      %v4599 = vmul.f32 %v4597, %v1140
      %v4600 = vmul.f32 %v4585, %v1145
      %v4601 = vmul.f32 %v4587, %v1150
      %v4602 = vmul.f32 %v4589, %v1155
      %v4603 = vmul.f32 %v4590, %v1160
      %v4604 = vmul.f32 %v4529, %v1165
      %v4605 = vlaneseq
      %v4606 = vshrl.u32 %v4605, 7
      %v4607 = vsub.s32 4, %v4606
      %v4608 = vrot.slane %v4392, %v4607
      %v4609 = vmul.f32 %v4598, %v4608
      %v4610 = vmul.f32 %v4599, %v4608
      %v4611 = vmul.f32 %v4600, %v4608
      %v4612 = vmul.f32 %v4601, %v4608
      %v4613 = vmul.f32 %v4602, %v4608
      %v4614 = vmul.f32 %v4603, %v4608
      %v4615 = vmul.f32 %v4604, %v4608
      %v4616 = vadd.f32 %v4569, %v4609
      %v4617 = vadd.f32 %v4570, %v4610
      %v4618 = vadd.f32 %v4571, %v4611
      %v4619 = vadd.f32 %v4572, %v4612
      %v4620 = vadd.f32 %v4573, %v4613
      %v4621 = vadd.f32 %v4574, %v4614
      %v4622 = vadd.f32 %v4575, %v4615
      %v4623 = vrot.slane %v4358, 7
      %v4624 = vrot.slane %v4363, 7
      %v4625 = vsel %vm1192, %v4623, %v4624
      %v4626 = vrot.slane %v4368, 7
      %v4627 = vsel %vm1192, %v4624, %v4626
      %v4628 = vrot.slane %v4373, 7
      %v4629 = vsel %vm1192, %v4626, %v4628
      %v4630 = vrot.slane %v4378, 7
      %v4631 = vsel %vm1192, %v4628, %v4630
      %v4638 = vsel %vm1192, %v4388, %v4623
      %v4639 = vmul.f32 %v4383, %v1212
      %v4640 = vmul.f32 %v4638, %v1217
      %v4641 = vmul.f32 %v4625, %v1222
      %v4642 = vmul.f32 %v4627, %v1227
      %v4643 = vmul.f32 %v4629, %v1232
      %v4644 = vmul.f32 %v4631, %v1237
      %v4645 = vmul.f32 %v4630, %v1242
      %v4646 = vlaneseq
      %v4647 = vshrl.u32 %v4646, 7
      %v4648 = vsub.s32 5, %v4647
      %v4649 = vrot.slane %v4392, %v4648
      %v4650 = vmul.f32 %v4639, %v4649
      %v4651 = vmul.f32 %v4640, %v4649
      %v4652 = vmul.f32 %v4641, %v4649
      %v4653 = vmul.f32 %v4642, %v4649
      %v4654 = vmul.f32 %v4643, %v4649
      %v4655 = vmul.f32 %v4644, %v4649
      %v4656 = vmul.f32 %v4645, %v4649
      %v4657 = vadd.f32 %v4616, %v4650
      %v4658 = vadd.f32 %v4617, %v4651
      %v4659 = vadd.f32 %v4618, %v4652
      %v4660 = vadd.f32 %v4619, %v4653
      %v4661 = vadd.f32 %v4620, %v4654
      %v4662 = vadd.f32 %v4621, %v4655
      %v4663 = vadd.f32 %v4622, %v4656
      %v4664 = vmul.f32 %v4403, %v1272
      %v4665 = vmul.f32 %v4358, %v1277
      %v4666 = vmul.f32 %v4363, %v1282
      %v4667 = vmul.f32 %v4368, %v1287
      %v4668 = vmul.f32 %v4373, %v1292
      %v4669 = vmul.f32 %v4378, %v1297
      %v4670 = vmul.f32 %v4383, %v1302
      %v4671 = vlaneseq
      %v4672 = vshrl.u32 %v4671, 7
      %v4673 = vsub.s32 6, %v4672
      %v4674 = vrot.slane %v4392, %v4673
      %v4675 = vmul.f32 %v4664, %v4674
      %v4676 = vmul.f32 %v4665, %v4674
      %v4677 = vmul.f32 %v4666, %v4674
      %v4678 = vmul.f32 %v4667, %v4674
      %v4679 = vmul.f32 %v4668, %v4674
      %v4680 = vmul.f32 %v4669, %v4674
      %v4681 = vmul.f32 %v4670, %v4674
      %v4682 = vadd.f32 %v4657, %v4675
      %v4683 = vadd.f32 %v4658, %v4676
      %v4684 = vadd.f32 %v4659, %v4677
      %v4685 = vadd.f32 %v4660, %v4678
      %v4686 = vadd.f32 %v4661, %v4679
      %v4687 = vadd.f32 %v4662, %v4680
      %v4688 = vadd.f32 %v4663, %v4681
      %v4690 = vmul.f32 %v4456, %v1333
      %v4691 = vmul.f32 %v4444, %v1338
      %v4692 = vmul.f32 %v4446, %v1343
      %v4693 = vmul.f32 %v4448, %v1348
      %v4694 = vmul.f32 %v4449, %v1353
      %v4695 = vmul.f32 %v4401, %v1358
      %v4696 = vmul.f32 %v4400, %v1363
      %v4697 = vlaneseq
      %v4698 = vshrl.u32 %v4697, 7
      %v4699 = vsub.s32 7, %v4698
      %v4700 = vrot.slane %v4392, %v4699
      %v4701 = vmul.f32 %v4690, %v4700
      %v4702 = vmul.f32 %v4691, %v4700
      %v4703 = vmul.f32 %v4692, %v4700
      %v4704 = vmul.f32 %v4693, %v4700
      %v4705 = vmul.f32 %v4694, %v4700
      %v4706 = vmul.f32 %v4695, %v4700
      %v4707 = vmul.f32 %v4696, %v4700
      %v4708 = vadd.f32 %v4682, %v4701
      %v4709 = vadd.f32 %v4683, %v4702
      %v4710 = vadd.f32 %v4684, %v4703
      %v4711 = vadd.f32 %v4685, %v4704
      %v4712 = vadd.f32 %v4686, %v4705
      %v4713 = vadd.f32 %v4687, %v4706
      %v4714 = vadd.f32 %v4688, %v4707
      %v4716 = vmul.f32 %v4503, %v1394
      %v4717 = vmul.f32 %v4491, %v1399
      %v4718 = vmul.f32 %v4493, %v1404
      %v4719 = vmul.f32 %v4495, %v1409
      %v4720 = vmul.f32 %v4496, %v1414
      %v4721 = vmul.f32 %v4433, %v1419
      %v4722 = vmul.f32 %v4432, %v1424
      %v4723 = vlaneseq
      %v4724 = vshrl.u32 %v4723, 7
      %v4725 = vsub.s32 0, %v4724
      %v4726 = vrot.slane %v4393, %v4725
      %v4727 = vmul.f32 %v4716, %v4726
      %v4728 = vmul.f32 %v4717, %v4726
      %v4729 = vmul.f32 %v4718, %v4726
      %v4730 = vmul.f32 %v4719, %v4726
      %v4731 = vmul.f32 %v4720, %v4726
      %v4732 = vmul.f32 %v4721, %v4726
      %v4733 = vmul.f32 %v4722, %v4726
      %v4734 = vadd.f32 %v4708, %v4727
      %v4735 = vadd.f32 %v4709, %v4728
      %v4736 = vadd.f32 %v4710, %v4729
      %v4737 = vadd.f32 %v4711, %v4730
      %v4738 = vadd.f32 %v4712, %v4731
      %v4739 = vadd.f32 %v4713, %v4732
      %v4740 = vadd.f32 %v4714, %v4733
      %v4742 = vmul.f32 %v4550, %v1455
      %v4743 = vmul.f32 %v4538, %v1460
      %v4744 = vmul.f32 %v4540, %v1465
      %v4745 = vmul.f32 %v4542, %v1470
      %v4746 = vmul.f32 %v4543, %v1475
      %v4747 = vmul.f32 %v4484, %v1480
      %v4748 = vmul.f32 %v4483, %v1485
      %v4749 = vlaneseq
      %v4750 = vshrl.u32 %v4749, 7
      %v4751 = vsub.s32 1, %v4750
      %v4752 = vrot.slane %v4393, %v4751
      %v4753 = vmul.f32 %v4742, %v4752
      %v4754 = vmul.f32 %v4743, %v4752
      %v4755 = vmul.f32 %v4744, %v4752
      %v4756 = vmul.f32 %v4745, %v4752
      %v4757 = vmul.f32 %v4746, %v4752
      %v4758 = vmul.f32 %v4747, %v4752
      %v4759 = vmul.f32 %v4748, %v4752
      %v4760 = vadd.f32 %v4734, %v4753
      %v4761 = vadd.f32 %v4735, %v4754
      %v4762 = vadd.f32 %v4736, %v4755
      %v4763 = vadd.f32 %v4737, %v4756
      %v4764 = vadd.f32 %v4738, %v4757
      %v4765 = vadd.f32 %v4739, %v4758
      %v4766 = vadd.f32 %v4740, %v4759
      %v4767 = vrot.slane %v4383, 7
      %v4768 = vrot.slane %v4388, 7
      %v4769 = vsel %vm1192, %v4767, %v4768
      %v4771 = vrot.slane %v4358, 6
      %v4772 = vrot.slane %v4363, 6
      %v4773 = vsel %vm1516, %v4771, %v4772
      %v4774 = vrot.slane %v4368, 6
      %v4775 = vsel %vm1516, %v4772, %v4774
      %v4776 = vrot.slane %v4373, 6
      %v4777 = vsel %vm1516, %v4774, %v4776
      %v4778 = vrot.slane %v4378, 6
      %v4779 = vsel %vm1516, %v4776, %v4778
      %v4780 = vrot.slane %v4383, 6
      %v4781 = vsel %vm1516, %v4778, %v4780
      %v4789 = vsel %vm1516, %v4769, %v4771
      %v4790 = vmul.f32 %v4789, %v1539
      %v4791 = vmul.f32 %v4773, %v1544
      %v4792 = vmul.f32 %v4775, %v1549
      %v4793 = vmul.f32 %v4777, %v1554
      %v4794 = vmul.f32 %v4779, %v1559
      %v4795 = vmul.f32 %v4781, %v1564
      %v4796 = vmul.f32 %v4780, %v1569
      %v4797 = vlaneseq
      %v4798 = vshrl.u32 %v4797, 7
      %v4799 = vsub.s32 2, %v4798
      %v4800 = vrot.slane %v4393, %v4799
      %v4801 = vmul.f32 %v4790, %v4800
      %v4802 = vmul.f32 %v4791, %v4800
      %v4803 = vmul.f32 %v4792, %v4800
      %v4804 = vmul.f32 %v4793, %v4800
      %v4805 = vmul.f32 %v4794, %v4800
      %v4806 = vmul.f32 %v4795, %v4800
      %v4807 = vmul.f32 %v4796, %v4800
      %v4808 = vadd.f32 %v4760, %v4801
      %v4809 = vadd.f32 %v4761, %v4802
      %v4810 = vadd.f32 %v4762, %v4803
      %v4811 = vadd.f32 %v4763, %v4804
      %v4812 = vadd.f32 %v4764, %v4805
      %v4813 = vadd.f32 %v4765, %v4806
      %v4814 = vadd.f32 %v4766, %v4807
      %v4815 = vsel %vm1192, %v4630, %v4767
      %v4818 = vmul.f32 %v4638, %v1602
      %v4819 = vmul.f32 %v4625, %v1607
      %v4820 = vmul.f32 %v4627, %v1612
      %v4821 = vmul.f32 %v4629, %v1617
      %v4822 = vmul.f32 %v4631, %v1622
      %v4823 = vmul.f32 %v4815, %v1627
      %v4824 = vmul.f32 %v4767, %v1632
      %v4825 = vlaneseq
      %v4826 = vshrl.u32 %v4825, 7
      %v4827 = vsub.s32 3, %v4826
      %v4828 = vrot.slane %v4393, %v4827
      %v4829 = vmul.f32 %v4818, %v4828
      %v4830 = vmul.f32 %v4819, %v4828
      %v4831 = vmul.f32 %v4820, %v4828
      %v4832 = vmul.f32 %v4821, %v4828
      %v4833 = vmul.f32 %v4822, %v4828
      %v4834 = vmul.f32 %v4823, %v4828
      %v4835 = vmul.f32 %v4824, %v4828
      %v4836 = vadd.f32 %v4808, %v4829
      %v4837 = vadd.f32 %v4809, %v4830
      %v4838 = vadd.f32 %v4810, %v4831
      %v4839 = vadd.f32 %v4811, %v4832
      %v4840 = vadd.f32 %v4812, %v4833
      %v4841 = vadd.f32 %v4813, %v4834
      %v4842 = vadd.f32 %v4814, %v4835
      %v4843 = vmul.f32 %v4358, %v1662
      %v4844 = vmul.f32 %v4363, %v1667
      %v4845 = vmul.f32 %v4368, %v1672
      %v4846 = vmul.f32 %v4373, %v1677
      %v4847 = vmul.f32 %v4378, %v1682
      %v4848 = vmul.f32 %v4383, %v1687
      %v4849 = vmul.f32 %v4388, %v1692
      %v4850 = vlaneseq
      %v4851 = vshrl.u32 %v4850, 7
      %v4852 = vsub.s32 4, %v4851
      %v4853 = vrot.slane %v4393, %v4852
      %v4854 = vmul.f32 %v4843, %v4853
      %v4855 = vmul.f32 %v4844, %v4853
      %v4856 = vmul.f32 %v4845, %v4853
      %v4857 = vmul.f32 %v4846, %v4853
      %v4858 = vmul.f32 %v4847, %v4853
      %v4859 = vmul.f32 %v4848, %v4853
      %v4860 = vmul.f32 %v4849, %v4853
      %v4861 = vadd.f32 %v4836, %v4854
      %v4862 = vadd.f32 %v4837, %v4855
      %v4863 = vadd.f32 %v4838, %v4856
      %v4864 = vadd.f32 %v4839, %v4857
      %v4865 = vadd.f32 %v4840, %v4858
      %v4866 = vadd.f32 %v4841, %v4859
      %v4867 = vadd.f32 %v4842, %v4860
      %v4868 = vmul.f32 %v4444, %v1722
      %v4869 = vmul.f32 %v4446, %v1727
      %v4870 = vmul.f32 %v4448, %v1732
      %v4871 = vmul.f32 %v4449, %v1737
      %v4872 = vmul.f32 %v4401, %v1742
      %v4873 = vmul.f32 %v4403, %v1747
      %v4874 = vmul.f32 %v4358, %v1752
      %v4875 = vlaneseq
      %v4876 = vshrl.u32 %v4875, 7
      %v4877 = vsub.s32 5, %v4876
      %v4878 = vrot.slane %v4393, %v4877
      %v4879 = vmul.f32 %v4868, %v4878
      %v4880 = vmul.f32 %v4869, %v4878
      %v4881 = vmul.f32 %v4870, %v4878
      %v4882 = vmul.f32 %v4871, %v4878
      %v4883 = vmul.f32 %v4872, %v4878
      %v4884 = vmul.f32 %v4873, %v4878
      %v4885 = vmul.f32 %v4874, %v4878
      %v4886 = vadd.f32 %v4861, %v4879
      %v4887 = vadd.f32 %v4862, %v4880
      %v4888 = vadd.f32 %v4863, %v4881
      %v4889 = vadd.f32 %v4864, %v4882
      %v4890 = vadd.f32 %v4865, %v4883
      %v4891 = vadd.f32 %v4866, %v4884
      %v4892 = vadd.f32 %v4867, %v4885
      %v4893 = vmul.f32 %v4491, %v1782
      %v4894 = vmul.f32 %v4493, %v1787
      %v4895 = vmul.f32 %v4495, %v1792
      %v4896 = vmul.f32 %v4496, %v1797
      %v4897 = vmul.f32 %v4433, %v1802
      %v4898 = vmul.f32 %v4456, %v1807
      %v4899 = vmul.f32 %v4442, %v1812
      %v4900 = vlaneseq
      %v4901 = vshrl.u32 %v4900, 7
      %v4902 = vsub.s32 6, %v4901
      %v4903 = vrot.slane %v4393, %v4902
      %v4904 = vmul.f32 %v4893, %v4903
      %v4905 = vmul.f32 %v4894, %v4903
      %v4906 = vmul.f32 %v4895, %v4903
      %v4907 = vmul.f32 %v4896, %v4903
      %v4908 = vmul.f32 %v4897, %v4903
      %v4909 = vmul.f32 %v4898, %v4903
      %v4910 = vmul.f32 %v4899, %v4903
      %v4911 = vadd.f32 %v4886, %v4904
      %v4912 = vadd.f32 %v4887, %v4905
      %v4913 = vadd.f32 %v4888, %v4906
      %v4914 = vadd.f32 %v4889, %v4907
      %v4915 = vadd.f32 %v4890, %v4908
      %v4916 = vadd.f32 %v4891, %v4909
      %v4917 = vadd.f32 %v4892, %v4910
      %v4918 = vrot.slane %v4358, 5
      %v4919 = vrot.slane %v4363, 5
      %v4920 = vsel %vm1109, %v4918, %v4919
      %v4921 = vrot.slane %v4368, 5
      %v4922 = vsel %vm1109, %v4919, %v4921
      %v4923 = vrot.slane %v4373, 5
      %v4924 = vsel %vm1109, %v4921, %v4923
      %v4925 = vsel %vm1109, %v4923, %v4576
      %v4930 = vmul.f32 %v4920, %v1854
      %v4931 = vmul.f32 %v4922, %v1859
      %v4932 = vmul.f32 %v4924, %v1864
      %v4933 = vmul.f32 %v4925, %v1869
      %v4934 = vmul.f32 %v4578, %v1874
      %v4935 = vmul.f32 %v4597, %v1879
      %v4936 = vmul.f32 %v4583, %v1884
      %v4937 = vlaneseq
      %v4938 = vshrl.u32 %v4937, 7
      %v4939 = vsub.s32 7, %v4938
      %v4940 = vrot.slane %v4393, %v4939
      %v4941 = vmul.f32 %v4930, %v4940
      %v4942 = vmul.f32 %v4931, %v4940
      %v4943 = vmul.f32 %v4932, %v4940
      %v4944 = vmul.f32 %v4933, %v4940
      %v4945 = vmul.f32 %v4934, %v4940
      %v4946 = vmul.f32 %v4935, %v4940
      %v4947 = vmul.f32 %v4936, %v4940
      %v4948 = vadd.f32 %v4911, %v4941
      %v4949 = vadd.f32 %v4912, %v4942
      %v4950 = vadd.f32 %v4913, %v4943
      %v4951 = vadd.f32 %v4914, %v4944
      %v4952 = vadd.f32 %v4915, %v4945
      %v4953 = vadd.f32 %v4916, %v4946
      %v4954 = vadd.f32 %v4917, %v4947
      %v4955 = vrot.slane %v4388, 6
      %v4956 = vsel %vm1516, %v4780, %v4955
      %v4959 = vsel %vm1109, %v4956, %v4918
      %v4960 = vmul.f32 %v4773, %v1919
      %v4961 = vmul.f32 %v4775, %v1924
      %v4962 = vmul.f32 %v4777, %v1929
      %v4963 = vmul.f32 %v4779, %v1934
      %v4964 = vmul.f32 %v4781, %v1939
      %v4965 = vmul.f32 %v4959, %v1944
      %v4966 = vmul.f32 %v4918, %v1949
      %v4967 = vlaneseq
      %v4968 = vshrl.u32 %v4967, 7
      %v4969 = vsub.s32 0, %v4968
      %v4970 = vrot.slane %v4394, %v4969
      %v4971 = vmul.f32 %v4960, %v4970
      %v4972 = vmul.f32 %v4961, %v4970
      %v4973 = vmul.f32 %v4962, %v4970
      %v4974 = vmul.f32 %v4963, %v4970
      %v4975 = vmul.f32 %v4964, %v4970
      %v4976 = vmul.f32 %v4965, %v4970
      %v4977 = vmul.f32 %v4966, %v4970
      %v4978 = vadd.f32 %v4948, %v4971
      %v4979 = vadd.f32 %v4949, %v4972
      %v4980 = vadd.f32 %v4950, %v4973
      %v4981 = vadd.f32 %v4951, %v4974
      %v4982 = vadd.f32 %v4952, %v4975
      %v4983 = vadd.f32 %v4953, %v4976
      %v4984 = vadd.f32 %v4954, %v4977
      %v4985 = vmul.f32 %v4625, %v1979
      %v4986 = vmul.f32 %v4627, %v1984
      %v4987 = vmul.f32 %v4629, %v1989
      %v4988 = vmul.f32 %v4631, %v1994
      %v4989 = vmul.f32 %v4815, %v1999
      %v4990 = vmul.f32 %v4789, %v2004
      %v4991 = vmul.f32 %v4771, %v2009
      %v4992 = vlaneseq
      %v4993 = vshrl.u32 %v4992, 7
      %v4994 = vsub.s32 1, %v4993
      %v4995 = vrot.slane %v4394, %v4994
      %v4996 = vmul.f32 %v4985, %v4995
      %v4997 = vmul.f32 %v4986, %v4995
      %v4998 = vmul.f32 %v4987, %v4995
      %v4999 = vmul.f32 %v4988, %v4995
      %v5000 = vmul.f32 %v4989, %v4995
      %v5001 = vmul.f32 %v4990, %v4995
      %v5002 = vmul.f32 %v4991, %v4995
      %v5003 = vadd.f32 %v4978, %v4996
      %v5004 = vadd.f32 %v4979, %v4997
      %v5005 = vadd.f32 %v4980, %v4998
      %v5006 = vadd.f32 %v4981, %v4999
      %v5007 = vadd.f32 %v4982, %v5000
      %v5008 = vadd.f32 %v4983, %v5001
      %v5009 = vadd.f32 %v4984, %v5002
      %v5010 = vmul.f32 %v4363, %v2039
      %v5011 = vmul.f32 %v4368, %v2044
      %v5012 = vmul.f32 %v4373, %v2049
      %v5013 = vmul.f32 %v4378, %v2054
      %v5014 = vmul.f32 %v4383, %v2059
      %v5015 = vmul.f32 %v4638, %v2064
      %v5016 = vmul.f32 %v4623, %v2069
      %v5017 = vlaneseq
      %v5018 = vshrl.u32 %v5017, 7
      %v5019 = vsub.s32 2, %v5018
      %v5020 = vrot.slane %v4394, %v5019
      %v5021 = vmul.f32 %v5010, %v5020
      %v5022 = vmul.f32 %v5011, %v5020
      %v5023 = vmul.f32 %v5012, %v5020
      %v5024 = vmul.f32 %v5013, %v5020
      %v5025 = vmul.f32 %v5014, %v5020
      %v5026 = vmul.f32 %v5015, %v5020
      %v5027 = vmul.f32 %v5016, %v5020
      %v5028 = vadd.f32 %v5003, %v5021
      %v5029 = vadd.f32 %v5004, %v5022
      %v5030 = vadd.f32 %v5005, %v5023
      %v5031 = vadd.f32 %v5006, %v5024
      %v5032 = vadd.f32 %v5007, %v5025
      %v5033 = vadd.f32 %v5008, %v5026
      %v5034 = vadd.f32 %v5009, %v5027
      %v5035 = vmul.f32 %v4446, %v2099
      %v5036 = vmul.f32 %v4448, %v2104
      %v5037 = vmul.f32 %v4449, %v2109
      %v5038 = vmul.f32 %v4401, %v2114
      %v5039 = vmul.f32 %v4403, %v2119
      %v5040 = vmul.f32 %v4358, %v2124
      %v5041 = vmul.f32 %v4363, %v2129
      %v5042 = vlaneseq
      %v5043 = vshrl.u32 %v5042, 7
      %v5044 = vsub.s32 3, %v5043
      %v5045 = vrot.slane %v4394, %v5044
      %v5046 = vmul.f32 %v5035, %v5045
      %v5047 = vmul.f32 %v5036, %v5045
      %v5048 = vmul.f32 %v5037, %v5045
      %v5049 = vmul.f32 %v5038, %v5045
      %v5050 = vmul.f32 %v5039, %v5045
      %v5051 = vmul.f32 %v5040, %v5045
      %v5052 = vmul.f32 %v5041, %v5045
      %v5053 = vadd.f32 %v5028, %v5046
      %v5054 = vadd.f32 %v5029, %v5047
      %v5055 = vadd.f32 %v5030, %v5048
      %v5056 = vadd.f32 %v5031, %v5049
      %v5057 = vadd.f32 %v5032, %v5050
      %v5058 = vadd.f32 %v5033, %v5051
      %v5059 = vadd.f32 %v5034, %v5052
      %v5061 = vmul.f32 %v4587, %v2160
      %v5062 = vmul.f32 %v4589, %v2165
      %v5063 = vmul.f32 %v4590, %v2170
      %v5064 = vmul.f32 %v4531, %v2175
      %v5065 = vmul.f32 %v4550, %v2180
      %v5066 = vmul.f32 %v4538, %v2185
      %v5067 = vmul.f32 %v4537, %v2190
      %v5068 = vlaneseq
      %v5069 = vshrl.u32 %v5068, 7
      %v5070 = vsub.s32 4, %v5069
      %v5071 = vrot.slane %v4394, %v5070
      %v5072 = vmul.f32 %v5061, %v5071
      %v5073 = vmul.f32 %v5062, %v5071
      %v5074 = vmul.f32 %v5063, %v5071
      %v5075 = vmul.f32 %v5064, %v5071
      %v5076 = vmul.f32 %v5065, %v5071
      %v5077 = vmul.f32 %v5066, %v5071
      %v5078 = vmul.f32 %v5067, %v5071
      %v5079 = vadd.f32 %v5053, %v5072
      %v5080 = vadd.f32 %v5054, %v5073
      %v5081 = vadd.f32 %v5055, %v5074
      %v5082 = vadd.f32 %v5056, %v5075
      %v5083 = vadd.f32 %v5057, %v5076
      %v5084 = vadd.f32 %v5058, %v5077
      %v5085 = vadd.f32 %v5059, %v5078
      %v5087 = vmul.f32 %v4922, %v2221
      %v5088 = vmul.f32 %v4924, %v2226
      %v5089 = vmul.f32 %v4925, %v2231
      %v5090 = vmul.f32 %v4578, %v2236
      %v5091 = vmul.f32 %v4597, %v2241
      %v5092 = vmul.f32 %v4585, %v2246
      %v5093 = vmul.f32 %v4584, %v2251
      %v5094 = vlaneseq
      %v5095 = vshrl.u32 %v5094, 7
      %v5096 = vsub.s32 5, %v5095
      %v5097 = vrot.slane %v4394, %v5096
      %v5098 = vmul.f32 %v5087, %v5097
      %v5099 = vmul.f32 %v5088, %v5097
      %v5100 = vmul.f32 %v5089, %v5097
      %v5101 = vmul.f32 %v5090, %v5097
      %v5102 = vmul.f32 %v5091, %v5097
      %v5103 = vmul.f32 %v5092, %v5097
      %v5104 = vmul.f32 %v5093, %v5097
      %v5105 = vadd.f32 %v5079, %v5098
      %v5106 = vadd.f32 %v5080, %v5099
      %v5107 = vadd.f32 %v5081, %v5100
      %v5108 = vadd.f32 %v5082, %v5101
      %v5109 = vadd.f32 %v5083, %v5102
      %v5110 = vadd.f32 %v5084, %v5103
      %v5111 = vadd.f32 %v5085, %v5104
      %v5113 = vmul.f32 %v4775, %v2282
      %v5114 = vmul.f32 %v4777, %v2287
      %v5115 = vmul.f32 %v4779, %v2292
      %v5116 = vmul.f32 %v4781, %v2297
      %v5117 = vmul.f32 %v4959, %v2302
      %v5118 = vmul.f32 %v4920, %v2307
      %v5119 = vmul.f32 %v4919, %v2312
      %v5120 = vlaneseq
      %v5121 = vshrl.u32 %v5120, 7
      %v5122 = vsub.s32 6, %v5121
      %v5123 = vrot.slane %v4394, %v5122
      %v5124 = vmul.f32 %v5113, %v5123
      %v5125 = vmul.f32 %v5114, %v5123
      %v5126 = vmul.f32 %v5115, %v5123
      %v5127 = vmul.f32 %v5116, %v5123
      %v5128 = vmul.f32 %v5117, %v5123
      %v5129 = vmul.f32 %v5118, %v5123
      %v5130 = vmul.f32 %v5119, %v5123
      %v5131 = vadd.f32 %v5105, %v5124
      %v5132 = vadd.f32 %v5106, %v5125
      %v5133 = vadd.f32 %v5107, %v5126
      %v5134 = vadd.f32 %v5108, %v5127
      %v5135 = vadd.f32 %v5109, %v5128
      %v5136 = vadd.f32 %v5110, %v5129
      %v5137 = vadd.f32 %v5111, %v5130
      %v5139 = vmul.f32 %v4627, %v2343
      %v5140 = vmul.f32 %v4629, %v2348
      %v5141 = vmul.f32 %v4631, %v2353
      %v5142 = vmul.f32 %v4815, %v2358
      %v5143 = vmul.f32 %v4789, %v2363
      %v5144 = vmul.f32 %v4773, %v2368
      %v5145 = vmul.f32 %v4772, %v2373
      %v5146 = vlaneseq
      %v5147 = vshrl.u32 %v5146, 7
      %v5148 = vsub.s32 7, %v5147
      %v5149 = vrot.slane %v4394, %v5148
      %v5150 = vmul.f32 %v5139, %v5149
      %v5151 = vmul.f32 %v5140, %v5149
      %v5152 = vmul.f32 %v5141, %v5149
      %v5153 = vmul.f32 %v5142, %v5149
      %v5154 = vmul.f32 %v5143, %v5149
      %v5155 = vmul.f32 %v5144, %v5149
      %v5156 = vmul.f32 %v5145, %v5149
      %v5157 = vadd.f32 %v5131, %v5150
      %v5158 = vadd.f32 %v5132, %v5151
      %v5159 = vadd.f32 %v5133, %v5152
      %v5160 = vadd.f32 %v5134, %v5153
      %v5161 = vadd.f32 %v5135, %v5154
      %v5162 = vadd.f32 %v5136, %v5155
      %v5163 = vadd.f32 %v5137, %v5156
      %v5165 = vmul.f32 %v4368, %v2404
      %v5166 = vmul.f32 %v4373, %v2409
      %v5167 = vmul.f32 %v4378, %v2414
      %v5168 = vmul.f32 %v4383, %v2419
      %v5169 = vmul.f32 %v4638, %v2424
      %v5170 = vmul.f32 %v4625, %v2429
      %v5171 = vmul.f32 %v4624, %v2434
      %v5172 = vlaneseq
      %v5173 = vshrl.u32 %v5172, 7
      %v5174 = vsub.s32 0, %v5173
      %v5175 = vrot.slane %v4395, %v5174
      %v5176 = vmul.f32 %v5165, %v5175
      %v5177 = vmul.f32 %v5166, %v5175
      %v5178 = vmul.f32 %v5167, %v5175
      %v5179 = vmul.f32 %v5168, %v5175
      %v5180 = vmul.f32 %v5169, %v5175
      %v5181 = vmul.f32 %v5170, %v5175
      %v5182 = vmul.f32 %v5171, %v5175
      %v5183 = vadd.f32 %v5157, %v5176
      %v5184 = vadd.f32 %v5158, %v5177
      %v5185 = vadd.f32 %v5159, %v5178
      %v5186 = vadd.f32 %v5160, %v5179
      %v5187 = vadd.f32 %v5161, %v5180
      %v5188 = vadd.f32 %v5162, %v5181
      %v5189 = vadd.f32 %v5163, %v5182
      %s5190 = scalar_lea.vmem %s4, 2
      %v5191 = vld [vmem:[%s5190] sm:$0x1]
      %v5193 = vlaneseq
      %v5194 = vshrl.u32 %v5193, 7
      %v5195 = vsub.s32 0, %v5194
      %v5196 = vrot.slane %v5191, %v5195
      %v5198 = vadd.f32 %v5183, %v5196
      %v5199 = vadd.f32 %v5184, %v5196
      %v5200 = vadd.f32 %v5185, %v5196
      %v5201 = vadd.f32 %v5186, %v5196
      %v5202 = vadd.f32 %v5187, %v5196
      %v5203 = vadd.f32 %v5188, %v5196
      %v5204 = vadd.f32 %v5189, %v5196
      %5205 = vrot.lane.b32.xlu0 %v4358, 112
      %v5206 = vpop.permute.xlu0 %5205
      %5207 = vrot.lane.b32.xlu0 %v4363, 112
      %v5208 = vpop.permute.xlu0 %5207
      %5209 = vrot.lane.b32.xlu0 %v4368, 112
      %v5210 = vpop.permute.xlu0 %5209
      %5211 = vrot.lane.b32.xlu0 %v4373, 112
      %v5212 = vpop.permute.xlu0 %5211
      %5213 = vrot.lane.b32.xlu0 %v4378, 112
      %v5214 = vpop.permute.xlu0 %5213
      %5215 = vrot.lane.b32.xlu0 %v4383, 112
      %v5216 = vpop.permute.xlu0 %5215
      %5217 = vrot.lane.b32.xlu0 %v4388, 112
      %v5218 = vpop.permute.xlu0 %5217
      %v5220 = vsel %vm2489, %v5198, 0
      %v5223 = vsel %vm2489, %v5199, 0
      %v5226 = vsel %vm2489, %v5200, 0
      %v5229 = vsel %vm2489, %v5201, 0
      %v5232 = vsel %vm2489, %v5202, 0
      %v5235 = vsel %vm2489, %v5203, 0
      %v5238 = vsel %vm2489, %v5204, 0
      %v5240 = vsel %vm2489, %v5206, 0
      %v5242 = vsel %vm2489, %v5208, 0
      %v5244 = vsel %vm2489, %v5210, 0
      %v5246 = vsel %vm2489, %v5212, 0
      %v5248 = vsel %vm2489, %v5214, 0
      %v5250 = vsel %vm2489, %v5216, 0
      %v5252 = vsel %vm2489, %v5218, 0
      %5254 = vmatprep.subr.mxu0 0.0
      %5255 = vmatpush1.xpose.msra.mxu0 %v5240
      %5256 = vmatprep.subr.mxu0 0.0
      %5257 = vmatpush1.xpose.msra.mxu0 %v5242
      %5258 = vmatprep.subr.mxu0 0.0
      %5259 = vmatpush1.xpose.msra.mxu0 %v5244
      %5260 = vmatprep.subr.mxu0 0.0
      %5261 = vmatpush1.xpose.msra.mxu0 %v5246
      %5262 = vmatprep.subr.mxu0 0.0
      %5263 = vmatpush1.xpose.msra.mxu0 %v5248
      %5264 = vmatprep.subr.mxu0 0.0
      %5265 = vmatpush1.xpose.msra.mxu0 %v5250
      %5266 = vmatprep.subr.mxu0 0.0
      %5267 = vmatpush1.xpose.msra.mxu0 %v5252
      %5268 = vmatprep.subr.mxu0 0.0
      %5269 = vmatpush1.xpose.msra.mxu0 0.0
      %5270 = vmatprep.subr.mxu0 0.0
      %5271 = vmatpush1.xpose.msra.mxu0 0.0
      %5272 = vmatprep.subr.mxu0 0.0
      %5273 = vmatpush1.xpose.msra.mxu0 0.0
      %5274 = vmatprep.subr.mxu0 0.0
      %5275 = vmatpush1.xpose.msra.mxu0 0.0
      %5276 = vmatprep.subr.mxu0 0.0
      %5277 = vmatpush1.xpose.msra.mxu0 0.0
      %5278 = vmatprep.subr.mxu0 0.0
      %5279 = vmatpush1.xpose.msra.mxu0 0.0
      %5280 = vmatprep.subr.mxu0 0.0
      %5281 = vmatpush1.xpose.msra.mxu0 0.0
      %5282 = vmatprep.subr.mxu0 0.0
      %5283 = vmatpush1.xpose.msra.mxu0 0.0
      %5284 = vmatprep.subr.mxu0 0.0
      %5285 = vmatpush1.xpose.msra.mxu0 0.0
      %5286 = vmatprep.subr.mxu0 0.0
      %5287 = vmatpush1.xpose.msra.mxu0 0.0
      %5288 = vmatprep.subr.mxu0 0.0
      %5289 = vmatpush1.xpose.msra.mxu0 0.0
      %5290 = vmatprep.subr.mxu0 0.0
      %5291 = vmatpush1.xpose.msra.mxu0 0.0
      %5292 = vmatprep.subr.mxu0 0.0
      %5293 = vmatpush1.xpose.msra.mxu0 0.0
      %5294 = vmatprep.subr.mxu0 0.0
      %5295 = vmatpush1.xpose.msra.mxu0 0.0
      %5296 = vmatprep.subr.mxu0 0.0
      %5297 = vmatpush1.xpose.msra.mxu0 0.0
      %5298 = vmatprep.subr.mxu0 0.0
      %5299 = vmatpush1.xpose.msra.mxu0 0.0
      %5300 = vmatprep.subr.mxu0 0.0
      %5301 = vmatpush1.xpose.msra.mxu0 0.0
      %5302 = vmatprep.subr.mxu0 0.0
      %5303 = vmatpush1.xpose.msra.mxu0 0.0
      %5304 = vmatprep.subr.mxu0 0.0
      %5305 = vmatpush1.xpose.msra.mxu0 0.0
      %5306 = vmatprep.subr.mxu0 0.0
      %5307 = vmatpush1.xpose.msra.mxu0 0.0
      %5308 = vmatprep.subr.mxu0 0.0
      %5309 = vmatpush1.xpose.msra.mxu0 0.0
      %5310 = vmatprep.subr.mxu0 0.0
      %5311 = vmatpush1.xpose.msra.mxu0 0.0
      %5312 = vmatprep.subr.mxu0 0.0
      %5313 = vmatpush1.xpose.msra.mxu0 0.0
      %5314 = vmatprep.subr.mxu0 0.0
      %5315 = vmatpush1.xpose.msra.mxu0 0.0
      %5316 = vmatprep.subr.mxu0 0.0
      %5317 = vmatpush1.xpose.msra.mxu0 0.0
      %5318 = vmatprep.mubr.f32.mxu0 0.0
      %5319 = vmatmul.mubr.f32.gmra.mrb[0].mxu0 %v5220
      %v5320 = vpop.f32.mrb[0].mxu0
      %v5321 = vadd.f32 0.0, %v5320
      %v5322 = vpop.f32.mrb[0].mxu0
      %5323 = vmatprep.mubr.f32.mxu0 0.0
      %5324 = vmatmul.mubr.f32.gmra.mrb[0].mxu0 %v5223
      %v5325 = vpop.f32.mrb[0].mxu0
      %v5326 = vadd.f32 0.0, %v5325
      %v5327 = vpop.f32.mrb[0].mxu0
      %5328 = vmatprep.mubr.f32.mxu0 0.0
      %5329 = vmatmul.mubr.f32.gmra.mrb[0].mxu0 %v5226
      %v5330 = vpop.f32.mrb[0].mxu0
      %v5331 = vadd.f32 0.0, %v5330
      %v5332 = vpop.f32.mrb[0].mxu0
      %5333 = vmatprep.mubr.f32.mxu0 0.0
      %5334 = vmatmul.mubr.f32.gmra.mrb[0].mxu0 %v5229
      %v5335 = vpop.f32.mrb[0].mxu0
      %v5336 = vadd.f32 0.0, %v5335
      %v5337 = vpop.f32.mrb[0].mxu0
      %5338 = vmatprep.mubr.f32.mxu0 0.0
      %5339 = vmatmul.mubr.f32.gmra.mrb[0].mxu0 %v5232
      %v5340 = vpop.f32.mrb[0].mxu0
      %v5341 = vadd.f32 0.0, %v5340
      %v5342 = vpop.f32.mrb[0].mxu0
      %5343 = vmatprep.mubr.f32.mxu0 0.0
      %5344 = vmatmul.mubr.f32.gmra.mrb[0].mxu0 %v5235
      %v5345 = vpop.f32.mrb[0].mxu0
      %v5346 = vadd.f32 0.0, %v5345
      %v5347 = vpop.f32.mrb[0].mxu0
      %5348 = vmatprep.mubr.f32.mxu0 0.0
      %5349 = vmatmul.mubr.f32.gmra.mrb[0].mxu0 %v5238
      %v5350 = vpop.f32.mrb[0].mxu0
      %v5351 = vadd.f32 0.0, %v5350
      %v5352 = vpop.f32.mrb[0].mxu0
      %5353 = vdwg.mxu0
      %v5354 = vmul.f32 %v5321, 0.25
      %v5355 = vmul.f32 %v5326, 0.25
      %v5356 = vmul.f32 %v5331, 0.25
      %v5357 = vmul.f32 %v5336, 0.25
      %v5358 = vmul.f32 %v5341, 0.25
      %v5359 = vmul.f32 %v5346, 0.25
      %v5360 = vmul.f32 %v5351, 0.25
      %s5361 = scalar_lea.vmem %s6, 112
      %v5362 = vld [vmem:[%s5361] sm:$0xff]
      %v5363 = vld [vmem:[%s5361 + $0x8] sm:$0xff]
      %v5364 = vld [vmem:[%s5361 + $0x10] sm:$0xff]
      %v5365 = vld [vmem:[%s5361 + $0x18] sm:$0xff]
      %v5366 = vld [vmem:[%s5361 + $0x20] sm:$0xff]
      %v5367 = vld [vmem:[%s5361 + $0x28] sm:$0xff]
      %v5368 = vld [vmem:[%s5361 + $0x30] sm:$0x1]
      %v5369 = vadd.f32 %v5354, %v5362
      %v5370 = vadd.f32 %v5355, %v5363
      %v5371 = vadd.f32 %v5356, %v5364
      %v5372 = vadd.f32 %v5357, %v5365
      %v5373 = vadd.f32 %v5358, %v5366
      %v5374 = vadd.f32 %v5359, %v5367
      %v5375 = vadd.f32 %v5360, %v5368
      %v5376 = vsel %vm2646, %v5369, -inf
      %5377 = vmax.xlane.f32.xlu0 %v5376
      %v5378 = vpop.xlane.xlu0 %5377
      %v5379 = vsel %vm2646, %v5370, -inf
      %5380 = vmax.xlane.f32.xlu0 %v5379
      %v5381 = vpop.xlane.xlu0 %5380
      %v5382 = vsel %vm2646, %v5371, -inf
      %5383 = vmax.xlane.f32.xlu0 %v5382
      %v5384 = vpop.xlane.xlu0 %5383
      %v5385 = vsel %vm2646, %v5372, -inf
      %5386 = vmax.xlane.f32.xlu0 %v5385
      %v5387 = vpop.xlane.xlu0 %5386
      %v5388 = vsel %vm2646, %v5373, -inf
      %5389 = vmax.xlane.f32.xlu0 %v5388
      %v5390 = vpop.xlane.xlu0 %5389
      %v5391 = vsel %vm2646, %v5374, -inf
      %5392 = vmax.xlane.f32.xlu0 %v5391
      %v5393 = vpop.xlane.xlu0 %5392
      %v5394 = vsel %vm2665, %v5375, -inf
      %5395 = vmax.xlane.f32.xlu0 %v5394
      %v5396 = vpop.xlane.xlu0 %5395
      %v5397 = vsub.f32 %v5369, %v5378
      %v5398 = vsub.f32 %v5370, %v5381
      %v5399 = vsub.f32 %v5371, %v5384
      %v5400 = vsub.f32 %v5372, %v5387
      %v5401 = vsub.f32 %v5373, %v5390
      %v5402 = vsub.f32 %v5374, %v5393
      %v5403 = vsub.f32 %v5375, %v5396
      %v5404 = vmul.f32 %v5397, 1.442695
      %v5405 = vpow.pop %v5404
      %v5406 = vmul.f32 %v5398, 1.442695
      %v5407 = vpow.pop %v5406
      %v5408 = vmul.f32 %v5399, 1.442695
      %v5409 = vpow.pop %v5408
      %v5410 = vmul.f32 %v5400, 1.442695
      %v5411 = vpow.pop %v5410
      %v5412 = vmul.f32 %v5401, 1.442695
      %v5413 = vpow.pop %v5412
      %v5414 = vmul.f32 %v5402, 1.442695
      %v5415 = vpow.pop %v5414
      %v5416 = vmul.f32 %v5403, 1.442695
      %v5417 = vpow.pop %v5416
      %v5418 = vsel %vm2646, %v5405, 0.0
      %5419 = vadd.xlane.f32.xlu0 %v5418
      %v5420 = vpop.xlane.xlu0 %5419
      %v5421 = vsel %vm2646, %v5407, 0.0
      %5422 = vadd.xlane.f32.xlu0 %v5421
      %v5423 = vpop.xlane.xlu0 %5422
      %v5424 = vsel %vm2646, %v5409, 0.0
      %5425 = vadd.xlane.f32.xlu0 %v5424
      %v5426 = vpop.xlane.xlu0 %5425
      %v5427 = vsel %vm2646, %v5411, 0.0
      %5428 = vadd.xlane.f32.xlu0 %v5427
      %v5429 = vpop.xlane.xlu0 %5428
      %v5430 = vsel %vm2646, %v5413, 0.0
      %5431 = vadd.xlane.f32.xlu0 %v5430
      %v5432 = vpop.xlane.xlu0 %5431
      %v5433 = vsel %vm2646, %v5415, 0.0
      %5434 = vadd.xlane.f32.xlu0 %v5433
      %v5435 = vpop.xlane.xlu0 %5434
      %v5436 = vsel %vm2665, %v5417, 0.0
      %5437 = vadd.xlane.f32.xlu0 %v5436
      %v5438 = vpop.xlane.xlu0 %5437
      %v5439 = vrcp.pop %v5420
      %v5440 = vrcp.pop %v5423
      %v5441 = vrcp.pop %v5426
      %v5442 = vrcp.pop %v5429
      %v5443 = vrcp.pop %v5432
      %v5444 = vrcp.pop %v5435
      %v5445 = vrcp.pop %v5438
      %v5446 = vmul.f32 %v5405, %v5439
      %v5447 = vmul.f32 %v5407, %v5440
      %v5448 = vmul.f32 %v5409, %v5441
      %v5449 = vmul.f32 %v5411, %v5442
      %v5450 = vmul.f32 %v5413, %v5443
      %v5451 = vmul.f32 %v5415, %v5444
      %v5452 = vmul.f32 %v5417, %v5445
      %5453 = vrot.lane.b32.xlu0 %v4358, 96
      %v5454 = vpop.permute.xlu0 %5453
      %5455 = vrot.lane.b32.xlu0 %v4363, 96
      %v5456 = vpop.permute.xlu0 %5455
      %5457 = vrot.lane.b32.xlu0 %v4368, 96
      %v5458 = vpop.permute.xlu0 %5457
      %5459 = vrot.lane.b32.xlu0 %v4373, 96
      %v5460 = vpop.permute.xlu0 %5459
      %5461 = vrot.lane.b32.xlu0 %v4378, 96
      %v5462 = vpop.permute.xlu0 %5461
      %5463 = vrot.lane.b32.xlu0 %v4383, 96
      %v5464 = vpop.permute.xlu0 %5463
      %5465 = vrot.lane.b32.xlu0 %v4388, 96
      %v5466 = vpop.permute.xlu0 %5465
      %v5474 = vsel %vm2646, %v5446, 0
      %v5477 = vsel %vm2646, %v5447, 0
      %v5480 = vsel %vm2646, %v5448, 0
      %v5483 = vsel %vm2646, %v5449, 0
      %v5486 = vsel %vm2646, %v5450, 0
      %v5489 = vsel %vm2646, %v5451, 0
      %v5492 = vsel %vm2646, %v5452, 0
      %v5494 = vsel %vm1192, %v5466, 0
      %5496 = vmatprep.subr.mxu0 0.0
      %5497 = vmatpush1.msra.mxu0 %v5454
      %5498 = vmatprep.subr.mxu0 0.0
      %5499 = vmatpush1.msra.mxu0 %v5456
      %5500 = vmatprep.subr.mxu0 0.0
      %5501 = vmatpush1.msra.mxu0 %v5458
      %5502 = vmatprep.subr.mxu0 0.0
      %5503 = vmatpush1.msra.mxu0 %v5460
      %5504 = vmatprep.subr.mxu0 0.0
      %5505 = vmatpush1.msra.mxu0 %v5462
      %5506 = vmatprep.subr.mxu0 0.0
      %5507 = vmatpush1.msra.mxu0 %v5464
      %5508 = vmatprep.subr.mxu0 0.0
      %5509 = vmatpush1.msra.mxu0 %v5494
      %5510 = vmatprep.subr.mxu0 0.0
      %5511 = vmatpush1.msra.mxu0 0.0
      %5512 = vmatprep.subr.mxu0 0.0
      %5513 = vmatpush1.msra.mxu0 0.0
      %5514 = vmatprep.subr.mxu0 0.0
      %5515 = vmatpush1.msra.mxu0 0.0
      %5516 = vmatprep.subr.mxu0 0.0
      %5517 = vmatpush1.msra.mxu0 0.0
      %5518 = vmatprep.subr.mxu0 0.0
      %5519 = vmatpush1.msra.mxu0 0.0
      %5520 = vmatprep.subr.mxu0 0.0
      %5521 = vmatpush1.msra.mxu0 0.0
      %5522 = vmatprep.subr.mxu0 0.0
      %5523 = vmatpush1.msra.mxu0 0.0
      %5524 = vmatprep.subr.mxu0 0.0
      %5525 = vmatpush1.msra.mxu0 0.0
      %5526 = vmatprep.subr.mxu0 0.0
      %5527 = vmatpush1.msra.mxu0 0.0
      %5528 = vmatprep.subr.mxu0 0.0
      %5529 = vmatpush1.msra.mxu0 0.0
      %5530 = vmatprep.subr.mxu0 0.0
      %5531 = vmatpush1.msra.mxu0 0.0
      %5532 = vmatprep.subr.mxu0 0.0
      %5533 = vmatpush1.msra.mxu0 0.0
      %5534 = vmatprep.subr.mxu0 0.0
      %5535 = vmatpush1.msra.mxu0 0.0
      %5536 = vmatprep.subr.mxu0 0.0
      %5537 = vmatpush1.msra.mxu0 0.0
      %5538 = vmatprep.subr.mxu0 0.0
      %5539 = vmatpush1.msra.mxu0 0.0
      %5540 = vmatprep.subr.mxu0 0.0
      %5541 = vmatpush1.msra.mxu0 0.0
      %5542 = vmatprep.subr.mxu0 0.0
      %5543 = vmatpush1.msra.mxu0 0.0
      %5544 = vmatprep.subr.mxu0 0.0
      %5545 = vmatpush1.msra.mxu0 0.0
      %5546 = vmatprep.subr.mxu0 0.0
      %5547 = vmatpush1.msra.mxu0 0.0
      %5548 = vmatprep.subr.mxu0 0.0
      %5549 = vmatpush1.msra.mxu0 0.0
      %5550 = vmatprep.subr.mxu0 0.0
      %5551 = vmatpush1.msra.mxu0 0.0
      %5552 = vmatprep.subr.mxu0 0.0
      %5553 = vmatpush1.msra.mxu0 0.0
      %5554 = vmatprep.subr.mxu0 0.0
      %5555 = vmatpush1.msra.mxu0 0.0
      %5556 = vmatprep.subr.mxu0 0.0
      %5557 = vmatpush1.msra.mxu0 0.0
      %5558 = vmatprep.subr.mxu0 0.0
      %5559 = vmatpush1.msra.mxu0 0.0
      %5560 = vmatprep.mubr.f32.mxu0 0.0
      %5561 = vmatmul.mubr.f32.gmra.mrb[0].mxu0 %v5474
      %v5562 = vpop.f32.mrb[0].mxu0
      %v5563 = vadd.f32 0.0, %v5562
      %v5564 = vpop.f32.mrb[0].mxu0
      %5565 = vmatprep.mubr.f32.mxu0 0.0
      %5566 = vmatmul.mubr.f32.gmra.mrb[0].mxu0 %v5477
      %v5567 = vpop.f32.mrb[0].mxu0
      %v5568 = vadd.f32 0.0, %v5567
      %v5569 = vpop.f32.mrb[0].mxu0
      %5570 = vmatprep.mubr.f32.mxu0 0.0
      %5571 = vmatmul.mubr.f32.gmra.mrb[0].mxu0 %v5480
      %v5572 = vpop.f32.mrb[0].mxu0
      %v5573 = vadd.f32 0.0, %v5572
      %v5574 = vpop.f32.mrb[0].mxu0
      %5575 = vmatprep.mubr.f32.mxu0 0.0
      %5576 = vmatmul.mubr.f32.gmra.mrb[0].mxu0 %v5483
      %v5577 = vpop.f32.mrb[0].mxu0
      %v5578 = vadd.f32 0.0, %v5577
      %v5579 = vpop.f32.mrb[0].mxu0
      %5580 = vmatprep.mubr.f32.mxu0 0.0
      %5581 = vmatmul.mubr.f32.gmra.mrb[0].mxu0 %v5486
      %v5582 = vpop.f32.mrb[0].mxu0
      %v5583 = vadd.f32 0.0, %v5582
      %v5584 = vpop.f32.mrb[0].mxu0
      %5585 = vmatprep.mubr.f32.mxu0 0.0
      %5586 = vmatmul.mubr.f32.gmra.mrb[0].mxu0 %v5489
      %v5587 = vpop.f32.mrb[0].mxu0
      %v5588 = vadd.f32 0.0, %v5587
      %v5589 = vpop.f32.mrb[0].mxu0
      %5590 = vmatprep.mubr.f32.mxu0 0.0
      %5591 = vmatmul.mubr.f32.gmra.mrb[0].mxu0 %v5492
      %v5592 = vpop.f32.mrb[0].mxu0
      %v5593 = vadd.f32 0.0, %v5592
      %v5594 = vpop.f32.mrb[0].mxu0
      %5595 = vdwg.mxu0
      %5596 = vrot.lane.b32.xlu0 %v468, 104
      %v5597 = vpop.permute.xlu0 %5596
      %5598 = vrot.lane.b32.xlu0 %v469, 104
      %v5599 = vpop.permute.xlu0 %5598
      %5600 = vrot.lane.b32.xlu0 %v470, 104
      %v5601 = vpop.permute.xlu0 %5600
      %5602 = vrot.lane.b32.xlu0 %v471, 104
      %v5603 = vpop.permute.xlu0 %5602
      %5604 = vrot.lane.b32.xlu0 %v472, 104
      %v5605 = vpop.permute.xlu0 %5604
      %5606 = vrot.lane.b32.xlu0 %v473, 104
      %v5607 = vpop.permute.xlu0 %5606
      %5608 = vrot.lane.b32.xlu0 %v474, 104
      %v5609 = vpop.permute.xlu0 %5608
      %v5617 = vadd.f32 %v5563, %v5597
      %v5618 = vadd.f32 %v5568, %v5599
      %v5619 = vadd.f32 %v5573, %v5601
      %v5620 = vadd.f32 %v5578, %v5603
      %v5621 = vadd.f32 %v5583, %v5605
      %v5622 = vadd.f32 %v5588, %v5607
      %v5623 = vadd.f32 %v5593, %v5609
      %s5624 = scalar_lea.vmem %s1, 24
      %v5625 = vld [vmem:[%s5624] sm:$0xff]
      %s5626 = scalar_lea.vmem %s2, 3
      %v5627 = vld [vmem:[%s5626] sm:$0x1]
      %v5629 = vlaneseq
      %v5630 = vshrl.u32 %v5629, 7
      %v5631 = vsub.s32 0, %v5630
      %v5632 = vrot.slane %v5627, %v5631
      %v5635 = vsel %vm659, %v5617, 0
      %v5638 = vsel %vm659, %v5618, 0
      %v5641 = vsel %vm659, %v5619, 0
      %v5644 = vsel %vm659, %v5620, 0
      %v5647 = vsel %vm659, %v5621, 0
      %v5650 = vsel %vm659, %v5622, 0
      %v5653 = vsel %vm659, %v5623, 0
      %5655 = vmatprep.subr.mxu0 0.0
      %5656 = vmatpush1.msra.mxu0 %v5625
      %5657 = vmatprep.subr.mxu0 0.0
      %5658 = vmatpush1.msra.mxu0 0.0
      %5659 = vmatprep.subr.mxu0 0.0
      %5660 = vmatpush1.msra.mxu0 0.0
      %5661 = vmatprep.subr.mxu0 0.0
      %5662 = vmatpush1.msra.mxu0 0.0
      %5663 = vmatprep.subr.mxu0 0.0
      %5664 = vmatpush1.msra.mxu0 0.0
      %5665 = vmatprep.subr.mxu0 0.0
      %5666 = vmatpush1.msra.mxu0 0.0
      %5667 = vmatprep.subr.mxu0 0.0
      %5668 = vmatpush1.msra.mxu0 0.0
      %5669 = vmatprep.subr.mxu0 0.0
      %5670 = vmatpush1.msra.mxu0 0.0
      %5671 = vmatprep.subr.mxu0 0.0
      %5672 = vmatpush1.msra.mxu0 0.0
      %5673 = vmatprep.subr.mxu0 0.0
      %5674 = vmatpush1.msra.mxu0 0.0
      %5675 = vmatprep.subr.mxu0 0.0
      %5676 = vmatpush1.msra.mxu0 0.0
      %5677 = vmatprep.subr.mxu0 0.0
      %5678 = vmatpush1.msra.mxu0 0.0
      %5679 = vmatprep.subr.mxu0 0.0
      %5680 = vmatpush1.msra.mxu0 0.0
      %5681 = vmatprep.subr.mxu0 0.0
      %5682 = vmatpush1.msra.mxu0 0.0
      %5683 = vmatprep.subr.mxu0 0.0
      %5684 = vmatpush1.msra.mxu0 0.0
      %5685 = vmatprep.subr.mxu0 0.0
      %5686 = vmatpush1.msra.mxu0 0.0
      %5687 = vmatprep.subr.mxu0 0.0
      %5688 = vmatpush1.msra.mxu0 0.0
      %5689 = vmatprep.subr.mxu0 0.0
      %5690 = vmatpush1.msra.mxu0 0.0
      %5691 = vmatprep.subr.mxu0 0.0
      %5692 = vmatpush1.msra.mxu0 0.0
      %5693 = vmatprep.subr.mxu0 0.0
      %5694 = vmatpush1.msra.mxu0 0.0
      %5695 = vmatprep.subr.mxu0 0.0
      %5696 = vmatpush1.msra.mxu0 0.0
      %5697 = vmatprep.subr.mxu0 0.0
      %5698 = vmatpush1.msra.mxu0 0.0
      %5699 = vmatprep.subr.mxu0 0.0
      %5700 = vmatpush1.msra.mxu0 0.0
      %5701 = vmatprep.subr.mxu0 0.0
      %5702 = vmatpush1.msra.mxu0 0.0
      %5703 = vmatprep.subr.mxu0 0.0
      %5704 = vmatpush1.msra.mxu0 0.0
      %5705 = vmatprep.subr.mxu0 0.0
      %5706 = vmatpush1.msra.mxu0 0.0
      %5707 = vmatprep.subr.mxu0 0.0
      %5708 = vmatpush1.msra.mxu0 0.0
      %5709 = vmatprep.subr.mxu0 0.0
      %5710 = vmatpush1.msra.mxu0 0.0
      %5711 = vmatprep.subr.mxu0 0.0
      %5712 = vmatpush1.msra.mxu0 0.0
      %5713 = vmatprep.subr.mxu0 0.0
      %5714 = vmatpush1.msra.mxu0 0.0
      %5715 = vmatprep.subr.mxu0 0.0
      %5716 = vmatpush1.msra.mxu0 0.0
      %5717 = vmatprep.subr.mxu0 0.0
      %5718 = vmatpush1.msra.mxu0 0.0
      %5719 = vmatprep.mubr.f32.mxu0 0.0
      %5720 = vmatmul.mubr.f32.gmra.mrb[0].mxu0 %v5635
      %v5721 = vpop.f32.mrb[0].mxu0
      %v5722 = vadd.f32 %v5632, %v5721
      %v5723 = vpop.f32.mrb[0].mxu0
      %5724 = vmatprep.mubr.f32.mxu0 0.0
      %5725 = vmatmul.mubr.f32.gmra.mrb[0].mxu0 %v5638
      %v5726 = vpop.f32.mrb[0].mxu0
      %v5727 = vadd.f32 %v5632, %v5726
      %v5728 = vpop.f32.mrb[0].mxu0
      %5729 = vmatprep.mubr.f32.mxu0 0.0
      %5730 = vmatmul.mubr.f32.gmra.mrb[0].mxu0 %v5641
      %v5731 = vpop.f32.mrb[0].mxu0
      %v5732 = vadd.f32 %v5632, %v5731
      %v5733 = vpop.f32.mrb[0].mxu0
      %5734 = vmatprep.mubr.f32.mxu0 0.0
      %5735 = vmatmul.mubr.f32.gmra.mrb[0].mxu0 %v5644
      %v5736 = vpop.f32.mrb[0].mxu0
      %v5737 = vadd.f32 %v5632, %v5736
      %v5738 = vpop.f32.mrb[0].mxu0
      %5739 = vmatprep.mubr.f32.mxu0 0.0
      %5740 = vmatmul.mubr.f32.gmra.mrb[0].mxu0 %v5647
      %v5741 = vpop.f32.mrb[0].mxu0
      %v5742 = vadd.f32 %v5632, %v5741
      %v5743 = vpop.f32.mrb[0].mxu0
      %5744 = vmatprep.mubr.f32.mxu0 0.0
      %5745 = vmatmul.mubr.f32.gmra.mrb[0].mxu0 %v5650
      %v5746 = vpop.f32.mrb[0].mxu0
      %v5747 = vadd.f32 %v5632, %v5746
      %v5748 = vpop.f32.mrb[0].mxu0
      %5749 = vmatprep.mubr.f32.mxu0 0.0
      %5750 = vmatmul.mubr.f32.gmra.mrb[0].mxu0 %v5653
      %v5751 = vpop.f32.mrb[0].mxu0
      %v5752 = vadd.f32 %v5632, %v5751
      %v5753 = vpop.f32.mrb[0].mxu0
      %5754 = vdwg.mxu0
      %s5755 = scalar_lea.vmem %s3, 96
      %v5756 = vld [vmem:[%s5755] sm:$0xff]
      %v5757 = vld [vmem:[%s5755 + $0x8] sm:$0xff]
      %v5758 = vld [vmem:[%s5755 + $0x10] sm:$0xff]
      %v5759 = vld [vmem:[%s5755 + $0x18] sm:$0x1]
      %v5763 = vrot.slane %v5742, 1
      %v5764 = vrot.slane %v5747, 1
      %v5765 = vsel %vm788, %v5763, %v5764
      %v5766 = vrot.slane %v5752, 1
      %v5767 = vsel %vm788, %v5764, %v5766
      %v5770 = vmul.f32 %v5765, %v799
      %v5771 = vmul.f32 %v5767, %v804
      %v5772 = vmul.f32 %v5722, %v809
      %v5773 = vmul.f32 %v5727, %v814
      %v5774 = vmul.f32 %v5732, %v819
      %v5775 = vmul.f32 %v5737, %v824
      %v5776 = vmul.f32 %v5742, %v829
      %v5777 = vlaneseq
      %v5778 = vshrl.u32 %v5777, 7
      %v5779 = vsub.s32 0, %v5778
      %v5780 = vrot.slane %v5756, %v5779
      %v5781 = vmul.f32 %v5770, %v5780
      %v5782 = vmul.f32 %v5771, %v5780
      %v5783 = vmul.f32 %v5772, %v5780
      %v5784 = vmul.f32 %v5773, %v5780
      %v5785 = vmul.f32 %v5774, %v5780
      %v5786 = vmul.f32 %v5775, %v5780
      %v5787 = vmul.f32 %v5776, %v5780
      %v5788 = vadd.f32 %v5781, 0.0
      %v5789 = vadd.f32 %v5782, 0.0
      %v5790 = vadd.f32 %v5783, 0.0
      %v5791 = vadd.f32 %v5784, 0.0
      %v5792 = vadd.f32 %v5785, 0.0
      %v5793 = vadd.f32 %v5786, 0.0
      %v5794 = vadd.f32 %v5787, 0.0
      %v5795 = vrot.slane %v5742, 2
      %v5796 = vrot.slane %v5747, 2
      %v5797 = vsel %vm856, %v5795, %v5796
      %v5798 = vrot.slane %v5752, 2
      %v5799 = vsel %vm856, %v5796, %v5798
      %v5806 = vrot.slane %v5722, 1
      %v5807 = vrot.slane %v5727, 1
      %v5808 = vsel %vm788, %v5806, %v5807
      %v5809 = vrot.slane %v5732, 1
      %v5810 = vsel %vm788, %v5807, %v5809
      %v5811 = vrot.slane %v5737, 1
      %v5812 = vsel %vm788, %v5809, %v5811
      %v5813 = vsel %vm788, %v5811, %v5763
      %v5820 = vsel %vm788, %v5799, %v5806
      %v5821 = vmul.f32 %v5797, %v886
      %v5822 = vmul.f32 %v5820, %v891
      %v5823 = vmul.f32 %v5808, %v896
      %v5824 = vmul.f32 %v5810, %v901
      %v5825 = vmul.f32 %v5812, %v906
      %v5826 = vmul.f32 %v5813, %v911
      %v5827 = vmul.f32 %v5763, %v916
      %v5828 = vlaneseq
      %v5829 = vshrl.u32 %v5828, 7
      %v5830 = vsub.s32 1, %v5829
      %v5831 = vrot.slane %v5756, %v5830
      %v5832 = vmul.f32 %v5821, %v5831
      %v5833 = vmul.f32 %v5822, %v5831
      %v5834 = vmul.f32 %v5823, %v5831
      %v5835 = vmul.f32 %v5824, %v5831
      %v5836 = vmul.f32 %v5825, %v5831
      %v5837 = vmul.f32 %v5826, %v5831
      %v5838 = vmul.f32 %v5827, %v5831
      %v5839 = vadd.f32 %v5788, %v5832
      %v5840 = vadd.f32 %v5789, %v5833
      %v5841 = vadd.f32 %v5790, %v5834
      %v5842 = vadd.f32 %v5791, %v5835
      %v5843 = vadd.f32 %v5792, %v5836
      %v5844 = vadd.f32 %v5793, %v5837
      %v5845 = vadd.f32 %v5794, %v5838
      %v5846 = vrot.slane %v5742, 3
      %v5847 = vrot.slane %v5747, 3
      %v5848 = vsel %vm943, %v5846, %v5847
      %v5849 = vrot.slane %v5752, 3
      %v5850 = vsel %vm943, %v5847, %v5849
      %v5853 = vrot.slane %v5722, 2
      %v5854 = vrot.slane %v5727, 2
      %v5855 = vsel %vm856, %v5853, %v5854
      %v5856 = vrot.slane %v5732, 2
      %v5857 = vsel %vm856, %v5854, %v5856
      %v5858 = vrot.slane %v5737, 2
      %v5859 = vsel %vm856, %v5856, %v5858
      %v5860 = vsel %vm856, %v5858, %v5795
      %v5867 = vsel %vm856, %v5850, %v5853
      %v5868 = vmul.f32 %v5848, %v969
      %v5869 = vmul.f32 %v5867, %v974
      %v5870 = vmul.f32 %v5855, %v979
      %v5871 = vmul.f32 %v5857, %v984
      %v5872 = vmul.f32 %v5859, %v989
      %v5873 = vmul.f32 %v5860, %v994
      %v5874 = vmul.f32 %v5795, %v999
      %v5875 = vlaneseq
      %v5876 = vshrl.u32 %v5875, 7
      %v5877 = vsub.s32 2, %v5876
      %v5878 = vrot.slane %v5756, %v5877
      %v5879 = vmul.f32 %v5868, %v5878
      %v5880 = vmul.f32 %v5869, %v5878
      %v5881 = vmul.f32 %v5870, %v5878
      %v5882 = vmul.f32 %v5871, %v5878
      %v5883 = vmul.f32 %v5872, %v5878
      %v5884 = vmul.f32 %v5873, %v5878
      %v5885 = vmul.f32 %v5874, %v5878
      %v5886 = vadd.f32 %v5839, %v5879
      %v5887 = vadd.f32 %v5840, %v5880
      %v5888 = vadd.f32 %v5841, %v5881
      %v5889 = vadd.f32 %v5842, %v5882
      %v5890 = vadd.f32 %v5843, %v5883
      %v5891 = vadd.f32 %v5844, %v5884
      %v5892 = vadd.f32 %v5845, %v5885
      %v5893 = vrot.slane %v5742, 4
      %v5894 = vrot.slane %v5747, 4
      %v5895 = vsel %vm1026, %v5893, %v5894
      %v5896 = vrot.slane %v5752, 4
      %v5897 = vsel %vm1026, %v5894, %v5896
      %v5900 = vrot.slane %v5722, 3
      %v5901 = vrot.slane %v5727, 3
      %v5902 = vsel %vm943, %v5900, %v5901
      %v5903 = vrot.slane %v5732, 3
      %v5904 = vsel %vm943, %v5901, %v5903
      %v5905 = vrot.slane %v5737, 3
      %v5906 = vsel %vm943, %v5903, %v5905
      %v5907 = vsel %vm943, %v5905, %v5846
      %v5914 = vsel %vm943, %v5897, %v5900
      %v5915 = vmul.f32 %v5895, %v1052
      %v5916 = vmul.f32 %v5914, %v1057
      %v5917 = vmul.f32 %v5902, %v1062
      %v5918 = vmul.f32 %v5904, %v1067
      %v5919 = vmul.f32 %v5906, %v1072
      %v5920 = vmul.f32 %v5907, %v1077
      %v5921 = vmul.f32 %v5846, %v1082
      %v5922 = vlaneseq
      %v5923 = vshrl.u32 %v5922, 7
      %v5924 = vsub.s32 3, %v5923
      %v5925 = vrot.slane %v5756, %v5924
      %v5926 = vmul.f32 %v5915, %v5925
      %v5927 = vmul.f32 %v5916, %v5925
      %v5928 = vmul.f32 %v5917, %v5925
      %v5929 = vmul.f32 %v5918, %v5925
      %v5930 = vmul.f32 %v5919, %v5925
      %v5931 = vmul.f32 %v5920, %v5925
      %v5932 = vmul.f32 %v5921, %v5925
      %v5933 = vadd.f32 %v5886, %v5926
      %v5934 = vadd.f32 %v5887, %v5927
      %v5935 = vadd.f32 %v5888, %v5928
      %v5936 = vadd.f32 %v5889, %v5929
      %v5937 = vadd.f32 %v5890, %v5930
      %v5938 = vadd.f32 %v5891, %v5931
      %v5939 = vadd.f32 %v5892, %v5932
      %v5940 = vrot.slane %v5742, 5
      %v5941 = vrot.slane %v5747, 5
      %v5942 = vsel %vm1109, %v5940, %v5941
      %v5943 = vrot.slane %v5752, 5
      %v5944 = vsel %vm1109, %v5941, %v5943
      %v5947 = vrot.slane %v5722, 4
      %v5948 = vrot.slane %v5727, 4
      %v5949 = vsel %vm1026, %v5947, %v5948
      %v5950 = vrot.slane %v5732, 4
      %v5951 = vsel %vm1026, %v5948, %v5950
      %v5952 = vrot.slane %v5737, 4
      %v5953 = vsel %vm1026, %v5950, %v5952
      %v5954 = vsel %vm1026, %v5952, %v5893
      %v5961 = vsel %vm1026, %v5944, %v5947
      %v5962 = vmul.f32 %v5942, %v1135
      %v5963 = vmul.f32 %v5961, %v1140
      %v5964 = vmul.f32 %v5949, %v1145
      %v5965 = vmul.f32 %v5951, %v1150
      %v5966 = vmul.f32 %v5953, %v1155
      %v5967 = vmul.f32 %v5954, %v1160
      %v5968 = vmul.f32 %v5893, %v1165
      %v5969 = vlaneseq
      %v5970 = vshrl.u32 %v5969, 7
      %v5971 = vsub.s32 4, %v5970
      %v5972 = vrot.slane %v5756, %v5971
      %v5973 = vmul.f32 %v5962, %v5972
      %v5974 = vmul.f32 %v5963, %v5972
      %v5975 = vmul.f32 %v5964, %v5972
      %v5976 = vmul.f32 %v5965, %v5972
      %v5977 = vmul.f32 %v5966, %v5972
      %v5978 = vmul.f32 %v5967, %v5972
      %v5979 = vmul.f32 %v5968, %v5972
      %v5980 = vadd.f32 %v5933, %v5973
      %v5981 = vadd.f32 %v5934, %v5974
      %v5982 = vadd.f32 %v5935, %v5975
      %v5983 = vadd.f32 %v5936, %v5976
      %v5984 = vadd.f32 %v5937, %v5977
      %v5985 = vadd.f32 %v5938, %v5978
      %v5986 = vadd.f32 %v5939, %v5979
      %v5987 = vrot.slane %v5722, 7
      %v5988 = vrot.slane %v5727, 7
      %v5989 = vsel %vm1192, %v5987, %v5988
      %v5990 = vrot.slane %v5732, 7
      %v5991 = vsel %vm1192, %v5988, %v5990
      %v5992 = vrot.slane %v5737, 7
      %v5993 = vsel %vm1192, %v5990, %v5992
      %v5994 = vrot.slane %v5742, 7
      %v5995 = vsel %vm1192, %v5992, %v5994
      %v6002 = vsel %vm1192, %v5752, %v5987
      %v6003 = vmul.f32 %v5747, %v1212
      %v6004 = vmul.f32 %v6002, %v1217
      %v6005 = vmul.f32 %v5989, %v1222
      %v6006 = vmul.f32 %v5991, %v1227
      %v6007 = vmul.f32 %v5993, %v1232
      %v6008 = vmul.f32 %v5995, %v1237
      %v6009 = vmul.f32 %v5994, %v1242
      %v6010 = vlaneseq
      %v6011 = vshrl.u32 %v6010, 7
      %v6012 = vsub.s32 5, %v6011
      %v6013 = vrot.slane %v5756, %v6012
      %v6014 = vmul.f32 %v6003, %v6013
      %v6015 = vmul.f32 %v6004, %v6013
      %v6016 = vmul.f32 %v6005, %v6013
      %v6017 = vmul.f32 %v6006, %v6013
      %v6018 = vmul.f32 %v6007, %v6013
      %v6019 = vmul.f32 %v6008, %v6013
      %v6020 = vmul.f32 %v6009, %v6013
      %v6021 = vadd.f32 %v5980, %v6014
      %v6022 = vadd.f32 %v5981, %v6015
      %v6023 = vadd.f32 %v5982, %v6016
      %v6024 = vadd.f32 %v5983, %v6017
      %v6025 = vadd.f32 %v5984, %v6018
      %v6026 = vadd.f32 %v5985, %v6019
      %v6027 = vadd.f32 %v5986, %v6020
      %v6028 = vmul.f32 %v5767, %v1272
      %v6029 = vmul.f32 %v5722, %v1277
      %v6030 = vmul.f32 %v5727, %v1282
      %v6031 = vmul.f32 %v5732, %v1287
      %v6032 = vmul.f32 %v5737, %v1292
      %v6033 = vmul.f32 %v5742, %v1297
      %v6034 = vmul.f32 %v5747, %v1302
      %v6035 = vlaneseq
      %v6036 = vshrl.u32 %v6035, 7
      %v6037 = vsub.s32 6, %v6036
      %v6038 = vrot.slane %v5756, %v6037
      %v6039 = vmul.f32 %v6028, %v6038
      %v6040 = vmul.f32 %v6029, %v6038
      %v6041 = vmul.f32 %v6030, %v6038
      %v6042 = vmul.f32 %v6031, %v6038
      %v6043 = vmul.f32 %v6032, %v6038
      %v6044 = vmul.f32 %v6033, %v6038
      %v6045 = vmul.f32 %v6034, %v6038
      %v6046 = vadd.f32 %v6021, %v6039
      %v6047 = vadd.f32 %v6022, %v6040
      %v6048 = vadd.f32 %v6023, %v6041
      %v6049 = vadd.f32 %v6024, %v6042
      %v6050 = vadd.f32 %v6025, %v6043
      %v6051 = vadd.f32 %v6026, %v6044
      %v6052 = vadd.f32 %v6027, %v6045
      %v6054 = vmul.f32 %v5820, %v1333
      %v6055 = vmul.f32 %v5808, %v1338
      %v6056 = vmul.f32 %v5810, %v1343
      %v6057 = vmul.f32 %v5812, %v1348
      %v6058 = vmul.f32 %v5813, %v1353
      %v6059 = vmul.f32 %v5765, %v1358
      %v6060 = vmul.f32 %v5764, %v1363
      %v6061 = vlaneseq
      %v6062 = vshrl.u32 %v6061, 7
      %v6063 = vsub.s32 7, %v6062
      %v6064 = vrot.slane %v5756, %v6063
      %v6065 = vmul.f32 %v6054, %v6064
      %v6066 = vmul.f32 %v6055, %v6064
      %v6067 = vmul.f32 %v6056, %v6064
      %v6068 = vmul.f32 %v6057, %v6064
      %v6069 = vmul.f32 %v6058, %v6064
      %v6070 = vmul.f32 %v6059, %v6064
      %v6071 = vmul.f32 %v6060, %v6064
      %v6072 = vadd.f32 %v6046, %v6065
      %v6073 = vadd.f32 %v6047, %v6066
      %v6074 = vadd.f32 %v6048, %v6067
      %v6075 = vadd.f32 %v6049, %v6068
      %v6076 = vadd.f32 %v6050, %v6069
      %v6077 = vadd.f32 %v6051, %v6070
      %v6078 = vadd.f32 %v6052, %v6071
      %v6080 = vmul.f32 %v5867, %v1394
      %v6081 = vmul.f32 %v5855, %v1399
      %v6082 = vmul.f32 %v5857, %v1404
      %v6083 = vmul.f32 %v5859, %v1409
      %v6084 = vmul.f32 %v5860, %v1414
      %v6085 = vmul.f32 %v5797, %v1419
      %v6086 = vmul.f32 %v5796, %v1424
      %v6087 = vlaneseq
      %v6088 = vshrl.u32 %v6087, 7
      %v6089 = vsub.s32 0, %v6088
      %v6090 = vrot.slane %v5757, %v6089
      %v6091 = vmul.f32 %v6080, %v6090
      %v6092 = vmul.f32 %v6081, %v6090
      %v6093 = vmul.f32 %v6082, %v6090
      %v6094 = vmul.f32 %v6083, %v6090
      %v6095 = vmul.f32 %v6084, %v6090
      %v6096 = vmul.f32 %v6085, %v6090
      %v6097 = vmul.f32 %v6086, %v6090
      %v6098 = vadd.f32 %v6072, %v6091
      %v6099 = vadd.f32 %v6073, %v6092
      %v6100 = vadd.f32 %v6074, %v6093
      %v6101 = vadd.f32 %v6075, %v6094
      %v6102 = vadd.f32 %v6076, %v6095
      %v6103 = vadd.f32 %v6077, %v6096
      %v6104 = vadd.f32 %v6078, %v6097
      %v6106 = vmul.f32 %v5914, %v1455
      %v6107 = vmul.f32 %v5902, %v1460
      %v6108 = vmul.f32 %v5904, %v1465
      %v6109 = vmul.f32 %v5906, %v1470
      %v6110 = vmul.f32 %v5907, %v1475
      %v6111 = vmul.f32 %v5848, %v1480
      %v6112 = vmul.f32 %v5847, %v1485
      %v6113 = vlaneseq
      %v6114 = vshrl.u32 %v6113, 7
      %v6115 = vsub.s32 1, %v6114
      %v6116 = vrot.slane %v5757, %v6115
      %v6117 = vmul.f32 %v6106, %v6116
      %v6118 = vmul.f32 %v6107, %v6116
      %v6119 = vmul.f32 %v6108, %v6116
      %v6120 = vmul.f32 %v6109, %v6116
      %v6121 = vmul.f32 %v6110, %v6116
      %v6122 = vmul.f32 %v6111, %v6116
      %v6123 = vmul.f32 %v6112, %v6116
      %v6124 = vadd.f32 %v6098, %v6117
      %v6125 = vadd.f32 %v6099, %v6118
      %v6126 = vadd.f32 %v6100, %v6119
      %v6127 = vadd.f32 %v6101, %v6120
      %v6128 = vadd.f32 %v6102, %v6121
      %v6129 = vadd.f32 %v6103, %v6122
      %v6130 = vadd.f32 %v6104, %v6123
      %v6131 = vrot.slane %v5747, 7
      %v6132 = vrot.slane %v5752, 7
      %v6133 = vsel %vm1192, %v6131, %v6132
      %v6135 = vrot.slane %v5722, 6
      %v6136 = vrot.slane %v5727, 6
      %v6137 = vsel %vm1516, %v6135, %v6136
      %v6138 = vrot.slane %v5732, 6
      %v6139 = vsel %vm1516, %v6136, %v6138
      %v6140 = vrot.slane %v5737, 6
      %v6141 = vsel %vm1516, %v6138, %v6140
      %v6142 = vrot.slane %v5742, 6
      %v6143 = vsel %vm1516, %v6140, %v6142
      %v6144 = vrot.slane %v5747, 6
      %v6145 = vsel %vm1516, %v6142, %v6144
      %v6153 = vsel %vm1516, %v6133, %v6135
      %v6154 = vmul.f32 %v6153, %v1539
      %v6155 = vmul.f32 %v6137, %v1544
      %v6156 = vmul.f32 %v6139, %v1549
      %v6157 = vmul.f32 %v6141, %v1554
      %v6158 = vmul.f32 %v6143, %v1559
      %v6159 = vmul.f32 %v6145, %v1564
      %v6160 = vmul.f32 %v6144, %v1569
      %v6161 = vlaneseq
      %v6162 = vshrl.u32 %v6161, 7
      %v6163 = vsub.s32 2, %v6162
      %v6164 = vrot.slane %v5757, %v6163
      %v6165 = vmul.f32 %v6154, %v6164
      %v6166 = vmul.f32 %v6155, %v6164
      %v6167 = vmul.f32 %v6156, %v6164
      %v6168 = vmul.f32 %v6157, %v6164
      %v6169 = vmul.f32 %v6158, %v6164
      %v6170 = vmul.f32 %v6159, %v6164
      %v6171 = vmul.f32 %v6160, %v6164
      %v6172 = vadd.f32 %v6124, %v6165
      %v6173 = vadd.f32 %v6125, %v6166
      %v6174 = vadd.f32 %v6126, %v6167
      %v6175 = vadd.f32 %v6127, %v6168
      %v6176 = vadd.f32 %v6128, %v6169
      %v6177 = vadd.f32 %v6129, %v6170
      %v6178 = vadd.f32 %v6130, %v6171
      %v6179 = vsel %vm1192, %v5994, %v6131
      %v6182 = vmul.f32 %v6002, %v1602
      %v6183 = vmul.f32 %v5989, %v1607
      %v6184 = vmul.f32 %v5991, %v1612
      %v6185 = vmul.f32 %v5993, %v1617
      %v6186 = vmul.f32 %v5995, %v1622
      %v6187 = vmul.f32 %v6179, %v1627
      %v6188 = vmul.f32 %v6131, %v1632
      %v6189 = vlaneseq
      %v6190 = vshrl.u32 %v6189, 7
      %v6191 = vsub.s32 3, %v6190
      %v6192 = vrot.slane %v5757, %v6191
      %v6193 = vmul.f32 %v6182, %v6192
      %v6194 = vmul.f32 %v6183, %v6192
      %v6195 = vmul.f32 %v6184, %v6192
      %v6196 = vmul.f32 %v6185, %v6192
      %v6197 = vmul.f32 %v6186, %v6192
      %v6198 = vmul.f32 %v6187, %v6192
      %v6199 = vmul.f32 %v6188, %v6192
      %v6200 = vadd.f32 %v6172, %v6193
      %v6201 = vadd.f32 %v6173, %v6194
      %v6202 = vadd.f32 %v6174, %v6195
      %v6203 = vadd.f32 %v6175, %v6196
      %v6204 = vadd.f32 %v6176, %v6197
      %v6205 = vadd.f32 %v6177, %v6198
      %v6206 = vadd.f32 %v6178, %v6199
      %v6207 = vmul.f32 %v5722, %v1662
      %v6208 = vmul.f32 %v5727, %v1667
      %v6209 = vmul.f32 %v5732, %v1672
      %v6210 = vmul.f32 %v5737, %v1677
      %v6211 = vmul.f32 %v5742, %v1682
      %v6212 = vmul.f32 %v5747, %v1687
      %v6213 = vmul.f32 %v5752, %v1692
      %v6214 = vlaneseq
      %v6215 = vshrl.u32 %v6214, 7
      %v6216 = vsub.s32 4, %v6215
      %v6217 = vrot.slane %v5757, %v6216
      %v6218 = vmul.f32 %v6207, %v6217
      %v6219 = vmul.f32 %v6208, %v6217
      %v6220 = vmul.f32 %v6209, %v6217
      %v6221 = vmul.f32 %v6210, %v6217
      %v6222 = vmul.f32 %v6211, %v6217
      %v6223 = vmul.f32 %v6212, %v6217
      %v6224 = vmul.f32 %v6213, %v6217
      %v6225 = vadd.f32 %v6200, %v6218
      %v6226 = vadd.f32 %v6201, %v6219
      %v6227 = vadd.f32 %v6202, %v6220
      %v6228 = vadd.f32 %v6203, %v6221
      %v6229 = vadd.f32 %v6204, %v6222
      %v6230 = vadd.f32 %v6205, %v6223
      %v6231 = vadd.f32 %v6206, %v6224
      %v6232 = vmul.f32 %v5808, %v1722
      %v6233 = vmul.f32 %v5810, %v1727
      %v6234 = vmul.f32 %v5812, %v1732
      %v6235 = vmul.f32 %v5813, %v1737
      %v6236 = vmul.f32 %v5765, %v1742
      %v6237 = vmul.f32 %v5767, %v1747
      %v6238 = vmul.f32 %v5722, %v1752
      %v6239 = vlaneseq
      %v6240 = vshrl.u32 %v6239, 7
      %v6241 = vsub.s32 5, %v6240
      %v6242 = vrot.slane %v5757, %v6241
      %v6243 = vmul.f32 %v6232, %v6242
      %v6244 = vmul.f32 %v6233, %v6242
      %v6245 = vmul.f32 %v6234, %v6242
      %v6246 = vmul.f32 %v6235, %v6242
      %v6247 = vmul.f32 %v6236, %v6242
      %v6248 = vmul.f32 %v6237, %v6242
      %v6249 = vmul.f32 %v6238, %v6242
      %v6250 = vadd.f32 %v6225, %v6243
      %v6251 = vadd.f32 %v6226, %v6244
      %v6252 = vadd.f32 %v6227, %v6245
      %v6253 = vadd.f32 %v6228, %v6246
      %v6254 = vadd.f32 %v6229, %v6247
      %v6255 = vadd.f32 %v6230, %v6248
      %v6256 = vadd.f32 %v6231, %v6249
      %v6257 = vmul.f32 %v5855, %v1782
      %v6258 = vmul.f32 %v5857, %v1787
      %v6259 = vmul.f32 %v5859, %v1792
      %v6260 = vmul.f32 %v5860, %v1797
      %v6261 = vmul.f32 %v5797, %v1802
      %v6262 = vmul.f32 %v5820, %v1807
      %v6263 = vmul.f32 %v5806, %v1812
      %v6264 = vlaneseq
      %v6265 = vshrl.u32 %v6264, 7
      %v6266 = vsub.s32 6, %v6265
      %v6267 = vrot.slane %v5757, %v6266
      %v6268 = vmul.f32 %v6257, %v6267
      %v6269 = vmul.f32 %v6258, %v6267
      %v6270 = vmul.f32 %v6259, %v6267
      %v6271 = vmul.f32 %v6260, %v6267
      %v6272 = vmul.f32 %v6261, %v6267
      %v6273 = vmul.f32 %v6262, %v6267
      %v6274 = vmul.f32 %v6263, %v6267
      %v6275 = vadd.f32 %v6250, %v6268
      %v6276 = vadd.f32 %v6251, %v6269
      %v6277 = vadd.f32 %v6252, %v6270
      %v6278 = vadd.f32 %v6253, %v6271
      %v6279 = vadd.f32 %v6254, %v6272
      %v6280 = vadd.f32 %v6255, %v6273
      %v6281 = vadd.f32 %v6256, %v6274
      %v6282 = vrot.slane %v5722, 5
      %v6283 = vrot.slane %v5727, 5
      %v6284 = vsel %vm1109, %v6282, %v6283
      %v6285 = vrot.slane %v5732, 5
      %v6286 = vsel %vm1109, %v6283, %v6285
      %v6287 = vrot.slane %v5737, 5
      %v6288 = vsel %vm1109, %v6285, %v6287
      %v6289 = vsel %vm1109, %v6287, %v5940
      %v6294 = vmul.f32 %v6284, %v1854
      %v6295 = vmul.f32 %v6286, %v1859
      %v6296 = vmul.f32 %v6288, %v1864
      %v6297 = vmul.f32 %v6289, %v1869
      %v6298 = vmul.f32 %v5942, %v1874
      %v6299 = vmul.f32 %v5961, %v1879
      %v6300 = vmul.f32 %v5947, %v1884
      %v6301 = vlaneseq
      %v6302 = vshrl.u32 %v6301, 7
      %v6303 = vsub.s32 7, %v6302
      %v6304 = vrot.slane %v5757, %v6303
      %v6305 = vmul.f32 %v6294, %v6304
      %v6306 = vmul.f32 %v6295, %v6304
      %v6307 = vmul.f32 %v6296, %v6304
      %v6308 = vmul.f32 %v6297, %v6304
      %v6309 = vmul.f32 %v6298, %v6304
      %v6310 = vmul.f32 %v6299, %v6304
      %v6311 = vmul.f32 %v6300, %v6304
      %v6312 = vadd.f32 %v6275, %v6305
      %v6313 = vadd.f32 %v6276, %v6306
      %v6314 = vadd.f32 %v6277, %v6307
      %v6315 = vadd.f32 %v6278, %v6308
      %v6316 = vadd.f32 %v6279, %v6309
      %v6317 = vadd.f32 %v6280, %v6310
      %v6318 = vadd.f32 %v6281, %v6311
      %v6319 = vrot.slane %v5752, 6
      %v6320 = vsel %vm1516, %v6144, %v6319
      %v6323 = vsel %vm1109, %v6320, %v6282
      %v6324 = vmul.f32 %v6137, %v1919
      %v6325 = vmul.f32 %v6139, %v1924
      %v6326 = vmul.f32 %v6141, %v1929
      %v6327 = vmul.f32 %v6143, %v1934
      %v6328 = vmul.f32 %v6145, %v1939
      %v6329 = vmul.f32 %v6323, %v1944
      %v6330 = vmul.f32 %v6282, %v1949
      %v6331 = vlaneseq
      %v6332 = vshrl.u32 %v6331, 7
      %v6333 = vsub.s32 0, %v6332
      %v6334 = vrot.slane %v5758, %v6333
      %v6335 = vmul.f32 %v6324, %v6334
      %v6336 = vmul.f32 %v6325, %v6334
      %v6337 = vmul.f32 %v6326, %v6334
      %v6338 = vmul.f32 %v6327, %v6334
      %v6339 = vmul.f32 %v6328, %v6334
      %v6340 = vmul.f32 %v6329, %v6334
      %v6341 = vmul.f32 %v6330, %v6334
      %v6342 = vadd.f32 %v6312, %v6335
      %v6343 = vadd.f32 %v6313, %v6336
      %v6344 = vadd.f32 %v6314, %v6337
      %v6345 = vadd.f32 %v6315, %v6338
      %v6346 = vadd.f32 %v6316, %v6339
      %v6347 = vadd.f32 %v6317, %v6340
      %v6348 = vadd.f32 %v6318, %v6341
      %v6349 = vmul.f32 %v5989, %v1979
      %v6350 = vmul.f32 %v5991, %v1984
      %v6351 = vmul.f32 %v5993, %v1989
      %v6352 = vmul.f32 %v5995, %v1994
      %v6353 = vmul.f32 %v6179, %v1999
      %v6354 = vmul.f32 %v6153, %v2004
      %v6355 = vmul.f32 %v6135, %v2009
      %v6356 = vlaneseq
      %v6357 = vshrl.u32 %v6356, 7
      %v6358 = vsub.s32 1, %v6357
      %v6359 = vrot.slane %v5758, %v6358
      %v6360 = vmul.f32 %v6349, %v6359
      %v6361 = vmul.f32 %v6350, %v6359
      %v6362 = vmul.f32 %v6351, %v6359
      %v6363 = vmul.f32 %v6352, %v6359
      %v6364 = vmul.f32 %v6353, %v6359
      %v6365 = vmul.f32 %v6354, %v6359
      %v6366 = vmul.f32 %v6355, %v6359
      %v6367 = vadd.f32 %v6342, %v6360
      %v6368 = vadd.f32 %v6343, %v6361
      %v6369 = vadd.f32 %v6344, %v6362
      %v6370 = vadd.f32 %v6345, %v6363
      %v6371 = vadd.f32 %v6346, %v6364
      %v6372 = vadd.f32 %v6347, %v6365
      %v6373 = vadd.f32 %v6348, %v6366
      %v6374 = vmul.f32 %v5727, %v2039
      %v6375 = vmul.f32 %v5732, %v2044
      %v6376 = vmul.f32 %v5737, %v2049
      %v6377 = vmul.f32 %v5742, %v2054
      %v6378 = vmul.f32 %v5747, %v2059
      %v6379 = vmul.f32 %v6002, %v2064
      %v6380 = vmul.f32 %v5987, %v2069
      %v6381 = vlaneseq
      %v6382 = vshrl.u32 %v6381, 7
      %v6383 = vsub.s32 2, %v6382
      %v6384 = vrot.slane %v5758, %v6383
      %v6385 = vmul.f32 %v6374, %v6384
      %v6386 = vmul.f32 %v6375, %v6384
      %v6387 = vmul.f32 %v6376, %v6384
      %v6388 = vmul.f32 %v6377, %v6384
      %v6389 = vmul.f32 %v6378, %v6384
      %v6390 = vmul.f32 %v6379, %v6384
      %v6391 = vmul.f32 %v6380, %v6384
      %v6392 = vadd.f32 %v6367, %v6385
      %v6393 = vadd.f32 %v6368, %v6386
      %v6394 = vadd.f32 %v6369, %v6387
      %v6395 = vadd.f32 %v6370, %v6388
      %v6396 = vadd.f32 %v6371, %v6389
      %v6397 = vadd.f32 %v6372, %v6390
      %v6398 = vadd.f32 %v6373, %v6391
      %v6399 = vmul.f32 %v5810, %v2099
      %v6400 = vmul.f32 %v5812, %v2104
      %v6401 = vmul.f32 %v5813, %v2109
      %v6402 = vmul.f32 %v5765, %v2114
      %v6403 = vmul.f32 %v5767, %v2119
      %v6404 = vmul.f32 %v5722, %v2124
      %v6405 = vmul.f32 %v5727, %v2129
      %v6406 = vlaneseq
      %v6407 = vshrl.u32 %v6406, 7
      %v6408 = vsub.s32 3, %v6407
      %v6409 = vrot.slane %v5758, %v6408
      %v6410 = vmul.f32 %v6399, %v6409
      %v6411 = vmul.f32 %v6400, %v6409
      %v6412 = vmul.f32 %v6401, %v6409
      %v6413 = vmul.f32 %v6402, %v6409
      %v6414 = vmul.f32 %v6403, %v6409
      %v6415 = vmul.f32 %v6404, %v6409
      %v6416 = vmul.f32 %v6405, %v6409
      %v6417 = vadd.f32 %v6392, %v6410
      %v6418 = vadd.f32 %v6393, %v6411
      %v6419 = vadd.f32 %v6394, %v6412
      %v6420 = vadd.f32 %v6395, %v6413
      %v6421 = vadd.f32 %v6396, %v6414
      %v6422 = vadd.f32 %v6397, %v6415
      %v6423 = vadd.f32 %v6398, %v6416
      %v6425 = vmul.f32 %v5951, %v2160
      %v6426 = vmul.f32 %v5953, %v2165
      %v6427 = vmul.f32 %v5954, %v2170
      %v6428 = vmul.f32 %v5895, %v2175
      %v6429 = vmul.f32 %v5914, %v2180
      %v6430 = vmul.f32 %v5902, %v2185
      %v6431 = vmul.f32 %v5901, %v2190
      %v6432 = vlaneseq
      %v6433 = vshrl.u32 %v6432, 7
      %v6434 = vsub.s32 4, %v6433
      %v6435 = vrot.slane %v5758, %v6434
      %v6436 = vmul.f32 %v6425, %v6435
      %v6437 = vmul.f32 %v6426, %v6435
      %v6438 = vmul.f32 %v6427, %v6435
      %v6439 = vmul.f32 %v6428, %v6435
      %v6440 = vmul.f32 %v6429, %v6435
      %v6441 = vmul.f32 %v6430, %v6435
      %v6442 = vmul.f32 %v6431, %v6435
      %v6443 = vadd.f32 %v6417, %v6436
      %v6444 = vadd.f32 %v6418, %v6437
      %v6445 = vadd.f32 %v6419, %v6438
      %v6446 = vadd.f32 %v6420, %v6439
      %v6447 = vadd.f32 %v6421, %v6440
      %v6448 = vadd.f32 %v6422, %v6441
      %v6449 = vadd.f32 %v6423, %v6442
      %v6451 = vmul.f32 %v6286, %v2221
      %v6452 = vmul.f32 %v6288, %v2226
      %v6453 = vmul.f32 %v6289, %v2231
      %v6454 = vmul.f32 %v5942, %v2236
      %v6455 = vmul.f32 %v5961, %v2241
      %v6456 = vmul.f32 %v5949, %v2246
      %v6457 = vmul.f32 %v5948, %v2251
      %v6458 = vlaneseq
      %v6459 = vshrl.u32 %v6458, 7
      %v6460 = vsub.s32 5, %v6459
      %v6461 = vrot.slane %v5758, %v6460
      %v6462 = vmul.f32 %v6451, %v6461
      %v6463 = vmul.f32 %v6452, %v6461
      %v6464 = vmul.f32 %v6453, %v6461
      %v6465 = vmul.f32 %v6454, %v6461
      %v6466 = vmul.f32 %v6455, %v6461
      %v6467 = vmul.f32 %v6456, %v6461
      %v6468 = vmul.f32 %v6457, %v6461
      %v6469 = vadd.f32 %v6443, %v6462
      %v6470 = vadd.f32 %v6444, %v6463
      %v6471 = vadd.f32 %v6445, %v6464
      %v6472 = vadd.f32 %v6446, %v6465
      %v6473 = vadd.f32 %v6447, %v6466
      %v6474 = vadd.f32 %v6448, %v6467
      %v6475 = vadd.f32 %v6449, %v6468
      %v6477 = vmul.f32 %v6139, %v2282
      %v6478 = vmul.f32 %v6141, %v2287
      %v6479 = vmul.f32 %v6143, %v2292
      %v6480 = vmul.f32 %v6145, %v2297
      %v6481 = vmul.f32 %v6323, %v2302
      %v6482 = vmul.f32 %v6284, %v2307
      %v6483 = vmul.f32 %v6283, %v2312
      %v6484 = vlaneseq
      %v6485 = vshrl.u32 %v6484, 7
      %v6486 = vsub.s32 6, %v6485
      %v6487 = vrot.slane %v5758, %v6486
      %v6488 = vmul.f32 %v6477, %v6487
      %v6489 = vmul.f32 %v6478, %v6487
      %v6490 = vmul.f32 %v6479, %v6487
      %v6491 = vmul.f32 %v6480, %v6487
      %v6492 = vmul.f32 %v6481, %v6487
      %v6493 = vmul.f32 %v6482, %v6487
      %v6494 = vmul.f32 %v6483, %v6487
      %v6495 = vadd.f32 %v6469, %v6488
      %v6496 = vadd.f32 %v6470, %v6489
      %v6497 = vadd.f32 %v6471, %v6490
      %v6498 = vadd.f32 %v6472, %v6491
      %v6499 = vadd.f32 %v6473, %v6492
      %v6500 = vadd.f32 %v6474, %v6493
      %v6501 = vadd.f32 %v6475, %v6494
      %v6503 = vmul.f32 %v5991, %v2343
      %v6504 = vmul.f32 %v5993, %v2348
      %v6505 = vmul.f32 %v5995, %v2353
      %v6506 = vmul.f32 %v6179, %v2358
      %v6507 = vmul.f32 %v6153, %v2363
      %v6508 = vmul.f32 %v6137, %v2368
      %v6509 = vmul.f32 %v6136, %v2373
      %v6510 = vlaneseq
      %v6511 = vshrl.u32 %v6510, 7
      %v6512 = vsub.s32 7, %v6511
      %v6513 = vrot.slane %v5758, %v6512
      %v6514 = vmul.f32 %v6503, %v6513
      %v6515 = vmul.f32 %v6504, %v6513
      %v6516 = vmul.f32 %v6505, %v6513
      %v6517 = vmul.f32 %v6506, %v6513
      %v6518 = vmul.f32 %v6507, %v6513
      %v6519 = vmul.f32 %v6508, %v6513
      %v6520 = vmul.f32 %v6509, %v6513
      %v6521 = vadd.f32 %v6495, %v6514
      %v6522 = vadd.f32 %v6496, %v6515
      %v6523 = vadd.f32 %v6497, %v6516
      %v6524 = vadd.f32 %v6498, %v6517
      %v6525 = vadd.f32 %v6499, %v6518
      %v6526 = vadd.f32 %v6500, %v6519
      %v6527 = vadd.f32 %v6501, %v6520
      %v6529 = vmul.f32 %v5732, %v2404
      %v6530 = vmul.f32 %v5737, %v2409
      %v6531 = vmul.f32 %v5742, %v2414
      %v6532 = vmul.f32 %v5747, %v2419
      %v6533 = vmul.f32 %v6002, %v2424
      %v6534 = vmul.f32 %v5989, %v2429
      %v6535 = vmul.f32 %v5988, %v2434
      %v6536 = vlaneseq
      %v6537 = vshrl.u32 %v6536, 7
      %v6538 = vsub.s32 0, %v6537
      %v6539 = vrot.slane %v5759, %v6538
      %v6540 = vmul.f32 %v6529, %v6539
      %v6541 = vmul.f32 %v6530, %v6539
      %v6542 = vmul.f32 %v6531, %v6539
      %v6543 = vmul.f32 %v6532, %v6539
      %v6544 = vmul.f32 %v6533, %v6539
      %v6545 = vmul.f32 %v6534, %v6539
      %v6546 = vmul.f32 %v6535, %v6539
      %v6547 = vadd.f32 %v6521, %v6540
      %v6548 = vadd.f32 %v6522, %v6541
      %v6549 = vadd.f32 %v6523, %v6542
      %v6550 = vadd.f32 %v6524, %v6543
      %v6551 = vadd.f32 %v6525, %v6544
      %v6552 = vadd.f32 %v6526, %v6545
      %v6553 = vadd.f32 %v6527, %v6546
      %s6554 = scalar_lea.vmem %s4, 3
      %v6555 = vld [vmem:[%s6554] sm:$0x1]
      %v6557 = vlaneseq
      %v6558 = vshrl.u32 %v6557, 7
      %v6559 = vsub.s32 0, %v6558
      %v6560 = vrot.slane %v6555, %v6559
      %v6562 = vadd.f32 %v6547, %v6560
      %v6563 = vadd.f32 %v6548, %v6560
      %v6564 = vadd.f32 %v6549, %v6560
      %v6565 = vadd.f32 %v6550, %v6560
      %v6566 = vadd.f32 %v6551, %v6560
      %v6567 = vadd.f32 %v6552, %v6560
      %v6568 = vadd.f32 %v6553, %v6560
      %6569 = vrot.lane.b32.xlu0 %v5722, 112
      %v6570 = vpop.permute.xlu0 %6569
      %6571 = vrot.lane.b32.xlu0 %v5727, 112
      %v6572 = vpop.permute.xlu0 %6571
      %6573 = vrot.lane.b32.xlu0 %v5732, 112
      %v6574 = vpop.permute.xlu0 %6573
      %6575 = vrot.lane.b32.xlu0 %v5737, 112
      %v6576 = vpop.permute.xlu0 %6575
      %6577 = vrot.lane.b32.xlu0 %v5742, 112
      %v6578 = vpop.permute.xlu0 %6577
      %6579 = vrot.lane.b32.xlu0 %v5747, 112
      %v6580 = vpop.permute.xlu0 %6579
      %6581 = vrot.lane.b32.xlu0 %v5752, 112
      %v6582 = vpop.permute.xlu0 %6581
      %v6584 = vsel %vm2489, %v6562, 0
      %v6587 = vsel %vm2489, %v6563, 0
      %v6590 = vsel %vm2489, %v6564, 0
      %v6593 = vsel %vm2489, %v6565, 0
      %v6596 = vsel %vm2489, %v6566, 0
      %v6599 = vsel %vm2489, %v6567, 0
      %v6602 = vsel %vm2489, %v6568, 0
      %v6604 = vsel %vm2489, %v6570, 0
      %v6606 = vsel %vm2489, %v6572, 0
      %v6608 = vsel %vm2489, %v6574, 0
      %v6610 = vsel %vm2489, %v6576, 0
      %v6612 = vsel %vm2489, %v6578, 0
      %v6614 = vsel %vm2489, %v6580, 0
      %v6616 = vsel %vm2489, %v6582, 0
      %6618 = vmatprep.subr.mxu0 0.0
      %6619 = vmatpush1.xpose.msra.mxu0 %v6604
      %6620 = vmatprep.subr.mxu0 0.0
      %6621 = vmatpush1.xpose.msra.mxu0 %v6606
      %6622 = vmatprep.subr.mxu0 0.0
      %6623 = vmatpush1.xpose.msra.mxu0 %v6608
      %6624 = vmatprep.subr.mxu0 0.0
      %6625 = vmatpush1.xpose.msra.mxu0 %v6610
      %6626 = vmatprep.subr.mxu0 0.0
      %6627 = vmatpush1.xpose.msra.mxu0 %v6612
      %6628 = vmatprep.subr.mxu0 0.0
      %6629 = vmatpush1.xpose.msra.mxu0 %v6614
      %6630 = vmatprep.subr.mxu0 0.0
      %6631 = vmatpush1.xpose.msra.mxu0 %v6616
      %6632 = vmatprep.subr.mxu0 0.0
      %6633 = vmatpush1.xpose.msra.mxu0 0.0
      %6634 = vmatprep.subr.mxu0 0.0
      %6635 = vmatpush1.xpose.msra.mxu0 0.0
      %6636 = vmatprep.subr.mxu0 0.0
      %6637 = vmatpush1.xpose.msra.mxu0 0.0
      %6638 = vmatprep.subr.mxu0 0.0
      %6639 = vmatpush1.xpose.msra.mxu0 0.0
      %6640 = vmatprep.subr.mxu0 0.0
      %6641 = vmatpush1.xpose.msra.mxu0 0.0
      %6642 = vmatprep.subr.mxu0 0.0
      %6643 = vmatpush1.xpose.msra.mxu0 0.0
      %6644 = vmatprep.subr.mxu0 0.0
      %6645 = vmatpush1.xpose.msra.mxu0 0.0
      %6646 = vmatprep.subr.mxu0 0.0
      %6647 = vmatpush1.xpose.msra.mxu0 0.0
      %6648 = vmatprep.subr.mxu0 0.0
      %6649 = vmatpush1.xpose.msra.mxu0 0.0
      %6650 = vmatprep.subr.mxu0 0.0
      %6651 = vmatpush1.xpose.msra.mxu0 0.0
      %6652 = vmatprep.subr.mxu0 0.0
      %6653 = vmatpush1.xpose.msra.mxu0 0.0
      %6654 = vmatprep.subr.mxu0 0.0
      %6655 = vmatpush1.xpose.msra.mxu0 0.0
      %6656 = vmatprep.subr.mxu0 0.0
      %6657 = vmatpush1.xpose.msra.mxu0 0.0
      %6658 = vmatprep.subr.mxu0 0.0
      %6659 = vmatpush1.xpose.msra.mxu0 0.0
      %6660 = vmatprep.subr.mxu0 0.0
      %6661 = vmatpush1.xpose.msra.mxu0 0.0
      %6662 = vmatprep.subr.mxu0 0.0
      %6663 = vmatpush1.xpose.msra.mxu0 0.0
      %6664 = vmatprep.subr.mxu0 0.0
      %6665 = vmatpush1.xpose.msra.mxu0 0.0
      %6666 = vmatprep.subr.mxu0 0.0
      %6667 = vmatpush1.xpose.msra.mxu0 0.0
      %6668 = vmatprep.subr.mxu0 0.0
      %6669 = vmatpush1.xpose.msra.mxu0 0.0
      %6670 = vmatprep.subr.mxu0 0.0
      %6671 = vmatpush1.xpose.msra.mxu0 0.0
      %6672 = vmatprep.subr.mxu0 0.0
      %6673 = vmatpush1.xpose.msra.mxu0 0.0
      %6674 = vmatprep.subr.mxu0 0.0
      %6675 = vmatpush1.xpose.msra.mxu0 0.0
      %6676 = vmatprep.subr.mxu0 0.0
      %6677 = vmatpush1.xpose.msra.mxu0 0.0
      %6678 = vmatprep.subr.mxu0 0.0
      %6679 = vmatpush1.xpose.msra.mxu0 0.0
      %6680 = vmatprep.subr.mxu0 0.0
      %6681 = vmatpush1.xpose.msra.mxu0 0.0
      %6682 = vmatprep.mubr.f32.mxu0 0.0
      %6683 = vmatmul.mubr.f32.gmra.mrb[0].mxu0 %v6584
      %v6684 = vpop.f32.mrb[0].mxu0
      %v6685 = vadd.f32 0.0, %v6684
      %v6686 = vpop.f32.mrb[0].mxu0
      %6687 = vmatprep.mubr.f32.mxu0 0.0
      %6688 = vmatmul.mubr.f32.gmra.mrb[0].mxu0 %v6587
      %v6689 = vpop.f32.mrb[0].mxu0
      %v6690 = vadd.f32 0.0, %v6689
      %v6691 = vpop.f32.mrb[0].mxu0
      %6692 = vmatprep.mubr.f32.mxu0 0.0
      %6693 = vmatmul.mubr.f32.gmra.mrb[0].mxu0 %v6590
      %v6694 = vpop.f32.mrb[0].mxu0
      %v6695 = vadd.f32 0.0, %v6694
      %v6696 = vpop.f32.mrb[0].mxu0
      %6697 = vmatprep.mubr.f32.mxu0 0.0
      %6698 = vmatmul.mubr.f32.gmra.mrb[0].mxu0 %v6593
      %v6699 = vpop.f32.mrb[0].mxu0
      %v6700 = vadd.f32 0.0, %v6699
      %v6701 = vpop.f32.mrb[0].mxu0
      %6702 = vmatprep.mubr.f32.mxu0 0.0
      %6703 = vmatmul.mubr.f32.gmra.mrb[0].mxu0 %v6596
      %v6704 = vpop.f32.mrb[0].mxu0
      %v6705 = vadd.f32 0.0, %v6704
      %v6706 = vpop.f32.mrb[0].mxu0
      %6707 = vmatprep.mubr.f32.mxu0 0.0
      %6708 = vmatmul.mubr.f32.gmra.mrb[0].mxu0 %v6599
      %v6709 = vpop.f32.mrb[0].mxu0
      %v6710 = vadd.f32 0.0, %v6709
      %v6711 = vpop.f32.mrb[0].mxu0
      %6712 = vmatprep.mubr.f32.mxu0 0.0
      %6713 = vmatmul.mubr.f32.gmra.mrb[0].mxu0 %v6602
      %v6714 = vpop.f32.mrb[0].mxu0
      %v6715 = vadd.f32 0.0, %v6714
      %v6716 = vpop.f32.mrb[0].mxu0
      %6717 = vdwg.mxu0
      %v6718 = vmul.f32 %v6685, 0.25
      %v6719 = vmul.f32 %v6690, 0.25
      %v6720 = vmul.f32 %v6695, 0.25
      %v6721 = vmul.f32 %v6700, 0.25
      %v6722 = vmul.f32 %v6705, 0.25
      %v6723 = vmul.f32 %v6710, 0.25
      %v6724 = vmul.f32 %v6715, 0.25
      %s6725 = scalar_lea.vmem %s6, 168
      %v6726 = vld [vmem:[%s6725] sm:$0xff]
      %v6727 = vld [vmem:[%s6725 + $0x8] sm:$0xff]
      %v6728 = vld [vmem:[%s6725 + $0x10] sm:$0xff]
      %v6729 = vld [vmem:[%s6725 + $0x18] sm:$0xff]
      %v6730 = vld [vmem:[%s6725 + $0x20] sm:$0xff]
      %v6731 = vld [vmem:[%s6725 + $0x28] sm:$0xff]
      %v6732 = vld [vmem:[%s6725 + $0x30] sm:$0x1]
      %v6733 = vadd.f32 %v6718, %v6726
      %v6734 = vadd.f32 %v6719, %v6727
      %v6735 = vadd.f32 %v6720, %v6728
      %v6736 = vadd.f32 %v6721, %v6729
      %v6737 = vadd.f32 %v6722, %v6730
      %v6738 = vadd.f32 %v6723, %v6731
      %v6739 = vadd.f32 %v6724, %v6732
      %v6740 = vsel %vm2646, %v6733, -inf
      %6741 = vmax.xlane.f32.xlu0 %v6740
      %v6742 = vpop.xlane.xlu0 %6741
      %v6743 = vsel %vm2646, %v6734, -inf
      %6744 = vmax.xlane.f32.xlu0 %v6743
      %v6745 = vpop.xlane.xlu0 %6744
      %v6746 = vsel %vm2646, %v6735, -inf
      %6747 = vmax.xlane.f32.xlu0 %v6746
      %v6748 = vpop.xlane.xlu0 %6747
      %v6749 = vsel %vm2646, %v6736, -inf
      %6750 = vmax.xlane.f32.xlu0 %v6749
      %v6751 = vpop.xlane.xlu0 %6750
      %v6752 = vsel %vm2646, %v6737, -inf
      %6753 = vmax.xlane.f32.xlu0 %v6752
      %v6754 = vpop.xlane.xlu0 %6753
      %v6755 = vsel %vm2646, %v6738, -inf
      %6756 = vmax.xlane.f32.xlu0 %v6755
      %v6757 = vpop.xlane.xlu0 %6756
      %v6758 = vsel %vm2665, %v6739, -inf
      %6759 = vmax.xlane.f32.xlu0 %v6758
      %v6760 = vpop.xlane.xlu0 %6759
      %v6761 = vsub.f32 %v6733, %v6742
      %v6762 = vsub.f32 %v6734, %v6745
      %v6763 = vsub.f32 %v6735, %v6748
      %v6764 = vsub.f32 %v6736, %v6751
      %v6765 = vsub.f32 %v6737, %v6754
      %v6766 = vsub.f32 %v6738, %v6757
      %v6767 = vsub.f32 %v6739, %v6760
      %v6768 = vmul.f32 %v6761, 1.442695
      %v6769 = vpow.pop %v6768
      %v6770 = vmul.f32 %v6762, 1.442695
      %v6771 = vpow.pop %v6770
      %v6772 = vmul.f32 %v6763, 1.442695
      %v6773 = vpow.pop %v6772
      %v6774 = vmul.f32 %v6764, 1.442695
      %v6775 = vpow.pop %v6774
      %v6776 = vmul.f32 %v6765, 1.442695
      %v6777 = vpow.pop %v6776
      %v6778 = vmul.f32 %v6766, 1.442695
      %v6779 = vpow.pop %v6778
      %v6780 = vmul.f32 %v6767, 1.442695
      %v6781 = vpow.pop %v6780
      %v6782 = vsel %vm2646, %v6769, 0.0
      %6783 = vadd.xlane.f32.xlu0 %v6782
      %v6784 = vpop.xlane.xlu0 %6783
      %v6785 = vsel %vm2646, %v6771, 0.0
      %6786 = vadd.xlane.f32.xlu0 %v6785
      %v6787 = vpop.xlane.xlu0 %6786
      %v6788 = vsel %vm2646, %v6773, 0.0
      %6789 = vadd.xlane.f32.xlu0 %v6788
      %v6790 = vpop.xlane.xlu0 %6789
      %v6791 = vsel %vm2646, %v6775, 0.0
      %6792 = vadd.xlane.f32.xlu0 %v6791
      %v6793 = vpop.xlane.xlu0 %6792
      %v6794 = vsel %vm2646, %v6777, 0.0
      %6795 = vadd.xlane.f32.xlu0 %v6794
      %v6796 = vpop.xlane.xlu0 %6795
      %v6797 = vsel %vm2646, %v6779, 0.0
      %6798 = vadd.xlane.f32.xlu0 %v6797
      %v6799 = vpop.xlane.xlu0 %6798
      %v6800 = vsel %vm2665, %v6781, 0.0
      %6801 = vadd.xlane.f32.xlu0 %v6800
      %v6802 = vpop.xlane.xlu0 %6801
      %v6803 = vrcp.pop %v6784
      %v6804 = vrcp.pop %v6787
      %v6805 = vrcp.pop %v6790
      %v6806 = vrcp.pop %v6793
      %v6807 = vrcp.pop %v6796
      %v6808 = vrcp.pop %v6799
      %v6809 = vrcp.pop %v6802
      %v6810 = vmul.f32 %v6769, %v6803
      %v6811 = vmul.f32 %v6771, %v6804
      %v6812 = vmul.f32 %v6773, %v6805
      %v6813 = vmul.f32 %v6775, %v6806
      %v6814 = vmul.f32 %v6777, %v6807
      %v6815 = vmul.f32 %v6779, %v6808
      %v6816 = vmul.f32 %v6781, %v6809
      %6817 = vrot.lane.b32.xlu0 %v5722, 96
      %v6818 = vpop.permute.xlu0 %6817
      %6819 = vrot.lane.b32.xlu0 %v5727, 96
      %v6820 = vpop.permute.xlu0 %6819
      %6821 = vrot.lane.b32.xlu0 %v5732, 96
      %v6822 = vpop.permute.xlu0 %6821
      %6823 = vrot.lane.b32.xlu0 %v5737, 96
      %v6824 = vpop.permute.xlu0 %6823
      %6825 = vrot.lane.b32.xlu0 %v5742, 96
      %v6826 = vpop.permute.xlu0 %6825
      %6827 = vrot.lane.b32.xlu0 %v5747, 96
      %v6828 = vpop.permute.xlu0 %6827
      %6829 = vrot.lane.b32.xlu0 %v5752, 96
      %v6830 = vpop.permute.xlu0 %6829
      %v6838 = vsel %vm2646, %v6810, 0
      %v6841 = vsel %vm2646, %v6811, 0
      %v6844 = vsel %vm2646, %v6812, 0
      %v6847 = vsel %vm2646, %v6813, 0
      %v6850 = vsel %vm2646, %v6814, 0
      %v6853 = vsel %vm2646, %v6815, 0
      %v6856 = vsel %vm2646, %v6816, 0
      %v6858 = vsel %vm1192, %v6830, 0
      %6860 = vmatprep.subr.mxu0 0.0
      %6861 = vmatpush1.msra.mxu0 %v6818
      %6862 = vmatprep.subr.mxu0 0.0
      %6863 = vmatpush1.msra.mxu0 %v6820
      %6864 = vmatprep.subr.mxu0 0.0
      %6865 = vmatpush1.msra.mxu0 %v6822
      %6866 = vmatprep.subr.mxu0 0.0
      %6867 = vmatpush1.msra.mxu0 %v6824
      %6868 = vmatprep.subr.mxu0 0.0
      %6869 = vmatpush1.msra.mxu0 %v6826
      %6870 = vmatprep.subr.mxu0 0.0
      %6871 = vmatpush1.msra.mxu0 %v6828
      %6872 = vmatprep.subr.mxu0 0.0
      %6873 = vmatpush1.msra.mxu0 %v6858
      %6874 = vmatprep.subr.mxu0 0.0
      %6875 = vmatpush1.msra.mxu0 0.0
      %6876 = vmatprep.subr.mxu0 0.0
      %6877 = vmatpush1.msra.mxu0 0.0
      %6878 = vmatprep.subr.mxu0 0.0
      %6879 = vmatpush1.msra.mxu0 0.0
      %6880 = vmatprep.subr.mxu0 0.0
      %6881 = vmatpush1.msra.mxu0 0.0
      %6882 = vmatprep.subr.mxu0 0.0
      %6883 = vmatpush1.msra.mxu0 0.0
      %6884 = vmatprep.subr.mxu0 0.0
      %6885 = vmatpush1.msra.mxu0 0.0
      %6886 = vmatprep.subr.mxu0 0.0
      %6887 = vmatpush1.msra.mxu0 0.0
      %6888 = vmatprep.subr.mxu0 0.0
      %6889 = vmatpush1.msra.mxu0 0.0
      %6890 = vmatprep.subr.mxu0 0.0
      %6891 = vmatpush1.msra.mxu0 0.0
      %6892 = vmatprep.subr.mxu0 0.0
      %6893 = vmatpush1.msra.mxu0 0.0
      %6894 = vmatprep.subr.mxu0 0.0
      %6895 = vmatpush1.msra.mxu0 0.0
      %6896 = vmatprep.subr.mxu0 0.0
      %6897 = vmatpush1.msra.mxu0 0.0
      %6898 = vmatprep.subr.mxu0 0.0
      %6899 = vmatpush1.msra.mxu0 0.0
      %6900 = vmatprep.subr.mxu0 0.0
      %6901 = vmatpush1.msra.mxu0 0.0
      %6902 = vmatprep.subr.mxu0 0.0
      %6903 = vmatpush1.msra.mxu0 0.0
      %6904 = vmatprep.subr.mxu0 0.0
      %6905 = vmatpush1.msra.mxu0 0.0
      %6906 = vmatprep.subr.mxu0 0.0
      %6907 = vmatpush1.msra.mxu0 0.0
      %6908 = vmatprep.subr.mxu0 0.0
      %6909 = vmatpush1.msra.mxu0 0.0
      %6910 = vmatprep.subr.mxu0 0.0
      %6911 = vmatpush1.msra.mxu0 0.0
      %6912 = vmatprep.subr.mxu0 0.0
      %6913 = vmatpush1.msra.mxu0 0.0
      %6914 = vmatprep.subr.mxu0 0.0
      %6915 = vmatpush1.msra.mxu0 0.0
      %6916 = vmatprep.subr.mxu0 0.0
      %6917 = vmatpush1.msra.mxu0 0.0
      %6918 = vmatprep.subr.mxu0 0.0
      %6919 = vmatpush1.msra.mxu0 0.0
      %6920 = vmatprep.subr.mxu0 0.0
      %6921 = vmatpush1.msra.mxu0 0.0
      %6922 = vmatprep.subr.mxu0 0.0
      %6923 = vmatpush1.msra.mxu0 0.0
      %6924 = vmatprep.mubr.f32.mxu0 0.0
      %6925 = vmatmul.mubr.f32.gmra.mrb[0].mxu0 %v6838
      %v6926 = vpop.f32.mrb[0].mxu0
      %v6927 = vadd.f32 0.0, %v6926
      %v6928 = vpop.f32.mrb[0].mxu0
      %6929 = vmatprep.mubr.f32.mxu0 0.0
      %6930 = vmatmul.mubr.f32.gmra.mrb[0].mxu0 %v6841
      %v6931 = vpop.f32.mrb[0].mxu0
      %v6932 = vadd.f32 0.0, %v6931
      %v6933 = vpop.f32.mrb[0].mxu0
      %6934 = vmatprep.mubr.f32.mxu0 0.0
      %6935 = vmatmul.mubr.f32.gmra.mrb[0].mxu0 %v6844
      %v6936 = vpop.f32.mrb[0].mxu0
      %v6937 = vadd.f32 0.0, %v6936
      %v6938 = vpop.f32.mrb[0].mxu0
      %6939 = vmatprep.mubr.f32.mxu0 0.0
      %6940 = vmatmul.mubr.f32.gmra.mrb[0].mxu0 %v6847
      %v6941 = vpop.f32.mrb[0].mxu0
      %v6942 = vadd.f32 0.0, %v6941
      %v6943 = vpop.f32.mrb[0].mxu0
      %6944 = vmatprep.mubr.f32.mxu0 0.0
      %6945 = vmatmul.mubr.f32.gmra.mrb[0].mxu0 %v6850
      %v6946 = vpop.f32.mrb[0].mxu0
      %v6947 = vadd.f32 0.0, %v6946
      %v6948 = vpop.f32.mrb[0].mxu0
      %6949 = vmatprep.mubr.f32.mxu0 0.0
      %6950 = vmatmul.mubr.f32.gmra.mrb[0].mxu0 %v6853
      %v6951 = vpop.f32.mrb[0].mxu0
      %v6952 = vadd.f32 0.0, %v6951
      %v6953 = vpop.f32.mrb[0].mxu0
      %6954 = vmatprep.mubr.f32.mxu0 0.0
      %6955 = vmatmul.mubr.f32.gmra.mrb[0].mxu0 %v6856
      %v6956 = vpop.f32.mrb[0].mxu0
      %v6957 = vadd.f32 0.0, %v6956
      %v6958 = vpop.f32.mrb[0].mxu0
      %6959 = vdwg.mxu0
      %6967 = vrot.lane.b32.xlu0 %v4199, 8
      %v6968 = vpop.permute.xlu0 %6967
      %6969 = vrot.lane.b32.xlu0 %v4204, 8
      %v6970 = vpop.permute.xlu0 %6969
      %6971 = vrot.lane.b32.xlu0 %v4209, 8
      %v6972 = vpop.permute.xlu0 %6971
      %6973 = vrot.lane.b32.xlu0 %v4214, 8
      %v6974 = vpop.permute.xlu0 %6973
      %6975 = vrot.lane.b32.xlu0 %v4219, 8
      %v6976 = vpop.permute.xlu0 %6975
      %6977 = vrot.lane.b32.xlu0 %v4224, 8
      %v6978 = vpop.permute.xlu0 %6977
      %6979 = vrot.lane.b32.xlu0 %v4229, 8
      %v6980 = vpop.permute.xlu0 %6979
      %6995 = vrot.lane.b32.xlu0 %v5563, 16
      %v6996 = vpop.permute.xlu0 %6995
      %6997 = vrot.lane.b32.xlu0 %v5568, 16
      %v6998 = vpop.permute.xlu0 %6997
      %6999 = vrot.lane.b32.xlu0 %v5573, 16
      %v7000 = vpop.permute.xlu0 %6999
      %7001 = vrot.lane.b32.xlu0 %v5578, 16
      %v7002 = vpop.permute.xlu0 %7001
      %7003 = vrot.lane.b32.xlu0 %v5583, 16
      %v7004 = vpop.permute.xlu0 %7003
      %7005 = vrot.lane.b32.xlu0 %v5588, 16
      %v7006 = vpop.permute.xlu0 %7005
      %7007 = vrot.lane.b32.xlu0 %v5593, 16
      %v7008 = vpop.permute.xlu0 %7007
      %7023 = vrot.lane.b32.xlu0 %v6927, 24
      %v7024 = vpop.permute.xlu0 %7023
      %7025 = vrot.lane.b32.xlu0 %v6932, 24
      %v7026 = vpop.permute.xlu0 %7025
      %7027 = vrot.lane.b32.xlu0 %v6937, 24
      %v7028 = vpop.permute.xlu0 %7027
      %7029 = vrot.lane.b32.xlu0 %v6942, 24
      %v7030 = vpop.permute.xlu0 %7029
      %7031 = vrot.lane.b32.xlu0 %v6947, 24
      %v7032 = vpop.permute.xlu0 %7031
      %7033 = vrot.lane.b32.xlu0 %v6952, 24
      %v7034 = vpop.permute.xlu0 %7033
      %7035 = vrot.lane.b32.xlu0 %v6957, 24
      %v7036 = vpop.permute.xlu0 %7035
      %v7044 = vsel %vm659, %v2835, %v6968
      %v7045 = vsel %vm659, %v2840, %v6970
      %v7046 = vsel %vm659, %v2845, %v6972
      %v7047 = vsel %vm659, %v2850, %v6974
      %v7048 = vsel %vm659, %v2855, %v6976
      %v7049 = vsel %vm659, %v2860, %v6978
      %v7050 = vsel %vm659, %v2865, %v6980
      %v7051 = vsel %vm2489, %v7044, %v6996
      %v7052 = vsel %vm2489, %v7045, %v6998
      %v7053 = vsel %vm2489, %v7046, %v7000
      %v7054 = vsel %vm2489, %v7047, %v7002
      %v7055 = vsel %vm2489, %v7048, %v7004
      %v7056 = vsel %vm2489, %v7049, %v7006
      %v7057 = vsel %vm2489, %v7050, %v7008
      %vm7058 = vcmask 195584
      %v7059 = vsel %vm7058, %v7051, %v7024
      %v7060 = vsel %vm7058, %v7052, %v7026
      %v7061 = vsel %vm7058, %v7053, %v7028
      %v7062 = vsel %vm7058, %v7054, %v7030
      %v7063 = vsel %vm7058, %v7055, %v7032
      %v7064 = vsel %vm7058, %v7056, %v7034
      %v7065 = vsel %vm7058, %v7057, %v7036
      %v7066 = vmax.f32 %v7059, 0.0
      %v7067 = vmax.f32 %v7060, 0.0
      %v7068 = vmax.f32 %v7061, 0.0
      %v7069 = vmax.f32 %v7062, 0.0
      %v7070 = vmax.f32 %v7063, 0.0
      %v7071 = vmax.f32 %v7064, 0.0
      %v7072 = vmax.f32 %v7065, 0.0
      %v7073 = vld [vmem:[%s7] sm:$0xff]
      %v7074 = vld [vmem:[%s7 + $0x8] sm:$0xff]
      %v7075 = vld [vmem:[%s7 + $0x10] sm:$0xff]
      %v7076 = vld [vmem:[%s7 + $0x18] sm:$0xff]
      %v7077 = vld [vmem:[%s8] sm:$0x1]
      %v7079 = vlaneseq
      %v7080 = vshrl.u32 %v7079, 7
      %v7081 = vsub.s32 0, %v7080
      %v7082 = vrot.slane %v7077, %v7081
      %vm7084 = vcmask 261120
      %v7086 = vsel %vm7084, %v7066, 0
      %v7089 = vsel %vm7084, %v7067, 0
      %v7092 = vsel %vm7084, %v7068, 0
      %v7095 = vsel %vm7084, %v7069, 0
      %v7098 = vsel %vm7084, %v7070, 0
      %v7101 = vsel %vm7084, %v7071, 0
      %v7104 = vsel %vm7084, %v7072, 0
      %7106 = vmatprep.subr.mxu0 0.0
      %7107 = vmatpush1.msra.mxu0 %v7073
      %7108 = vmatprep.subr.mxu0 0.0
      %7109 = vmatpush1.msra.mxu0 %v7074
      %7110 = vmatprep.subr.mxu0 0.0
      %7111 = vmatpush1.msra.mxu0 %v7075
      %7112 = vmatprep.subr.mxu0 0.0
      %7113 = vmatpush1.msra.mxu0 %v7076
      %7114 = vmatprep.subr.mxu0 0.0
      %7115 = vmatpush1.msra.mxu0 0.0
      %7116 = vmatprep.subr.mxu0 0.0
      %7117 = vmatpush1.msra.mxu0 0.0
      %7118 = vmatprep.subr.mxu0 0.0
      %7119 = vmatpush1.msra.mxu0 0.0
      %7120 = vmatprep.subr.mxu0 0.0
      %7121 = vmatpush1.msra.mxu0 0.0
      %7122 = vmatprep.subr.mxu0 0.0
      %7123 = vmatpush1.msra.mxu0 0.0
      %7124 = vmatprep.subr.mxu0 0.0
      %7125 = vmatpush1.msra.mxu0 0.0
      %7126 = vmatprep.subr.mxu0 0.0
      %7127 = vmatpush1.msra.mxu0 0.0
      %7128 = vmatprep.subr.mxu0 0.0
      %7129 = vmatpush1.msra.mxu0 0.0
      %7130 = vmatprep.subr.mxu0 0.0
      %7131 = vmatpush1.msra.mxu0 0.0
      %7132 = vmatprep.subr.mxu0 0.0
      %7133 = vmatpush1.msra.mxu0 0.0
      %7134 = vmatprep.subr.mxu0 0.0
      %7135 = vmatpush1.msra.mxu0 0.0
      %7136 = vmatprep.subr.mxu0 0.0
      %7137 = vmatpush1.msra.mxu0 0.0
      %7138 = vmatprep.subr.mxu0 0.0
      %7139 = vmatpush1.msra.mxu0 0.0
      %7140 = vmatprep.subr.mxu0 0.0
      %7141 = vmatpush1.msra.mxu0 0.0
      %7142 = vmatprep.subr.mxu0 0.0
      %7143 = vmatpush1.msra.mxu0 0.0
      %7144 = vmatprep.subr.mxu0 0.0
      %7145 = vmatpush1.msra.mxu0 0.0
      %7146 = vmatprep.subr.mxu0 0.0
      %7147 = vmatpush1.msra.mxu0 0.0
      %7148 = vmatprep.subr.mxu0 0.0
      %7149 = vmatpush1.msra.mxu0 0.0
      %7150 = vmatprep.subr.mxu0 0.0
      %7151 = vmatpush1.msra.mxu0 0.0
      %7152 = vmatprep.subr.mxu0 0.0
      %7153 = vmatpush1.msra.mxu0 0.0
      %7154 = vmatprep.subr.mxu0 0.0
      %7155 = vmatpush1.msra.mxu0 0.0
      %7156 = vmatprep.subr.mxu0 0.0
      %7157 = vmatpush1.msra.mxu0 0.0
      %7158 = vmatprep.subr.mxu0 0.0
      %7159 = vmatpush1.msra.mxu0 0.0
      %7160 = vmatprep.subr.mxu0 0.0
      %7161 = vmatpush1.msra.mxu0 0.0
      %7162 = vmatprep.subr.mxu0 0.0
      %7163 = vmatpush1.msra.mxu0 0.0
      %7164 = vmatprep.subr.mxu0 0.0
      %7165 = vmatpush1.msra.mxu0 0.0
      %7166 = vmatprep.subr.mxu0 0.0
      %7167 = vmatpush1.msra.mxu0 0.0
      %7168 = vmatprep.subr.mxu0 0.0
      %7169 = vmatpush1.msra.mxu0 0.0
      %7170 = vmatprep.mubr.f32.mxu0 0.0
      %7171 = vmatmul.mubr.f32.gmra.mrb[0].mxu0 %v7086
      %v7172 = vpop.f32.mrb[0].mxu0
      %v7173 = vadd.f32 %v7082, %v7172
      %v7174 = vpop.f32.mrb[0].mxu0
      %7175 = vmatprep.mubr.f32.mxu0 0.0
      %7176 = vmatmul.mubr.f32.gmra.mrb[0].mxu0 %v7089
      %v7177 = vpop.f32.mrb[0].mxu0
      %v7178 = vadd.f32 %v7082, %v7177
      %v7179 = vpop.f32.mrb[0].mxu0
      %7180 = vmatprep.mubr.f32.mxu0 0.0
      %7181 = vmatmul.mubr.f32.gmra.mrb[0].mxu0 %v7092
      %v7182 = vpop.f32.mrb[0].mxu0
      %v7183 = vadd.f32 %v7082, %v7182
      %v7184 = vpop.f32.mrb[0].mxu0
      %7185 = vmatprep.mubr.f32.mxu0 0.0
      %7186 = vmatmul.mubr.f32.gmra.mrb[0].mxu0 %v7095
      %v7187 = vpop.f32.mrb[0].mxu0
      %v7188 = vadd.f32 %v7082, %v7187
      %v7189 = vpop.f32.mrb[0].mxu0
      %7190 = vmatprep.mubr.f32.mxu0 0.0
      %7191 = vmatmul.mubr.f32.gmra.mrb[0].mxu0 %v7098
      %v7192 = vpop.f32.mrb[0].mxu0
      %v7193 = vadd.f32 %v7082, %v7192
      %v7194 = vpop.f32.mrb[0].mxu0
      %7195 = vmatprep.mubr.f32.mxu0 0.0
      %7196 = vmatmul.mubr.f32.gmra.mrb[0].mxu0 %v7101
      %v7197 = vpop.f32.mrb[0].mxu0
      %v7198 = vadd.f32 %v7082, %v7197
      %v7199 = vpop.f32.mrb[0].mxu0
      %7200 = vmatprep.mubr.f32.mxu0 0.0
      %7201 = vmatmul.mubr.f32.gmra.mrb[0].mxu0 %v7104
      %v7202 = vpop.f32.mrb[0].mxu0
      %v7203 = vadd.f32 %v7082, %v7202
      %v7204 = vpop.f32.mrb[0].mxu0
      %7205 = vdwg.mxu0
      %v7206 = vadd.f32 %v468, %v7173
      %v7207 = vadd.f32 %v469, %v7178
      %v7208 = vadd.f32 %v470, %v7183
      %v7209 = vadd.f32 %v471, %v7188
      %v7210 = vadd.f32 %v472, %v7193
      %v7211 = vadd.f32 %v473, %v7198
      %v7212 = vadd.f32 %v474, %v7203
      %v7213 = vsel %vm7084, %v7206, 0.0
      %7214 = vadd.xlane.f32.xlu0 %v7213
      %v7215 = vpop.xlane.xlu0 %7214
      %v7216 = vsel %vm7084, %v7207, 0.0
      %7217 = vadd.xlane.f32.xlu0 %v7216
      %v7218 = vpop.xlane.xlu0 %7217
      %v7219 = vsel %vm7084, %v7208, 0.0
      %7220 = vadd.xlane.f32.xlu0 %v7219
      %v7221 = vpop.xlane.xlu0 %7220
      %v7222 = vsel %vm7084, %v7209, 0.0
      %7223 = vadd.xlane.f32.xlu0 %v7222
      %v7224 = vpop.xlane.xlu0 %7223
      %v7225 = vsel %vm7084, %v7210, 0.0
      %7226 = vadd.xlane.f32.xlu0 %v7225
      %v7227 = vpop.xlane.xlu0 %7226
      %v7228 = vsel %vm7084, %v7211, 0.0
      %7229 = vadd.xlane.f32.xlu0 %v7228
      %v7230 = vpop.xlane.xlu0 %7229
      %vm7231 = vcmask 253952
      %v7232 = vsel %vm7231, %v7212, 0.0
      %7233 = vadd.xlane.f32.xlu0 %v7232
      %v7234 = vpop.xlane.xlu0 %7233
      %v7235 = vrcp.pop 32.0
      %v7236 = vmul.f32 %v7215, %v7235
      %v7237 = vmul.f32 %v7218, %v7235
      %v7238 = vmul.f32 %v7221, %v7235
      %v7239 = vmul.f32 %v7224, %v7235
      %v7240 = vmul.f32 %v7227, %v7235
      %v7241 = vmul.f32 %v7230, %v7235
      %v7242 = vmul.f32 %v7234, %v7235
      %v7243 = vsub.f32 %v7206, %v7236
      %v7244 = vsub.f32 %v7207, %v7237
      %v7245 = vsub.f32 %v7208, %v7238
      %v7246 = vsub.f32 %v7209, %v7239
      %v7247 = vsub.f32 %v7210, %v7240
      %v7248 = vsub.f32 %v7211, %v7241
      %v7249 = vsub.f32 %v7212, %v7242
      %v7250 = vmul.f32 %v7243, %v7243
      %v7251 = vmul.f32 %v7244, %v7244
      %v7252 = vmul.f32 %v7245, %v7245
      %v7253 = vmul.f32 %v7246, %v7246
      %v7254 = vmul.f32 %v7247, %v7247
      %v7255 = vmul.f32 %v7248, %v7248
      %v7256 = vmul.f32 %v7249, %v7249
      %v7257 = vsel %vm7084, %v7250, 0.0
      %7258 = vadd.xlane.f32.xlu0 %v7257
      %v7259 = vpop.xlane.xlu0 %7258
      %v7260 = vsel %vm7084, %v7251, 0.0
      %7261 = vadd.xlane.f32.xlu0 %v7260
      %v7262 = vpop.xlane.xlu0 %7261
      %v7263 = vsel %vm7084, %v7252, 0.0
      %7264 = vadd.xlane.f32.xlu0 %v7263
      %v7265 = vpop.xlane.xlu0 %7264
      %v7266 = vsel %vm7084, %v7253, 0.0
      %7267 = vadd.xlane.f32.xlu0 %v7266
      %v7268 = vpop.xlane.xlu0 %7267
      %v7269 = vsel %vm7084, %v7254, 0.0
      %7270 = vadd.xlane.f32.xlu0 %v7269
      %v7271 = vpop.xlane.xlu0 %7270
      %v7272 = vsel %vm7084, %v7255, 0.0
      %7273 = vadd.xlane.f32.xlu0 %v7272
      %v7274 = vpop.xlane.xlu0 %7273
      %v7275 = vsel %vm7231, %v7256, 0.0
      %7276 = vadd.xlane.f32.xlu0 %v7275
      %v7277 = vpop.xlane.xlu0 %7276
      %v7278 = vmul.f32 %v7259, %v7235
      %v7279 = vmul.f32 %v7262, %v7235
      %v7280 = vmul.f32 %v7265, %v7235
      %v7281 = vmul.f32 %v7268, %v7235
      %v7282 = vmul.f32 %v7271, %v7235
      %v7283 = vmul.f32 %v7274, %v7235
      %v7284 = vmul.f32 %v7277, %v7235
      %v7285 = vadd.f32 %v7278, 1e-06
      %v7286 = vadd.f32 %v7279, 1e-06
      %v7287 = vadd.f32 %v7280, 1e-06
      %v7288 = vadd.f32 %v7281, 1e-06
      %v7289 = vadd.f32 %v7282, 1e-06
      %v7290 = vadd.f32 %v7283, 1e-06
      %v7291 = vadd.f32 %v7284, 1e-06
      %v7292 = vrsqrt.pop %v7285
      %v7293 = vrsqrt.pop %v7286
      %v7294 = vrsqrt.pop %v7287
      %v7295 = vrsqrt.pop %v7288
      %v7296 = vrsqrt.pop %v7289
      %v7297 = vrsqrt.pop %v7290
      %v7298 = vrsqrt.pop %v7291
      %v7299 = vmul.f32 %v7243, %v7292
      %v7300 = vmul.f32 %v7244, %v7293
      %v7301 = vmul.f32 %v7245, %v7294
      %v7302 = vmul.f32 %v7246, %v7295
      %v7303 = vmul.f32 %v7247, %v7296
      %v7304 = vmul.f32 %v7248, %v7297
      %v7305 = vmul.f32 %v7249, %v7298
      %v7306 = vlaneseq
      %v7307 = vshrl.u32 %v7306, 7
      %v7308 = vsub.s32 0, %v7307
      %v7309 = vrot.slane %v650, %v7308
      %v7310 = vmul.f32 %v7299, %v7309
      %v7311 = vmul.f32 %v7300, %v7309
      %v7312 = vmul.f32 %v7301, %v7309
      %v7313 = vmul.f32 %v7302, %v7309
      %v7314 = vmul.f32 %v7303, %v7309
      %v7315 = vmul.f32 %v7304, %v7309
      %v7316 = vmul.f32 %v7305, %v7309
      %v7317 = vlaneseq
      %v7318 = vshrl.u32 %v7317, 7
      %v7319 = vsub.s32 1, %v7318
      %v7320 = vrot.slane %v650, %v7319
      %v7321 = vadd.f32 %v7310, %v7320
      %v7322 = vadd.f32 %v7311, %v7320
      %v7323 = vadd.f32 %v7312, %v7320
      %v7324 = vadd.f32 %v7313, %v7320
      %v7325 = vadd.f32 %v7314, %v7320
      %v7326 = vadd.f32 %v7315, %v7320
      %v7327 = vadd.f32 %v7316, %v7320
      %v7328 = vld [vmem:[%s9] sm:$0xff]
      %v7329 = vld [vmem:[%s9 + $0x8] sm:$0xff]
      %v7330 = vld [vmem:[%s9 + $0x10] sm:$0xff]
      %v7331 = vld [vmem:[%s9 + $0x18] sm:$0xff]
      %v7332 = vld [vmem:[%s10] sm:$0x1]
      %v7334 = vlaneseq
      %v7335 = vshrl.u32 %v7334, 7
      %v7336 = vsub.s32 0, %v7335
      %v7337 = vrot.slane %v7332, %v7336
      %v7340 = vsel %vm7084, %v7321, 0
      %v7343 = vsel %vm7084, %v7322, 0
      %v7346 = vsel %vm7084, %v7323, 0
      %v7349 = vsel %vm7084, %v7324, 0
      %v7352 = vsel %vm7084, %v7325, 0
      %v7355 = vsel %vm7084, %v7326, 0
      %v7358 = vsel %vm7084, %v7327, 0
      %7360 = vmatprep.subr.mxu0 0.0
      %7361 = vmatpush1.msra.mxu0 %v7328
      %7362 = vmatprep.subr.mxu0 0.0
      %7363 = vmatpush1.msra.mxu0 %v7329
      %7364 = vmatprep.subr.mxu0 0.0
      %7365 = vmatpush1.msra.mxu0 %v7330
      %7366 = vmatprep.subr.mxu0 0.0
      %7367 = vmatpush1.msra.mxu0 %v7331
      %7368 = vmatprep.subr.mxu0 0.0
      %7369 = vmatpush1.msra.mxu0 0.0
      %7370 = vmatprep.subr.mxu0 0.0
      %7371 = vmatpush1.msra.mxu0 0.0
      %7372 = vmatprep.subr.mxu0 0.0
      %7373 = vmatpush1.msra.mxu0 0.0
      %7374 = vmatprep.subr.mxu0 0.0
      %7375 = vmatpush1.msra.mxu0 0.0
      %7376 = vmatprep.subr.mxu0 0.0
      %7377 = vmatpush1.msra.mxu0 0.0
      %7378 = vmatprep.subr.mxu0 0.0
      %7379 = vmatpush1.msra.mxu0 0.0
      %7380 = vmatprep.subr.mxu0 0.0
      %7381 = vmatpush1.msra.mxu0 0.0
      %7382 = vmatprep.subr.mxu0 0.0
      %7383 = vmatpush1.msra.mxu0 0.0
      %7384 = vmatprep.subr.mxu0 0.0
      %7385 = vmatpush1.msra.mxu0 0.0
      %7386 = vmatprep.subr.mxu0 0.0
      %7387 = vmatpush1.msra.mxu0 0.0
      %7388 = vmatprep.subr.mxu0 0.0
      %7389 = vmatpush1.msra.mxu0 0.0
      %7390 = vmatprep.subr.mxu0 0.0
      %7391 = vmatpush1.msra.mxu0 0.0
      %7392 = vmatprep.subr.mxu0 0.0
      %7393 = vmatpush1.msra.mxu0 0.0
      %7394 = vmatprep.subr.mxu0 0.0
      %7395 = vmatpush1.msra.mxu0 0.0
      %7396 = vmatprep.subr.mxu0 0.0
      %7397 = vmatpush1.msra.mxu0 0.0
      %7398 = vmatprep.subr.mxu0 0.0
      %7399 = vmatpush1.msra.mxu0 0.0
      %7400 = vmatprep.subr.mxu0 0.0
      %7401 = vmatpush1.msra.mxu0 0.0
      %7402 = vmatprep.subr.mxu0 0.0
      %7403 = vmatpush1.msra.mxu0 0.0
      %7404 = vmatprep.subr.mxu0 0.0
      %7405 = vmatpush1.msra.mxu0 0.0
      %7406 = vmatprep.subr.mxu0 0.0
      %7407 = vmatpush1.msra.mxu0 0.0
      %7408 = vmatprep.subr.mxu0 0.0
      %7409 = vmatpush1.msra.mxu0 0.0
      %7410 = vmatprep.subr.mxu0 0.0
      %7411 = vmatpush1.msra.mxu0 0.0
      %7412 = vmatprep.subr.mxu0 0.0
      %7413 = vmatpush1.msra.mxu0 0.0
      %7414 = vmatprep.subr.mxu0 0.0
      %7415 = vmatpush1.msra.mxu0 0.0
      %7416 = vmatprep.subr.mxu0 0.0
      %7417 = vmatpush1.msra.mxu0 0.0
      %7418 = vmatprep.subr.mxu0 0.0
      %7419 = vmatpush1.msra.mxu0 0.0
      %7420 = vmatprep.subr.mxu0 0.0
      %7421 = vmatpush1.msra.mxu0 0.0
      %7422 = vmatprep.subr.mxu0 0.0
      %7423 = vmatpush1.msra.mxu0 0.0
      %7424 = vmatprep.mubr.f32.mxu0 0.0
      %7425 = vmatmul.mubr.f32.gmra.mrb[0].mxu0 %v7340
      %v7426 = vpop.f32.mrb[0].mxu0
      %v7427 = vadd.f32 %v7337, %v7426
      %v7428 = vpop.f32.mrb[0].mxu0
      %7429 = vmatprep.mubr.f32.mxu0 0.0
      %7430 = vmatmul.mubr.f32.gmra.mrb[0].mxu0 %v7343
      %v7431 = vpop.f32.mrb[0].mxu0
      %v7432 = vadd.f32 %v7337, %v7431
      %v7433 = vpop.f32.mrb[0].mxu0
      %7434 = vmatprep.mubr.f32.mxu0 0.0
      %7435 = vmatmul.mubr.f32.gmra.mrb[0].mxu0 %v7346
      %v7436 = vpop.f32.mrb[0].mxu0
      %v7437 = vadd.f32 %v7337, %v7436
      %v7438 = vpop.f32.mrb[0].mxu0
      %7439 = vmatprep.mubr.f32.mxu0 0.0
      %7440 = vmatmul.mubr.f32.gmra.mrb[0].mxu0 %v7349
      %v7441 = vpop.f32.mrb[0].mxu0
      %v7442 = vadd.f32 %v7337, %v7441
      %v7443 = vpop.f32.mrb[0].mxu0
      %7444 = vmatprep.mubr.f32.mxu0 0.0
      %7445 = vmatmul.mubr.f32.gmra.mrb[0].mxu0 %v7352
      %v7446 = vpop.f32.mrb[0].mxu0
      %v7447 = vadd.f32 %v7337, %v7446
      %v7448 = vpop.f32.mrb[0].mxu0
      %7449 = vmatprep.mubr.f32.mxu0 0.0
      %7450 = vmatmul.mubr.f32.gmra.mrb[0].mxu0 %v7355
      %v7451 = vpop.f32.mrb[0].mxu0
      %v7452 = vadd.f32 %v7337, %v7451
      %v7453 = vpop.f32.mrb[0].mxu0
      %7454 = vmatprep.mubr.f32.mxu0 0.0
      %7455 = vmatmul.mubr.f32.gmra.mrb[0].mxu0 %v7358
      %v7456 = vpop.f32.mrb[0].mxu0
      %v7457 = vadd.f32 %v7337, %v7456
      %v7458 = vpop.f32.mrb[0].mxu0
      %7459 = vdwg.mxu0
      %v7460 = vmul.f32 %v7427, %v7427
      %v7461 = vmul.f32 %v7432, %v7432
      %v7462 = vmul.f32 %v7437, %v7437
      %v7463 = vmul.f32 %v7442, %v7442
      %v7464 = vmul.f32 %v7447, %v7447
      %v7465 = vmul.f32 %v7452, %v7452
      %v7466 = vmul.f32 %v7457, %v7457
      %v7467 = vmul.f32 %v7427, %v7460
      %v7468 = vmul.f32 %v7432, %v7461
      %v7469 = vmul.f32 %v7437, %v7462
      %v7470 = vmul.f32 %v7442, %v7463
      %v7471 = vmul.f32 %v7447, %v7464
      %v7472 = vmul.f32 %v7452, %v7465
      %v7473 = vmul.f32 %v7457, %v7466
      %v7474 = vmul.f32 %v7467, 0.044715
      %v7475 = vmul.f32 %v7468, 0.044715
      %v7476 = vmul.f32 %v7469, 0.044715
      %v7477 = vmul.f32 %v7470, 0.044715
      %v7478 = vmul.f32 %v7471, 0.044715
      %v7479 = vmul.f32 %v7472, 0.044715
      %v7480 = vmul.f32 %v7473, 0.044715
      %v7481 = vadd.f32 %v7427, %v7474
      %v7482 = vadd.f32 %v7432, %v7475
      %v7483 = vadd.f32 %v7437, %v7476
      %v7484 = vadd.f32 %v7442, %v7477
      %v7485 = vadd.f32 %v7447, %v7478
      %v7486 = vadd.f32 %v7452, %v7479
      %v7487 = vadd.f32 %v7457, %v7480
      %v7488 = vmul.f32 %v7481, 0.7978846
      %v7489 = vmul.f32 %v7482, 0.7978846
      %v7490 = vmul.f32 %v7483, 0.7978846
      %v7491 = vmul.f32 %v7484, 0.7978846
      %v7492 = vmul.f32 %v7485, 0.7978846
      %v7493 = vmul.f32 %v7486, 0.7978846
      %v7494 = vmul.f32 %v7487, 0.7978846
      %v7495 = vtanh.pop %v7488
      %v7496 = vtanh.pop %v7489
      %v7497 = vtanh.pop %v7490
      %v7498 = vtanh.pop %v7491
      %v7499 = vtanh.pop %v7492
      %v7500 = vtanh.pop %v7493
      %v7501 = vtanh.pop %v7494
      %v7502 = vadd.f32 %v7495, 1.0
      %v7503 = vadd.f32 %v7496, 1.0
      %v7504 = vadd.f32 %v7497, 1.0
      %v7505 = vadd.f32 %v7498, 1.0
      %v7506 = vadd.f32 %v7499, 1.0
      %v7507 = vadd.f32 %v7500, 1.0
      %v7508 = vadd.f32 %v7501, 1.0
      %v7509 = vmul.f32 %v7502, 0.5
      %v7510 = vmul.f32 %v7503, 0.5
      %v7511 = vmul.f32 %v7504, 0.5
      %v7512 = vmul.f32 %v7505, 0.5
      %v7513 = vmul.f32 %v7506, 0.5
      %v7514 = vmul.f32 %v7507, 0.5
      %v7515 = vmul.f32 %v7508, 0.5
      %v7516 = vmul.f32 %v7427, %v7509
      %v7517 = vmul.f32 %v7432, %v7510
      %v7518 = vmul.f32 %v7437, %v7511
      %v7519 = vmul.f32 %v7442, %v7512
      %v7520 = vmul.f32 %v7447, %v7513
      %v7521 = vmul.f32 %v7452, %v7514
      %v7522 = vmul.f32 %v7457, %v7515
      %v7523 = vld [vmem:[%s11] sm:$0xff]
      %v7524 = vld [vmem:[%s11 + $0x8] sm:$0xff]
      %v7525 = vld [vmem:[%s11 + $0x10] sm:$0xff]
      %v7526 = vld [vmem:[%s11 + $0x18] sm:$0xff]
      %v7527 = vld [vmem:[%s11 + $0x20] sm:$0xff]
      %v7528 = vld [vmem:[%s11 + $0x28] sm:$0xff]
      %v7529 = vld [vmem:[%s11 + $0x30] sm:$0xff]
      %v7530 = vld [vmem:[%s11 + $0x38] sm:$0xff]
      %v7531 = vld [vmem:[%s11 + $0x40] sm:$0xff]
      %v7532 = vld [vmem:[%s11 + $0x48] sm:$0xff]
      %v7533 = vld [vmem:[%s11 + $0x50] sm:$0xff]
      %v7534 = vld [vmem:[%s11 + $0x58] sm:$0xff]
      %v7535 = vld [vmem:[%s11 + $0x60] sm:$0xff]
      %v7536 = vld [vmem:[%s11 + $0x68] sm:$0xff]
      %v7537 = vld [vmem:[%s11 + $0x70] sm:$0xff]
      %v7538 = vld [vmem:[%s11 + $0x78] sm:$0xff]
      %v7539 = vld [vmem:[%s12] sm:$0x1]
      %v7541 = vlaneseq
      %v7542 = vshrl.u32 %v7541, 7
      %v7543 = vsub.s32 0, %v7542
      %v7544 = vrot.slane %v7539, %v7543
      %7546 = vmatprep.subr.mxu0 0.0
      %7547 = vmatpush1.msra.mxu0 %v7523
      %7548 = vmatprep.subr.mxu0 0.0
      %7549 = vmatpush1.msra.mxu0 %v7524
      %7550 = vmatprep.subr.mxu0 0.0
      %7551 = vmatpush1.msra.mxu0 %v7525
      %7552 = vmatprep.subr.mxu0 0.0
      %7553 = vmatpush1.msra.mxu0 %v7526
      %7554 = vmatprep.subr.mxu0 0.0
      %7555 = vmatpush1.msra.mxu0 %v7527
      %7556 = vmatprep.subr.mxu0 0.0
      %7557 = vmatpush1.msra.mxu0 %v7528
      %7558 = vmatprep.subr.mxu0 0.0
      %7559 = vmatpush1.msra.mxu0 %v7529
      %7560 = vmatprep.subr.mxu0 0.0
      %7561 = vmatpush1.msra.mxu0 %v7530
      %7562 = vmatprep.subr.mxu0 0.0
      %7563 = vmatpush1.msra.mxu0 %v7531
      %7564 = vmatprep.subr.mxu0 0.0
      %7565 = vmatpush1.msra.mxu0 %v7532
      %7566 = vmatprep.subr.mxu0 0.0
      %7567 = vmatpush1.msra.mxu0 %v7533
      %7568 = vmatprep.subr.mxu0 0.0
      %7569 = vmatpush1.msra.mxu0 %v7534
      %7570 = vmatprep.subr.mxu0 0.0
      %7571 = vmatpush1.msra.mxu0 %v7535
      %7572 = vmatprep.subr.mxu0 0.0
      %7573 = vmatpush1.msra.mxu0 %v7536
      %7574 = vmatprep.subr.mxu0 0.0
      %7575 = vmatpush1.msra.mxu0 %v7537
      %7576 = vmatprep.subr.mxu0 0.0
      %7577 = vmatpush1.msra.mxu0 %v7538
      %7578 = vmatprep.subr.mxu0 0.0
      %7579 = vmatpush1.msra.mxu0 0.0
      %7580 = vmatprep.subr.mxu0 0.0
      %7581 = vmatpush1.msra.mxu0 0.0
      %7582 = vmatprep.subr.mxu0 0.0
      %7583 = vmatpush1.msra.mxu0 0.0
      %7584 = vmatprep.subr.mxu0 0.0
      %7585 = vmatpush1.msra.mxu0 0.0
      %7586 = vmatprep.subr.mxu0 0.0
      %7587 = vmatpush1.msra.mxu0 0.0
      %7588 = vmatprep.subr.mxu0 0.0
      %7589 = vmatpush1.msra.mxu0 0.0
      %7590 = vmatprep.subr.mxu0 0.0
      %7591 = vmatpush1.msra.mxu0 0.0
      %7592 = vmatprep.subr.mxu0 0.0
      %7593 = vmatpush1.msra.mxu0 0.0
      %7594 = vmatprep.subr.mxu0 0.0
      %7595 = vmatpush1.msra.mxu0 0.0
      %7596 = vmatprep.subr.mxu0 0.0
      %7597 = vmatpush1.msra.mxu0 0.0
      %7598 = vmatprep.subr.mxu0 0.0
      %7599 = vmatpush1.msra.mxu0 0.0
      %7600 = vmatprep.subr.mxu0 0.0
      %7601 = vmatpush1.msra.mxu0 0.0
      %7602 = vmatprep.subr.mxu0 0.0
      %7603 = vmatpush1.msra.mxu0 0.0
      %7604 = vmatprep.subr.mxu0 0.0
      %7605 = vmatpush1.msra.mxu0 0.0
      %7606 = vmatprep.subr.mxu0 0.0
      %7607 = vmatpush1.msra.mxu0 0.0
      %7608 = vmatprep.subr.mxu0 0.0
      %7609 = vmatpush1.msra.mxu0 0.0
      %7610 = vmatprep.mubr.f32.mxu0 0.0
      %7611 = vmatmul.mubr.f32.gmra.mrb[0].mxu0 %v7516
      %v7612 = vpop.f32.mrb[0].mxu0
      %v7613 = vadd.f32 %v7544, %v7612
      %v7614 = vpop.f32.mrb[0].mxu0
      %7615 = vmatprep.mubr.f32.mxu0 0.0
      %7616 = vmatmul.mubr.f32.gmra.mrb[0].mxu0 %v7517
      %v7617 = vpop.f32.mrb[0].mxu0
      %v7618 = vadd.f32 %v7544, %v7617
      %v7619 = vpop.f32.mrb[0].mxu0
      %7620 = vmatprep.mubr.f32.mxu0 0.0
      %7621 = vmatmul.mubr.f32.gmra.mrb[0].mxu0 %v7518
      %v7622 = vpop.f32.mrb[0].mxu0
      %v7623 = vadd.f32 %v7544, %v7622
      %v7624 = vpop.f32.mrb[0].mxu0
      %7625 = vmatprep.mubr.f32.mxu0 0.0
      %7626 = vmatmul.mubr.f32.gmra.mrb[0].mxu0 %v7519
      %v7627 = vpop.f32.mrb[0].mxu0
      %v7628 = vadd.f32 %v7544, %v7627
      %v7629 = vpop.f32.mrb[0].mxu0
      %7630 = vmatprep.mubr.f32.mxu0 0.0
      %7631 = vmatmul.mubr.f32.gmra.mrb[0].mxu0 %v7520
      %v7632 = vpop.f32.mrb[0].mxu0
      %v7633 = vadd.f32 %v7544, %v7632
      %v7634 = vpop.f32.mrb[0].mxu0
      %7635 = vmatprep.mubr.f32.mxu0 0.0
      %7636 = vmatmul.mubr.f32.gmra.mrb[0].mxu0 %v7521
      %v7637 = vpop.f32.mrb[0].mxu0
      %v7638 = vadd.f32 %v7544, %v7637
      %v7639 = vpop.f32.mrb[0].mxu0
      %7640 = vmatprep.mubr.f32.mxu0 0.0
      %7641 = vmatmul.mubr.f32.gmra.mrb[0].mxu0 %v7522
      %v7642 = vpop.f32.mrb[0].mxu0
      %v7643 = vadd.f32 %v7544, %v7642
      %v7644 = vpop.f32.mrb[0].mxu0
      %7645 = vdwg.mxu0
      %v7646 = vadd.f32 %v7321, %v7613
      %v7647 = vadd.f32 %v7322, %v7618
      %v7648 = vadd.f32 %v7323, %v7623
      %v7649 = vadd.f32 %v7324, %v7628
      %v7650 = vadd.f32 %v7325, %v7633
      %v7651 = vadd.f32 %v7326, %v7638
      %v7652 = vadd.f32 %v7327, %v7643
      %v7653 = vsel %vm7084, %v7646, 0.0
      %7654 = vadd.xlane.f32.xlu0 %v7653
      %v7655 = vpop.xlane.xlu0 %7654
      %v7656 = vsel %vm7084, %v7647, 0.0
      %7657 = vadd.xlane.f32.xlu0 %v7656
      %v7658 = vpop.xlane.xlu0 %7657
      %v7659 = vsel %vm7084, %v7648, 0.0
      %7660 = vadd.xlane.f32.xlu0 %v7659
      %v7661 = vpop.xlane.xlu0 %7660
      %v7662 = vsel %vm7084, %v7649, 0.0
      %7663 = vadd.xlane.f32.xlu0 %v7662
      %v7664 = vpop.xlane.xlu0 %7663
      %v7665 = vsel %vm7084, %v7650, 0.0
      %7666 = vadd.xlane.f32.xlu0 %v7665
      %v7667 = vpop.xlane.xlu0 %7666
      %v7668 = vsel %vm7084, %v7651, 0.0
      %7669 = vadd.xlane.f32.xlu0 %v7668
      %v7670 = vpop.xlane.xlu0 %7669
      %v7671 = vsel %vm7231, %v7652, 0.0
      %7672 = vadd.xlane.f32.xlu0 %v7671
      %v7673 = vpop.xlane.xlu0 %7672
      %v7674 = vmul.f32 %v7655, %v7235
      %v7675 = vmul.f32 %v7658, %v7235
      %v7676 = vmul.f32 %v7661, %v7235
      %v7677 = vmul.f32 %v7664, %v7235
      %v7678 = vmul.f32 %v7667, %v7235
      %v7679 = vmul.f32 %v7670, %v7235
      %v7680 = vmul.f32 %v7673, %v7235
      %v7681 = vsub.f32 %v7646, %v7674
      %v7682 = vsub.f32 %v7647, %v7675
      %v7683 = vsub.f32 %v7648, %v7676
      %v7684 = vsub.f32 %v7649, %v7677
      %v7685 = vsub.f32 %v7650, %v7678
      %v7686 = vsub.f32 %v7651, %v7679
      %v7687 = vsub.f32 %v7652, %v7680
      %v7688 = vmul.f32 %v7681, %v7681
      %v7689 = vmul.f32 %v7682, %v7682
      %v7690 = vmul.f32 %v7683, %v7683
      %v7691 = vmul.f32 %v7684, %v7684
      %v7692 = vmul.f32 %v7685, %v7685
      %v7693 = vmul.f32 %v7686, %v7686
      %v7694 = vmul.f32 %v7687, %v7687
      %v7695 = vsel %vm7084, %v7688, 0.0
      %7696 = vadd.xlane.f32.xlu0 %v7695
      %v7697 = vpop.xlane.xlu0 %7696
      %v7698 = vsel %vm7084, %v7689, 0.0
      %7699 = vadd.xlane.f32.xlu0 %v7698
      %v7700 = vpop.xlane.xlu0 %7699
      %v7701 = vsel %vm7084, %v7690, 0.0
      %7702 = vadd.xlane.f32.xlu0 %v7701
      %v7703 = vpop.xlane.xlu0 %7702
      %v7704 = vsel %vm7084, %v7691, 0.0
      %7705 = vadd.xlane.f32.xlu0 %v7704
      %v7706 = vpop.xlane.xlu0 %7705
      %v7707 = vsel %vm7084, %v7692, 0.0
      %7708 = vadd.xlane.f32.xlu0 %v7707
      %v7709 = vpop.xlane.xlu0 %7708
      %v7710 = vsel %vm7084, %v7693, 0.0
      %7711 = vadd.xlane.f32.xlu0 %v7710
      %v7712 = vpop.xlane.xlu0 %7711
      %v7713 = vsel %vm7231, %v7694, 0.0
      %7714 = vadd.xlane.f32.xlu0 %v7713
      %v7715 = vpop.xlane.xlu0 %7714
      %v7716 = vmul.f32 %v7697, %v7235
      %v7717 = vmul.f32 %v7700, %v7235
      %v7718 = vmul.f32 %v7703, %v7235
      %v7719 = vmul.f32 %v7706, %v7235
      %v7720 = vmul.f32 %v7709, %v7235
      %v7721 = vmul.f32 %v7712, %v7235
      %v7722 = vmul.f32 %v7715, %v7235
      %v7723 = vadd.f32 %v7716, 1e-06
      %v7724 = vadd.f32 %v7717, 1e-06
      %v7725 = vadd.f32 %v7718, 1e-06
      %v7726 = vadd.f32 %v7719, 1e-06
      %v7727 = vadd.f32 %v7720, 1e-06
      %v7728 = vadd.f32 %v7721, 1e-06
      %v7729 = vadd.f32 %v7722, 1e-06
      %v7730 = vrsqrt.pop %v7723
      %v7731 = vrsqrt.pop %v7724
      %v7732 = vrsqrt.pop %v7725
      %v7733 = vrsqrt.pop %v7726
      %v7734 = vrsqrt.pop %v7727
      %v7735 = vrsqrt.pop %v7728
      %v7736 = vrsqrt.pop %v7729
      %v7737 = vmul.f32 %v7681, %v7730
      %v7738 = vmul.f32 %v7682, %v7731
      %v7739 = vmul.f32 %v7683, %v7732
      %v7740 = vmul.f32 %v7684, %v7733
      %v7741 = vmul.f32 %v7685, %v7734
      %v7742 = vmul.f32 %v7686, %v7735
      %v7743 = vmul.f32 %v7687, %v7736
      %v7744 = vlaneseq
      %v7745 = vshrl.u32 %v7744, 7
      %v7746 = vsub.s32 2, %v7745
      %v7747 = vrot.slane %v650, %v7746
      %v7748 = vmul.f32 %v7737, %v7747
      %v7749 = vmul.f32 %v7738, %v7747
      %v7750 = vmul.f32 %v7739, %v7747
      %v7751 = vmul.f32 %v7740, %v7747
      %v7752 = vmul.f32 %v7741, %v7747
      %v7753 = vmul.f32 %v7742, %v7747
      %v7754 = vmul.f32 %v7743, %v7747
      %v7755 = vlaneseq
      %v7756 = vshrl.u32 %v7755, 7
      %v7757 = vsub.s32 3, %v7756
      %v7758 = vrot.slane %v650, %v7757
      %v7759 = vadd.f32 %v7748, %v7758
      %v7760 = vadd.f32 %v7749, %v7758
      %v7761 = vadd.f32 %v7750, %v7758
      %v7762 = vadd.f32 %v7751, %v7758
      %v7763 = vadd.f32 %v7752, %v7758
      %v7764 = vadd.f32 %v7753, %v7758
      %v7765 = vadd.f32 %v7754, %v7758
      %7766 = vst.msk [vmem:[%s467] sm:$0xff] %vm7084, %v7759
      %7767 = vst.msk [vmem:[%s467 + $0x8] sm:$0xff] %vm7084, %v7760
      %7768 = vst.msk [vmem:[%s467 + $0x10] sm:$0xff] %vm7084, %v7761
      %7769 = vst.msk [vmem:[%s467 + $0x18] sm:$0xff] %vm7084, %v7762
      %7770 = vst.msk [vmem:[%s467 + $0x20] sm:$0xff] %vm7084, %v7763
      %7771 = vst.msk [vmem:[%s467 + $0x28] sm:$0xff] %vm7084, %v7764
      %7772 = vst.msk [vmem:[%s467 + $0x30] sm:$0x1] %vm7231, %v7765
      %p7773 = scmp.lt.s32.totalorder %s25, 7
      %s7774 = scalar_select %p7773, %s25, 7
      %s7775 = smul.addr %s7774, 7
      %s7776 = smul.addr %s7775, 8
      %s7777 = scalar_lea.vmem %s14, %s7776
      // Predicated region
      $region77: #{transformer_encoder_layer.1} parent=75 // pred_check
        %p7778 = pneg %p342
      $region78: #{transformer_encoder_layer.1} parent=75 // pred_check_branch
        %7780 = sbr.rel (%p7778) target = $region80
      $region79: #{transformer_encoder_layer.1} parent=75 // pred_region
        _
      $region80: #{transformer_encoder_layer.1} parent=75 // pred_fallthru
        _
    $region76: #{transformer_encoder_layer.1} parent=5 // pred_fallthru
      _
    %p7781 = scmp.le.s32.totalorder 2, %s20
    // Predicated region
    $region81: #{transformer_encoder_layer.1} parent=5 // pred_check
      %p7782 = pneg %p7781
    $region82: #{transformer_encoder_layer.1} parent=5 // pred_check_branch
      %7784 = sbr.rel (%p7782) target = $region84
    $region83: #{transformer_encoder_layer.1} parent=5 // pred_region
      %s7785 = ssub.s32 %s20, 2
      // Predicated region
      $region85: #{transformer_encoder_layer.1} parent=83 // pred_check
        %p7786 = pneg %p348
      $region86: #{transformer_encoder_layer.1} parent=83 // pred_check_branch
        %7788 = sbr.rel (%p7786) target = $region88
      $region87: #{transformer_encoder_layer.1} parent=83 // pred_region
        %p7789 = scmp.lt.s32.totalorder %s26, 7
        %s7790 = scalar_select %p7789, %s26, 7
        %s7791 = smul.addr %s7790, 7
        %s7792 = smul.addr %s7791, 8
        %s7793 = scalar_lea.vmem %s14, %s7792
      $region88: #{transformer_encoder_layer.1} parent=83 // pred_fallthru
        _
    $region84: #{transformer_encoder_layer.1} parent=5 // pred_fallthru
      _
  $region6: #{transformer_encoder_layer.1} parent=0 // loop_footer
    %s24 = sadd.s32 1, %s20
  $region7: #{transformer_encoder_layer.1} parent=0 // loop_footer_branch
    %19 = sbr.rel target = $region3
  $region8: #{transformer_encoder_layer.1} parent=0 // loop_exit
    _

</llo_original>
